<compile_context>
chip_gen: v7x
topology: tpu7x:2x2x1
jax: 0.10.0
libtpu: 0.0.40
codegen_flags: <defaults>
</compile_context>

<pallas_src>
import functools

import jax
import jax.numpy as jnp
from jax import lax
from jax.experimental import pallas as pl
from jax.experimental.pallas import tpu as pltpu

BN_EPS = 1e-5
CP = 128                      # padded (lane-dense) channel width
_SQRT1_2 = 0.7071067811865476


# ------------------------------ in-kernel math ------------------------------ #
def _erf(x):
    # Abramowitz & Stegun 7.1.26 polynomial (|err| < 1.5e-7).
    p = 0.3275911
    a1, a2, a3, a4, a5 = (0.254829592, -0.284496736, 1.421413741,
                          -1.453152027, 1.061405429)
    ax = jnp.abs(x)
    t = pl.reciprocal(1.0 + p * ax, approx=True)      # EUP, frees VALU slots
    poly = t * (a1 + t * (a2 + t * (a3 + t * (a4 + t * a5))))
    e = 1.0 - poly * jnp.exp(-ax * ax)
    return jnp.where(x >= 0.0, e, -e)


def _gelu(x):
    # torch.nn.GELU(approximate='none'): 0.5 * x * (1 + erf(x / sqrt(2)))
    return 0.5 * x * (1.0 + _erf(x * _SQRT1_2))


def _conv9(a_bf16, w_ref, b_ref, th, w2, cp):
    """3x3 'same' conv over a (th+2, w2+2, cp) halo slab = 9 shifted matmuls."""
    acc = jnp.zeros((th * w2, cp), jnp.float32)
    for di in range(3):
        for dj in range(3):
            xi = a_bf16[di:di + th, dj:dj + w2, :].reshape(th * w2, cp)
            acc = acc + jnp.dot(xi, w_ref[di, dj],
                                preferred_element_type=jnp.float32)
    return acc + b_ref[...]                            # (th*w2, cp) + (1, cp)


def _store_conv_out(y, y_ref, st_ref, th, w2, cp):
    y_ref[...] = y.reshape(th, w2, cp)
    s1 = jnp.sum(y, axis=0, keepdims=True)             # (1, cp)
    s2 = jnp.sum(y * y, axis=0, keepdims=True)
    st_ref[...] = jnp.concatenate([s1, s2], axis=0)    # (2, cp) BN partials


# --------------------------------- kernels ---------------------------------- #
def _convt_kernel(x_ref, w_ref, b_ref, o_ref):
    """ConvTranspose2d(k=2, s=2) == one matmul: (TM, CP) @ (CP, 4*CP) + bias."""
    x = x_ref[...].astype(jnp.bfloat16)
    y = jnp.dot(x, w_ref[...], preferred_element_type=jnp.float32)
    o_ref[...] = y + b_ref[...]


def _conv_plain_kernel(s_ref, w_ref, b_ref, y_ref, st_ref, *, th, w2, cp):
    """Conv3x3 + bias on an untransformed slab; emits per-tile BN partials."""
    a = s_ref[...].astype(jnp.bfloat16)
    y = _conv9(a, w_ref, b_ref, th, w2, cp)
    _store_conv_out(y, y_ref, st_ref, th, w2, cp)


def _conv_fused_kernel(s_ref, ss_ref, w_ref, b_ref, y_ref, st_ref, *, th, w2, cp):
    """(BatchNorm + GELU) of the previous conv's raw output, fused with Conv3x3.

    The slab ring was filled (wrapper side) with -shift/scale, so the affine+GELU
    maps it to ~0, reproducing the conv's zero padding on the transformed input.
    """
    a = s_ref[...]                                     # (th+2, w2+2, cp) f32
    scale = ss_ref[0:1, :].reshape(1, 1, cp)
    shift = ss_ref[1:2, :].reshape(1, 1, cp)
    a = _gelu(a * scale + shift)
    y = _conv9(a.astype(jnp.bfloat16), w_ref, b_ref, th, w2, cp)
    _store_conv_out(y, y_ref, st_ref, th, w2, cp)


def _bn_gelu_kernel(y_ref, ss_ref, o_ref, *, cp):
    """Final BatchNorm + GELU (module output)."""
    scale = ss_ref[0:1, :].reshape(1, 1, cp)
    shift = ss_ref[1:2, :].reshape(1, 1, cp)
    o_ref[...] = _gelu(y_ref[...] * scale + shift)


# ---------------------------- pallas_call wrappers --------------------------- #
def _convt_matmul(x_flat, wmat, bias4, tm):
    m, cp = x_flat.shape
    n4 = wmat.shape[1]
    return pl.pallas_call(
        _convt_kernel,
        out_shape=jax.ShapeDtypeStruct((m, n4), jnp.float32),
        grid=(m // tm,),
        in_specs=[
            pl.BlockSpec((tm, cp), lambda i: (i, 0)),
            pl.BlockSpec((cp, n4), lambda i: (0, 0)),
            pl.BlockSpec((1, n4), lambda i: (0, 0)),
        ],
        out_specs=pl.BlockSpec((tm, n4), lambda i: (i, 0)),
        compiler_params=pltpu.CompilerParams(dimension_semantics=("parallel",)),
        cost_estimate=pl.CostEstimate(
            flops=2 * m * cp * n4, transcendentals=0,
            bytes_accessed=m * cp * 4 + cp * n4 * 2 + m * n4 * 4),
    )(x_flat, wmat, bias4)


def _conv_stage(slabs, wk, bias, scale_shift, *, th):
    """One Conv3x3 stage (optionally fused with BN+GELU of its input).

    slabs: (N, n_tiles, th+2, W2+2, CP) halo slabs of the stage input
           (bf16 for the plain first stage, f32 for fused stages).
    Returns the raw (pre-BN) conv output (N, H2, W2, CP) f32 and per-tile
    BatchNorm partials (N, n_tiles, 2, CP) [sum, sumsq].
    """
    n, n_tiles, thp, w2p, cp = slabs.shape
    w2 = w2p - 2
    h2 = n_tiles * th
    fused = scale_shift is not None

    if fused:
        kern = functools.partial(_conv_fused_kernel, th=th, w2=w2, cp=cp)
    else:
        kern = functools.partial(_conv_plain_kernel, th=th, w2=w2, cp=cp)

    in_specs = [pl.BlockSpec((None, None, thp, w2p, cp),
                             lambda i, t: (i, t, 0, 0, 0))]
    args = [slabs]
    if fused:
        in_specs.append(pl.BlockSpec((2, cp), lambda i, t: (0, 0)))
        args.append(scale_shift)
    in_specs += [
        pl.BlockSpec((3, 3, cp, cp), lambda i, t: (0, 0, 0, 0)),
        pl.BlockSpec((1, cp), lambda i, t: (0, 0)),
    ]
    args += [wk, bias]

    m_rows = n * h2 * w2
    slab_bytes = slabs.size * slabs.dtype.itemsize
    y, st = pl.pallas_call(
        kern,
        out_shape=(
            jax.ShapeDtypeStruct((n, h2, w2, cp), jnp.float32),
            jax.ShapeDtypeStruct((n, n_tiles, 2, cp), jnp.float32),
        ),
        grid=(n, n_tiles),
        in_specs=in_specs,
        out_specs=(
            pl.BlockSpec((None, th, w2, cp), lambda i, t: (i, t, 0, 0)),
            pl.BlockSpec((None, None, 2, cp), lambda i, t: (i, t, 0, 0)),
        ),
        compiler_params=pltpu.CompilerParams(
            dimension_semantics=("parallel", "parallel")),
        cost_estimate=pl.CostEstimate(
            flops=2 * m_rows * 9 * cp * cp,
            transcendentals=(slabs.size if fused else 0),
            bytes_accessed=(slab_bytes + wk.size * 2
                            + m_rows * cp * 4 + n * n_tiles * 2 * cp * 4)),
    )(*args)
    return y, st


def _bn_gelu_apply(y, scale_shift, *, th):
    n, h2, w2, cp = y.shape
    n_tiles = h2 // th
    return pl.pallas_call(
        functools.partial(_bn_gelu_kernel, cp=cp),
        out_shape=jax.ShapeDtypeStruct((n, h2, w2, cp), jnp.float32),
        grid=(n, n_tiles),
        in_specs=[
            pl.BlockSpec((None, th, w2, cp), lambda i, t: (i, t, 0, 0)),
            pl.BlockSpec((2, cp), lambda i, t: (0, 0)),
        ],
        out_specs=pl.BlockSpec((None, th, w2, cp), lambda i, t: (i, t, 0, 0)),
        compiler_params=pltpu.CompilerParams(
            dimension_semantics=("parallel", "parallel")),
        cost_estimate=pl.CostEstimate(
            flops=10 * y.size, transcendentals=y.size,
            bytes_accessed=2 * y.size * 4),
    )(y, scale_shift)


# --------------------------------- JAX glue ---------------------------------- #
def _to_slabs(y, th, ring=None, dtype=jnp.float32):
    """(N, H2, W2, CP) -> halo slabs (N, H2//th, th+2, W2+2, CP).

    ring: optional per-channel border value; for fused stages it is -shift/scale
    so the in-kernel BN+GELU maps the border to ~0 (Conv2d zero-padding).
    """
    n, h2, w2, cp = y.shape
    ypad = jnp.pad(y, ((0, 0), (1, 1), (1, 1), (0, 0)))
    if ring is not None:
        rmask = jnp.pad(jnp.zeros_like(y), ((0, 0), (1, 1), (1, 1), (0, 0)),
                        constant_values=1.0)
        ypad = ypad + rmask * ring
    n_tiles = h2 // th
    slabs = jnp.stack(
        [ypad[:, t * th: t * th + th + 2] for t in range(n_tiles)], axis=1)
    return slabs.astype(dtype)


def _bn_fold(stats, gamma, beta, count):
    """Per-tile (sum, sumsq) -> per-channel (scale, shift) for y*scale + shift."""
    s = jnp.sum(stats, axis=(0, 1))                      # (2, CP)
    mean = s[0] / count
    var = jnp.maximum(s[1] / count - mean * mean, 0.0)   # biased, clamped >= 0
    rstd = lax.rsqrt(var + BN_EPS)
    scale = gamma * rstd
    shift = beta - mean * scale
    return jnp.stack([scale, shift], axis=0).astype(jnp.float32)


def _bn_ring(ss):
    scale, shift = ss[0], ss[1]
    safe = jnp.where(scale == 0.0, 1.0, scale)
    return jnp.where(scale == 0.0, 0.0, -shift / safe)   # (CP,)


def _pad1(v, cp):
    return jnp.pad(v, (0, cp - v.shape[0])).astype(jnp.float32)


def _pack_conv_w(w, cp):
    """torch Conv2d (Cout, Cin, 3, 3) -> (3, 3, CP, CP) bf16 for shifted matmuls."""
    co, ci, _, _ = w.shape
    wk = jnp.transpose(w, (2, 3, 1, 0))                  # (3, 3, Cin, Cout)
    wk = jnp.pad(wk, ((0, 0), (0, 0), (0, cp - ci), (0, cp - co)))
    return wk.astype(jnp.bfloat16)


def _pack_convt_w(w, cp):
    """torch ConvTranspose2d (Cin, Cout, 2, 2) -> (CP, 4*CP) bf16, cols=(di,dj,co)."""
    ci, co, _, _ = w.shape
    wm = jnp.transpose(w, (0, 2, 3, 1))                  # (Cin, 2, 2, Cout)
    wm = jnp.pad(wm, ((0, cp - ci), (0, 0), (0, 0), (0, cp - co)))
    return wm.reshape(cp, 4 * cp).astype(jnp.bfloat16)


def unet_up_forward(params, x, skip, *, th=8, tm1=128):
    n, cx, h, w = x.shape
    cin = cx + skip.shape[1]
    cout = params["w1"].shape[0]
    cp = CP
    h2, w2 = 2 * h, 2 * w
    assert h2 % th == 0 and cout <= cp and cin <= cp

    # --- torch.cat((x, skip), 1) + ConvTranspose2d(cin, cout, 2, 2) ---------- #
    xin = jnp.concatenate([x, skip], axis=1).astype(jnp.float32)
    xf = jnp.transpose(xin, (0, 2, 3, 1)).reshape(n * h * w, cin)
    xf = jnp.pad(xf, ((0, 0), (0, cp - cin)))
    m_in = n * h * w
    tm = min(tm1, m_in)
    assert m_in % tm == 0
    wt_mat = _pack_convt_w(params["wt"], cp)
    bt4 = jnp.tile(_pad1(params["bt"], cp), 4)[None, :]           # (1, 4*CP)
    y0 = _convt_matmul(xf, wt_mat, bt4, tm)                       # (M_in, 4*CP)
    y0 = y0.reshape(n, h, w, 2, 2, cp).transpose(0, 1, 3, 2, 4, 5)
    y0 = y0.reshape(n, h2, w2, cp)                                # upsampled NHWC

    # --- 4 x (Conv3x3 + BN(train) + GELU); BN+GELU fused into the next conv -- #
    wks = [_pack_conv_w(params[f"w{i}"], cp) for i in (1, 2, 3, 4)]
    bks = [_pad1(params[f"b{i}"], cp)[None, :] for i in (1, 2, 3, 4)]
    gks = [_pad1(params[f"g{i}"], cp) for i in (1, 2, 3, 4)]
    beks = [_pad1(params[f"be{i}"], cp) for i in (1, 2, 3, 4)]
    count = n * h2 * w2

    # Stage 1: slab is pure matmul input -> ship it to the kernel in bf16.
    y, st = _conv_stage(_to_slabs(y0, th, dtype=jnp.bfloat16),
                        wks[0], bks[0], None, th=th)
    ss = _bn_fold(st, gks[0], beks[0], count)
    for i in (1, 2, 3):
        slabs = _to_slabs(y, th, ring=_bn_ring(ss))               # f32 (BN input)
        y, st = _conv_stage(slabs, wks[i], bks[i], ss, th=th)
        ss = _bn_fold(st, gks[i], beks[i], count)
    out = _bn_gelu_apply(y, ss, th=th)                            # (N, H2, W2, CP)

    return jnp.transpose(out[..., :cout], (0, 3, 1, 2))           # NCHW


# ------------------------------- parameters ---------------------------------- #
def init_params(key, cin, cout):
    ks = iter(jax.random.split(key, 32))

    def u(k, shape, fan_in):
        b = 1.0 / (fan_in ** 0.5)
        return jax.random.uniform(k, shape, jnp.float32, -b, b)

    def bf16w(a):
        # weights are fed to the MXU as bf16; store them at bf16 precision so the
        # f32 reference and the Pallas path share identical effective weights.
        return a.astype(jnp.bfloat16).astype(jnp.float32)

    p = {
        "wt": bf16w(u(next(ks), (cin, cout, 2, 2), cin * 4)),
        "bt": u(next(ks), (cout,), cin * 4),
    }
    for i in (1, 2, 3, 4):
        p[f"w{i}"] = bf16w(u(next(ks), (cout, cout, 3, 3), cout * 9))
        p[f"b{i}"] = u(next(ks), (cout,), cout * 9)
        p[f"g{i}"] = 1.0 + 0.1 * jax.random.normal(next(ks), (cout,))
        p[f"be{i}"] = 0.1 * jax.random.normal(next(ks), (cout,))
    return {k: v.astype(jnp.float32) for k, v in p.items()}


# ----------------------------- pure-JAX reference ----------------------------- #
def _ref_forward(params, x, skip):
    xin = jnp.concatenate([x, skip], axis=1).astype(jnp.float32)
    wt, bt = params["wt"], params["bt"]
    n, _, h, w = xin.shape
    co = wt.shape[1]
    t = jnp.einsum("nchw,cokl->nohwkl", xin, wt)
    y = t.transpose(0, 1, 2, 4, 3, 5).reshape(n, co, 2 * h, 2 * w)
    y = y + bt[None, :, None, None]

    def conv(v, w_, b_):
        return lax.conv_general_dilated(
            v, w_, (1, 1), [(1, 1), (1, 1)],
            dimension_numbers=("NCHW", "OIHW", "NCHW")) + b_[None, :, None, None]

    def bn(v, g, b):
        mean = jnp.mean(v, axis=(0, 2, 3), keepdims=True)
        var = jnp.mean((v - mean) ** 2, axis=(0, 2, 3), keepdims=True)
        return ((v - mean) * lax.rsqrt(var + BN_EPS)) * g[None, :, None, None] \
            + b[None, :, None, None]

    gelu = lambda v: jax.nn.gelu(v, approximate=False)
    for i in (1, 2, 3, 4):
        y = gelu(bn(conv(y, params[f"w{i}"], params[f"b{i}"]),
                    params[f"g{i}"], params[f"be{i}"]))
    return y


if __name__ == "__main__":
    key = jax.random.PRNGKey(0)
    kx, ksk, kp = jax.random.split(key, 3)
    N, CX, CS, COUT, H, W = 2, 4, 4, 32, 16, 16      # COUT <= 128

    x = jax.random.normal(kx, (N, CX, H, W), jnp.float32)
    skip = jax.random.normal(ksk, (N, CS, H, W), jnp.float32)
    params = init_params(kp, CX + CS, COUT)

    fwd = jax.jit(unet_up_forward)
    out = jax.block_until_ready(fwd(params, x, skip))
    ref = jax.block_until_ready(_ref_forward(params, x, skip))

    assert out.shape == (N, COUT, 2 * H, 2 * W), out.shape
    assert bool(jnp.isfinite(out).all())
    max_err = float(jnp.max(jnp.abs(out - ref)))
    assert max_err < 5e-2, f"max_err={max_err}"
    print("KERNEL_OK")
</pallas_src>

<mosaic_0001>
module attributes {stable_mosaic.version = 11 : i64} {
  func.func @_convt_kernel(%arg0: i32, %arg1: memref<128x128xf32, #tpu.memory_space<vmem>>, %arg2: memref<128x512xbf16, #tpu.memory_space<vmem>>, %arg3: memref<1x512xf32, #tpu.memory_space<vmem>>, %arg4: memref<128x512xf32, #tpu.memory_space<vmem>>) attributes {dimension_semantics = [#tpu.dimension_semantics<parallel>], iteration_bounds = array<i64: 4>, scalar_prefetch = 0 : i64, scratch_operands = 0 : i64, tpu.core_type = #tpu.core_type<tc>, window_params = [{transform_indices = @transform_0, window_bounds = array<i64: 128, 128>}, {pipeline_mode = #tpu.pipeline_mode<synchronous>, transform_indices = @transform_1, window_bounds = array<i64: 128, 512>}, {pipeline_mode = #tpu.pipeline_mode<synchronous>, transform_indices = @transform_2, window_bounds = array<i64: 1, 512>}, {transform_indices = @transform_3, window_bounds = array<i64: 128, 512>}]} {
    %c0 = arith.constant 0 : index
    %c0_0 = arith.constant 0 : index
    %0 = vector.load %arg1[%c0, %c0_0] : memref<128x128xf32, #tpu.memory_space<vmem>>, vector<128x128xf32>
    %1 = arith.truncf %0 : vector<128x128xf32> to vector<128x128xbf16>
    %c0_1 = arith.constant 0 : index
    %c0_2 = arith.constant 0 : index
    %2 = vector.load %arg2[%c0_1, %c0_2] : memref<128x512xbf16, #tpu.memory_space<vmem>>, vector<128x512xbf16>
    %cst = arith.constant dense<0.000000e+00> : vector<128x512xf32>
    %3 = tpu.matmul %1, %2, %cst {dimension_numbers = #tpu.dot_dimension_numbers<[1], [0], [0], [1], [0, 0, 1, 1], [], []>} : vector<128x128xbf16>, vector<128x512xbf16>, vector<128x512xf32> -> vector<128x512xf32>
    %c0_3 = arith.constant 0 : index
    %c0_4 = arith.constant 0 : index
    %4 = vector.load %arg3[%c0_3, %c0_4] : memref<1x512xf32, #tpu.memory_space<vmem>>, vector<1x512xf32>
    %5 = vector.broadcast %4 : vector<1x512xf32> to vector<128x512xf32>
    %6 = arith.addf %3, %5 : vector<128x512xf32>
    %c0_5 = arith.constant 0 : index
    %c0_6 = arith.constant 0 : index
    %7 = vector.load %arg4[%c0_5, %c0_6] : memref<128x512xf32, #tpu.memory_space<vmem>>, vector<128x512xf32>
    tpu.vector_store %arg4[%c0_5, %c0_6], %6 {strides = array<i32>} : memref<128x512xf32, #tpu.memory_space<vmem>>, vector<128x512xf32>,
    return
  }
  func.func @transform_0(%arg0: i32) -> (i32, i32) {
    %c0_i32 = arith.constant 0 : i32
    %c0_i32_0 = arith.constant 0 : i32
    return %arg0, %c0_i32 : i32, i32
  }
  func.func @transform_1(%arg0: i32) -> (i32, i32) {
    %c0_i32 = arith.constant 0 : i32
    %c0_i32_0 = arith.constant 0 : i32
    %c0_i32_1 = arith.constant 0 : i32
    return %c0_i32, %c0_i32_0 : i32, i32
  }
  func.func @transform_2(%arg0: i32) -> (i32, i32) {
    %c0_i32 = arith.constant 0 : i32
    %c0_i32_0 = arith.constant 0 : i32
    %c0_i32_1 = arith.constant 0 : i32
    return %c0_i32, %c0_i32_0 : i32, i32
  }
  func.func @transform_3(%arg0: i32) -> (i32, i32) {
    %c0_i32 = arith.constant 0 : i32
    %c0_i32_0 = arith.constant 0 : i32
    return %arg0, %c0_i32 : i32, i32
  }
}

module attributes {stable_mosaic.version = 11 : i64} {
  func.func @_conv_plain_kernel(%arg0: i32, %arg1: i32, %arg2: memref<1x1x10x34x128xbf16, #tpu.memory_space<vmem>>, %arg3: memref<3x3x128x128xbf16, #tpu.memory_space<vmem>>, %arg4: memref<1x128xf32, #tpu.memory_space<vmem>>, %arg5: memref<1x8x32x128xf32, #tpu.memory_space<vmem>>, %arg6: memref<1x1x2x128xf32, #tpu.memory_space<vmem>>) attributes {dimension_semantics = [#tpu.dimension_semantics<parallel>, #tpu.dimension_semantics<parallel>], iteration_bounds = array<i64: 2, 4>, scalar_prefetch = 0 : i64, scratch_operands = 0 : i64, tpu.core_type = #tpu.core_type<tc>, window_params = [{transform_indices = @transform_0, window_bounds = array<i64: 1, 1, 10, 34, 128>}, {pipeline_mode = #tpu.pipeline_mode<synchronous>, transform_indices = @transform_1, window_bounds = array<i64: 3, 3, 128, 128>}, {pipeline_mode = #tpu.pipeline_mode<synchronous>, transform_indices = @transform_2, window_bounds = array<i64: 1, 128>}, {transform_indices = @transform_3, window_bounds = array<i64: 1, 8, 32, 128>}, {transform_indices = @transform_4, window_bounds = array<i64: 1, 1, 2, 128>}]} {
    %c0 = arith.constant 0 : index
    %c0_0 = arith.constant 0 : index
    %c0_1 = arith.constant 0 : index
    %c0_2 = arith.constant 0 : index
    %c0_3 = arith.constant 0 : index
    %0 = vector.load %arg2[%c0, %c0_0, %c0_1, %c0_2, %c0_3] : memref<1x1x10x34x128xbf16, #tpu.memory_space<vmem>>, vector<1x1x10x34x128xbf16>
    %1 = vector.shape_cast %0 : vector<1x1x10x34x128xbf16> to vector<10x34x128xbf16>
    %cst = arith.constant 0.000000e+00 : f32
    %2 = vector.broadcast %cst : f32 to vector<256x128xf32>
    %3 = vector.extract_strided_slice %1 {offsets = [0, 0, 0], sizes = [8, 32, 128], strides = [1, 1, 1]} : vector<10x34x128xbf16> to vector<8x32x128xbf16>
    %4 = vector.shape_cast %3 : vector<8x32x128xbf16> to vector<256x128xbf16>
    %c0_4 = arith.constant 0 : index
    %c0_5 = arith.constant 0 : index
    %c0_6 = arith.constant 0 : index
    %c0_7 = arith.constant 0 : index
    %5 = vector.load %arg3[%c0_4, %c0_5, %c0_6, %c0_7] : memref<3x3x128x128xbf16, #tpu.memory_space<vmem>>, vector<1x1x128x128xbf16>
    %6 = vector.shape_cast %5 : vector<1x1x128x128xbf16> to vector<128x128xbf16>
    %cst_8 = arith.constant dense<0.000000e+00> : vector<256x128xf32>
    %7 = tpu.matmul %4, %6, %cst_8 {dimension_numbers = #tpu.dot_dimension_numbers<[1], [0], [0], [1], [0, 0, 1, 1], [], []>} : vector<256x128xbf16>, vector<128x128xbf16>, vector<256x128xf32> -> vector<256x128xf32>
    %8 = arith.addf %2, %7 : vector<256x128xf32>
    %9 = vector.extract_strided_slice %1 {offsets = [0, 1, 0], sizes = [8, 32, 128], strides = [1, 1, 1]} : vector<10x34x128xbf16> to vector<8x32x128xbf16>
    %10 = vector.shape_cast %9 : vector<8x32x128xbf16> to vector<256x128xbf16>
    %c0_9 = arith.constant 0 : index
    %c1 = arith.constant 1 : index
    %c0_10 = arith.constant 0 : index
    %c0_11 = arith.constant 0 : index
    %11 = vector.load %arg3[%c0_9, %c1, %c0_10, %c0_11] : memref<3x3x128x128xbf16, #tpu.memory_space<vmem>>, vector<1x1x128x128xbf16>
    %12 = vector.shape_cast %11 : vector<1x1x128x128xbf16> to vector<128x128xbf16>
    %cst_12 = arith.constant dense<0.000000e+00> : vector<256x128xf32>
    %13 = tpu.matmul %10, %12, %cst_12 {dimension_numbers = #tpu.dot_dimension_numbers<[1], [0], [0], [1], [0, 0, 1, 1], [], []>} : vector<256x128xbf16>, vector<128x128xbf16>, vector<256x128xf32> -> vector<256x128xf32>
    %14 = arith.addf %8, %13 : vector<256x128xf32>
    %15 = vector.extract_strided_slice %1 {offsets = [0, 2, 0], sizes = [8, 32, 128], strides = [1, 1, 1]} : vector<10x34x128xbf16> to vector<8x32x128xbf16>
    %16 = vector.shape_cast %15 : vector<8x32x128xbf16> to vector<256x128xbf16>
    %c0_13 = arith.constant 0 : index
    %c2 = arith.constant 2 : index
    %c0_14 = arith.constant 0 : index
    %c0_15 = arith.constant 0 : index
    %17 = vector.load %arg3[%c0_13, %c2, %c0_14, %c0_15] : memref<3x3x128x128xbf16, #tpu.memory_space<vmem>>, vector<1x1x128x128xbf16>
    %18 = vector.shape_cast %17 : vector<1x1x128x128xbf16> to vector<128x128xbf16>
    %cst_16 = arith.constant dense<0.000000e+00> : vector<256x128xf32>
    %19 = tpu.matmul %16, %18, %cst_16 {dimension_numbers = #tpu.dot_dimension_numbers<[1], [0], [0], [1], [0, 0, 1, 1], [], []>} : vector<256x128xbf16>, vector<128x128xbf16>, vector<256x128xf32> -> vector<256x128xf32>
    %20 = arith.addf %14, %19 : vector<256x128xf32>
    %21 = vector.extract_strided_slice %1 {offsets = [1, 0, 0], sizes = [8, 32, 128], strides = [1, 1, 1]} : vector<10x34x128xbf16> to vector<8x32x128xbf16>
    %22 = vector.shape_cast %21 : vector<8x32x128xbf16> to vector<256x128xbf16>
    %c1_17 = arith.constant 1 : index
    %c0_18 = arith.constant 0 : index
    %c0_19 = arith.constant 0 : index
    %c0_20 = arith.constant 0 : index
    %23 = vector.load %arg3[%c1_17, %c0_18, %c0_19, %c0_20] : memref<3x3x128x128xbf16, #tpu.memory_space<vmem>>, vector<1x1x128x128xbf16>
    %24 = vector.shape_cast %23 : vector<1x1x128x128xbf16> to vector<128x128xbf16>
    %cst_21 = arith.constant dense<0.000000e+00> : vector<256x128xf32>
    %25 = tpu.matmul %22, %24, %cst_21 {dimension_numbers = #tpu.dot_dimension_numbers<[1], [0], [0], [1], [0, 0, 1, 1], [], []>} : vector<256x128xbf16>, vector<128x128xbf16>, vector<256x128xf32> -> vector<256x128xf32>
    %26 = arith.addf %20, %25 : vector<256x128xf32>
    %27 = vector.extract_strided_slice %1 {offsets = [1, 1, 0], sizes = [8, 32, 128], strides = [1, 1, 1]} : vector<10x34x128xbf16> to vector<8x32x128xbf16>
    %28 = vector.shape_cast %27 : vector<8x32x128xbf16> to vector<256x128xbf16>
    %c1_22 = arith.constant 1 : index
    %c1_23 = arith.constant 1 : index
    %c0_24 = arith.constant 0 : index
    %c0_25 = arith.constant 0 : index
    %29 = vector.load %arg3[%c1_22, %c1_23, %c0_24, %c0_25] : memref<3x3x128x128xbf16, #tpu.memory_space<vmem>>, vector<1x1x128x128xbf16>
    %30 = vector.shape_cast %29 : vector<1x1x128x128xbf16> to vector<128x128xbf16>
    %cst_26 = arith.constant dense<0.000000e+00> : vector<256x128xf32>
    %31 = tpu.matmul %28, %30, %cst_26 {dimension_numbers = #tpu.dot_dimension_numbers<[1], [0], [0], [1], [0, 0, 1, 1], [], []>} : vector<256x128xbf16>, vector<128x128xbf16>, vector<256x128xf32> -> vector<256x128xf32>
    %32 = arith.addf %26, %31 : vector<256x128xf32>
    %33 = vector.extract_strided_slice %1 {offsets = [1, 2, 0], sizes = [8, 32, 128], strides = [1, 1, 1]} : vector<10x34x128xbf16> to vector<8x32x128xbf16>
    %34 = vector.shape_cast %33 : vector<8x32x128xbf16> to vector<256x128xbf16>
    %c1_27 = arith.constant 1 : index
    %c2_28 = arith.constant 2 : index
    %c0_29 = arith.constant 0 : index
    %c0_30 = arith.constant 0 : index
    %35 = vector.load %arg3[%c1_27, %c2_28, %c0_29, %c0_30] : memref<3x3x128x128xbf16, #tpu.memory_space<vmem>>, vector<1x1x128x128xbf16>
    %36 = vector.shape_cast %35 : vector<1x1x128x128xbf16> to vector<128x128xbf16>
    %cst_31 = arith.constant dense<0.000000e+00> : vector<256x128xf32>
    %37 = tpu.matmul %34, %36, %cst_31 {dimension_numbers = #tpu.dot_dimension_numbers<[1], [0], [0], [1], [0, 0, 1, 1], [], []>} : vector<256x128xbf16>, vector<128x128xbf16>, vector<256x128xf32> -> vector<256x128xf32>
    %38 = arith.addf %32, %37 : vector<256x128xf32>
    %39 = vector.extract_strided_slice %1 {offsets = [2, 0, 0], sizes = [8, 32, 128], strides = [1, 1, 1]} : vector<10x34x128xbf16> to vector<8x32x128xbf16>
    %40 = vector.shape_cast %39 : vector<8x32x128xbf16> to vector<256x128xbf16>
    %c2_32 = arith.constant 2 : index
    %c0_33 = arith.constant 0 : index
    %c0_34 = arith.constant 0 : index
    %c0_35 = arith.constant 0 : index
    %41 = vector.load %arg3[%c2_32, %c0_33, %c0_34, %c0_35] : memref<3x3x128x128xbf16, #tpu.memory_space<vmem>>, vector<1x1x128x128xbf16>
    %42 = vector.shape_cast %41 : vector<1x1x128x128xbf16> to vector<128x128xbf16>
    %cst_36 = arith.constant dense<0.000000e+00> : vector<256x128xf32>
    %43 = tpu.matmul %40, %42, %cst_36 {dimension_numbers = #tpu.dot_dimension_numbers<[1], [0], [0], [1], [0, 0, 1, 1], [], []>} : vector<256x128xbf16>, vector<128x128xbf16>, vector<256x128xf32> -> vector<256x128xf32>
    %44 = arith.addf %38, %43 : vector<256x128xf32>
    %45 = vector.extract_strided_slice %1 {offsets = [2, 1, 0], sizes = [8, 32, 128], strides = [1, 1, 1]} : vector<10x34x128xbf16> to vector<8x32x128xbf16>
    %46 = vector.shape_cast %45 : vector<8x32x128xbf16> to vector<256x128xbf16>
    %c2_37 = arith.constant 2 : index
    %c1_38 = arith.constant 1 : index
    %c0_39 = arith.constant 0 : index
    %c0_40 = arith.constant 0 : index
    %47 = vector.load %arg3[%c2_37, %c1_38, %c0_39, %c0_40] : memref<3x3x128x128xbf16, #tpu.memory_space<vmem>>, vector<1x1x128x128xbf16>
    %48 = vector.shape_cast %47 : vector<1x1x128x128xbf16> to vector<128x128xbf16>
    %cst_41 = arith.constant dense<0.000000e+00> : vector<256x128xf32>
    %49 = tpu.matmul %46, %48, %cst_41 {dimension_numbers = #tpu.dot_dimension_numbers<[1], [0], [0], [1], [0, 0, 1, 1], [], []>} : vector<256x128xbf16>, vector<128x128xbf16>, vector<256x128xf32> -> vector<256x128xf32>
    %50 = arith.addf %44, %49 : vector<256x128xf32>
    %51 = vector.extract_strided_slice %1 {offsets = [2, 2, 0], sizes = [8, 32, 128], strides = [1, 1, 1]} : vector<10x34x128xbf16> to vector<8x32x128xbf16>
    %52 = vector.shape_cast %51 : vector<8x32x128xbf16> to vector<256x128xbf16>
    %c2_42 = arith.constant 2 : index
    %c2_43 = arith.constant 2 : index
    %c0_44 = arith.constant 0 : index
    %c0_45 = arith.constant 0 : index
    %53 = vector.load %arg3[%c2_42, %c2_43, %c0_44, %c0_45] : memref<3x3x128x128xbf16, #tpu.memory_space<vmem>>, vector<1x1x128x128xbf16>
    %54 = vector.shape_cast %53 : vector<1x1x128x128xbf16> to vector<128x128xbf16>
    %cst_46 = arith.constant dense<0.000000e+00> : vector<256x128xf32>
    %55 = tpu.matmul %52, %54, %cst_46 {dimension_numbers = #tpu.dot_dimension_numbers<[1], [0], [0], [1], [0, 0, 1, 1], [], []>} : vector<256x128xbf16>, vector<128x128xbf16>, vector<256x128xf32> -> vector<256x128xf32>
    %56 = arith.addf %50, %55 : vector<256x128xf32>
    %c0_47 = arith.constant 0 : index
    %c0_48 = arith.constant 0 : index
    %57 = vector.load %arg4[%c0_47, %c0_48] : memref<1x128xf32, #tpu.memory_space<vmem>>, vector<1x128xf32>
    %58 = vector.broadcast %57 : vector<1x128xf32> to vector<256x128xf32>
    %59 = arith.addf %56, %58 : vector<256x128xf32>
    %60 = vector.shape_cast %59 : vector<256x128xf32> to vector<8x32x128xf32>
    %c0_49 = arith.constant 0 : index
    %c0_50 = arith.constant 0 : index
    %c0_51 = arith.constant 0 : index
    %c0_52 = arith.constant 0 : index
    %61 = vector.load %arg5[%c0_49, %c0_50, %c0_51, %c0_52] : memref<1x8x32x128xf32, #tpu.memory_space<vmem>>, vector<1x8x32x128xf32>
    %62 = vector.shape_cast %61 : vector<1x8x32x128xf32> to vector<8x32x128xf32>
    %63 = vector.shape_cast %60 : vector<8x32x128xf32> to vector<1x8x32x128xf32>
    tpu.vector_store %arg5[%c0_49, %c0_50, %c0_51, %c0_52], %63 {strides = array<i32>} : memref<1x8x32x128xf32, #tpu.memory_space<vmem>>, vector<1x8x32x128xf32>,
    %cst_53 = arith.constant dense<0.000000e+00> : vector<128xf32>
    %64 = vector.multi_reduction <add>, %59, %cst_53 [0] : vector<256x128xf32> to vector<128xf32>
    %65 = vector.shape_cast %64 : vector<128xf32> to vector<1x128xf32>
    %66 = arith.mulf %59, %59 : vector<256x128xf32>
    %cst_54 = arith.constant dense<0.000000e+00> : vector<128xf32>
    %67 = vector.multi_reduction <add>, %66, %cst_54 [0] : vector<256x128xf32> to vector<128xf32>
    %68 = vector.shape_cast %67 : vector<128xf32> to vector<1x128xf32>
    %69 = tpu.concatenate %65, %68 in 0 : vector<1x128xf32>, vector<1x128xf32> -> vector<2x128xf32>
    %c0_55 = arith.constant 0 : index
    %c0_56 = arith.constant 0 : index
    %c0_57 = arith.constant 0 : index
    %c0_58 = arith.constant 0 : index
    %70 = vector.load %arg6[%c0_55, %c0_56, %c0_57, %c0_58] : memref<1x1x2x128xf32, #tpu.memory_space<vmem>>, vector<1x1x2x128xf32>
    %71 = vector.shape_cast %70 : vector<1x1x2x128xf32> to vector<2x128xf32>
    %72 = vector.shape_cast %69 : vector<2x128xf32> to vector<1x1x2x128xf32>
    tpu.vector_store %arg6[%c0_55, %c0_56, %c0_57, %c0_58], %72 {strides = array<i32>} : memref<1x1x2x128xf32, #tpu.memory_space<vmem>>, vector<1x1x2x128xf32>,
    return
  }
  func.func @transform_0(%arg0: i32, %arg1: i32) -> (i32, i32, i32, i32, i32) {
    %c0_i32 = arith.constant 0 : i32
    %c0_i32_0 = arith.constant 0 : i32
    %c0_i32_1 = arith.constant 0 : i32
    %c0_i32_2 = arith.constant 0 : i32
    return %arg0, %arg1, %c0_i32, %c0_i32_0, %c0_i32_1 : i32, i32, i32, i32, i32
  }
  func.func @transform_1(%arg0: i32, %arg1: i32) -> (i32, i32, i32, i32) {
    %c0_i32 = arith.constant 0 : i32
    %c0_i32_0 = arith.constant 0 : i32
    %c0_i32_1 = arith.constant 0 : i32
    %c0_i32_2 = arith.constant 0 : i32
    %c0_i32_3 = arith.constant 0 : i32
    return %c0_i32, %c0_i32_0, %c0_i32_1, %c0_i32_2 : i32, i32, i32, i32
  }
  func.func @transform_2(%arg0: i32, %arg1: i32) -> (i32, i32) {
    %c0_i32 = arith.constant 0 : i32
    %c0_i32_0 = arith.constant 0 : i32
    %c0_i32_1 = arith.constant 0 : i32
    return %c0_i32, %c0_i32_0 : i32, i32
  }
  func.func @transform_3(%arg0: i32, %arg1: i32) -> (i32, i32, i32, i32) {
    %c0_i32 = arith.constant 0 : i32
    %c0_i32_0 = arith.constant 0 : i32
    %c0_i32_1 = arith.constant 0 : i32
    return %arg0, %arg1, %c0_i32, %c0_i32_0 : i32, i32, i32, i32
  }
  func.func @transform_4(%arg0: i32, %arg1: i32) -> (i32, i32, i32, i32) {
    %c0_i32 = arith.constant 0 : i32
    %c0_i32_0 = arith.constant 0 : i32
    %c0_i32_1 = arith.constant 0 : i32
    return %arg0, %arg1, %c0_i32, %c0_i32_0 : i32, i32, i32, i32
  }
}

module attributes {stable_mosaic.version = 11 : i64} {
  func.func @_conv_fused_kernel(%arg0: i32, %arg1: i32, %arg2: memref<1x1x10x34x128xf32, #tpu.memory_space<vmem>>, %arg3: memref<2x128xf32, #tpu.memory_space<vmem>>, %arg4: memref<3x3x128x128xbf16, #tpu.memory_space<vmem>>, %arg5: memref<1x128xf32, #tpu.memory_space<vmem>>, %arg6: memref<1x8x32x128xf32, #tpu.memory_space<vmem>>, %arg7: memref<1x1x2x128xf32, #tpu.memory_space<vmem>>) attributes {dimension_semantics = [#tpu.dimension_semantics<parallel>, #tpu.dimension_semantics<parallel>], iteration_bounds = array<i64: 2, 4>, scalar_prefetch = 0 : i64, scratch_operands = 0 : i64, tpu.core_type = #tpu.core_type<tc>, window_params = [{transform_indices = @transform_0, window_bounds = array<i64: 1, 1, 10, 34, 128>}, {pipeline_mode = #tpu.pipeline_mode<synchronous>, transform_indices = @transform_1, window_bounds = array<i64: 2, 128>}, {pipeline_mode = #tpu.pipeline_mode<synchronous>, transform_indices = @transform_2, window_bounds = array<i64: 3, 3, 128, 128>}, {pipeline_mode = #tpu.pipeline_mode<synchronous>, transform_indices = @transform_3, window_bounds = array<i64: 1, 128>}, {transform_indices = @transform_4, window_bounds = array<i64: 1, 8, 32, 128>}, {transform_indices = @transform_5, window_bounds = array<i64: 1, 1, 2, 128>}]} {
    %c0 = arith.constant 0 : index
    %c0_0 = arith.constant 0 : index
    %c0_1 = arith.constant 0 : index
    %c0_2 = arith.constant 0 : index
    %c0_3 = arith.constant 0 : index
    %0 = vector.load %arg2[%c0, %c0_0, %c0_1, %c0_2, %c0_3] : memref<1x1x10x34x128xf32, #tpu.memory_space<vmem>>, vector<1x1x10x34x128xf32>
    %1 = vector.shape_cast %0 : vector<1x1x10x34x128xf32> to vector<10x34x128xf32>
    %c0_4 = arith.constant 0 : index
    %c0_5 = arith.constant 0 : index
    %2 = vector.load %arg3[%c0_4, %c0_5] : memref<2x128xf32, #tpu.memory_space<vmem>>, vector<1x128xf32>
    %3 = vector.shape_cast %2 : vector<1x128xf32> to vector<1x1x128xf32>
    %c1 = arith.constant 1 : index
    %c0_6 = arith.constant 0 : index
    %4 = vector.load %arg3[%c1, %c0_6] : memref<2x128xf32, #tpu.memory_space<vmem>>, vector<1x128xf32>
    %5 = vector.shape_cast %4 : vector<1x128xf32> to vector<1x1x128xf32>
    %6 = vector.broadcast %3 : vector<1x1x128xf32> to vector<10x34x128xf32>
    %7 = arith.mulf %1, %6 : vector<10x34x128xf32>
    %8 = vector.broadcast %5 : vector<1x1x128xf32> to vector<10x34x128xf32>
    %9 = arith.addf %7, %8 : vector<10x34x128xf32>
    %cst = arith.constant 5.000000e-01 : f32
    %10 = vector.broadcast %cst : f32 to vector<10x34x128xf32>
    %11 = arith.mulf %10, %9 : vector<10x34x128xf32>
    %cst_7 = arith.constant 0.707106769 : f32
    %12 = vector.broadcast %cst_7 : f32 to vector<10x34x128xf32>
    %13 = arith.mulf %9, %12 : vector<10x34x128xf32>
    %14 = math.absf %13 : vector<10x34x128xf32>
    %cst_8 = arith.constant 0.327591091 : f32
    %15 = vector.broadcast %cst_8 : f32 to vector<10x34x128xf32>
    %16 = arith.mulf %15, %14 : vector<10x34x128xf32>
    %cst_9 = arith.constant 1.000000e+00 : f32
    %17 = vector.broadcast %cst_9 : f32 to vector<10x34x128xf32>
    %18 = arith.addf %17, %16 : vector<10x34x128xf32>
    %19 = tpu.reciprocal %18 {approx = true} : vector<10x34x128xf32> -> vector<10x34x128xf32>
    %cst_10 = arith.constant 1.06140542 : f32
    %20 = vector.broadcast %cst_10 : f32 to vector<10x34x128xf32>
    %21 = arith.mulf %19, %20 : vector<10x34x128xf32>
    %cst_11 = arith.constant -1.45315206 : f32
    %22 = vector.broadcast %cst_11 : f32 to vector<10x34x128xf32>
    %23 = arith.addf %22, %21 : vector<10x34x128xf32>
    %24 = arith.mulf %19, %23 : vector<10x34x128xf32>
    %cst_12 = arith.constant 1.42141378 : f32
    %25 = vector.broadcast %cst_12 : f32 to vector<10x34x128xf32>
    %26 = arith.addf %25, %24 : vector<10x34x128xf32>
    %27 = arith.mulf %19, %26 : vector<10x34x128xf32>
    %cst_13 = arith.constant -0.284496725 : f32
    %28 = vector.broadcast %cst_13 : f32 to vector<10x34x128xf32>
    %29 = arith.addf %28, %27 : vector<10x34x128xf32>
    %30 = arith.mulf %19, %29 : vector<10x34x128xf32>
    %cst_14 = arith.constant 0.254829586 : f32
    %31 = vector.broadcast %cst_14 : f32 to vector<10x34x128xf32>
    %32 = arith.addf %31, %30 : vector<10x34x128xf32>
    %33 = arith.mulf %19, %32 : vector<10x34x128xf32>
    %cst_15 = arith.constant 0.000000e+00 : f32
    %34 = vector.broadcast %cst_15 : f32 to vector<10x34x128xf32>
    %35 = arith.subf %34, %14 : vector<10x34x128xf32>
    %36 = arith.mulf %35, %14 : vector<10x34x128xf32>
    %37 = math.exp %36 : vector<10x34x128xf32>
    %38 = arith.mulf %33, %37 : vector<10x34x128xf32>
    %cst_16 = arith.constant 1.000000e+00 : f32
    %39 = vector.broadcast %cst_16 : f32 to vector<10x34x128xf32>
    %40 = arith.subf %39, %38 : vector<10x34x128xf32>
    %cst_17 = arith.constant 0.000000e+00 : f32
    %41 = vector.broadcast %cst_17 : f32 to vector<10x34x128xf32>
    %42 = arith.cmpf oge, %13, %41 : vector<10x34x128xf32>
    %cst_18 = arith.constant 0.000000e+00 : f32
    %43 = vector.broadcast %cst_18 : f32 to vector<10x34x128xf32>
    %44 = arith.subf %43, %40 : vector<10x34x128xf32>
    %45 = arith.select %42, %40, %44 : vector<10x34x128xi1>, vector<10x34x128xf32>
    %cst_19 = arith.constant 1.000000e+00 : f32
    %46 = vector.broadcast %cst_19 : f32 to vector<10x34x128xf32>
    %47 = arith.addf %46, %45 : vector<10x34x128xf32>
    %48 = arith.mulf %11, %47 : vector<10x34x128xf32>
    %49 = arith.truncf %48 : vector<10x34x128xf32> to vector<10x34x128xbf16>
    %cst_20 = arith.constant 0.000000e+00 : f32
    %50 = vector.broadcast %cst_20 : f32 to vector<256x128xf32>
    %51 = vector.extract_strided_slice %49 {offsets = [0, 0, 0], sizes = [8, 32, 128], strides = [1, 1, 1]} : vector<10x34x128xbf16> to vector<8x32x128xbf16>
    %52 = vector.shape_cast %51 : vector<8x32x128xbf16> to vector<256x128xbf16>
    %c0_21 = arith.constant 0 : index
    %c0_22 = arith.constant 0 : index
    %c0_23 = arith.constant 0 : index
    %c0_24 = arith.constant 0 : index
    %53 = vector.load %arg4[%c0_21, %c0_22, %c0_23, %c0_24] : memref<3x3x128x128xbf16, #tpu.memory_space<vmem>>, vector<1x1x128x128xbf16>
    %54 = vector.shape_cast %53 : vector<1x1x128x128xbf16> to vector<128x128xbf16>
    %cst_25 = arith.constant dense<0.000000e+00> : vector<256x128xf32>
    %55 = tpu.matmul %52, %54, %cst_25 {dimension_numbers = #tpu.dot_dimension_numbers<[1], [0], [0], [1], [0, 0, 1, 1], [], []>} : vector<256x128xbf16>, vector<128x128xbf16>, vector<256x128xf32> -> vector<256x128xf32>
    %56 = arith.addf %50, %55 : vector<256x128xf32>
    %57 = vector.extract_strided_slice %49 {offsets = [0, 1, 0], sizes = [8, 32, 128], strides = [1, 1, 1]} : vector<10x34x128xbf16> to vector<8x32x128xbf16>
    %58 = vector.shape_cast %57 : vector<8x32x128xbf16> to vector<256x128xbf16>
    %c0_26 = arith.constant 0 : index
    %c1_27 = arith.constant 1 : index
    %c0_28 = arith.constant 0 : index
    %c0_29 = arith.constant 0 : index
    %59 = vector.load %arg4[%c0_26, %c1_27, %c0_28, %c0_29] : memref<3x3x128x128xbf16, #tpu.memory_space<vmem>>, vector<1x1x128x128xbf16>
    %60 = vector.shape_cast %59 : vector<1x1x128x128xbf16> to vector<128x128xbf16>
    %cst_30 = arith.constant dense<0.000000e+00> : vector<256x128xf32>
    %61 = tpu.matmul %58, %60, %cst_30 {dimension_numbers = #tpu.dot_dimension_numbers<[1], [0], [0], [1], [0, 0, 1, 1], [], []>} : vector<256x128xbf16>, vector<128x128xbf16>, vector<256x128xf32> -> vector<256x128xf32>
    %62 = arith.addf %56, %61 : vector<256x128xf32>
    %63 = vector.extract_strided_slice %49 {offsets = [0, 2, 0], sizes = [8, 32, 128], strides = [1, 1, 1]} : vector<10x34x128xbf16> to vector<8x32x128xbf16>
    %64 = vector.shape_cast %63 : vector<8x32x128xbf16> to vector<256x128xbf16>
    %c0_31 = arith.constant 0 : index
    %c2 = arith.constant 2 : index
    %c0_32 = arith.constant 0 : index
    %c0_33 = arith.constant 0 : index
    %65 = vector.load %arg4[%c0_31, %c2, %c0_32, %c0_33] : memref<3x3x128x128xbf16, #tpu.memory_space<vmem>>, vector<1x1x128x128xbf16>
    %66 = vector.shape_cast %65 : vector<1x1x128x128xbf16> to vector<128x128xbf16>
    %cst_34 = arith.constant dense<0.000000e+00> : vector<256x128xf32>
    %67 = tpu.matmul %64, %66, %cst_34 {dimension_numbers = #tpu.dot_dimension_numbers<[1], [0], [0], [1], [0, 0, 1, 1], [], []>} : vector<256x128xbf16>, vector<128x128xbf16>, vector<256x128xf32> -> vector<256x128xf32>
    %68 = arith.addf %62, %67 : vector<256x128xf32>
    %69 = vector.extract_strided_slice %49 {offsets = [1, 0, 0], sizes = [8, 32, 128], strides = [1, 1, 1]} : vector<10x34x128xbf16> to vector<8x32x128xbf16>
    %70 = vector.shape_cast %69 : vector<8x32x128xbf16> to vector<256x128xbf16>
    %c1_35 = arith.constant 1 : index
    %c0_36 = arith.constant 0 : index
    %c0_37 = arith.constant 0 : index
    %c0_38 = arith.constant 0 : index
    %71 = vector.load %arg4[%c1_35, %c0_36, %c0_37, %c0_38] : memref<3x3x128x128xbf16, #tpu.memory_space<vmem>>, vector<1x1x128x128xbf16>
    %72 = vector.shape_cast %71 : vector<1x1x128x128xbf16> to vector<128x128xbf16>
    %cst_39 = arith.constant dense<0.000000e+00> : vector<256x128xf32>
    %73 = tpu.matmul %70, %72, %cst_39 {dimension_numbers = #tpu.dot_dimension_numbers<[1], [0], [0], [1], [0, 0, 1, 1], [], []>} : vector<256x128xbf16>, vector<128x128xbf16>, vector<256x128xf32> -> vector<256x128xf32>
    %74 = arith.addf %68, %73 : vector<256x128xf32>
    %75 = vector.extract_strided_slice %49 {offsets = [1, 1, 0], sizes = [8, 32, 128], strides = [1, 1, 1]} : vector<10x34x128xbf16> to vector<8x32x128xbf16>
    %76 = vector.shape_cast %75 : vector<8x32x128xbf16> to vector<256x128xbf16>
    %c1_40 = arith.constant 1 : index
    %c1_41 = arith.constant 1 : index
    %c0_42 = arith.constant 0 : index
    %c0_43 = arith.constant 0 : index
    %77 = vector.load %arg4[%c1_40, %c1_41, %c0_42, %c0_43] : memref<3x3x128x128xbf16, #tpu.memory_space<vmem>>, vector<1x1x128x128xbf16>
    %78 = vector.shape_cast %77 : vector<1x1x128x128xbf16> to vector<128x128xbf16>
    %cst_44 = arith.constant dense<0.000000e+00> : vector<256x128xf32>
    %79 = tpu.matmul %76, %78, %cst_44 {dimension_numbers = #tpu.dot_dimension_numbers<[1], [0], [0], [1], [0, 0, 1, 1], [], []>} : vector<256x128xbf16>, vector<128x128xbf16>, vector<256x128xf32> -> vector<256x128xf32>
    %80 = arith.addf %74, %79 : vector<256x128xf32>
    %81 = vector.extract_strided_slice %49 {offsets = [1, 2, 0], sizes = [8, 32, 128], strides = [1, 1, 1]} : vector<10x34x128xbf16> to vector<8x32x128xbf16>
    %82 = vector.shape_cast %81 : vector<8x32x128xbf16> to vector<256x128xbf16>
    %c1_45 = arith.constant 1 : index
    %c2_46 = arith.constant 2 : index
    %c0_47 = arith.constant 0 : index
    %c0_48 = arith.constant 0 : index
    %83 = vector.load %arg4[%c1_45, %c2_46, %c0_47, %c0_48] : memref<3x3x128x128xbf16, #tpu.memory_space<vmem>>, vector<1x1x128x128xbf16>
    %84 = vector.shape_cast %83 : vector<1x1x128x128xbf16> to vector<128x128xbf16>
    %cst_49 = arith.constant dense<0.000000e+00> : vector<256x128xf32>
    %85 = tpu.matmul %82, %84, %cst_49 {dimension_numbers = #tpu.dot_dimension_numbers<[1], [0], [0], [1], [0, 0, 1, 1], [], []>} : vector<256x128xbf16>, vector<128x128xbf16>, vector<256x128xf32> -> vector<256x128xf32>
    %86 = arith.addf %80, %85 : vector<256x128xf32>
    %87 = vector.extract_strided_slice %49 {offsets = [2, 0, 0], sizes = [8, 32, 128], strides = [1, 1, 1]} : vector<10x34x128xbf16> to vector<8x32x128xbf16>
    %88 = vector.shape_cast %87 : vector<8x32x128xbf16> to vector<256x128xbf16>
    %c2_50 = arith.constant 2 : index
    %c0_51 = arith.constant 0 : index
    %c0_52 = arith.constant 0 : index
    %c0_53 = arith.constant 0 : index
    %89 = vector.load %arg4[%c2_50, %c0_51, %c0_52, %c0_53] : memref<3x3x128x128xbf16, #tpu.memory_space<vmem>>, vector<1x1x128x128xbf16>
    %90 = vector.shape_cast %89 : vector<1x1x128x128xbf16> to vector<128x128xbf16>
    %cst_54 = arith.constant dense<0.000000e+00> : vector<256x128xf32>
    %91 = tpu.matmul %88, %90, %cst_54 {dimension_numbers = #tpu.dot_dimension_numbers<[1], [0], [0], [1], [0, 0, 1, 1], [], []>} : vector<256x128xbf16>, vector<128x128xbf16>, vector<256x128xf32> -> vector<256x128xf32>
    %92 = arith.addf %86, %91 : vector<256x128xf32>
    %93 = vector.extract_strided_slice %49 {offsets = [2, 1, 0], sizes = [8, 32, 128], strides = [1, 1, 1]} : vector<10x34x128xbf16> to vector<8x32x128xbf16>
    %94 = vector.shape_cast %93 : vector<8x32x128xbf16> to vector<256x128xbf16>
    %c2_55 = arith.constant 2 : index
    %c1_56 = arith.constant 1 : index
    %c0_57 = arith.constant 0 : index
    %c0_58 = arith.constant 0 : index
    %95 = vector.load %arg4[%c2_55, %c1_56, %c0_57, %c0_58] : memref<3x3x128x128xbf16, #tpu.memory_space<vmem>>, vector<1x1x128x128xbf16>
    %96 = vector.shape_cast %95 : vector<1x1x128x128xbf16> to vector<128x128xbf16>
    %cst_59 = arith.constant dense<0.000000e+00> : vector<256x128xf32>
    %97 = tpu.matmul %94, %96, %cst_59 {dimension_numbers = #tpu.dot_dimension_numbers<[1], [0], [0], [1], [0, 0, 1, 1], [], []>} : vector<256x128xbf16>, vector<128x128xbf16>, vector<256x128xf32> -> vector<256x128xf32>
    %98 = arith.addf %92, %97 : vector<256x128xf32>
    %99 = vector.extract_strided_slice %49 {offsets = [2, 2, 0], sizes = [8, 32, 128], strides = [1, 1, 1]} : vector<10x34x128xbf16> to vector<8x32x128xbf16>
    %100 = vector.shape_cast %99 : vector<8x32x128xbf16> to vector<256x128xbf16>
    %c2_60 = arith.constant 2 : index
    %c2_61 = arith.constant 2 : index
    %c0_62 = arith.constant 0 : index
    %c0_63 = arith.constant 0 : index
    %101 = vector.load %arg4[%c2_60, %c2_61, %c0_62, %c0_63] : memref<3x3x128x128xbf16, #tpu.memory_space<vmem>>, vector<1x1x128x128xbf16>
    %102 = vector.shape_cast %101 : vector<1x1x128x128xbf16> to vector<128x128xbf16>
    %cst_64 = arith.constant dense<0.000000e+00> : vector<256x128xf32>
    %103 = tpu.matmul %100, %102, %cst_64 {dimension_numbers = #tpu.dot_dimension_numbers<[1], [0], [0], [1], [0, 0, 1, 1], [], []>} : vector<256x128xbf16>, vector<128x128xbf16>, vector<256x128xf32> -> vector<256x128xf32>
    %104 = arith.addf %98, %103 : vector<256x128xf32>
    %c0_65 = arith.constant 0 : index
    %c0_66 = arith.constant 0 : index
    %105 = vector.load %arg5[%c0_65, %c0_66] : memref<1x128xf32, #tpu.memory_space<vmem>>, vector<1x128xf32>
    %106 = vector.broadcast %105 : vector<1x128xf32> to vector<256x128xf32>
    %107 = arith.addf %104, %106 : vector<256x128xf32>
    %108 = vector.shape_cast %107 : vector<256x128xf32> to vector<8x32x128xf32>
    %c0_67 = arith.constant 0 : index
    %c0_68 = arith.constant 0 : index
    %c0_69 = arith.constant 0 : index
    %c0_70 = arith.constant 0 : index
    %109 = vector.load %arg6[%c0_67, %c0_68, %c0_69, %c0_70] : memref<1x8x32x128xf32, #tpu.memory_space<vmem>>, vector<1x8x32x128xf32>
    %110 = vector.shape_cast %109 : vector<1x8x32x128xf32> to vector<8x32x128xf32>
    %111 = vector.shape_cast %108 : vector<8x32x128xf32> to vector<1x8x32x128xf32>
    tpu.vector_store %arg6[%c0_67, %c0_68, %c0_69, %c0_70], %111 {strides = array<i32>} : memref<1x8x32x128xf32, #tpu.memory_space<vmem>>, vector<1x8x32x128xf32>,
    %cst_71 = arith.constant dense<0.000000e+00> : vector<128xf32>
    %112 = vector.multi_reduction <add>, %107, %cst_71 [0] : vector<256x128xf32> to vector<128xf32>
    %113 = vector.shape_cast %112 : vector<128xf32> to vector<1x128xf32>
    %114 = arith.mulf %107, %107 : vector<256x128xf32>
    %cst_72 = arith.constant dense<0.000000e+00> : vector<128xf32>
    %115 = vector.multi_reduction <add>, %114, %cst_72 [0] : vector<256x128xf32> to vector<128xf32>
    %116 = vector.shape_cast %115 : vector<128xf32> to vector<1x128xf32>
    %117 = tpu.concatenate %113, %116 in 0 : vector<1x128xf32>, vector<1x128xf32> -> vector<2x128xf32>
    %c0_73 = arith.constant 0 : index
    %c0_74 = arith.constant 0 : index
    %c0_75 = arith.constant 0 : index
    %c0_76 = arith.constant 0 : index
    %118 = vector.load %arg7[%c0_73, %c0_74, %c0_75, %c0_76] : memref<1x1x2x128xf32, #tpu.memory_space<vmem>>, vector<1x1x2x128xf32>
    %119 = vector.shape_cast %118 : vector<1x1x2x128xf32> to vector<2x128xf32>
    %120 = vector.shape_cast %117 : vector<2x128xf32> to vector<1x1x2x128xf32>
    tpu.vector_store %arg7[%c0_73, %c0_74, %c0_75, %c0_76], %120 {strides = array<i32>} : memref<1x1x2x128xf32, #tpu.memory_space<vmem>>, vector<1x1x2x128xf32>,
    return
  }
  func.func @transform_0(%arg0: i32, %arg1: i32) -> (i32, i32, i32, i32, i32) {
    %c0_i32 = arith.constant 0 : i32
    %c0_i32_0 = arith.constant 0 : i32
    %c0_i32_1 = arith.constant 0 : i32
    %c0_i32_2 = arith.constant 0 : i32
    return %arg0, %arg1, %c0_i32, %c0_i32_0, %c0_i32_1 : i32, i32, i32, i32, i32
  }
  func.func @transform_1(%arg0: i32, %arg1: i32) -> (i32, i32) {
    %c0_i32 = arith.constant 0 : i32
    %c0_i32_0 = arith.constant 0 : i32
    %c0_i32_1 = arith.constant 0 : i32
    return %c0_i32, %c0_i32_0 : i32, i32
  }
  func.func @transform_2(%arg0: i32, %arg1: i32) -> (i32, i32, i32, i32) {
    %c0_i32 = arith.constant 0 : i32
    %c0_i32_0 = arith.constant 0 : i32
    %c0_i32_1 = arith.constant 0 : i32
    %c0_i32_2 = arith.constant 0 : i32
    %c0_i32_3 = arith.constant 0 : i32
    return %c0_i32, %c0_i32_0, %c0_i32_1, %c0_i32_2 : i32, i32, i32, i32
  }
  func.func @transform_3(%arg0: i32, %arg1: i32) -> (i32, i32) {
    %c0_i32 = arith.constant 0 : i32
    %c0_i32_0 = arith.constant 0 : i32
    %c0_i32_1 = arith.constant 0 : i32
    return %c0_i32, %c0_i32_0 : i32, i32
  }
  func.func @transform_4(%arg0: i32, %arg1: i32) -> (i32, i32, i32, i32) {
    %c0_i32 = arith.constant 0 : i32
    %c0_i32_0 = arith.constant 0 : i32
    %c0_i32_1 = arith.constant 0 : i32
    return %arg0, %arg1, %c0_i32, %c0_i32_0 : i32, i32, i32, i32
  }
  func.func @transform_5(%arg0: i32, %arg1: i32) -> (i32, i32, i32, i32) {
    %c0_i32 = arith.constant 0 : i32
    %c0_i32_0 = arith.constant 0 : i32
    %c0_i32_1 = arith.constant 0 : i32
    return %arg0, %arg1, %c0_i32, %c0_i32_0 : i32, i32, i32, i32
  }
}

module attributes {stable_mosaic.version = 11 : i64} {
  func.func @_bn_gelu_kernel(%arg0: i32, %arg1: i32, %arg2: memref<1x8x32x128xf32, #tpu.memory_space<vmem>>, %arg3: memref<2x128xf32, #tpu.memory_space<vmem>>, %arg4: memref<1x8x32x128xf32, #tpu.memory_space<vmem>>) attributes {dimension_semantics = [#tpu.dimension_semantics<parallel>, #tpu.dimension_semantics<parallel>], iteration_bounds = array<i64: 2, 4>, scalar_prefetch = 0 : i64, scratch_operands = 0 : i64, tpu.core_type = #tpu.core_type<tc>, window_params = [{transform_indices = @transform_0, window_bounds = array<i64: 1, 8, 32, 128>}, {pipeline_mode = #tpu.pipeline_mode<synchronous>, transform_indices = @transform_1, window_bounds = array<i64: 2, 128>}, {transform_indices = @transform_2, window_bounds = array<i64: 1, 8, 32, 128>}]} {
    %c0 = arith.constant 0 : index
    %c0_0 = arith.constant 0 : index
    %0 = vector.load %arg3[%c0, %c0_0] : memref<2x128xf32, #tpu.memory_space<vmem>>, vector<1x128xf32>
    %1 = vector.shape_cast %0 : vector<1x128xf32> to vector<1x1x128xf32>
    %c1 = arith.constant 1 : index
    %c0_1 = arith.constant 0 : index
    %2 = vector.load %arg3[%c1, %c0_1] : memref<2x128xf32, #tpu.memory_space<vmem>>, vector<1x128xf32>
    %3 = vector.shape_cast %2 : vector<1x128xf32> to vector<1x1x128xf32>
    %c0_2 = arith.constant 0 : index
    %c0_3 = arith.constant 0 : index
    %c0_4 = arith.constant 0 : index
    %c0_5 = arith.constant 0 : index
    %4 = vector.load %arg2[%c0_2, %c0_3, %c0_4, %c0_5] : memref<1x8x32x128xf32, #tpu.memory_space<vmem>>, vector<1x8x32x128xf32>
    %5 = vector.shape_cast %4 : vector<1x8x32x128xf32> to vector<8x32x128xf32>
    %6 = vector.broadcast %1 : vector<1x1x128xf32> to vector<8x32x128xf32>
    %7 = arith.mulf %5, %6 : vector<8x32x128xf32>
    %8 = vector.broadcast %3 : vector<1x1x128xf32> to vector<8x32x128xf32>
    %9 = arith.addf %7, %8 : vector<8x32x128xf32>
    %cst = arith.constant 5.000000e-01 : f32
    %10 = vector.broadcast %cst : f32 to vector<8x32x128xf32>
    %11 = arith.mulf %10, %9 : vector<8x32x128xf32>
    %cst_6 = arith.constant 0.707106769 : f32
    %12 = vector.broadcast %cst_6 : f32 to vector<8x32x128xf32>
    %13 = arith.mulf %9, %12 : vector<8x32x128xf32>
    %14 = math.absf %13 : vector<8x32x128xf32>
    %cst_7 = arith.constant 0.327591091 : f32
    %15 = vector.broadcast %cst_7 : f32 to vector<8x32x128xf32>
    %16 = arith.mulf %15, %14 : vector<8x32x128xf32>
    %cst_8 = arith.constant 1.000000e+00 : f32
    %17 = vector.broadcast %cst_8 : f32 to vector<8x32x128xf32>
    %18 = arith.addf %17, %16 : vector<8x32x128xf32>
    %19 = tpu.reciprocal %18 {approx = true} : vector<8x32x128xf32> -> vector<8x32x128xf32>
    %cst_9 = arith.constant 1.06140542 : f32
    %20 = vector.broadcast %cst_9 : f32 to vector<8x32x128xf32>
    %21 = arith.mulf %19, %20 : vector<8x32x128xf32>
    %cst_10 = arith.constant -1.45315206 : f32
    %22 = vector.broadcast %cst_10 : f32 to vector<8x32x128xf32>
    %23 = arith.addf %22, %21 : vector<8x32x128xf32>
    %24 = arith.mulf %19, %23 : vector<8x32x128xf32>
    %cst_11 = arith.constant 1.42141378 : f32
    %25 = vector.broadcast %cst_11 : f32 to vector<8x32x128xf32>
    %26 = arith.addf %25, %24 : vector<8x32x128xf32>
    %27 = arith.mulf %19, %26 : vector<8x32x128xf32>
    %cst_12 = arith.constant -0.284496725 : f32
    %28 = vector.broadcast %cst_12 : f32 to vector<8x32x128xf32>
    %29 = arith.addf %28, %27 : vector<8x32x128xf32>
    %30 = arith.mulf %19, %29 : vector<8x32x128xf32>
    %cst_13 = arith.constant 0.254829586 : f32
    %31 = vector.broadcast %cst_13 : f32 to vector<8x32x128xf32>
    %32 = arith.addf %31, %30 : vector<8x32x128xf32>
    %33 = arith.mulf %19, %32 : vector<8x32x128xf32>
    %cst_14 = arith.constant 0.000000e+00 : f32
    %34 = vector.broadcast %cst_14 : f32 to vector<8x32x128xf32>
    %35 = arith.subf %34, %14 : vector<8x32x128xf32>
    %36 = arith.mulf %35, %14 : vector<8x32x128xf32>
    %37 = math.exp %36 : vector<8x32x128xf32>
    %38 = arith.mulf %33, %37 : vector<8x32x128xf32>
    %cst_15 = arith.constant 1.000000e+00 : f32
    %39 = vector.broadcast %cst_15 : f32 to vector<8x32x128xf32>
    %40 = arith.subf %39, %38 : vector<8x32x128xf32>
    %cst_16 = arith.constant 0.000000e+00 : f32
    %41 = vector.broadcast %cst_16 : f32 to vector<8x32x128xf32>
    %42 = arith.cmpf oge, %13, %41 : vector<8x32x128xf32>
    %cst_17 = arith.constant 0.000000e+00 : f32
    %43 = vector.broadcast %cst_17 : f32 to vector<8x32x128xf32>
    %44 = arith.subf %43, %40 : vector<8x32x128xf32>
    %45 = arith.select %42, %40, %44 : vector<8x32x128xi1>, vector<8x32x128xf32>
    %cst_18 = arith.constant 1.000000e+00 : f32
    %46 = vector.broadcast %cst_18 : f32 to vector<8x32x128xf32>
    %47 = arith.addf %46, %45 : vector<8x32x128xf32>
    %48 = arith.mulf %11, %47 : vector<8x32x128xf32>
    %c0_19 = arith.constant 0 : index
    %c0_20 = arith.constant 0 : index
    %c0_21 = arith.constant 0 : index
    %c0_22 = arith.constant 0 : index
    %49 = vector.load %arg4[%c0_19, %c0_20, %c0_21, %c0_22] : memref<1x8x32x128xf32, #tpu.memory_space<vmem>>, vector<1x8x32x128xf32>
    %50 = vector.shape_cast %49 : vector<1x8x32x128xf32> to vector<8x32x128xf32>
    %51 = vector.shape_cast %48 : vector<8x32x128xf32> to vector<1x8x32x128xf32>
    tpu.vector_store %arg4[%c0_19, %c0_20, %c0_21, %c0_22], %51 {strides = array<i32>} : memref<1x8x32x128xf32, #tpu.memory_space<vmem>>, vector<1x8x32x128xf32>,
    return
  }
  func.func @transform_0(%arg0: i32, %arg1: i32) -> (i32, i32, i32, i32) {
    %c0_i32 = arith.constant 0 : i32
    %c0_i32_0 = arith.constant 0 : i32
    %c0_i32_1 = arith.constant 0 : i32
    return %arg0, %arg1, %c0_i32, %c0_i32_0 : i32, i32, i32, i32
  }
  func.func @transform_1(%arg0: i32, %arg1: i32) -> (i32, i32) {
    %c0_i32 = arith.constant 0 : i32
    %c0_i32_0 = arith.constant 0 : i32
    %c0_i32_1 = arith.constant 0 : i32
    return %c0_i32, %c0_i32_0 : i32, i32
  }
  func.func @transform_2(%arg0: i32, %arg1: i32) -> (i32, i32, i32, i32) {
    %c0_i32 = arith.constant 0 : i32
    %c0_i32_0 = arith.constant 0 : i32
    %c0_i32_1 = arith.constant 0 : i32
    return %arg0, %arg1, %c0_i32, %c0_i32_0 : i32, i32, i32, i32
  }
}

</mosaic_0001>

<llo_original>
// kernel: tile.8
$region0: #{tile.8}
  #allocation0 [shape = 's32[1]{0}', space=sflag, size = 0x4, scoped, tag = 'scoped memory for tile.8']
  %s0 = inlined_call_operand.vmem [shape: f32[128], index: 0, kind: input, shape index: {}]
  %s1 = inlined_call_operand.vmem [shape: f32[4,128], index: 1, kind: output, shape index: {}]
  // Predicated region
  $region2: #{tile.8} parent=0 // pred_check
    _
  $region3: #{tile.8} parent=0 // pred_check_branch
    %3 = sbr.rel (0) target = $region5
  $region4: #{tile.8} parent=0 // pred_region
    _
  $region5: #{tile.8} parent=0 // pred_fallthru
    _
  %v4 = vld [vmem:[%s0] ss:$0 sm:$0xff]
  %5 = vst [vmem:[%s1] sm:$0xf] %v4

// kernel: unet_up_forward.6
$region0: #{unet_up_forward.6}
  #allocation0 [shape = 'u32[]', space=smem, size = 0x4, offset = 0x4, fixed_abs, tag = 'smem constant byte address 0x4 - core index']
  #allocation1 [shape = 'u32[144,128]{1,0:T(1,128)}', space=vmem, size = 0x12000, scoped, tag = 'internal scratch']
  %s0 = inlined_call_operand.vmem [shape: f32[512,128], index: 0, kind: input, shape index: {}]
  %s1 = inlined_call_operand.vmem [shape: bf16[128,512], index: 1, kind: input, shape index: {}]
  %s2 = inlined_call_operand.vmem [shape: f32[1,512], index: 2, kind: input, shape index: {}]
  %s3 = inlined_call_operand.vmem [shape: f32[512,512], index: 3, kind: output, shape index: {}]
  %s4 = sld [smem:[#allocation0]]
  $region45: #{unet_up_forward.6} parent=0
    _
  %s6 = ssub.s32 1, %s4
  %s7 = scalar_select 0, %s6, %s4
  loop: start=0, step=1, limit=6
  $region2: #{unet_up_forward.6} parent=0 // loop_pre_header
    _
  $region3: #{unet_up_forward.6} parent=0 // loop_header
    %s9 = sphi 0, %s13
    %p10 = scmp.ge.s32.totalorder %s9, 6
    %s19 = sphi 0, %s21
    %s22 = sphi 0, %s19
    %s23 = sphi 0, %s22
    %s39 = sphi 0, %s23
    %s43 = sphi 0, %s43
    %s45 = sphi 0, %s43
    %s46 = sphi 0, %s45
    %s60 = sphi 0, %s46
    %s64 = sphi 0, %s64
    %s66 = sphi 0, %s64
    %s67 = sphi 0, %s66
    %s81 = sphi 0, %s67
    %s87 = sphi 0, %s89
    %s90 = sphi 0, %s87
    %s91 = sphi 0, %s90
    %s107 = sphi 0, %s91
  $region4: #{unet_up_forward.6} parent=0 // loop_header_branch
    %12 = sbr.rel (%p10) target = $region8
  $region5: #{unet_up_forward.6} parent=0 // loop_body
    %s14 = ssub.s32 %s9, 1
    %s15 = ssub.s32 %s9, 2
    %s16 = sadd.s32 %s9, 1
    %s17 = ssub.s32 %s9, %s16
    %p18 = scmp.eq.s32.totalorder %s17, 0
    %s20 = sadd.s32 %s19, 1
    %s21 = scalar_select %p18, %s19, %s20
    %p24 = pneg %p18
    %p25 = scmp.eq.s32.totalorder %s9, 3
    %p26 = por %p24, %p25
    %p27 = scmp.ne.s32.totalorder %s19, %s22
    %p28 = scmp.eq.s32.totalorder %s9, 0
    %p29 = por %p27, %p28
    %p30 = scmp.ne.s32.totalorder %s19, %s22
    %p31 = scmp.eq.s32.totalorder %s14, 3
    %p32 = por %p30, %p31
    %p33 = scmp.ne.s32.totalorder %s22, %s23
    %p34 = scmp.eq.s32.totalorder %s14, 0
    %p35 = por %p33, %p34
    %p36 = scmp.ne.s32.totalorder %s22, %s23
    %p37 = scmp.eq.s32.totalorder %s15, 3
    %p38 = por %p36, %p37
    %p40 = scmp.ne.s32.totalorder %s23, %s39
    %p41 = scmp.eq.s32.totalorder %s15, 0
    %p42 = por %p40, %p41
    %s44 = sadd.s32 %s43, 1
    %p47 = scmp.eq.s32.totalorder %s9, 3
    %p48 = scmp.ne.s32.totalorder %s43, %s45
    %p49 = scmp.eq.s32.totalorder %s9, 0
    %p50 = por %p48, %p49
    %p51 = scmp.ne.s32.totalorder %s43, %s45
    %p52 = scmp.eq.s32.totalorder %s14, 3
    %p53 = por %p51, %p52
    %p54 = scmp.ne.s32.totalorder %s45, %s46
    %p55 = scmp.eq.s32.totalorder %s14, 0
    %p56 = por %p54, %p55
    %p57 = scmp.ne.s32.totalorder %s45, %s46
    %p58 = scmp.eq.s32.totalorder %s15, 3
    %p59 = por %p57, %p58
    %p61 = scmp.ne.s32.totalorder %s46, %s60
    %p62 = scmp.eq.s32.totalorder %s15, 0
    %p63 = por %p61, %p62
    %s65 = sadd.s32 %s64, 1
    %p68 = scmp.eq.s32.totalorder %s9, 3
    %p69 = scmp.ne.s32.totalorder %s64, %s66
    %p70 = scmp.eq.s32.totalorder %s9, 0
    %p71 = por %p69, %p70
    %p72 = scmp.ne.s32.totalorder %s64, %s66
    %p73 = scmp.eq.s32.totalorder %s14, 3
    %p74 = por %p72, %p73
    %p75 = scmp.ne.s32.totalorder %s66, %s67
    %p76 = scmp.eq.s32.totalorder %s14, 0
    %p77 = por %p75, %p76
    %p78 = scmp.ne.s32.totalorder %s66, %s67
    %p79 = scmp.eq.s32.totalorder %s15, 3
    %p80 = por %p78, %p79
    %p82 = scmp.ne.s32.totalorder %s67, %s81
    %p83 = scmp.eq.s32.totalorder %s15, 0
    %p84 = por %p82, %p83
    %s85 = ssub.s32 %s9, %s16
    %p86 = scmp.eq.s32.totalorder %s85, 0
    %s88 = sadd.s32 %s87, 1
    %s89 = scalar_select %p86, %s87, %s88
    %p92 = pneg %p86
    %p93 = scmp.eq.s32.totalorder %s9, 3
    %p94 = por %p92, %p93
    %p95 = scmp.ne.s32.totalorder %s87, %s90
    %p96 = scmp.eq.s32.totalorder %s9, 0
    %p97 = por %p95, %p96
    %p98 = scmp.ne.s32.totalorder %s87, %s90
    %p99 = scmp.eq.s32.totalorder %s14, 3
    %p100 = por %p98, %p99
    %p101 = scmp.ne.s32.totalorder %s90, %s91
    %p102 = scmp.eq.s32.totalorder %s14, 0
    %p103 = por %p101, %p102
    %p104 = scmp.ne.s32.totalorder %s90, %s91
    %p105 = scmp.eq.s32.totalorder %s15, 3
    %p106 = por %p104, %p105
    %p108 = scmp.ne.s32.totalorder %s91, %s107
    %p109 = scmp.eq.s32.totalorder %s15, 0
    %p110 = por %p108, %p109
    %p111 = scmp.le.s32.totalorder 1, %s9
    %p112 = scmp.lt.s32.totalorder %s9, 5
    %p113 = pnand %p111, %p112
    %p114 = pneg %p113
    // Predicated region
    $region9: #{unet_up_forward.6} parent=5 // pred_check
      _
    $region10: #{unet_up_forward.6} parent=5 // pred_check_branch
      %116 = sbr.rel (%p113) target = $region12
    $region11: #{unet_up_forward.6} parent=5 // pred_region
      %s117 = ssub.s32 %s9, 1
      // Predicated region
      $region13: #{unet_up_forward.6} parent=11 // pred_check
        %p118 = pneg %p56
      $region14: #{unet_up_forward.6} parent=11 // pred_check_branch
        %120 = sbr.rel (%p118) target = $region16
      $region15: #{unet_up_forward.6} parent=11 // pred_region
        _
      $region16: #{unet_up_forward.6} parent=11 // pred_fallthru
        _
      // Predicated region
      $region17: #{unet_up_forward.6} parent=11 // pred_check
        %p121 = pneg %p77
      $region18: #{unet_up_forward.6} parent=11 // pred_check_branch
        %123 = sbr.rel (%p121) target = $region20
      $region19: #{unet_up_forward.6} parent=11 // pred_region
        _
      $region20: #{unet_up_forward.6} parent=11 // pred_fallthru
        _
    $region12: #{unet_up_forward.6} parent=5 // pred_fallthru
      _
    %p124 = scmp.lt.s32.totalorder %s9, 4
    // Predicated region
    $region21: #{unet_up_forward.6} parent=5 // pred_check
      %p125 = pneg %p124
    $region22: #{unet_up_forward.6} parent=5 // pred_check_branch
      %127 = sbr.rel (%p125) target = $region24
    $region23: #{unet_up_forward.6} parent=5 // pred_region
      // Predicated region
      $region25: #{unet_up_forward.6} parent=23 // pred_check
        %p128 = pneg %p29
      $region26: #{unet_up_forward.6} parent=23 // pred_check_branch
        %130 = sbr.rel (%p128) target = $region28
      $region27: #{unet_up_forward.6} parent=23 // pred_region
        %s131 = smul.u32 16, %s9
        %p132 = scmp.lt.s32.totalorder %s131, 63
        %s133 = scalar_select %p132, %s131, 63
        %s134 = smul.addr %s133, 8
        %s135 = scalar_lea.vmem %s0, %s134
        %s136 = smul.u32 16, %s9
      $region28: #{unet_up_forward.6} parent=23 // pred_fallthru
        _
    $region24: #{unet_up_forward.6} parent=5 // pred_fallthru
      _
    %p137 = scmp.le.s32.totalorder 1, %s9
    %p138 = scmp.lt.s32.totalorder %s9, 5
    %p139 = pnand %p137, %p138
    %p140 = pneg %p139
    // Predicated region
    $region29: #{unet_up_forward.6} parent=5 // pred_check
      _
    $region30: #{unet_up_forward.6} parent=5 // pred_check_branch
      %142 = sbr.rel (%p139) target = $region32
    $region31: #{unet_up_forward.6} parent=5 // pred_region
      %s143 = ssub.s32 %s9, 1
      %s144 = smul.u32 16, %s14
      %p145 = scmp.lt.s32.totalorder %s144, 63
      %s146 = scalar_select %p145, %s144, 63
      %s147 = smul.addr %s146, 8
      %s148 = scalar_lea.vmem %s0, %s147
      %p149 = pneg %p35
      %p150 = pneg %p32
      %p151 = pneg %p56
      %p152 = pneg %p53
      %p153 = pneg %p77
      %p154 = pneg %p74
      %p155 = pneg %p103
      %p156 = pneg %p100
      %s157 = smul.u32 16, %s14
      %p158 = scmp.lt.s32.totalorder %s157, 63
      %s159 = scalar_select %p158, %s157, 63
      %s160 = smul.addr %s159, 4
      %s161 = smul.addr %s160, 8
      %s162 = scalar_lea.vmem %s3, %s161
      %s163 = smul.u32 16, %s14
      %p164 = scmp.lt.s32.totalorder %s163, 63
      %s165 = scalar_select %p164, %s163, 63
      %s166 = smul.addr %s165, 8
      %s167 = scalar_lea.vmem %s0, %s166
      %s168 = smul.u32 16, %s14
      %s169 = smul.u32 16, %s14
      %p170 = scmp.lt.s32.totalorder %s169, 63
      %s171 = scalar_select %p170, %s169, 63
      %s172 = smul.addr %s171, 4
      %s173 = smul.addr %s172, 8
      %s174 = scalar_lea.vmem %s3, %s173
      %s175 = smul.u32 16, %s14
      %v177 = vld [vmem:[%s167] sm:$0xff]
      %v178 = vld [vmem:[%s167 + $0x8] sm:$0xff]
      %v179 = vld [vmem:[%s167 + $0x10] sm:$0xff]
      %v180 = vld [vmem:[%s167 + $0x18] sm:$0xff]
      %v181 = vld [vmem:[%s167 + $0x20] sm:$0xff]
      %v182 = vld [vmem:[%s167 + $0x28] sm:$0xff]
      %v183 = vld [vmem:[%s167 + $0x30] sm:$0xff]
      %v184 = vld [vmem:[%s167 + $0x38] sm:$0xff]
      %v185 = vld [vmem:[%s167 + $0x40] sm:$0xff]
      %v186 = vld [vmem:[%s167 + $0x48] sm:$0xff]
      %v187 = vld [vmem:[%s167 + $0x50] sm:$0xff]
      %v188 = vld [vmem:[%s167 + $0x58] sm:$0xff]
      %v189 = vld [vmem:[%s167 + $0x60] sm:$0xff]
      %v190 = vld [vmem:[%s167 + $0x68] sm:$0xff]
      %v191 = vld [vmem:[%s167 + $0x70] sm:$0xff]
      %v192 = vld [vmem:[%s167 + $0x78] sm:$0xff]
      %v193 = vpack.c.bf16 %v178, %v177
      %v194 = vpack.c.bf16 %v180, %v179
      %v195 = vpack.c.bf16 %v182, %v181
      %v196 = vpack.c.bf16 %v184, %v183
      %v197 = vpack.c.bf16 %v186, %v185
      %v198 = vpack.c.bf16 %v188, %v187
      %v199 = vpack.c.bf16 %v190, %v189
      %v200 = vpack.c.bf16 %v192, %v191
      %v201 = vld [vmem:[%s1] sm:$0xff]
      %v202 = vld [vmem:[%s1 + $0x8] sm:$0xff]
      %v203 = vld [vmem:[%s1 + $0x10] sm:$0xff]
      %v204 = vld [vmem:[%s1 + $0x18] sm:$0xff]
      %v205 = vld [vmem:[%s1 + $0x20] sm:$0xff]
      %v206 = vld [vmem:[%s1 + $0x28] sm:$0xff]
      %v207 = vld [vmem:[%s1 + $0x30] sm:$0xff]
      %v208 = vld [vmem:[%s1 + $0x38] sm:$0xff]
      %v209 = vld [vmem:[%s1 + $0x40] sm:$0xff]
      %v210 = vld [vmem:[%s1 + $0x48] sm:$0xff]
      %v211 = vld [vmem:[%s1 + $0x50] sm:$0xff]
      %v212 = vld [vmem:[%s1 + $0x58] sm:$0xff]
      %v213 = vld [vmem:[%s1 + $0x60] sm:$0xff]
      %v214 = vld [vmem:[%s1 + $0x68] sm:$0xff]
      %v215 = vld [vmem:[%s1 + $0x70] sm:$0xff]
      %v216 = vld [vmem:[%s1 + $0x78] sm:$0xff]
      %v217 = vld [vmem:[%s1 + $0x80] sm:$0xff]
      %v218 = vld [vmem:[%s1 + $0x88] sm:$0xff]
      %v219 = vld [vmem:[%s1 + $0x90] sm:$0xff]
      %v220 = vld [vmem:[%s1 + $0x98] sm:$0xff]
      %v221 = vld [vmem:[%s1 + $0xa0] sm:$0xff]
      %v222 = vld [vmem:[%s1 + $0xa8] sm:$0xff]
      %v223 = vld [vmem:[%s1 + $0xb0] sm:$0xff]
      %v224 = vld [vmem:[%s1 + $0xb8] sm:$0xff]
      %v225 = vld [vmem:[%s1 + $0xc0] sm:$0xff]
      %v226 = vld [vmem:[%s1 + $0xc8] sm:$0xff]
      %v227 = vld [vmem:[%s1 + $0xd0] sm:$0xff]
      %v228 = vld [vmem:[%s1 + $0xd8] sm:$0xff]
      %v229 = vld [vmem:[%s1 + $0xe0] sm:$0xff]
      %v230 = vld [vmem:[%s1 + $0xe8] sm:$0xff]
      %v231 = vld [vmem:[%s1 + $0xf0] sm:$0xff]
      %v232 = vld [vmem:[%s1 + $0xf8] sm:$0xff]
      %v233 = vld [vmem:[%s2] sm:$0xf]
      %v235 = vlaneseq
      %v236 = vshrl.u32 %v235, 7
      %v237 = vsub.s32 0, %v236
      %v238 = vrot.slane %v233, %v237
      %v239 = vlaneseq
      %v240 = vshrl.u32 %v239, 7
      %v241 = vsub.s32 1, %v240
      %v242 = vrot.slane %v233, %v241
      %v243 = vlaneseq
      %v244 = vshrl.u32 %v243, 7
      %v245 = vsub.s32 2, %v244
      %v246 = vrot.slane %v233, %v245
      %v247 = vlaneseq
      %v248 = vshrl.u32 %v247, 7
      %v249 = vsub.s32 3, %v248
      %v250 = vrot.slane %v233, %v249
      %v287 = vunpack.c.l.b16 %v201
      %v288 = vunpack.c.h.b16 %v201
      %v289 = vunpack.c.l.b16 %v202
      %v290 = vunpack.c.h.b16 %v202
      %v291 = vunpack.c.l.b16 %v203
      %v292 = vunpack.c.h.b16 %v203
      %v293 = vunpack.c.l.b16 %v204
      %v294 = vunpack.c.h.b16 %v204
      %v295 = vunpack.c.l.b16 %v205
      %v296 = vunpack.c.h.b16 %v205
      %v297 = vunpack.c.l.b16 %v206
      %v298 = vunpack.c.h.b16 %v206
      %v299 = vunpack.c.l.b16 %v207
      %v300 = vunpack.c.h.b16 %v207
      %v301 = vunpack.c.l.b16 %v208
      %v302 = vunpack.c.h.b16 %v208
      %v303 = vunpack.c.l.b16 %v209
      %v304 = vunpack.c.h.b16 %v209
      %v305 = vunpack.c.l.b16 %v210
      %v306 = vunpack.c.h.b16 %v210
      %v307 = vunpack.c.l.b16 %v211
      %v308 = vunpack.c.h.b16 %v211
      %v309 = vunpack.c.l.b16 %v212
      %v310 = vunpack.c.h.b16 %v212
      %v311 = vunpack.c.l.b16 %v213
      %v312 = vunpack.c.h.b16 %v213
      %v313 = vunpack.c.l.b16 %v214
      %v314 = vunpack.c.h.b16 %v214
      %v315 = vunpack.c.l.b16 %v215
      %v316 = vunpack.c.h.b16 %v215
      %v317 = vunpack.c.l.b16 %v216
      %v318 = vunpack.c.h.b16 %v216
      %v319 = vunpack.c.l.b16 %v217
      %v320 = vunpack.c.h.b16 %v217
      %v321 = vunpack.c.l.b16 %v218
      %v322 = vunpack.c.h.b16 %v218
      %v323 = vunpack.c.l.b16 %v219
      %v324 = vunpack.c.h.b16 %v219
      %v325 = vunpack.c.l.b16 %v220
      %v326 = vunpack.c.h.b16 %v220
      %v327 = vunpack.c.l.b16 %v221
      %v328 = vunpack.c.h.b16 %v221
      %v329 = vunpack.c.l.b16 %v222
      %v330 = vunpack.c.h.b16 %v222
      %v331 = vunpack.c.l.b16 %v223
      %v332 = vunpack.c.h.b16 %v223
      %v333 = vunpack.c.l.b16 %v224
      %v334 = vunpack.c.h.b16 %v224
      %v335 = vunpack.c.l.b16 %v225
      %v336 = vunpack.c.h.b16 %v225
      %v337 = vunpack.c.l.b16 %v226
      %v338 = vunpack.c.h.b16 %v226
      %v339 = vunpack.c.l.b16 %v227
      %v340 = vunpack.c.h.b16 %v227
      %v341 = vunpack.c.l.b16 %v228
      %v342 = vunpack.c.h.b16 %v228
      %v343 = vunpack.c.l.b16 %v229
      %v344 = vunpack.c.h.b16 %v229
      %v345 = vunpack.c.l.b16 %v230
      %v346 = vunpack.c.h.b16 %v230
      %v347 = vunpack.c.l.b16 %v231
      %v348 = vunpack.c.h.b16 %v231
      %v349 = vunpack.c.l.b16 %v232
      %v350 = vunpack.c.h.b16 %v232
      %v351 = vpack.c.b16 %v291, %v287
      %v352 = vpack.c.b16 %v292, %v288
      %v353 = vpack.c.b16 %v293, %v289
      %v354 = vpack.c.b16 %v294, %v290
      %v355 = vpack.c.b16 %v299, %v295
      %v356 = vpack.c.b16 %v300, %v296
      %v357 = vpack.c.b16 %v301, %v297
      %v358 = vpack.c.b16 %v302, %v298
      %v359 = vpack.c.b16 %v307, %v303
      %v360 = vpack.c.b16 %v308, %v304
      %v361 = vpack.c.b16 %v309, %v305
      %v362 = vpack.c.b16 %v310, %v306
      %v363 = vpack.c.b16 %v315, %v311
      %v364 = vpack.c.b16 %v316, %v312
      %v365 = vpack.c.b16 %v317, %v313
      %v366 = vpack.c.b16 %v318, %v314
      %v367 = vpack.c.b16 %v323, %v319
      %v368 = vpack.c.b16 %v324, %v320
      %v369 = vpack.c.b16 %v325, %v321
      %v370 = vpack.c.b16 %v326, %v322
      %v371 = vpack.c.b16 %v331, %v327
      %v372 = vpack.c.b16 %v332, %v328
      %v373 = vpack.c.b16 %v333, %v329
      %v374 = vpack.c.b16 %v334, %v330
      %v375 = vpack.c.b16 %v339, %v335
      %v376 = vpack.c.b16 %v340, %v336
      %v377 = vpack.c.b16 %v341, %v337
      %v378 = vpack.c.b16 %v342, %v338
      %v379 = vpack.c.b16 %v347, %v343
      %v380 = vpack.c.b16 %v348, %v344
      %v381 = vpack.c.b16 %v349, %v345
      %v382 = vpack.c.b16 %v350, %v346
      %415 = vmatprep.subr.bf16.mxu0 %v352
      %416 = vmatpush1.bf16.msra.mxu0 %v351
      %417 = vmatprep.subr.bf16.mxu0 %v356
      %418 = vmatpush1.bf16.msra.mxu0 %v355
      %419 = vmatprep.subr.bf16.mxu0 %v360
      %420 = vmatpush1.bf16.msra.mxu0 %v359
      %421 = vmatprep.subr.bf16.mxu0 %v364
      %422 = vmatpush1.bf16.msra.mxu0 %v363
      %423 = vmatprep.subr.bf16.mxu0 %v368
      %424 = vmatpush1.bf16.msra.mxu0 %v367
      %425 = vmatprep.subr.bf16.mxu0 %v372
      %426 = vmatpush1.bf16.msra.mxu0 %v371
      %427 = vmatprep.subr.bf16.mxu0 %v376
      %428 = vmatpush1.bf16.msra.mxu0 %v375
      %429 = vmatprep.subr.bf16.mxu0 %v380
      %430 = vmatpush1.bf16.msra.mxu0 %v379
      %431 = vmatprep.subr.bf16.mxu0 0
      %432 = vmatpush1.bf16.msra.mxu0 0
      %433 = vmatprep.subr.bf16.mxu0 0
      %434 = vmatpush1.bf16.msra.mxu0 0
      %435 = vmatprep.subr.bf16.mxu0 0
      %436 = vmatpush1.bf16.msra.mxu0 0
      %437 = vmatprep.subr.bf16.mxu0 0
      %438 = vmatpush1.bf16.msra.mxu0 0
      %439 = vmatprep.subr.bf16.mxu0 0
      %440 = vmatpush1.bf16.msra.mxu0 0
      %441 = vmatprep.subr.bf16.mxu0 0
      %442 = vmatpush1.bf16.msra.mxu0 0
      %443 = vmatprep.subr.bf16.mxu0 0
      %444 = vmatpush1.bf16.msra.mxu0 0
      %445 = vmatprep.subr.bf16.mxu0 0
      %446 = vmatpush1.bf16.msra.mxu0 0
      %447 = vmatprep.mubr.bf16.mxu0 0
      %448 = vmatmul.mubr.bf16.gmra.mrb[0].mxu0 %v193
      %v449 = vpop.f32.mrb[0].mxu0
      %v450 = vadd.f32 %v238, %v449
      %v451 = vpop.f32.mrb[0].mxu0
      %v452 = vadd.f32 %v242, %v451
      %v453 = vpop.f32.mrb[0].mxu0
      %v454 = vadd.f32 %v238, %v453
      %v455 = vpop.f32.mrb[0].mxu0
      %v456 = vadd.f32 %v242, %v455
      %457 = vmatprep.mubr.bf16.mxu0 0
      %458 = vmatmul.mubr.bf16.gmra.mrb[0].mxu0 %v194
      %v459 = vpop.f32.mrb[0].mxu0
      %v460 = vadd.f32 %v238, %v459
      %v461 = vpop.f32.mrb[0].mxu0
      %v462 = vadd.f32 %v242, %v461
      %v463 = vpop.f32.mrb[0].mxu0
      %v464 = vadd.f32 %v238, %v463
      %v465 = vpop.f32.mrb[0].mxu0
      %v466 = vadd.f32 %v242, %v465
      %467 = vmatprep.mubr.bf16.mxu0 0
      %468 = vmatmul.mubr.bf16.gmra.mrb[0].mxu0 %v195
      %v469 = vpop.f32.mrb[0].mxu0
      %v470 = vadd.f32 %v238, %v469
      %v471 = vpop.f32.mrb[0].mxu0
      %v472 = vadd.f32 %v242, %v471
      %v473 = vpop.f32.mrb[0].mxu0
      %v474 = vadd.f32 %v238, %v473
      %v475 = vpop.f32.mrb[0].mxu0
      %v476 = vadd.f32 %v242, %v475
      %477 = vmatprep.mubr.bf16.mxu0 0
      %478 = vmatmul.mubr.bf16.gmra.mrb[0].mxu0 %v196
      %v479 = vpop.f32.mrb[0].mxu0
      %v480 = vadd.f32 %v238, %v479
      %v481 = vpop.f32.mrb[0].mxu0
      %v482 = vadd.f32 %v242, %v481
      %v483 = vpop.f32.mrb[0].mxu0
      %v484 = vadd.f32 %v238, %v483
      %v485 = vpop.f32.mrb[0].mxu0
      %v486 = vadd.f32 %v242, %v485
      %487 = vmatprep.mubr.bf16.mxu0 0
      %488 = vmatmul.mubr.bf16.gmra.mrb[0].mxu0 %v197
      %v489 = vpop.f32.mrb[0].mxu0
      %v490 = vadd.f32 %v238, %v489
      %v491 = vpop.f32.mrb[0].mxu0
      %v492 = vadd.f32 %v242, %v491
      %v493 = vpop.f32.mrb[0].mxu0
      %v494 = vadd.f32 %v238, %v493
      %v495 = vpop.f32.mrb[0].mxu0
      %v496 = vadd.f32 %v242, %v495
      %497 = vmatprep.mubr.bf16.mxu0 0
      %498 = vmatmul.mubr.bf16.gmra.mrb[0].mxu0 %v198
      %v499 = vpop.f32.mrb[0].mxu0
      %v500 = vadd.f32 %v238, %v499
      %v501 = vpop.f32.mrb[0].mxu0
      %v502 = vadd.f32 %v242, %v501
      %v503 = vpop.f32.mrb[0].mxu0
      %v504 = vadd.f32 %v238, %v503
      %v505 = vpop.f32.mrb[0].mxu0
      %v506 = vadd.f32 %v242, %v505
      %507 = vmatprep.mubr.bf16.mxu0 0
      %508 = vmatmul.mubr.bf16.gmra.mrb[0].mxu0 %v199
      %v509 = vpop.f32.mrb[0].mxu0
      %v510 = vadd.f32 %v238, %v509
      %v511 = vpop.f32.mrb[0].mxu0
      %v512 = vadd.f32 %v242, %v511
      %v513 = vpop.f32.mrb[0].mxu0
      %v514 = vadd.f32 %v238, %v513
      %v515 = vpop.f32.mrb[0].mxu0
      %v516 = vadd.f32 %v242, %v515
      %517 = vmatprep.mubr.bf16.mxu0 0
      %518 = vmatmul.mubr.bf16.gmra.mrb[0].mxu0 %v200
      %v519 = vpop.f32.mrb[0].mxu0
      %v520 = vadd.f32 %v238, %v519
      %v521 = vpop.f32.mrb[0].mxu0
      %v522 = vadd.f32 %v242, %v521
      %v523 = vpop.f32.mrb[0].mxu0
      %v524 = vadd.f32 %v238, %v523
      %v525 = vpop.f32.mrb[0].mxu0
      %v526 = vadd.f32 %v242, %v525
      %527 = vdwg.mxu0
      %528 = vmatprep.subr.bf16.mxu0 %v354
      %529 = vmatpush1.bf16.msra.mxu0 %v353
      %530 = vmatprep.subr.bf16.mxu0 %v358
      %531 = vmatpush1.bf16.msra.mxu0 %v357
      %532 = vmatprep.subr.bf16.mxu0 %v362
      %533 = vmatpush1.bf16.msra.mxu0 %v361
      %534 = vmatprep.subr.bf16.mxu0 %v366
      %535 = vmatpush1.bf16.msra.mxu0 %v365
      %536 = vmatprep.subr.bf16.mxu0 %v370
      %537 = vmatpush1.bf16.msra.mxu0 %v369
      %538 = vmatprep.subr.bf16.mxu0 %v374
      %539 = vmatpush1.bf16.msra.mxu0 %v373
      %540 = vmatprep.subr.bf16.mxu0 %v378
      %541 = vmatpush1.bf16.msra.mxu0 %v377
      %542 = vmatprep.subr.bf16.mxu0 %v382
      %543 = vmatpush1.bf16.msra.mxu0 %v381
      %544 = vmatprep.subr.bf16.mxu0 0
      %545 = vmatpush1.bf16.msra.mxu0 0
      %546 = vmatprep.subr.bf16.mxu0 0
      %547 = vmatpush1.bf16.msra.mxu0 0
      %548 = vmatprep.subr.bf16.mxu0 0
      %549 = vmatpush1.bf16.msra.mxu0 0
      %550 = vmatprep.subr.bf16.mxu0 0
      %551 = vmatpush1.bf16.msra.mxu0 0
      %552 = vmatprep.subr.bf16.mxu0 0
      %553 = vmatpush1.bf16.msra.mxu0 0
      %554 = vmatprep.subr.bf16.mxu0 0
      %555 = vmatpush1.bf16.msra.mxu0 0
      %556 = vmatprep.subr.bf16.mxu0 0
      %557 = vmatpush1.bf16.msra.mxu0 0
      %558 = vmatprep.subr.bf16.mxu0 0
      %559 = vmatpush1.bf16.msra.mxu0 0
      %560 = vmatprep.mubr.bf16.mxu0 0
      %561 = vmatmul.mubr.bf16.gmra.mrb[0].mxu0 %v193
      %v562 = vpop.f32.mrb[0].mxu0
      %v563 = vadd.f32 %v246, %v562
      %v564 = vpop.f32.mrb[0].mxu0
      %v565 = vadd.f32 %v250, %v564
      %v566 = vpop.f32.mrb[0].mxu0
      %v567 = vadd.f32 %v246, %v566
      %v568 = vpop.f32.mrb[0].mxu0
      %v569 = vadd.f32 %v250, %v568
      %570 = vmatprep.mubr.bf16.mxu0 0
      %571 = vmatmul.mubr.bf16.gmra.mrb[0].mxu0 %v194
      %v572 = vpop.f32.mrb[0].mxu0
      %v573 = vadd.f32 %v246, %v572
      %v574 = vpop.f32.mrb[0].mxu0
      %v575 = vadd.f32 %v250, %v574
      %v576 = vpop.f32.mrb[0].mxu0
      %v577 = vadd.f32 %v246, %v576
      %v578 = vpop.f32.mrb[0].mxu0
      %v579 = vadd.f32 %v250, %v578
      %580 = vmatprep.mubr.bf16.mxu0 0
      %581 = vmatmul.mubr.bf16.gmra.mrb[0].mxu0 %v195
      %v582 = vpop.f32.mrb[0].mxu0
      %v583 = vadd.f32 %v246, %v582
      %v584 = vpop.f32.mrb[0].mxu0
      %v585 = vadd.f32 %v250, %v584
      %v586 = vpop.f32.mrb[0].mxu0
      %v587 = vadd.f32 %v246, %v586
      %v588 = vpop.f32.mrb[0].mxu0
      %v589 = vadd.f32 %v250, %v588
      %590 = vmatprep.mubr.bf16.mxu0 0
      %591 = vmatmul.mubr.bf16.gmra.mrb[0].mxu0 %v196
      %v592 = vpop.f32.mrb[0].mxu0
      %v593 = vadd.f32 %v246, %v592
      %v594 = vpop.f32.mrb[0].mxu0
      %v595 = vadd.f32 %v250, %v594
      %v596 = vpop.f32.mrb[0].mxu0
      %v597 = vadd.f32 %v246, %v596
      %v598 = vpop.f32.mrb[0].mxu0
      %v599 = vadd.f32 %v250, %v598
      %600 = vmatprep.mubr.bf16.mxu0 0
      %601 = vmatmul.mubr.bf16.gmra.mrb[0].mxu0 %v197
      %v602 = vpop.f32.mrb[0].mxu0
      %v603 = vadd.f32 %v246, %v602
      %v604 = vpop.f32.mrb[0].mxu0
      %v605 = vadd.f32 %v250, %v604
      %v606 = vpop.f32.mrb[0].mxu0
      %v607 = vadd.f32 %v246, %v606
      %v608 = vpop.f32.mrb[0].mxu0
      %v609 = vadd.f32 %v250, %v608
      %610 = vmatprep.mubr.bf16.mxu0 0
      %611 = vmatmul.mubr.bf16.gmra.mrb[0].mxu0 %v198
      %v612 = vpop.f32.mrb[0].mxu0
      %v613 = vadd.f32 %v246, %v612
      %v614 = vpop.f32.mrb[0].mxu0
      %v615 = vadd.f32 %v250, %v614
      %v616 = vpop.f32.mrb[0].mxu0
      %v617 = vadd.f32 %v246, %v616
      %v618 = vpop.f32.mrb[0].mxu0
      %v619 = vadd.f32 %v250, %v618
      %620 = vmatprep.mubr.bf16.mxu0 0
      %621 = vmatmul.mubr.bf16.gmra.mrb[0].mxu0 %v199
      %v622 = vpop.f32.mrb[0].mxu0
      %v623 = vadd.f32 %v246, %v622
      %v624 = vpop.f32.mrb[0].mxu0
      %v625 = vadd.f32 %v250, %v624
      %v626 = vpop.f32.mrb[0].mxu0
      %v627 = vadd.f32 %v246, %v626
      %v628 = vpop.f32.mrb[0].mxu0
      %v629 = vadd.f32 %v250, %v628
      %630 = vmatprep.mubr.bf16.mxu0 0
      %631 = vmatmul.mubr.bf16.gmra.mrb[0].mxu0 %v200
      %v632 = vpop.f32.mrb[0].mxu0
      %v633 = vadd.f32 %v246, %v632
      %v634 = vpop.f32.mrb[0].mxu0
      %v635 = vadd.f32 %v250, %v634
      %v636 = vpop.f32.mrb[0].mxu0
      %v637 = vadd.f32 %v246, %v636
      %v638 = vpop.f32.mrb[0].mxu0
      %v639 = vadd.f32 %v250, %v638
      %640 = vdwg.mxu0
      %641 = vst [vmem:[%s174] sm:$0xff] %v450
      %642 = vst [vmem:[%s174 + $0x8] sm:$0xff] %v452
      %643 = vst [vmem:[%s174 + $0x10] sm:$0xff] %v563
      %644 = vst [vmem:[%s174 + $0x18] sm:$0xff] %v565
      %645 = vst [vmem:[%s174 + $0x20] sm:$0xff] %v454
      %646 = vst [vmem:[%s174 + $0x28] sm:$0xff] %v456
      %647 = vst [vmem:[%s174 + $0x30] sm:$0xff] %v567
      %648 = vst [vmem:[%s174 + $0x38] sm:$0xff] %v569
      %649 = vst [vmem:[%s174 + $0x40] sm:$0xff] %v460
      %650 = vst [vmem:[%s174 + $0x48] sm:$0xff] %v462
      %651 = vst [vmem:[%s174 + $0x50] sm:$0xff] %v573
      %652 = vst [vmem:[%s174 + $0x58] sm:$0xff] %v575
      %653 = vst [vmem:[%s174 + $0x60] sm:$0xff] %v464
      %654 = vst [vmem:[%s174 + $0x68] sm:$0xff] %v466
      %655 = vst [vmem:[%s174 + $0x70] sm:$0xff] %v577
      %656 = vst [vmem:[%s174 + $0x78] sm:$0xff] %v579
      %657 = vst [vmem:[%s174 + $0x80] sm:$0xff] %v470
      %658 = vst [vmem:[%s174 + $0x88] sm:$0xff] %v472
      %659 = vst [vmem:[%s174 + $0x90] sm:$0xff] %v583
      %660 = vst [vmem:[%s174 + $0x98] sm:$0xff] %v585
      %661 = vst [vmem:[%s174 + $0xa0] sm:$0xff] %v474
      %662 = vst [vmem:[%s174 + $0xa8] sm:$0xff] %v476
      %663 = vst [vmem:[%s174 + $0xb0] sm:$0xff] %v587
      %664 = vst [vmem:[%s174 + $0xb8] sm:$0xff] %v589
      %665 = vst [vmem:[%s174 + $0xc0] sm:$0xff] %v480
      %666 = vst [vmem:[%s174 + $0xc8] sm:$0xff] %v482
      %667 = vst [vmem:[%s174 + $0xd0] sm:$0xff] %v593
      %668 = vst [vmem:[%s174 + $0xd8] sm:$0xff] %v595
      %669 = vst [vmem:[%s174 + $0xe0] sm:$0xff] %v484
      %670 = vst [vmem:[%s174 + $0xe8] sm:$0xff] %v486
      %671 = vst [vmem:[%s174 + $0xf0] sm:$0xff] %v597
      %672 = vst [vmem:[%s174 + $0xf8] sm:$0xff] %v599
      %673 = vst [vmem:[%s174 + $0x100] sm:$0xff] %v490
      %674 = vst [vmem:[%s174 + $0x108] sm:$0xff] %v492
      %675 = vst [vmem:[%s174 + $0x110] sm:$0xff] %v603
      %676 = vst [vmem:[%s174 + $0x118] sm:$0xff] %v605
      %677 = vst [vmem:[%s174 + $0x120] sm:$0xff] %v494
      %678 = vst [vmem:[%s174 + $0x128] sm:$0xff] %v496
      %679 = vst [vmem:[%s174 + $0x130] sm:$0xff] %v607
      %680 = vst [vmem:[%s174 + $0x138] sm:$0xff] %v609
      %681 = vst [vmem:[%s174 + $0x140] sm:$0xff] %v500
      %682 = vst [vmem:[%s174 + $0x148] sm:$0xff] %v502
      %683 = vst [vmem:[%s174 + $0x150] sm:$0xff] %v613
      %684 = vst [vmem:[%s174 + $0x158] sm:$0xff] %v615
      %685 = vst [vmem:[%s174 + $0x160] sm:$0xff] %v504
      %686 = vst [vmem:[%s174 + $0x168] sm:$0xff] %v506
      %687 = vst [vmem:[%s174 + $0x170] sm:$0xff] %v617
      %688 = vst [vmem:[%s174 + $0x178] sm:$0xff] %v619
      %689 = vst [vmem:[%s174 + $0x180] sm:$0xff] %v510
      %690 = vst [vmem:[%s174 + $0x188] sm:$0xff] %v512
      %691 = vst [vmem:[%s174 + $0x190] sm:$0xff] %v623
      %692 = vst [vmem:[%s174 + $0x198] sm:$0xff] %v625
      %693 = vst [vmem:[%s174 + $0x1a0] sm:$0xff] %v514
      %694 = vst [vmem:[%s174 + $0x1a8] sm:$0xff] %v516
      %695 = vst [vmem:[%s174 + $0x1b0] sm:$0xff] %v627
      %696 = vst [vmem:[%s174 + $0x1b8] sm:$0xff] %v629
      %697 = vst [vmem:[%s174 + $0x1c0] sm:$0xff] %v520
      %698 = vst [vmem:[%s174 + $0x1c8] sm:$0xff] %v522
      %699 = vst [vmem:[%s174 + $0x1d0] sm:$0xff] %v633
      %700 = vst [vmem:[%s174 + $0x1d8] sm:$0xff] %v635
      %701 = vst [vmem:[%s174 + $0x1e0] sm:$0xff] %v524
      %702 = vst [vmem:[%s174 + $0x1e8] sm:$0xff] %v526
      %703 = vst [vmem:[%s174 + $0x1f0] sm:$0xff] %v637
      %704 = vst [vmem:[%s174 + $0x1f8] sm:$0xff] %v639
      %s705 = smul.u32 16, %s14
      %p706 = scmp.lt.s32.totalorder %s705, 63
      %s707 = scalar_select %p706, %s705, 63
      %s708 = smul.addr %s707, 4
      %s709 = smul.addr %s708, 8
      %s710 = scalar_lea.vmem %s3, %s709
      // Predicated region
      $region33: #{unet_up_forward.6} parent=31 // pred_check
        %p711 = pneg %p100
      $region34: #{unet_up_forward.6} parent=31 // pred_check_branch
        %713 = sbr.rel (%p711) target = $region36
      $region35: #{unet_up_forward.6} parent=31 // pred_region
        %s714 = smul.u32 16, %s14
      $region36: #{unet_up_forward.6} parent=31 // pred_fallthru
        _
    $region32: #{unet_up_forward.6} parent=5 // pred_fallthru
      _
    %p715 = scmp.le.s32.totalorder 2, %s9
    // Predicated region
    $region37: #{unet_up_forward.6} parent=5 // pred_check
      %p716 = pneg %p715
    $region38: #{unet_up_forward.6} parent=5 // pred_check_branch
      %718 = sbr.rel (%p716) target = $region40
    $region39: #{unet_up_forward.6} parent=5 // pred_region
      %s719 = ssub.s32 %s9, 2
      // Predicated region
      $region41: #{unet_up_forward.6} parent=39 // pred_check
        %p720 = pneg %p106
      $region42: #{unet_up_forward.6} parent=39 // pred_check_branch
        %722 = sbr.rel (%p720) target = $region44
      $region43: #{unet_up_forward.6} parent=39 // pred_region
        %s723 = smul.u32 16, %s15
        %p724 = scmp.lt.s32.totalorder %s723, 63
        %s725 = scalar_select %p724, %s723, 63
        %s726 = smul.addr %s725, 4
        %s727 = smul.addr %s726, 8
        %s728 = scalar_lea.vmem %s3, %s727
      $region44: #{unet_up_forward.6} parent=39 // pred_fallthru
        _
    $region40: #{unet_up_forward.6} parent=5 // pred_fallthru
      _
  $region6: #{unet_up_forward.6} parent=0 // loop_footer
    %s13 = sadd.s32 1, %s9
  $region7: #{unet_up_forward.6} parent=0 // loop_footer_branch
    %8 = sbr.rel target = $region3
  $region8: #{unet_up_forward.6} parent=0 // loop_exit
    _

// kernel: unet_up_forward.7
$region0: #{unet_up_forward.7}
  #allocation0 [shape = 'u32[]', space=smem, size = 0x4, offset = 0x4, fixed_abs, tag = 'smem constant byte address 0x4 - core index']
  #allocation1 [shape = 'u32[144,128]{1,0:T(1,128)}', space=vmem, size = 0x12000, scoped, tag = 'internal scratch']
  %s0 = inlined_call_operand.vmem [shape: bf16[2,4,10,34,128], index: 0, kind: input, shape index: {}]
  %s1 = inlined_call_operand.vmem [shape: bf16[3,3,128,128], index: 1, kind: input, shape index: {}]
  %s2 = inlined_call_operand.vmem [shape: f32[1,128], index: 2, kind: input, shape index: {}]
  %s3 = inlined_call_operand.vmem [shape: f32[2,32,32,128], index: 3, kind: output, shape index: {0}]
  %s4 = inlined_call_operand.vmem [shape: f32[2,4,2,128], index: 4, kind: output, shape index: {1}]
  %5 = xla_tuple %s3, %s4
  %s6 = sld [smem:[#allocation0]]
  $region53: #{unet_up_forward.7} parent=0
    _
  %s8 = ssub.s32 1, %s6
  %s9 = scalar_select 0, %s8, %s6
  loop: start=0, step=1, limit=10
  $region2: #{unet_up_forward.7} parent=0 // loop_pre_header
    _
  $region3: #{unet_up_forward.7} parent=0 // loop_header
    %s11 = sphi 0, %s15
    %p12 = scmp.ge.s32.totalorder %s11, 10
    %s18 = sphi 0, %s30
    %s19 = sphi 0, %s26
    %s20 = sphi 0, %s18
    %s21 = sphi 0, %s19
    %s22 = sphi 0, %s20
    %s23 = sphi 0, %s21
    %s35 = sphi 0, %s37
    %s38 = sphi 0, %s35
    %s39 = sphi 0, %s38
    %s55 = sphi 0, %s39
    %s59 = sphi 0, %s59
    %s61 = sphi 0, %s59
    %s62 = sphi 0, %s61
    %s76 = sphi 0, %s62
    %s80 = sphi 0, %s80
    %s82 = sphi 0, %s80
    %s83 = sphi 0, %s82
    %s97 = sphi 0, %s83
    %s105 = sphi 0, %s107
    %s108 = sphi 0, %s105
    %s109 = sphi 0, %s108
    %s125 = sphi 0, %s109
    %s133 = sphi 0, %s135
    %s136 = sphi 0, %s133
    %s137 = sphi 0, %s136
    %s153 = sphi 0, %s137
  $region4: #{unet_up_forward.7} parent=0 // loop_header_branch
    %14 = sbr.rel (%p12) target = $region8
  $region5: #{unet_up_forward.7} parent=0 // loop_body
    %s16 = ssub.s32 %s11, 1
    %s17 = ssub.s32 %s11, 2
    %s24 = sadd.s32 1, %s19
    %p25 = scmp.ge.s32.totalorder %s24, 4
    %s26 = scalar_select %p25, 0, %s24
    %s27 = sadd.s32 1, %s18
    %s28 = scalar_select %p25, %s27, %s18
    %p29 = scmp.ge.s32.totalorder %s28, 2
    %s30 = scalar_select %p29, 0, %s28
    %s31 = ssub.s32 %s18, %s30
    %s32 = ssub.s32 %s19, %s26
    %s33 = sor.u32 %s31, %s32
    %p34 = scmp.eq.s32.totalorder %s33, 0
    %s36 = sadd.s32 %s35, 1
    %s37 = scalar_select %p34, %s35, %s36
    %p40 = pneg %p34
    %p41 = scmp.eq.s32.totalorder %s11, 7
    %p42 = por %p40, %p41
    %p43 = scmp.ne.s32.totalorder %s35, %s38
    %p44 = scmp.eq.s32.totalorder %s11, 0
    %p45 = por %p43, %p44
    %p46 = scmp.ne.s32.totalorder %s35, %s38
    %p47 = scmp.eq.s32.totalorder %s16, 7
    %p48 = por %p46, %p47
    %p49 = scmp.ne.s32.totalorder %s38, %s39
    %p50 = scmp.eq.s32.totalorder %s16, 0
    %p51 = por %p49, %p50
    %p52 = scmp.ne.s32.totalorder %s38, %s39
    %p53 = scmp.eq.s32.totalorder %s17, 7
    %p54 = por %p52, %p53
    %p56 = scmp.ne.s32.totalorder %s39, %s55
    %p57 = scmp.eq.s32.totalorder %s17, 0
    %p58 = por %p56, %p57
    %s60 = sadd.s32 %s59, 1
    %p63 = scmp.eq.s32.totalorder %s11, 7
    %p64 = scmp.ne.s32.totalorder %s59, %s61
    %p65 = scmp.eq.s32.totalorder %s11, 0
    %p66 = por %p64, %p65
    %p67 = scmp.ne.s32.totalorder %s59, %s61
    %p68 = scmp.eq.s32.totalorder %s16, 7
    %p69 = por %p67, %p68
    %p70 = scmp.ne.s32.totalorder %s61, %s62
    %p71 = scmp.eq.s32.totalorder %s16, 0
    %p72 = por %p70, %p71
    %p73 = scmp.ne.s32.totalorder %s61, %s62
    %p74 = scmp.eq.s32.totalorder %s17, 7
    %p75 = por %p73, %p74
    %p77 = scmp.ne.s32.totalorder %s62, %s76
    %p78 = scmp.eq.s32.totalorder %s17, 0
    %p79 = por %p77, %p78
    %s81 = sadd.s32 %s80, 1
    %p84 = scmp.eq.s32.totalorder %s11, 7
    %p85 = scmp.ne.s32.totalorder %s80, %s82
    %p86 = scmp.eq.s32.totalorder %s11, 0
    %p87 = por %p85, %p86
    %p88 = scmp.ne.s32.totalorder %s80, %s82
    %p89 = scmp.eq.s32.totalorder %s16, 7
    %p90 = por %p88, %p89
    %p91 = scmp.ne.s32.totalorder %s82, %s83
    %p92 = scmp.eq.s32.totalorder %s16, 0
    %p93 = por %p91, %p92
    %p94 = scmp.ne.s32.totalorder %s82, %s83
    %p95 = scmp.eq.s32.totalorder %s17, 7
    %p96 = por %p94, %p95
    %p98 = scmp.ne.s32.totalorder %s83, %s97
    %p99 = scmp.eq.s32.totalorder %s17, 0
    %p100 = por %p98, %p99
    %s101 = ssub.s32 %s18, %s30
    %s102 = ssub.s32 %s19, %s26
    %s103 = sor.u32 %s101, %s102
    %p104 = scmp.eq.s32.totalorder %s103, 0
    %s106 = sadd.s32 %s105, 1
    %s107 = scalar_select %p104, %s105, %s106
    %p110 = pneg %p104
    %p111 = scmp.eq.s32.totalorder %s11, 7
    %p112 = por %p110, %p111
    %p113 = scmp.ne.s32.totalorder %s105, %s108
    %p114 = scmp.eq.s32.totalorder %s11, 0
    %p115 = por %p113, %p114
    %p116 = scmp.ne.s32.totalorder %s105, %s108
    %p117 = scmp.eq.s32.totalorder %s16, 7
    %p118 = por %p116, %p117
    %p119 = scmp.ne.s32.totalorder %s108, %s109
    %p120 = scmp.eq.s32.totalorder %s16, 0
    %p121 = por %p119, %p120
    %p122 = scmp.ne.s32.totalorder %s108, %s109
    %p123 = scmp.eq.s32.totalorder %s17, 7
    %p124 = por %p122, %p123
    %p126 = scmp.ne.s32.totalorder %s109, %s125
    %p127 = scmp.eq.s32.totalorder %s17, 0
    %p128 = por %p126, %p127
    %s129 = ssub.s32 %s18, %s30
    %s130 = ssub.s32 %s19, %s26
    %s131 = sor.u32 %s129, %s130
    %p132 = scmp.eq.s32.totalorder %s131, 0
    %s134 = sadd.s32 %s133, 1
    %s135 = scalar_select %p132, %s133, %s134
    %p138 = pneg %p132
    %p139 = scmp.eq.s32.totalorder %s11, 7
    %p140 = por %p138, %p139
    %p141 = scmp.ne.s32.totalorder %s133, %s136
    %p142 = scmp.eq.s32.totalorder %s11, 0
    %p143 = por %p141, %p142
    %p144 = scmp.ne.s32.totalorder %s133, %s136
    %p145 = scmp.eq.s32.totalorder %s16, 7
    %p146 = por %p144, %p145
    %p147 = scmp.ne.s32.totalorder %s136, %s137
    %p148 = scmp.eq.s32.totalorder %s16, 0
    %p149 = por %p147, %p148
    %p150 = scmp.ne.s32.totalorder %s136, %s137
    %p151 = scmp.eq.s32.totalorder %s17, 7
    %p152 = por %p150, %p151
    %p154 = scmp.ne.s32.totalorder %s137, %s153
    %p155 = scmp.eq.s32.totalorder %s17, 0
    %p156 = por %p154, %p155
    %p157 = scmp.le.s32.totalorder 1, %s11
    %p158 = scmp.lt.s32.totalorder %s11, 9
    %p159 = pnand %p157, %p158
    %p160 = pneg %p159
    // Predicated region
    $region9: #{unet_up_forward.7} parent=5 // pred_check
      _
    $region10: #{unet_up_forward.7} parent=5 // pred_check_branch
      %162 = sbr.rel (%p159) target = $region12
    $region11: #{unet_up_forward.7} parent=5 // pred_region
      %s163 = ssub.s32 %s11, 1
      // Predicated region
      $region13: #{unet_up_forward.7} parent=11 // pred_check
        %p164 = pneg %p72
      $region14: #{unet_up_forward.7} parent=11 // pred_check_branch
        %166 = sbr.rel (%p164) target = $region16
      $region15: #{unet_up_forward.7} parent=11 // pred_region
        _
      $region16: #{unet_up_forward.7} parent=11 // pred_fallthru
        _
      // Predicated region
      $region17: #{unet_up_forward.7} parent=11 // pred_check
        %p167 = pneg %p93
      $region18: #{unet_up_forward.7} parent=11 // pred_check_branch
        %169 = sbr.rel (%p167) target = $region20
      $region19: #{unet_up_forward.7} parent=11 // pred_region
        _
      $region20: #{unet_up_forward.7} parent=11 // pred_fallthru
        _
    $region12: #{unet_up_forward.7} parent=5 // pred_fallthru
      _
    %p170 = scmp.lt.s32.totalorder %s11, 8
    // Predicated region
    $region21: #{unet_up_forward.7} parent=5 // pred_check
      %p171 = pneg %p170
    $region22: #{unet_up_forward.7} parent=5 // pred_check_branch
      %173 = sbr.rel (%p171) target = $region24
    $region23: #{unet_up_forward.7} parent=5 // pred_region
      // Predicated region
      $region25: #{unet_up_forward.7} parent=23 // pred_check
        %p174 = pneg %p45
      $region26: #{unet_up_forward.7} parent=23 // pred_check_branch
        %176 = sbr.rel (%p174) target = $region28
      $region27: #{unet_up_forward.7} parent=23 // pred_region
        %p177 = scmp.lt.s32.totalorder %s18, 1
        %s178 = scalar_select %p177, %s18, 1
        %p179 = scmp.lt.s32.totalorder %s19, 3
        %s180 = scalar_select %p179, %s19, 3
        %s181 = smul.addr %s180, 50
        %s182 = smul.addr %s178, 200
        %s183 = sadd.s32 %s181, %s182
        %s184 = smul.addr %s183, 4
        %s185 = scalar_lea.vmem %s0, %s184
      $region28: #{unet_up_forward.7} parent=23 // pred_fallthru
        _
    $region24: #{unet_up_forward.7} parent=5 // pred_fallthru
      _
    %p186 = scmp.le.s32.totalorder 1, %s11
    %p187 = scmp.lt.s32.totalorder %s11, 9
    %p188 = pnand %p186, %p187
    %p189 = pneg %p188
    // Predicated region
    $region29: #{unet_up_forward.7} parent=5 // pred_check
      _
    $region30: #{unet_up_forward.7} parent=5 // pred_check_branch
      %191 = sbr.rel (%p188) target = $region32
    $region31: #{unet_up_forward.7} parent=5 // pred_region
      %s192 = ssub.s32 %s11, 1
      %p193 = scmp.lt.s32.totalorder %s20, 1
      %s194 = scalar_select %p193, %s20, 1
      %p195 = scmp.lt.s32.totalorder %s21, 3
      %s196 = scalar_select %p195, %s21, 3
      %s197 = smul.addr %s196, 50
      %s198 = smul.addr %s194, 200
      %s199 = sadd.s32 %s197, %s198
      %s200 = smul.addr %s199, 4
      %s201 = scalar_lea.vmem %s0, %s200
      %p202 = pneg %p51
      %p203 = pneg %p48
      %p204 = pneg %p72
      %p205 = pneg %p69
      %p206 = pneg %p93
      %p207 = pneg %p90
      %p208 = pneg %p121
      %p209 = pneg %p118
      %s210 = smul.u32 8, %s21
      %p211 = scmp.lt.s32.totalorder %s20, 1
      %s212 = scalar_select %p211, %s20, 1
      %p213 = scmp.lt.s32.totalorder %s210, 31
      %s214 = scalar_select %p213, %s210, 31
      %s215 = smul.addr %s214, 4
      %s216 = smul.addr %s212, 128
      %s217 = sadd.s32 %s215, %s216
      %s218 = smul.addr %s217, 8
      %s219 = scalar_lea.vmem %s3, %s218
      %p220 = pneg %p149
      %p221 = pneg %p146
      %p222 = scmp.lt.s32.totalorder %s20, 1
      %s223 = scalar_select %p222, %s20, 1
      %p224 = scmp.lt.s32.totalorder %s21, 3
      %s225 = scalar_select %p224, %s21, 3
      %s226 = smul.addr %s223, 4
      %s227 = sadd.s32 %s225, %s226
      %s228 = smul.addr %s227, 2
      %s229 = scalar_lea.vmem %s4, %s228
      %p230 = scmp.lt.s32.totalorder %s20, 1
      %s231 = scalar_select %p230, %s20, 1
      %p232 = scmp.lt.s32.totalorder %s21, 3
      %s233 = scalar_select %p232, %s21, 3
      %s234 = smul.addr %s233, 50
      %s235 = smul.addr %s231, 200
      %s236 = sadd.s32 %s234, %s235
      %s237 = smul.addr %s236, 4
      %s238 = scalar_lea.vmem %s0, %s237
      %s239 = smul.u32 8, %s21
      %p240 = scmp.lt.s32.totalorder %s20, 1
      %s241 = scalar_select %p240, %s20, 1
      %p242 = scmp.lt.s32.totalorder %s239, 31
      %s243 = scalar_select %p242, %s239, 31
      %s244 = smul.addr %s243, 4
      %s245 = smul.addr %s241, 128
      %s246 = sadd.s32 %s244, %s245
      %s247 = smul.addr %s246, 8
      %s248 = scalar_lea.vmem %s3, %s247
      %s249 = smul.u32 8, %s21
      %p250 = scmp.lt.s32.totalorder %s20, 1
      %s251 = scalar_select %p250, %s20, 1
      %p252 = scmp.lt.s32.totalorder %s21, 3
      %s253 = scalar_select %p252, %s21, 3
      %s254 = smul.addr %s251, 4
      %s255 = sadd.s32 %s253, %s254
      %s256 = smul.addr %s255, 2
      %s257 = scalar_lea.vmem %s4, %s256
      %v259 = vld [vmem:[%s238] sm:$0xf]
      %v260 = vld [vmem:[%s238 + $0x4] sm:$0xf]
      %v261 = vld [vmem:[%s238 + $0x8] sm:$0xf]
      %v262 = vld [vmem:[%s238 + $0xc] sm:$0xf]
      %v263 = vld [vmem:[%s238 + $0x10] sm:$0x1]
      %v264 = vld [vmem:[%s238 + $0x14] sm:$0xf]
      %v265 = vld [vmem:[%s238 + $0x18] sm:$0xf]
      %v266 = vld [vmem:[%s238 + $0x1c] sm:$0xf]
      %v267 = vld [vmem:[%s238 + $0x20] sm:$0xf]
      %v268 = vld [vmem:[%s238 + $0x24] sm:$0x1]
      %v269 = vld [vmem:[%s238 + $0x28] sm:$0xf]
      %v270 = vld [vmem:[%s238 + $0x2c] sm:$0xf]
      %v271 = vld [vmem:[%s238 + $0x30] sm:$0xf]
      %v272 = vld [vmem:[%s238 + $0x34] sm:$0xf]
      %v273 = vld [vmem:[%s238 + $0x38] sm:$0x1]
      %v274 = vld [vmem:[%s238 + $0x3c] sm:$0xf]
      %v275 = vld [vmem:[%s238 + $0x40] sm:$0xf]
      %v276 = vld [vmem:[%s238 + $0x44] sm:$0xf]
      %v277 = vld [vmem:[%s238 + $0x48] sm:$0xf]
      %v278 = vld [vmem:[%s238 + $0x4c] sm:$0x1]
      %v279 = vld [vmem:[%s238 + $0x50] sm:$0xf]
      %v280 = vld [vmem:[%s238 + $0x54] sm:$0xf]
      %v281 = vld [vmem:[%s238 + $0x58] sm:$0xf]
      %v282 = vld [vmem:[%s238 + $0x5c] sm:$0xf]
      %v283 = vld [vmem:[%s238 + $0x60] sm:$0x1]
      %v284 = vld [vmem:[%s238 + $0x64] sm:$0xf]
      %v285 = vld [vmem:[%s238 + $0x68] sm:$0xf]
      %v286 = vld [vmem:[%s238 + $0x6c] sm:$0xf]
      %v287 = vld [vmem:[%s238 + $0x70] sm:$0xf]
      %v288 = vld [vmem:[%s238 + $0x74] sm:$0x1]
      %v289 = vld [vmem:[%s238 + $0x78] sm:$0xf]
      %v290 = vld [vmem:[%s238 + $0x7c] sm:$0xf]
      %v291 = vld [vmem:[%s238 + $0x80] sm:$0xf]
      %v292 = vld [vmem:[%s238 + $0x84] sm:$0xf]
      %v293 = vld [vmem:[%s238 + $0x88] sm:$0x1]
      %v294 = vld [vmem:[%s238 + $0x8c] sm:$0xf]
      %v295 = vld [vmem:[%s238 + $0x90] sm:$0xf]
      %v296 = vld [vmem:[%s238 + $0x94] sm:$0xf]
      %v297 = vld [vmem:[%s238 + $0x98] sm:$0xf]
      %v298 = vld [vmem:[%s238 + $0x9c] sm:$0x1]
      %v299 = vld [vmem:[%s238 + $0xa0] sm:$0xf]
      %v300 = vld [vmem:[%s238 + $0xa4] sm:$0xf]
      %v301 = vld [vmem:[%s238 + $0xa8] sm:$0xf]
      %v302 = vld [vmem:[%s238 + $0xac] sm:$0xf]
      %v303 = vld [vmem:[%s238 + $0xb0] sm:$0x1]
      %v304 = vld [vmem:[%s238 + $0xb4] sm:$0xf]
      %v305 = vld [vmem:[%s238 + $0xb8] sm:$0xf]
      %v306 = vld [vmem:[%s238 + $0xbc] sm:$0xf]
      %v307 = vld [vmem:[%s238 + $0xc0] sm:$0xf]
      %v308 = vld [vmem:[%s238 + $0xc4] sm:$0x1]
      %v309 = vld [vmem:[%s1] sm:$0xf]
      %v310 = vld [vmem:[%s1 + $0x4] sm:$0xf]
      %v311 = vld [vmem:[%s1 + $0x8] sm:$0xf]
      %v312 = vld [vmem:[%s1 + $0xc] sm:$0xf]
      %v313 = vld [vmem:[%s1 + $0x10] sm:$0xf]
      %v314 = vld [vmem:[%s1 + $0x14] sm:$0xf]
      %v315 = vld [vmem:[%s1 + $0x18] sm:$0xf]
      %v316 = vld [vmem:[%s1 + $0x1c] sm:$0xf]
      %v317 = vld [vmem:[%s1 + $0x20] sm:$0xf]
      %v318 = vld [vmem:[%s1 + $0x24] sm:$0xf]
      %v319 = vld [vmem:[%s1 + $0x28] sm:$0xf]
      %v320 = vld [vmem:[%s1 + $0x2c] sm:$0xf]
      %v321 = vld [vmem:[%s1 + $0x30] sm:$0xf]
      %v322 = vld [vmem:[%s1 + $0x34] sm:$0xf]
      %v323 = vld [vmem:[%s1 + $0x38] sm:$0xf]
      %v324 = vld [vmem:[%s1 + $0x3c] sm:$0xf]
      %vm325 = vsmask.f32 3328
      %vm326 = vsmask.f32 7440
      %vm327 = vmor %vm325, %vm326
      %v329 = vshrl.u32 %v259, 16
      %v331 = vrot.slane %v329, 4
      %v332 = vshll.u32 %v259, 16
      %v334 = vrot.slane %v332, 5
      %v335 = vor.u32 %v331, %v334
      %v336 = vrot.slane %v335, 4
      %v338 = vshll.u32 %v260, 16
      %v340 = vrot.slane %v338, 5
      %v341 = vsel %vm327, %v336, %v340
      %v342 = vshrl.u32 %v260, 16
      %v344 = vrot.slane %v342, 4
      %v345 = vor.u32 %v344, %v340
      %v346 = vrot.slane %v345, 4
      %v348 = vshll.u32 %v261, 16
      %v350 = vrot.slane %v348, 5
      %v351 = vsel %vm327, %v346, %v350
      %v352 = vshrl.u32 %v261, 16
      %v354 = vrot.slane %v352, 4
      %v355 = vor.u32 %v354, %v350
      %v356 = vrot.slane %v355, 4
      %v358 = vshll.u32 %v262, 16
      %v360 = vrot.slane %v358, 5
      %v361 = vsel %vm327, %v356, %v360
      %v362 = vshrl.u32 %v262, 16
      %v364 = vrot.slane %v362, 4
      %v365 = vor.u32 %v364, %v360
      %v366 = vrot.slane %v365, 4
      %v368 = vshll.u32 %v263, 16
      %v370 = vrot.slane %v368, 5
      %v371 = vsel %vm327, %v366, %v370
      %v373 = vshrl.u32 %v264, 16
      %v375 = vrot.slane %v373, 4
      %v376 = vshll.u32 %v264, 16
      %v378 = vrot.slane %v376, 5
      %v379 = vor.u32 %v375, %v378
      %v380 = vrot.slane %v379, 4
      %v382 = vshll.u32 %v265, 16
      %v384 = vrot.slane %v382, 5
      %v385 = vsel %vm327, %v380, %v384
      %v386 = vshrl.u32 %v265, 16
      %v388 = vrot.slane %v386, 4
      %v389 = vor.u32 %v388, %v384
      %v390 = vrot.slane %v389, 4
      %v392 = vshll.u32 %v266, 16
      %v394 = vrot.slane %v392, 5
      %v395 = vsel %vm327, %v390, %v394
      %v396 = vshrl.u32 %v266, 16
      %v398 = vrot.slane %v396, 4
      %v399 = vor.u32 %v398, %v394
      %v400 = vrot.slane %v399, 4
      %v402 = vshll.u32 %v267, 16
      %v404 = vrot.slane %v402, 5
      %v405 = vsel %vm327, %v400, %v404
      %v406 = vshrl.u32 %v267, 16
      %v408 = vrot.slane %v406, 4
      %v409 = vor.u32 %v408, %v404
      %v410 = vrot.slane %v409, 4
      %v412 = vshll.u32 %v268, 16
      %v414 = vrot.slane %v412, 5
      %v415 = vsel %vm327, %v410, %v414
      %v417 = vshrl.u32 %v269, 16
      %v419 = vrot.slane %v417, 4
      %v420 = vshll.u32 %v269, 16
      %v422 = vrot.slane %v420, 5
      %v423 = vor.u32 %v419, %v422
      %v424 = vrot.slane %v423, 4
      %v426 = vshll.u32 %v270, 16
      %v428 = vrot.slane %v426, 5
      %v429 = vsel %vm327, %v424, %v428
      %v430 = vshrl.u32 %v270, 16
      %v432 = vrot.slane %v430, 4
      %v433 = vor.u32 %v432, %v428
      %v434 = vrot.slane %v433, 4
      %v436 = vshll.u32 %v271, 16
      %v438 = vrot.slane %v436, 5
      %v439 = vsel %vm327, %v434, %v438
      %v440 = vshrl.u32 %v271, 16
      %v442 = vrot.slane %v440, 4
      %v443 = vor.u32 %v442, %v438
      %v444 = vrot.slane %v443, 4
      %v446 = vshll.u32 %v272, 16
      %v448 = vrot.slane %v446, 5
      %v449 = vsel %vm327, %v444, %v448
      %v450 = vshrl.u32 %v272, 16
      %v452 = vrot.slane %v450, 4
      %v453 = vor.u32 %v452, %v448
      %v454 = vrot.slane %v453, 4
      %v456 = vshll.u32 %v273, 16
      %v458 = vrot.slane %v456, 5
      %v459 = vsel %vm327, %v454, %v458
      %v461 = vshrl.u32 %v274, 16
      %v463 = vrot.slane %v461, 4
      %v464 = vshll.u32 %v274, 16
      %v466 = vrot.slane %v464, 5
      %v467 = vor.u32 %v463, %v466
      %v468 = vrot.slane %v467, 4
      %v470 = vshll.u32 %v275, 16
      %v472 = vrot.slane %v470, 5
      %v473 = vsel %vm327, %v468, %v472
      %v474 = vshrl.u32 %v275, 16
      %v476 = vrot.slane %v474, 4
      %v477 = vor.u32 %v476, %v472
      %v478 = vrot.slane %v477, 4
      %v480 = vshll.u32 %v276, 16
      %v482 = vrot.slane %v480, 5
      %v483 = vsel %vm327, %v478, %v482
      %v484 = vshrl.u32 %v276, 16
      %v486 = vrot.slane %v484, 4
      %v487 = vor.u32 %v486, %v482
      %v488 = vrot.slane %v487, 4
      %v490 = vshll.u32 %v277, 16
      %v492 = vrot.slane %v490, 5
      %v493 = vsel %vm327, %v488, %v492
      %v494 = vshrl.u32 %v277, 16
      %v496 = vrot.slane %v494, 4
      %v497 = vor.u32 %v496, %v492
      %v498 = vrot.slane %v497, 4
      %v500 = vshll.u32 %v278, 16
      %v502 = vrot.slane %v500, 5
      %v503 = vsel %vm327, %v498, %v502
      %v505 = vshrl.u32 %v279, 16
      %v507 = vrot.slane %v505, 4
      %v508 = vshll.u32 %v279, 16
      %v510 = vrot.slane %v508, 5
      %v511 = vor.u32 %v507, %v510
      %v512 = vrot.slane %v511, 4
      %v514 = vshll.u32 %v280, 16
      %v516 = vrot.slane %v514, 5
      %v517 = vsel %vm327, %v512, %v516
      %v518 = vshrl.u32 %v280, 16
      %v520 = vrot.slane %v518, 4
      %v521 = vor.u32 %v520, %v516
      %v522 = vrot.slane %v521, 4
      %v524 = vshll.u32 %v281, 16
      %v526 = vrot.slane %v524, 5
      %v527 = vsel %vm327, %v522, %v526
      %v528 = vshrl.u32 %v281, 16
      %v530 = vrot.slane %v528, 4
      %v531 = vor.u32 %v530, %v526
      %v532 = vrot.slane %v531, 4
      %v534 = vshll.u32 %v282, 16
      %v536 = vrot.slane %v534, 5
      %v537 = vsel %vm327, %v532, %v536
      %v538 = vshrl.u32 %v282, 16
      %v540 = vrot.slane %v538, 4
      %v541 = vor.u32 %v540, %v536
      %v542 = vrot.slane %v541, 4
      %v544 = vshll.u32 %v283, 16
      %v546 = vrot.slane %v544, 5
      %v547 = vsel %vm327, %v542, %v546
      %v549 = vshrl.u32 %v284, 16
      %v551 = vrot.slane %v549, 4
      %v552 = vshll.u32 %v284, 16
      %v554 = vrot.slane %v552, 5
      %v555 = vor.u32 %v551, %v554
      %v556 = vrot.slane %v555, 4
      %v558 = vshll.u32 %v285, 16
      %v560 = vrot.slane %v558, 5
      %v561 = vsel %vm327, %v556, %v560
      %v562 = vshrl.u32 %v285, 16
      %v564 = vrot.slane %v562, 4
      %v565 = vor.u32 %v564, %v560
      %v566 = vrot.slane %v565, 4
      %v568 = vshll.u32 %v286, 16
      %v570 = vrot.slane %v568, 5
      %v571 = vsel %vm327, %v566, %v570
      %v572 = vshrl.u32 %v286, 16
      %v574 = vrot.slane %v572, 4
      %v575 = vor.u32 %v574, %v570
      %v576 = vrot.slane %v575, 4
      %v578 = vshll.u32 %v287, 16
      %v580 = vrot.slane %v578, 5
      %v581 = vsel %vm327, %v576, %v580
      %v582 = vshrl.u32 %v287, 16
      %v584 = vrot.slane %v582, 4
      %v585 = vor.u32 %v584, %v580
      %v586 = vrot.slane %v585, 4
      %v588 = vshll.u32 %v288, 16
      %v590 = vrot.slane %v588, 5
      %v591 = vsel %vm327, %v586, %v590
      %v593 = vshrl.u32 %v289, 16
      %v595 = vrot.slane %v593, 4
      %v596 = vshll.u32 %v289, 16
      %v598 = vrot.slane %v596, 5
      %v599 = vor.u32 %v595, %v598
      %v600 = vrot.slane %v599, 4
      %v602 = vshll.u32 %v290, 16
      %v604 = vrot.slane %v602, 5
      %v605 = vsel %vm327, %v600, %v604
      %v606 = vshrl.u32 %v290, 16
      %v608 = vrot.slane %v606, 4
      %v609 = vor.u32 %v608, %v604
      %v610 = vrot.slane %v609, 4
      %v612 = vshll.u32 %v291, 16
      %v614 = vrot.slane %v612, 5
      %v615 = vsel %vm327, %v610, %v614
      %v616 = vshrl.u32 %v291, 16
      %v618 = vrot.slane %v616, 4
      %v619 = vor.u32 %v618, %v614
      %v620 = vrot.slane %v619, 4
      %v622 = vshll.u32 %v292, 16
      %v624 = vrot.slane %v622, 5
      %v625 = vsel %vm327, %v620, %v624
      %v626 = vshrl.u32 %v292, 16
      %v628 = vrot.slane %v626, 4
      %v629 = vor.u32 %v628, %v624
      %v630 = vrot.slane %v629, 4
      %v632 = vshll.u32 %v293, 16
      %v634 = vrot.slane %v632, 5
      %v635 = vsel %vm327, %v630, %v634
      %v637 = vshrl.u32 %v294, 16
      %v639 = vrot.slane %v637, 4
      %v640 = vshll.u32 %v294, 16
      %v642 = vrot.slane %v640, 5
      %v643 = vor.u32 %v639, %v642
      %v644 = vrot.slane %v643, 4
      %v646 = vshll.u32 %v295, 16
      %v648 = vrot.slane %v646, 5
      %v649 = vsel %vm327, %v644, %v648
      %v650 = vshrl.u32 %v295, 16
      %v652 = vrot.slane %v650, 4
      %v653 = vor.u32 %v652, %v648
      %v654 = vrot.slane %v653, 4
      %v656 = vshll.u32 %v296, 16
      %v658 = vrot.slane %v656, 5
      %v659 = vsel %vm327, %v654, %v658
      %v660 = vshrl.u32 %v296, 16
      %v662 = vrot.slane %v660, 4
      %v663 = vor.u32 %v662, %v658
      %v664 = vrot.slane %v663, 4
      %v666 = vshll.u32 %v297, 16
      %v668 = vrot.slane %v666, 5
      %v669 = vsel %vm327, %v664, %v668
      %v670 = vshrl.u32 %v297, 16
      %v672 = vrot.slane %v670, 4
      %v673 = vor.u32 %v672, %v668
      %v674 = vrot.slane %v673, 4
      %v676 = vshll.u32 %v298, 16
      %v678 = vrot.slane %v676, 5
      %v679 = vsel %vm327, %v674, %v678
      %s680 = scalar_lea.vmem %s1, 64
      %v681 = vld [vmem:[%s680] sm:$0xf]
      %v682 = vld [vmem:[%s680 + $0x4] sm:$0xf]
      %v683 = vld [vmem:[%s680 + $0x8] sm:$0xf]
      %v684 = vld [vmem:[%s680 + $0xc] sm:$0xf]
      %v685 = vld [vmem:[%s680 + $0x10] sm:$0xf]
      %v686 = vld [vmem:[%s680 + $0x14] sm:$0xf]
      %v687 = vld [vmem:[%s680 + $0x18] sm:$0xf]
      %v688 = vld [vmem:[%s680 + $0x1c] sm:$0xf]
      %v689 = vld [vmem:[%s680 + $0x20] sm:$0xf]
      %v690 = vld [vmem:[%s680 + $0x24] sm:$0xf]
      %v691 = vld [vmem:[%s680 + $0x28] sm:$0xf]
      %v692 = vld [vmem:[%s680 + $0x2c] sm:$0xf]
      %v693 = vld [vmem:[%s680 + $0x30] sm:$0xf]
      %v694 = vld [vmem:[%s680 + $0x34] sm:$0xf]
      %v695 = vld [vmem:[%s680 + $0x38] sm:$0xf]
      %v696 = vld [vmem:[%s680 + $0x3c] sm:$0xf]
      %v697 = vunpack.c.l.b16 %v341
      %v698 = vunpack.c.l.b16 %v351
      %v699 = vunpack.c.l.b16 %v361
      %v700 = vunpack.c.l.b16 %v371
      %v701 = vunpack.c.l.b16 %v385
      %v702 = vunpack.c.l.b16 %v395
      %v703 = vunpack.c.l.b16 %v405
      %v704 = vunpack.c.l.b16 %v415
      %v705 = vunpack.c.l.b16 %v429
      %v706 = vunpack.c.l.b16 %v439
      %v707 = vunpack.c.l.b16 %v449
      %v708 = vunpack.c.l.b16 %v459
      %v709 = vunpack.c.l.b16 %v473
      %v710 = vunpack.c.l.b16 %v483
      %v711 = vunpack.c.l.b16 %v493
      %v712 = vunpack.c.l.b16 %v503
      %v713 = vunpack.c.l.b16 %v517
      %v714 = vunpack.c.l.b16 %v527
      %v715 = vunpack.c.l.b16 %v537
      %v716 = vunpack.c.l.b16 %v547
      %v717 = vunpack.c.l.b16 %v561
      %v718 = vunpack.c.l.b16 %v571
      %v719 = vunpack.c.l.b16 %v581
      %v720 = vunpack.c.l.b16 %v591
      %v721 = vunpack.c.l.b16 %v605
      %v722 = vunpack.c.l.b16 %v615
      %v723 = vunpack.c.l.b16 %v625
      %v724 = vunpack.c.l.b16 %v635
      %v725 = vunpack.c.l.b16 %v649
      %v726 = vunpack.c.l.b16 %v659
      %v727 = vunpack.c.l.b16 %v669
      %v728 = vunpack.c.l.b16 %v679
      %v729 = vpack.c.b16 %v698, %v697
      %v730 = vpack.c.b16 %v700, %v699
      %v731 = vpack.c.b16 %v702, %v701
      %v732 = vpack.c.b16 %v704, %v703
      %v733 = vpack.c.b16 %v706, %v705
      %v734 = vpack.c.b16 %v708, %v707
      %v735 = vpack.c.b16 %v710, %v709
      %v736 = vpack.c.b16 %v712, %v711
      %v737 = vpack.c.b16 %v714, %v713
      %v738 = vpack.c.b16 %v716, %v715
      %v739 = vpack.c.b16 %v718, %v717
      %v740 = vpack.c.b16 %v720, %v719
      %v741 = vpack.c.b16 %v722, %v721
      %v742 = vpack.c.b16 %v724, %v723
      %v743 = vpack.c.b16 %v726, %v725
      %v744 = vpack.c.b16 %v728, %v727
      %v777 = vunpack.c.l.b16 %v681
      %v778 = vunpack.c.l.b16 %v682
      %v779 = vunpack.c.l.b16 %v683
      %v780 = vunpack.c.l.b16 %v684
      %v781 = vunpack.c.l.b16 %v685
      %v782 = vunpack.c.l.b16 %v686
      %v783 = vunpack.c.l.b16 %v687
      %v784 = vunpack.c.l.b16 %v688
      %v785 = vunpack.c.l.b16 %v689
      %v786 = vunpack.c.l.b16 %v690
      %v787 = vunpack.c.l.b16 %v691
      %v788 = vunpack.c.l.b16 %v692
      %v789 = vunpack.c.l.b16 %v693
      %v790 = vunpack.c.l.b16 %v694
      %v791 = vunpack.c.l.b16 %v695
      %v792 = vunpack.c.l.b16 %v696
      %v793 = vpack.c.b16 %v778, %v777
      %v794 = vpack.c.b16 %v780, %v779
      %v795 = vpack.c.b16 %v782, %v781
      %v796 = vpack.c.b16 %v784, %v783
      %v797 = vpack.c.b16 %v786, %v785
      %v798 = vpack.c.b16 %v788, %v787
      %v799 = vpack.c.b16 %v790, %v789
      %v800 = vpack.c.b16 %v792, %v791
      %809 = vmatprep.subr.bf16.mxu0 0
      %810 = vmatpush1.bf16.msra.mxu0 %v793
      %811 = vmatprep.subr.bf16.mxu0 0
      %812 = vmatpush1.bf16.msra.mxu0 %v794
      %813 = vmatprep.subr.bf16.mxu0 0
      %814 = vmatpush1.bf16.msra.mxu0 %v795
      %815 = vmatprep.subr.bf16.mxu0 0
      %816 = vmatpush1.bf16.msra.mxu0 %v796
      %817 = vmatprep.subr.bf16.mxu0 0
      %818 = vmatpush1.bf16.msra.mxu0 %v797
      %819 = vmatprep.subr.bf16.mxu0 0
      %820 = vmatpush1.bf16.msra.mxu0 %v798
      %821 = vmatprep.subr.bf16.mxu0 0
      %822 = vmatpush1.bf16.msra.mxu0 %v799
      %823 = vmatprep.subr.bf16.mxu0 0
      %824 = vmatpush1.bf16.msra.mxu0 %v800
      %825 = vmatprep.subr.bf16.mxu0 0
      %826 = vmatpush1.bf16.msra.mxu0 0
      %827 = vmatprep.subr.bf16.mxu0 0
      %828 = vmatpush1.bf16.msra.mxu0 0
      %829 = vmatprep.subr.bf16.mxu0 0
      %830 = vmatpush1.bf16.msra.mxu0 0
      %831 = vmatprep.subr.bf16.mxu0 0
      %832 = vmatpush1.bf16.msra.mxu0 0
      %833 = vmatprep.subr.bf16.mxu0 0
      %834 = vmatpush1.bf16.msra.mxu0 0
      %835 = vmatprep.subr.bf16.mxu0 0
      %836 = vmatpush1.bf16.msra.mxu0 0
      %837 = vmatprep.subr.bf16.mxu0 0
      %838 = vmatpush1.bf16.msra.mxu0 0
      %839 = vmatprep.subr.bf16.mxu0 0
      %840 = vmatpush1.bf16.msra.mxu0 0
      %841 = vmatprep.mubr.bf16.mxu0 0
      %842 = vmatmul.mubr.bf16.gmra.mrb[0].mxu0 %v729
      %v843 = vpop.f32.mrb[0].mxu0
      %v844 = vadd.f32 0.0, %v843
      %v845 = vpop.f32.mrb[0].mxu0
      %v846 = vpop.f32.mrb[0].mxu0
      %v847 = vadd.f32 0.0, %v846
      %v848 = vpop.f32.mrb[0].mxu0
      %849 = vmatprep.mubr.bf16.mxu0 0
      %850 = vmatmul.mubr.bf16.gmra.mrb[0].mxu0 %v730
      %v851 = vpop.f32.mrb[0].mxu0
      %v852 = vadd.f32 0.0, %v851
      %v853 = vpop.f32.mrb[0].mxu0
      %v854 = vpop.f32.mrb[0].mxu0
      %v855 = vadd.f32 0.0, %v854
      %v856 = vpop.f32.mrb[0].mxu0
      %857 = vmatprep.mubr.bf16.mxu0 0
      %858 = vmatmul.mubr.bf16.gmra.mrb[0].mxu0 %v731
      %v859 = vpop.f32.mrb[0].mxu0
      %v860 = vadd.f32 0.0, %v859
      %v861 = vpop.f32.mrb[0].mxu0
      %v862 = vpop.f32.mrb[0].mxu0
      %v863 = vadd.f32 0.0, %v862
      %v864 = vpop.f32.mrb[0].mxu0
      %865 = vmatprep.mubr.bf16.mxu0 0
      %866 = vmatmul.mubr.bf16.gmra.mrb[0].mxu0 %v732
      %v867 = vpop.f32.mrb[0].mxu0
      %v868 = vadd.f32 0.0, %v867
      %v869 = vpop.f32.mrb[0].mxu0
      %v870 = vpop.f32.mrb[0].mxu0
      %v871 = vadd.f32 0.0, %v870
      %v872 = vpop.f32.mrb[0].mxu0
      %873 = vmatprep.mubr.bf16.mxu0 0
      %874 = vmatmul.mubr.bf16.gmra.mrb[0].mxu0 %v733
      %v875 = vpop.f32.mrb[0].mxu0
      %v876 = vadd.f32 0.0, %v875
      %v877 = vpop.f32.mrb[0].mxu0
      %v878 = vpop.f32.mrb[0].mxu0
      %v879 = vadd.f32 0.0, %v878
      %v880 = vpop.f32.mrb[0].mxu0
      %881 = vmatprep.mubr.bf16.mxu0 0
      %882 = vmatmul.mubr.bf16.gmra.mrb[0].mxu0 %v734
      %v883 = vpop.f32.mrb[0].mxu0
      %v884 = vadd.f32 0.0, %v883
      %v885 = vpop.f32.mrb[0].mxu0
      %v886 = vpop.f32.mrb[0].mxu0
      %v887 = vadd.f32 0.0, %v886
      %v888 = vpop.f32.mrb[0].mxu0
      %889 = vmatprep.mubr.bf16.mxu0 0
      %890 = vmatmul.mubr.bf16.gmra.mrb[0].mxu0 %v735
      %v891 = vpop.f32.mrb[0].mxu0
      %v892 = vadd.f32 0.0, %v891
      %v893 = vpop.f32.mrb[0].mxu0
      %v894 = vpop.f32.mrb[0].mxu0
      %v895 = vadd.f32 0.0, %v894
      %v896 = vpop.f32.mrb[0].mxu0
      %897 = vmatprep.mubr.bf16.mxu0 0
      %898 = vmatmul.mubr.bf16.gmra.mrb[0].mxu0 %v736
      %v899 = vpop.f32.mrb[0].mxu0
      %v900 = vadd.f32 0.0, %v899
      %v901 = vpop.f32.mrb[0].mxu0
      %v902 = vpop.f32.mrb[0].mxu0
      %v903 = vadd.f32 0.0, %v902
      %v904 = vpop.f32.mrb[0].mxu0
      %905 = vmatprep.mubr.bf16.mxu0 0
      %906 = vmatmul.mubr.bf16.gmra.mrb[0].mxu0 %v737
      %v907 = vpop.f32.mrb[0].mxu0
      %v908 = vadd.f32 0.0, %v907
      %v909 = vpop.f32.mrb[0].mxu0
      %v910 = vpop.f32.mrb[0].mxu0
      %v911 = vadd.f32 0.0, %v910
      %v912 = vpop.f32.mrb[0].mxu0
      %913 = vmatprep.mubr.bf16.mxu0 0
      %914 = vmatmul.mubr.bf16.gmra.mrb[0].mxu0 %v738
      %v915 = vpop.f32.mrb[0].mxu0
      %v916 = vadd.f32 0.0, %v915
      %v917 = vpop.f32.mrb[0].mxu0
      %v918 = vpop.f32.mrb[0].mxu0
      %v919 = vadd.f32 0.0, %v918
      %v920 = vpop.f32.mrb[0].mxu0
      %921 = vmatprep.mubr.bf16.mxu0 0
      %922 = vmatmul.mubr.bf16.gmra.mrb[0].mxu0 %v739
      %v923 = vpop.f32.mrb[0].mxu0
      %v924 = vadd.f32 0.0, %v923
      %v925 = vpop.f32.mrb[0].mxu0
      %v926 = vpop.f32.mrb[0].mxu0
      %v927 = vadd.f32 0.0, %v926
      %v928 = vpop.f32.mrb[0].mxu0
      %929 = vmatprep.mubr.bf16.mxu0 0
      %930 = vmatmul.mubr.bf16.gmra.mrb[0].mxu0 %v740
      %v931 = vpop.f32.mrb[0].mxu0
      %v932 = vadd.f32 0.0, %v931
      %v933 = vpop.f32.mrb[0].mxu0
      %v934 = vpop.f32.mrb[0].mxu0
      %v935 = vadd.f32 0.0, %v934
      %v936 = vpop.f32.mrb[0].mxu0
      %937 = vmatprep.mubr.bf16.mxu0 0
      %938 = vmatmul.mubr.bf16.gmra.mrb[0].mxu0 %v741
      %v939 = vpop.f32.mrb[0].mxu0
      %v940 = vadd.f32 0.0, %v939
      %v941 = vpop.f32.mrb[0].mxu0
      %v942 = vpop.f32.mrb[0].mxu0
      %v943 = vadd.f32 0.0, %v942
      %v944 = vpop.f32.mrb[0].mxu0
      %945 = vmatprep.mubr.bf16.mxu0 0
      %946 = vmatmul.mubr.bf16.gmra.mrb[0].mxu0 %v742
      %v947 = vpop.f32.mrb[0].mxu0
      %v948 = vadd.f32 0.0, %v947
      %v949 = vpop.f32.mrb[0].mxu0
      %v950 = vpop.f32.mrb[0].mxu0
      %v951 = vadd.f32 0.0, %v950
      %v952 = vpop.f32.mrb[0].mxu0
      %953 = vmatprep.mubr.bf16.mxu0 0
      %954 = vmatmul.mubr.bf16.gmra.mrb[0].mxu0 %v743
      %v955 = vpop.f32.mrb[0].mxu0
      %v956 = vadd.f32 0.0, %v955
      %v957 = vpop.f32.mrb[0].mxu0
      %v958 = vpop.f32.mrb[0].mxu0
      %v959 = vadd.f32 0.0, %v958
      %v960 = vpop.f32.mrb[0].mxu0
      %961 = vmatprep.mubr.bf16.mxu0 0
      %962 = vmatmul.mubr.bf16.gmra.mrb[0].mxu0 %v744
      %v963 = vpop.f32.mrb[0].mxu0
      %v964 = vadd.f32 0.0, %v963
      %v965 = vpop.f32.mrb[0].mxu0
      %v966 = vpop.f32.mrb[0].mxu0
      %v967 = vadd.f32 0.0, %v966
      %v968 = vpop.f32.mrb[0].mxu0
      %969 = vdwg.mxu0
      %v1002 = vunpack.c.l.b16 %v259
      %v1003 = vunpack.c.l.b16 %v260
      %v1004 = vunpack.c.l.b16 %v261
      %v1005 = vunpack.c.l.b16 %v262
      %v1006 = vunpack.c.l.b16 %v264
      %v1007 = vunpack.c.l.b16 %v265
      %v1008 = vunpack.c.l.b16 %v266
      %v1009 = vunpack.c.l.b16 %v267
      %v1010 = vunpack.c.l.b16 %v269
      %v1011 = vunpack.c.l.b16 %v270
      %v1012 = vunpack.c.l.b16 %v271
      %v1013 = vunpack.c.l.b16 %v272
      %v1014 = vunpack.c.l.b16 %v274
      %v1015 = vunpack.c.l.b16 %v275
      %v1016 = vunpack.c.l.b16 %v276
      %v1017 = vunpack.c.l.b16 %v277
      %v1018 = vunpack.c.l.b16 %v279
      %v1019 = vunpack.c.l.b16 %v280
      %v1020 = vunpack.c.l.b16 %v281
      %v1021 = vunpack.c.l.b16 %v282
      %v1022 = vunpack.c.l.b16 %v284
      %v1023 = vunpack.c.l.b16 %v285
      %v1024 = vunpack.c.l.b16 %v286
      %v1025 = vunpack.c.l.b16 %v287
      %v1026 = vunpack.c.l.b16 %v289
      %v1027 = vunpack.c.l.b16 %v290
      %v1028 = vunpack.c.l.b16 %v291
      %v1029 = vunpack.c.l.b16 %v292
      %v1030 = vunpack.c.l.b16 %v294
      %v1031 = vunpack.c.l.b16 %v295
      %v1032 = vunpack.c.l.b16 %v296
      %v1033 = vunpack.c.l.b16 %v297
      %v1034 = vpack.c.b16 %v1003, %v1002
      %v1035 = vpack.c.b16 %v1005, %v1004
      %v1036 = vpack.c.b16 %v1007, %v1006
      %v1037 = vpack.c.b16 %v1009, %v1008
      %v1038 = vpack.c.b16 %v1011, %v1010
      %v1039 = vpack.c.b16 %v1013, %v1012
      %v1040 = vpack.c.b16 %v1015, %v1014
      %v1041 = vpack.c.b16 %v1017, %v1016
      %v1042 = vpack.c.b16 %v1019, %v1018
      %v1043 = vpack.c.b16 %v1021, %v1020
      %v1044 = vpack.c.b16 %v1023, %v1022
      %v1045 = vpack.c.b16 %v1025, %v1024
      %v1046 = vpack.c.b16 %v1027, %v1026
      %v1047 = vpack.c.b16 %v1029, %v1028
      %v1048 = vpack.c.b16 %v1031, %v1030
      %v1049 = vpack.c.b16 %v1033, %v1032
      %v1082 = vunpack.c.l.b16 %v309
      %v1083 = vunpack.c.l.b16 %v310
      %v1084 = vunpack.c.l.b16 %v311
      %v1085 = vunpack.c.l.b16 %v312
      %v1086 = vunpack.c.l.b16 %v313
      %v1087 = vunpack.c.l.b16 %v314
      %v1088 = vunpack.c.l.b16 %v315
      %v1089 = vunpack.c.l.b16 %v316
      %v1090 = vunpack.c.l.b16 %v317
      %v1091 = vunpack.c.l.b16 %v318
      %v1092 = vunpack.c.l.b16 %v319
      %v1093 = vunpack.c.l.b16 %v320
      %v1094 = vunpack.c.l.b16 %v321
      %v1095 = vunpack.c.l.b16 %v322
      %v1096 = vunpack.c.l.b16 %v323
      %v1097 = vunpack.c.l.b16 %v324
      %v1098 = vpack.c.b16 %v1083, %v1082
      %v1099 = vpack.c.b16 %v1085, %v1084
      %v1100 = vpack.c.b16 %v1087, %v1086
      %v1101 = vpack.c.b16 %v1089, %v1088
      %v1102 = vpack.c.b16 %v1091, %v1090
      %v1103 = vpack.c.b16 %v1093, %v1092
      %v1104 = vpack.c.b16 %v1095, %v1094
      %v1105 = vpack.c.b16 %v1097, %v1096
      %1114 = vmatprep.subr.bf16.mxu0 0
      %1115 = vmatpush1.bf16.msra.mxu0 %v1098
      %1116 = vmatprep.subr.bf16.mxu0 0
      %1117 = vmatpush1.bf16.msra.mxu0 %v1099
      %1118 = vmatprep.subr.bf16.mxu0 0
      %1119 = vmatpush1.bf16.msra.mxu0 %v1100
      %1120 = vmatprep.subr.bf16.mxu0 0
      %1121 = vmatpush1.bf16.msra.mxu0 %v1101
      %1122 = vmatprep.subr.bf16.mxu0 0
      %1123 = vmatpush1.bf16.msra.mxu0 %v1102
      %1124 = vmatprep.subr.bf16.mxu0 0
      %1125 = vmatpush1.bf16.msra.mxu0 %v1103
      %1126 = vmatprep.subr.bf16.mxu0 0
      %1127 = vmatpush1.bf16.msra.mxu0 %v1104
      %1128 = vmatprep.subr.bf16.mxu0 0
      %1129 = vmatpush1.bf16.msra.mxu0 %v1105
      %1130 = vmatprep.subr.bf16.mxu0 0
      %1131 = vmatpush1.bf16.msra.mxu0 0
      %1132 = vmatprep.subr.bf16.mxu0 0
      %1133 = vmatpush1.bf16.msra.mxu0 0
      %1134 = vmatprep.subr.bf16.mxu0 0
      %1135 = vmatpush1.bf16.msra.mxu0 0
      %1136 = vmatprep.subr.bf16.mxu0 0
      %1137 = vmatpush1.bf16.msra.mxu0 0
      %1138 = vmatprep.subr.bf16.mxu0 0
      %1139 = vmatpush1.bf16.msra.mxu0 0
      %1140 = vmatprep.subr.bf16.mxu0 0
      %1141 = vmatpush1.bf16.msra.mxu0 0
      %1142 = vmatprep.subr.bf16.mxu0 0
      %1143 = vmatpush1.bf16.msra.mxu0 0
      %1144 = vmatprep.subr.bf16.mxu0 0
      %1145 = vmatpush1.bf16.msra.mxu0 0
      %1146 = vmatprep.mubr.bf16.mxu0 0
      %1147 = vmatmul.mubr.bf16.gmra.mrb[0].mxu0 %v1034
      %v1148 = vpop.f32.mrb[0].mxu0
      %v1149 = vadd.f32 %v844, %v1148
      %v1150 = vpop.f32.mrb[0].mxu0
      %v1151 = vpop.f32.mrb[0].mxu0
      %v1152 = vadd.f32 %v847, %v1151
      %v1153 = vpop.f32.mrb[0].mxu0
      %1154 = vmatprep.mubr.bf16.mxu0 0
      %1155 = vmatmul.mubr.bf16.gmra.mrb[0].mxu0 %v1035
      %v1156 = vpop.f32.mrb[0].mxu0
      %v1157 = vadd.f32 %v852, %v1156
      %v1158 = vpop.f32.mrb[0].mxu0
      %v1159 = vpop.f32.mrb[0].mxu0
      %v1160 = vadd.f32 %v855, %v1159
      %v1161 = vpop.f32.mrb[0].mxu0
      %1162 = vmatprep.mubr.bf16.mxu0 0
      %1163 = vmatmul.mubr.bf16.gmra.mrb[0].mxu0 %v1036
      %v1164 = vpop.f32.mrb[0].mxu0
      %v1165 = vadd.f32 %v860, %v1164
      %v1166 = vpop.f32.mrb[0].mxu0
      %v1167 = vpop.f32.mrb[0].mxu0
      %v1168 = vadd.f32 %v863, %v1167
      %v1169 = vpop.f32.mrb[0].mxu0
      %1170 = vmatprep.mubr.bf16.mxu0 0
      %1171 = vmatmul.mubr.bf16.gmra.mrb[0].mxu0 %v1037
      %v1172 = vpop.f32.mrb[0].mxu0
      %v1173 = vadd.f32 %v868, %v1172
      %v1174 = vpop.f32.mrb[0].mxu0
      %v1175 = vpop.f32.mrb[0].mxu0
      %v1176 = vadd.f32 %v871, %v1175
      %v1177 = vpop.f32.mrb[0].mxu0
      %1178 = vmatprep.mubr.bf16.mxu0 0
      %1179 = vmatmul.mubr.bf16.gmra.mrb[0].mxu0 %v1038
      %v1180 = vpop.f32.mrb[0].mxu0
      %v1181 = vadd.f32 %v876, %v1180
      %v1182 = vpop.f32.mrb[0].mxu0
      %v1183 = vpop.f32.mrb[0].mxu0
      %v1184 = vadd.f32 %v879, %v1183
      %v1185 = vpop.f32.mrb[0].mxu0
      %1186 = vmatprep.mubr.bf16.mxu0 0
      %1187 = vmatmul.mubr.bf16.gmra.mrb[0].mxu0 %v1039
      %v1188 = vpop.f32.mrb[0].mxu0
      %v1189 = vadd.f32 %v884, %v1188
      %v1190 = vpop.f32.mrb[0].mxu0
      %v1191 = vpop.f32.mrb[0].mxu0
      %v1192 = vadd.f32 %v887, %v1191
      %v1193 = vpop.f32.mrb[0].mxu0
      %1194 = vmatprep.mubr.bf16.mxu0 0
      %1195 = vmatmul.mubr.bf16.gmra.mrb[0].mxu0 %v1040
      %v1196 = vpop.f32.mrb[0].mxu0
      %v1197 = vadd.f32 %v892, %v1196
      %v1198 = vpop.f32.mrb[0].mxu0
      %v1199 = vpop.f32.mrb[0].mxu0
      %v1200 = vadd.f32 %v895, %v1199
      %v1201 = vpop.f32.mrb[0].mxu0
      %1202 = vmatprep.mubr.bf16.mxu0 0
      %1203 = vmatmul.mubr.bf16.gmra.mrb[0].mxu0 %v1041
      %v1204 = vpop.f32.mrb[0].mxu0
      %v1205 = vadd.f32 %v900, %v1204
      %v1206 = vpop.f32.mrb[0].mxu0
      %v1207 = vpop.f32.mrb[0].mxu0
      %v1208 = vadd.f32 %v903, %v1207
      %v1209 = vpop.f32.mrb[0].mxu0
      %1210 = vmatprep.mubr.bf16.mxu0 0
      %1211 = vmatmul.mubr.bf16.gmra.mrb[0].mxu0 %v1042
      %v1212 = vpop.f32.mrb[0].mxu0
      %v1213 = vadd.f32 %v908, %v1212
      %v1214 = vpop.f32.mrb[0].mxu0
      %v1215 = vpop.f32.mrb[0].mxu0
      %v1216 = vadd.f32 %v911, %v1215
      %v1217 = vpop.f32.mrb[0].mxu0
      %1218 = vmatprep.mubr.bf16.mxu0 0
      %1219 = vmatmul.mubr.bf16.gmra.mrb[0].mxu0 %v1043
      %v1220 = vpop.f32.mrb[0].mxu0
      %v1221 = vadd.f32 %v916, %v1220
      %v1222 = vpop.f32.mrb[0].mxu0
      %v1223 = vpop.f32.mrb[0].mxu0
      %v1224 = vadd.f32 %v919, %v1223
      %v1225 = vpop.f32.mrb[0].mxu0
      %1226 = vmatprep.mubr.bf16.mxu0 0
      %1227 = vmatmul.mubr.bf16.gmra.mrb[0].mxu0 %v1044
      %v1228 = vpop.f32.mrb[0].mxu0
      %v1229 = vadd.f32 %v924, %v1228
      %v1230 = vpop.f32.mrb[0].mxu0
      %v1231 = vpop.f32.mrb[0].mxu0
      %v1232 = vadd.f32 %v927, %v1231
      %v1233 = vpop.f32.mrb[0].mxu0
      %1234 = vmatprep.mubr.bf16.mxu0 0
      %1235 = vmatmul.mubr.bf16.gmra.mrb[0].mxu0 %v1045
      %v1236 = vpop.f32.mrb[0].mxu0
      %v1237 = vadd.f32 %v932, %v1236
      %v1238 = vpop.f32.mrb[0].mxu0
      %v1239 = vpop.f32.mrb[0].mxu0
      %v1240 = vadd.f32 %v935, %v1239
      %v1241 = vpop.f32.mrb[0].mxu0
      %1242 = vmatprep.mubr.bf16.mxu0 0
      %1243 = vmatmul.mubr.bf16.gmra.mrb[0].mxu0 %v1046
      %v1244 = vpop.f32.mrb[0].mxu0
      %v1245 = vadd.f32 %v940, %v1244
      %v1246 = vpop.f32.mrb[0].mxu0
      %v1247 = vpop.f32.mrb[0].mxu0
      %v1248 = vadd.f32 %v943, %v1247
      %v1249 = vpop.f32.mrb[0].mxu0
      %1250 = vmatprep.mubr.bf16.mxu0 0
      %1251 = vmatmul.mubr.bf16.gmra.mrb[0].mxu0 %v1047
      %v1252 = vpop.f32.mrb[0].mxu0
      %v1253 = vadd.f32 %v948, %v1252
      %v1254 = vpop.f32.mrb[0].mxu0
      %v1255 = vpop.f32.mrb[0].mxu0
      %v1256 = vadd.f32 %v951, %v1255
      %v1257 = vpop.f32.mrb[0].mxu0
      %1258 = vmatprep.mubr.bf16.mxu0 0
      %1259 = vmatmul.mubr.bf16.gmra.mrb[0].mxu0 %v1048
      %v1260 = vpop.f32.mrb[0].mxu0
      %v1261 = vadd.f32 %v956, %v1260
      %v1262 = vpop.f32.mrb[0].mxu0
      %v1263 = vpop.f32.mrb[0].mxu0
      %v1264 = vadd.f32 %v959, %v1263
      %v1265 = vpop.f32.mrb[0].mxu0
      %1266 = vmatprep.mubr.bf16.mxu0 0
      %1267 = vmatmul.mubr.bf16.gmra.mrb[0].mxu0 %v1049
      %v1268 = vpop.f32.mrb[0].mxu0
      %v1269 = vadd.f32 %v964, %v1268
      %v1270 = vpop.f32.mrb[0].mxu0
      %v1271 = vpop.f32.mrb[0].mxu0
      %v1272 = vadd.f32 %v967, %v1271
      %v1273 = vpop.f32.mrb[0].mxu0
      %1274 = vdwg.mxu0
      %vm1283 = vcmask 1042432
      %vm1284 = vcmask 1046532
      %vm1285 = vmor %vm1283, %vm1284
      %v1286 = vrot.slane %v259, 5
      %v1287 = vrot.slane %v1286, 4
      %v1288 = vrot.slane %v260, 5
      %v1289 = vsel %vm1285, %v1287, %v1288
      %v1290 = vrot.slane %v1288, 4
      %v1291 = vrot.slane %v261, 5
      %v1292 = vsel %vm1285, %v1290, %v1291
      %v1293 = vrot.slane %v1291, 4
      %v1294 = vrot.slane %v262, 5
      %v1295 = vsel %vm1285, %v1293, %v1294
      %v1296 = vrot.slane %v1294, 4
      %v1297 = vrot.slane %v263, 5
      %v1298 = vsel %vm1285, %v1296, %v1297
      %v1299 = vrot.slane %v264, 5
      %v1300 = vrot.slane %v1299, 4
      %v1301 = vrot.slane %v265, 5
      %v1302 = vsel %vm1285, %v1300, %v1301
      %v1303 = vrot.slane %v1301, 4
      %v1304 = vrot.slane %v266, 5
      %v1305 = vsel %vm1285, %v1303, %v1304
      %v1306 = vrot.slane %v1304, 4
      %v1307 = vrot.slane %v267, 5
      %v1308 = vsel %vm1285, %v1306, %v1307
      %v1309 = vrot.slane %v1307, 4
      %v1310 = vrot.slane %v268, 5
      %v1311 = vsel %vm1285, %v1309, %v1310
      %v1312 = vrot.slane %v269, 5
      %v1313 = vrot.slane %v1312, 4
      %v1314 = vrot.slane %v270, 5
      %v1315 = vsel %vm1285, %v1313, %v1314
      %v1316 = vrot.slane %v1314, 4
      %v1317 = vrot.slane %v271, 5
      %v1318 = vsel %vm1285, %v1316, %v1317
      %v1319 = vrot.slane %v1317, 4
      %v1320 = vrot.slane %v272, 5
      %v1321 = vsel %vm1285, %v1319, %v1320
      %v1322 = vrot.slane %v1320, 4
      %v1323 = vrot.slane %v273, 5
      %v1324 = vsel %vm1285, %v1322, %v1323
      %v1325 = vrot.slane %v274, 5
      %v1326 = vrot.slane %v1325, 4
      %v1327 = vrot.slane %v275, 5
      %v1328 = vsel %vm1285, %v1326, %v1327
      %v1329 = vrot.slane %v1327, 4
      %v1330 = vrot.slane %v276, 5
      %v1331 = vsel %vm1285, %v1329, %v1330
      %v1332 = vrot.slane %v1330, 4
      %v1333 = vrot.slane %v277, 5
      %v1334 = vsel %vm1285, %v1332, %v1333
      %v1335 = vrot.slane %v1333, 4
      %v1336 = vrot.slane %v278, 5
      %v1337 = vsel %vm1285, %v1335, %v1336
      %v1338 = vrot.slane %v279, 5
      %v1339 = vrot.slane %v1338, 4
      %v1340 = vrot.slane %v280, 5
      %v1341 = vsel %vm1285, %v1339, %v1340
      %v1342 = vrot.slane %v1340, 4
      %v1343 = vrot.slane %v281, 5
      %v1344 = vsel %vm1285, %v1342, %v1343
      %v1345 = vrot.slane %v1343, 4
      %v1346 = vrot.slane %v282, 5
      %v1347 = vsel %vm1285, %v1345, %v1346
      %v1348 = vrot.slane %v1346, 4
      %v1349 = vrot.slane %v283, 5
      %v1350 = vsel %vm1285, %v1348, %v1349
      %v1351 = vrot.slane %v284, 5
      %v1352 = vrot.slane %v1351, 4
      %v1353 = vrot.slane %v285, 5
      %v1354 = vsel %vm1285, %v1352, %v1353
      %v1355 = vrot.slane %v1353, 4
      %v1356 = vrot.slane %v286, 5
      %v1357 = vsel %vm1285, %v1355, %v1356
      %v1358 = vrot.slane %v1356, 4
      %v1359 = vrot.slane %v287, 5
      %v1360 = vsel %vm1285, %v1358, %v1359
      %v1361 = vrot.slane %v1359, 4
      %v1362 = vrot.slane %v288, 5
      %v1363 = vsel %vm1285, %v1361, %v1362
      %v1364 = vrot.slane %v289, 5
      %v1365 = vrot.slane %v1364, 4
      %v1366 = vrot.slane %v290, 5
      %v1367 = vsel %vm1285, %v1365, %v1366
      %v1368 = vrot.slane %v1366, 4
      %v1369 = vrot.slane %v291, 5
      %v1370 = vsel %vm1285, %v1368, %v1369
      %v1371 = vrot.slane %v1369, 4
      %v1372 = vrot.slane %v292, 5
      %v1373 = vsel %vm1285, %v1371, %v1372
      %v1374 = vrot.slane %v1372, 4
      %v1375 = vrot.slane %v293, 5
      %v1376 = vsel %vm1285, %v1374, %v1375
      %v1377 = vrot.slane %v294, 5
      %v1378 = vrot.slane %v1377, 4
      %v1379 = vrot.slane %v295, 5
      %v1380 = vsel %vm1285, %v1378, %v1379
      %v1381 = vrot.slane %v1379, 4
      %v1382 = vrot.slane %v296, 5
      %v1383 = vsel %vm1285, %v1381, %v1382
      %v1384 = vrot.slane %v1382, 4
      %v1385 = vrot.slane %v297, 5
      %v1386 = vsel %vm1285, %v1384, %v1385
      %v1387 = vrot.slane %v1385, 4
      %v1388 = vrot.slane %v298, 5
      %v1389 = vsel %vm1285, %v1387, %v1388
      %s1390 = scalar_lea.vmem %s1, 128
      %v1391 = vld [vmem:[%s1390] sm:$0xf]
      %v1392 = vld [vmem:[%s1390 + $0x4] sm:$0xf]
      %v1393 = vld [vmem:[%s1390 + $0x8] sm:$0xf]
      %v1394 = vld [vmem:[%s1390 + $0xc] sm:$0xf]
      %v1395 = vld [vmem:[%s1390 + $0x10] sm:$0xf]
      %v1396 = vld [vmem:[%s1390 + $0x14] sm:$0xf]
      %v1397 = vld [vmem:[%s1390 + $0x18] sm:$0xf]
      %v1398 = vld [vmem:[%s1390 + $0x1c] sm:$0xf]
      %v1399 = vld [vmem:[%s1390 + $0x20] sm:$0xf]
      %v1400 = vld [vmem:[%s1390 + $0x24] sm:$0xf]
      %v1401 = vld [vmem:[%s1390 + $0x28] sm:$0xf]
      %v1402 = vld [vmem:[%s1390 + $0x2c] sm:$0xf]
      %v1403 = vld [vmem:[%s1390 + $0x30] sm:$0xf]
      %v1404 = vld [vmem:[%s1390 + $0x34] sm:$0xf]
      %v1405 = vld [vmem:[%s1390 + $0x38] sm:$0xf]
      %v1406 = vld [vmem:[%s1390 + $0x3c] sm:$0xf]
      %v1407 = vunpack.c.l.b16 %v1289
      %v1408 = vunpack.c.l.b16 %v1292
      %v1409 = vunpack.c.l.b16 %v1295
      %v1410 = vunpack.c.l.b16 %v1298
      %v1411 = vunpack.c.l.b16 %v1302
      %v1412 = vunpack.c.l.b16 %v1305
      %v1413 = vunpack.c.l.b16 %v1308
      %v1414 = vunpack.c.l.b16 %v1311
      %v1415 = vunpack.c.l.b16 %v1315
      %v1416 = vunpack.c.l.b16 %v1318
      %v1417 = vunpack.c.l.b16 %v1321
      %v1418 = vunpack.c.l.b16 %v1324
      %v1419 = vunpack.c.l.b16 %v1328
      %v1420 = vunpack.c.l.b16 %v1331
      %v1421 = vunpack.c.l.b16 %v1334
      %v1422 = vunpack.c.l.b16 %v1337
      %v1423 = vunpack.c.l.b16 %v1341
      %v1424 = vunpack.c.l.b16 %v1344
      %v1425 = vunpack.c.l.b16 %v1347
      %v1426 = vunpack.c.l.b16 %v1350
      %v1427 = vunpack.c.l.b16 %v1354
      %v1428 = vunpack.c.l.b16 %v1357
      %v1429 = vunpack.c.l.b16 %v1360
      %v1430 = vunpack.c.l.b16 %v1363
      %v1431 = vunpack.c.l.b16 %v1367
      %v1432 = vunpack.c.l.b16 %v1370
      %v1433 = vunpack.c.l.b16 %v1373
      %v1434 = vunpack.c.l.b16 %v1376
      %v1435 = vunpack.c.l.b16 %v1380
      %v1436 = vunpack.c.l.b16 %v1383
      %v1437 = vunpack.c.l.b16 %v1386
      %v1438 = vunpack.c.l.b16 %v1389
      %v1439 = vpack.c.b16 %v1408, %v1407
      %v1440 = vpack.c.b16 %v1410, %v1409
      %v1441 = vpack.c.b16 %v1412, %v1411
      %v1442 = vpack.c.b16 %v1414, %v1413
      %v1443 = vpack.c.b16 %v1416, %v1415
      %v1444 = vpack.c.b16 %v1418, %v1417
      %v1445 = vpack.c.b16 %v1420, %v1419
      %v1446 = vpack.c.b16 %v1422, %v1421
      %v1447 = vpack.c.b16 %v1424, %v1423
      %v1448 = vpack.c.b16 %v1426, %v1425
      %v1449 = vpack.c.b16 %v1428, %v1427
      %v1450 = vpack.c.b16 %v1430, %v1429
      %v1451 = vpack.c.b16 %v1432, %v1431
      %v1452 = vpack.c.b16 %v1434, %v1433
      %v1453 = vpack.c.b16 %v1436, %v1435
      %v1454 = vpack.c.b16 %v1438, %v1437
      %v1487 = vunpack.c.l.b16 %v1391
      %v1488 = vunpack.c.l.b16 %v1392
      %v1489 = vunpack.c.l.b16 %v1393
      %v1490 = vunpack.c.l.b16 %v1394
      %v1491 = vunpack.c.l.b16 %v1395
      %v1492 = vunpack.c.l.b16 %v1396
      %v1493 = vunpack.c.l.b16 %v1397
      %v1494 = vunpack.c.l.b16 %v1398
      %v1495 = vunpack.c.l.b16 %v1399
      %v1496 = vunpack.c.l.b16 %v1400
      %v1497 = vunpack.c.l.b16 %v1401
      %v1498 = vunpack.c.l.b16 %v1402
      %v1499 = vunpack.c.l.b16 %v1403
      %v1500 = vunpack.c.l.b16 %v1404
      %v1501 = vunpack.c.l.b16 %v1405
      %v1502 = vunpack.c.l.b16 %v1406
      %v1503 = vpack.c.b16 %v1488, %v1487
      %v1504 = vpack.c.b16 %v1490, %v1489
      %v1505 = vpack.c.b16 %v1492, %v1491
      %v1506 = vpack.c.b16 %v1494, %v1493
      %v1507 = vpack.c.b16 %v1496, %v1495
      %v1508 = vpack.c.b16 %v1498, %v1497
      %v1509 = vpack.c.b16 %v1500, %v1499
      %v1510 = vpack.c.b16 %v1502, %v1501
      %1519 = vmatprep.subr.bf16.mxu0 0
      %1520 = vmatpush1.bf16.msra.mxu0 %v1503
      %1521 = vmatprep.subr.bf16.mxu0 0
      %1522 = vmatpush1.bf16.msra.mxu0 %v1504
      %1523 = vmatprep.subr.bf16.mxu0 0
      %1524 = vmatpush1.bf16.msra.mxu0 %v1505
      %1525 = vmatprep.subr.bf16.mxu0 0
      %1526 = vmatpush1.bf16.msra.mxu0 %v1506
      %1527 = vmatprep.subr.bf16.mxu0 0
      %1528 = vmatpush1.bf16.msra.mxu0 %v1507
      %1529 = vmatprep.subr.bf16.mxu0 0
      %1530 = vmatpush1.bf16.msra.mxu0 %v1508
      %1531 = vmatprep.subr.bf16.mxu0 0
      %1532 = vmatpush1.bf16.msra.mxu0 %v1509
      %1533 = vmatprep.subr.bf16.mxu0 0
      %1534 = vmatpush1.bf16.msra.mxu0 %v1510
      %1535 = vmatprep.subr.bf16.mxu0 0
      %1536 = vmatpush1.bf16.msra.mxu0 0
      %1537 = vmatprep.subr.bf16.mxu0 0
      %1538 = vmatpush1.bf16.msra.mxu0 0
      %1539 = vmatprep.subr.bf16.mxu0 0
      %1540 = vmatpush1.bf16.msra.mxu0 0
      %1541 = vmatprep.subr.bf16.mxu0 0
      %1542 = vmatpush1.bf16.msra.mxu0 0
      %1543 = vmatprep.subr.bf16.mxu0 0
      %1544 = vmatpush1.bf16.msra.mxu0 0
      %1545 = vmatprep.subr.bf16.mxu0 0
      %1546 = vmatpush1.bf16.msra.mxu0 0
      %1547 = vmatprep.subr.bf16.mxu0 0
      %1548 = vmatpush1.bf16.msra.mxu0 0
      %1549 = vmatprep.subr.bf16.mxu0 0
      %1550 = vmatpush1.bf16.msra.mxu0 0
      %1551 = vmatprep.mubr.bf16.mxu0 0
      %1552 = vmatmul.mubr.bf16.gmra.mrb[0].mxu0 %v1439
      %v1553 = vpop.f32.mrb[0].mxu0
      %v1554 = vadd.f32 0.0, %v1553
      %v1555 = vpop.f32.mrb[0].mxu0
      %v1556 = vpop.f32.mrb[0].mxu0
      %v1557 = vadd.f32 0.0, %v1556
      %v1558 = vpop.f32.mrb[0].mxu0
      %1559 = vmatprep.mubr.bf16.mxu0 0
      %1560 = vmatmul.mubr.bf16.gmra.mrb[0].mxu0 %v1440
      %v1561 = vpop.f32.mrb[0].mxu0
      %v1562 = vadd.f32 0.0, %v1561
      %v1563 = vpop.f32.mrb[0].mxu0
      %v1564 = vpop.f32.mrb[0].mxu0
      %v1565 = vadd.f32 0.0, %v1564
      %v1566 = vpop.f32.mrb[0].mxu0
      %1567 = vmatprep.mubr.bf16.mxu0 0
      %1568 = vmatmul.mubr.bf16.gmra.mrb[0].mxu0 %v1441
      %v1569 = vpop.f32.mrb[0].mxu0
      %v1570 = vadd.f32 0.0, %v1569
      %v1571 = vpop.f32.mrb[0].mxu0
      %v1572 = vpop.f32.mrb[0].mxu0
      %v1573 = vadd.f32 0.0, %v1572
      %v1574 = vpop.f32.mrb[0].mxu0
      %1575 = vmatprep.mubr.bf16.mxu0 0
      %1576 = vmatmul.mubr.bf16.gmra.mrb[0].mxu0 %v1442
      %v1577 = vpop.f32.mrb[0].mxu0
      %v1578 = vadd.f32 0.0, %v1577
      %v1579 = vpop.f32.mrb[0].mxu0
      %v1580 = vpop.f32.mrb[0].mxu0
      %v1581 = vadd.f32 0.0, %v1580
      %v1582 = vpop.f32.mrb[0].mxu0
      %1583 = vmatprep.mubr.bf16.mxu0 0
      %1584 = vmatmul.mubr.bf16.gmra.mrb[0].mxu0 %v1443
      %v1585 = vpop.f32.mrb[0].mxu0
      %v1586 = vadd.f32 0.0, %v1585
      %v1587 = vpop.f32.mrb[0].mxu0
      %v1588 = vpop.f32.mrb[0].mxu0
      %v1589 = vadd.f32 0.0, %v1588
      %v1590 = vpop.f32.mrb[0].mxu0
      %1591 = vmatprep.mubr.bf16.mxu0 0
      %1592 = vmatmul.mubr.bf16.gmra.mrb[0].mxu0 %v1444
      %v1593 = vpop.f32.mrb[0].mxu0
      %v1594 = vadd.f32 0.0, %v1593
      %v1595 = vpop.f32.mrb[0].mxu0
      %v1596 = vpop.f32.mrb[0].mxu0
      %v1597 = vadd.f32 0.0, %v1596
      %v1598 = vpop.f32.mrb[0].mxu0
      %1599 = vmatprep.mubr.bf16.mxu0 0
      %1600 = vmatmul.mubr.bf16.gmra.mrb[0].mxu0 %v1445
      %v1601 = vpop.f32.mrb[0].mxu0
      %v1602 = vadd.f32 0.0, %v1601
      %v1603 = vpop.f32.mrb[0].mxu0
      %v1604 = vpop.f32.mrb[0].mxu0
      %v1605 = vadd.f32 0.0, %v1604
      %v1606 = vpop.f32.mrb[0].mxu0
      %1607 = vmatprep.mubr.bf16.mxu0 0
      %1608 = vmatmul.mubr.bf16.gmra.mrb[0].mxu0 %v1446
      %v1609 = vpop.f32.mrb[0].mxu0
      %v1610 = vadd.f32 0.0, %v1609
      %v1611 = vpop.f32.mrb[0].mxu0
      %v1612 = vpop.f32.mrb[0].mxu0
      %v1613 = vadd.f32 0.0, %v1612
      %v1614 = vpop.f32.mrb[0].mxu0
      %1615 = vmatprep.mubr.bf16.mxu0 0
      %1616 = vmatmul.mubr.bf16.gmra.mrb[0].mxu0 %v1447
      %v1617 = vpop.f32.mrb[0].mxu0
      %v1618 = vadd.f32 0.0, %v1617
      %v1619 = vpop.f32.mrb[0].mxu0
      %v1620 = vpop.f32.mrb[0].mxu0
      %v1621 = vadd.f32 0.0, %v1620
      %v1622 = vpop.f32.mrb[0].mxu0
      %1623 = vmatprep.mubr.bf16.mxu0 0
      %1624 = vmatmul.mubr.bf16.gmra.mrb[0].mxu0 %v1448
      %v1625 = vpop.f32.mrb[0].mxu0
      %v1626 = vadd.f32 0.0, %v1625
      %v1627 = vpop.f32.mrb[0].mxu0
      %v1628 = vpop.f32.mrb[0].mxu0
      %v1629 = vadd.f32 0.0, %v1628
      %v1630 = vpop.f32.mrb[0].mxu0
      %1631 = vmatprep.mubr.bf16.mxu0 0
      %1632 = vmatmul.mubr.bf16.gmra.mrb[0].mxu0 %v1449
      %v1633 = vpop.f32.mrb[0].mxu0
      %v1634 = vadd.f32 0.0, %v1633
      %v1635 = vpop.f32.mrb[0].mxu0
      %v1636 = vpop.f32.mrb[0].mxu0
      %v1637 = vadd.f32 0.0, %v1636
      %v1638 = vpop.f32.mrb[0].mxu0
      %1639 = vmatprep.mubr.bf16.mxu0 0
      %1640 = vmatmul.mubr.bf16.gmra.mrb[0].mxu0 %v1450
      %v1641 = vpop.f32.mrb[0].mxu0
      %v1642 = vadd.f32 0.0, %v1641
      %v1643 = vpop.f32.mrb[0].mxu0
      %v1644 = vpop.f32.mrb[0].mxu0
      %v1645 = vadd.f32 0.0, %v1644
      %v1646 = vpop.f32.mrb[0].mxu0
      %1647 = vmatprep.mubr.bf16.mxu0 0
      %1648 = vmatmul.mubr.bf16.gmra.mrb[0].mxu0 %v1451
      %v1649 = vpop.f32.mrb[0].mxu0
      %v1650 = vadd.f32 0.0, %v1649
      %v1651 = vpop.f32.mrb[0].mxu0
      %v1652 = vpop.f32.mrb[0].mxu0
      %v1653 = vadd.f32 0.0, %v1652
      %v1654 = vpop.f32.mrb[0].mxu0
      %1655 = vmatprep.mubr.bf16.mxu0 0
      %1656 = vmatmul.mubr.bf16.gmra.mrb[0].mxu0 %v1452
      %v1657 = vpop.f32.mrb[0].mxu0
      %v1658 = vadd.f32 0.0, %v1657
      %v1659 = vpop.f32.mrb[0].mxu0
      %v1660 = vpop.f32.mrb[0].mxu0
      %v1661 = vadd.f32 0.0, %v1660
      %v1662 = vpop.f32.mrb[0].mxu0
      %1663 = vmatprep.mubr.bf16.mxu0 0
      %1664 = vmatmul.mubr.bf16.gmra.mrb[0].mxu0 %v1453
      %v1665 = vpop.f32.mrb[0].mxu0
      %v1666 = vadd.f32 0.0, %v1665
      %v1667 = vpop.f32.mrb[0].mxu0
      %v1668 = vpop.f32.mrb[0].mxu0
      %v1669 = vadd.f32 0.0, %v1668
      %v1670 = vpop.f32.mrb[0].mxu0
      %1671 = vmatprep.mubr.bf16.mxu0 0
      %1672 = vmatmul.mubr.bf16.gmra.mrb[0].mxu0 %v1454
      %v1673 = vpop.f32.mrb[0].mxu0
      %v1674 = vadd.f32 0.0, %v1673
      %v1675 = vpop.f32.mrb[0].mxu0
      %v1676 = vpop.f32.mrb[0].mxu0
      %v1677 = vadd.f32 0.0, %v1676
      %v1678 = vpop.f32.mrb[0].mxu0
      %1679 = vdwg.mxu0
      %v1680 = vadd.f32 %v1149, %v1554
      %v1681 = vadd.f32 %v1152, %v1557
      %v1682 = vadd.f32 %v1157, %v1562
      %v1683 = vadd.f32 %v1160, %v1565
      %v1684 = vadd.f32 %v1165, %v1570
      %v1685 = vadd.f32 %v1168, %v1573
      %v1686 = vadd.f32 %v1173, %v1578
      %v1687 = vadd.f32 %v1176, %v1581
      %v1688 = vadd.f32 %v1181, %v1586
      %v1689 = vadd.f32 %v1184, %v1589
      %v1690 = vadd.f32 %v1189, %v1594
      %v1691 = vadd.f32 %v1192, %v1597
      %v1692 = vadd.f32 %v1197, %v1602
      %v1693 = vadd.f32 %v1200, %v1605
      %v1694 = vadd.f32 %v1205, %v1610
      %v1695 = vadd.f32 %v1208, %v1613
      %v1696 = vadd.f32 %v1213, %v1618
      %v1697 = vadd.f32 %v1216, %v1621
      %v1698 = vadd.f32 %v1221, %v1626
      %v1699 = vadd.f32 %v1224, %v1629
      %v1700 = vadd.f32 %v1229, %v1634
      %v1701 = vadd.f32 %v1232, %v1637
      %v1702 = vadd.f32 %v1237, %v1642
      %v1703 = vadd.f32 %v1240, %v1645
      %v1704 = vadd.f32 %v1245, %v1650
      %v1705 = vadd.f32 %v1248, %v1653
      %v1706 = vadd.f32 %v1253, %v1658
      %v1707 = vadd.f32 %v1256, %v1661
      %v1708 = vadd.f32 %v1261, %v1666
      %v1709 = vadd.f32 %v1264, %v1669
      %v1710 = vadd.f32 %v1269, %v1674
      %v1711 = vadd.f32 %v1272, %v1677
      %s1712 = scalar_lea.vmem %s1, 192
      %v1713 = vld [vmem:[%s1712] sm:$0xf]
      %v1714 = vld [vmem:[%s1712 + $0x4] sm:$0xf]
      %v1715 = vld [vmem:[%s1712 + $0x8] sm:$0xf]
      %v1716 = vld [vmem:[%s1712 + $0xc] sm:$0xf]
      %v1717 = vld [vmem:[%s1712 + $0x10] sm:$0xf]
      %v1718 = vld [vmem:[%s1712 + $0x14] sm:$0xf]
      %v1719 = vld [vmem:[%s1712 + $0x18] sm:$0xf]
      %v1720 = vld [vmem:[%s1712 + $0x1c] sm:$0xf]
      %v1721 = vld [vmem:[%s1712 + $0x20] sm:$0xf]
      %v1722 = vld [vmem:[%s1712 + $0x24] sm:$0xf]
      %v1723 = vld [vmem:[%s1712 + $0x28] sm:$0xf]
      %v1724 = vld [vmem:[%s1712 + $0x2c] sm:$0xf]
      %v1725 = vld [vmem:[%s1712 + $0x30] sm:$0xf]
      %v1726 = vld [vmem:[%s1712 + $0x34] sm:$0xf]
      %v1727 = vld [vmem:[%s1712 + $0x38] sm:$0xf]
      %v1728 = vld [vmem:[%s1712 + $0x3c] sm:$0xf]
      %v1733 = vunpack.c.l.b16 %v299
      %v1734 = vunpack.c.l.b16 %v300
      %v1735 = vunpack.c.l.b16 %v301
      %v1736 = vunpack.c.l.b16 %v302
      %v1737 = vpack.c.b16 %v1734, %v1733
      %v1738 = vpack.c.b16 %v1736, %v1735
      %v1757 = vunpack.c.l.b16 %v1713
      %v1758 = vunpack.c.l.b16 %v1714
      %v1759 = vunpack.c.l.b16 %v1715
      %v1760 = vunpack.c.l.b16 %v1716
      %v1761 = vunpack.c.l.b16 %v1717
      %v1762 = vunpack.c.l.b16 %v1718
      %v1763 = vunpack.c.l.b16 %v1719
      %v1764 = vunpack.c.l.b16 %v1720
      %v1765 = vunpack.c.l.b16 %v1721
      %v1766 = vunpack.c.l.b16 %v1722
      %v1767 = vunpack.c.l.b16 %v1723
      %v1768 = vunpack.c.l.b16 %v1724
      %v1769 = vunpack.c.l.b16 %v1725
      %v1770 = vunpack.c.l.b16 %v1726
      %v1771 = vunpack.c.l.b16 %v1727
      %v1772 = vunpack.c.l.b16 %v1728
      %v1773 = vpack.c.b16 %v1758, %v1757
      %v1774 = vpack.c.b16 %v1760, %v1759
      %v1775 = vpack.c.b16 %v1762, %v1761
      %v1776 = vpack.c.b16 %v1764, %v1763
      %v1777 = vpack.c.b16 %v1766, %v1765
      %v1778 = vpack.c.b16 %v1768, %v1767
      %v1779 = vpack.c.b16 %v1770, %v1769
      %v1780 = vpack.c.b16 %v1772, %v1771
      %1789 = vmatprep.subr.bf16.mxu0 0
      %1790 = vmatpush1.bf16.msra.mxu0 %v1773
      %1791 = vmatprep.subr.bf16.mxu0 0
      %1792 = vmatpush1.bf16.msra.mxu0 %v1774
      %1793 = vmatprep.subr.bf16.mxu0 0
      %1794 = vmatpush1.bf16.msra.mxu0 %v1775
      %1795 = vmatprep.subr.bf16.mxu0 0
      %1796 = vmatpush1.bf16.msra.mxu0 %v1776
      %1797 = vmatprep.subr.bf16.mxu0 0
      %1798 = vmatpush1.bf16.msra.mxu0 %v1777
      %1799 = vmatprep.subr.bf16.mxu0 0
      %1800 = vmatpush1.bf16.msra.mxu0 %v1778
      %1801 = vmatprep.subr.bf16.mxu0 0
      %1802 = vmatpush1.bf16.msra.mxu0 %v1779
      %1803 = vmatprep.subr.bf16.mxu0 0
      %1804 = vmatpush1.bf16.msra.mxu0 %v1780
      %1805 = vmatprep.subr.bf16.mxu0 0
      %1806 = vmatpush1.bf16.msra.mxu0 0
      %1807 = vmatprep.subr.bf16.mxu0 0
      %1808 = vmatpush1.bf16.msra.mxu0 0
      %1809 = vmatprep.subr.bf16.mxu0 0
      %1810 = vmatpush1.bf16.msra.mxu0 0
      %1811 = vmatprep.subr.bf16.mxu0 0
      %1812 = vmatpush1.bf16.msra.mxu0 0
      %1813 = vmatprep.subr.bf16.mxu0 0
      %1814 = vmatpush1.bf16.msra.mxu0 0
      %1815 = vmatprep.subr.bf16.mxu0 0
      %1816 = vmatpush1.bf16.msra.mxu0 0
      %1817 = vmatprep.subr.bf16.mxu0 0
      %1818 = vmatpush1.bf16.msra.mxu0 0
      %1819 = vmatprep.subr.bf16.mxu0 0
      %1820 = vmatpush1.bf16.msra.mxu0 0
      %1821 = vmatprep.mubr.bf16.mxu0 0
      %1822 = vmatmul.mubr.bf16.gmra.mrb[0].mxu0 %v1036
      %v1823 = vpop.f32.mrb[0].mxu0
      %v1824 = vadd.f32 0.0, %v1823
      %v1825 = vpop.f32.mrb[0].mxu0
      %v1826 = vpop.f32.mrb[0].mxu0
      %v1827 = vadd.f32 0.0, %v1826
      %v1828 = vpop.f32.mrb[0].mxu0
      %1829 = vmatprep.mubr.bf16.mxu0 0
      %1830 = vmatmul.mubr.bf16.gmra.mrb[0].mxu0 %v1037
      %v1831 = vpop.f32.mrb[0].mxu0
      %v1832 = vadd.f32 0.0, %v1831
      %v1833 = vpop.f32.mrb[0].mxu0
      %v1834 = vpop.f32.mrb[0].mxu0
      %v1835 = vadd.f32 0.0, %v1834
      %v1836 = vpop.f32.mrb[0].mxu0
      %1837 = vmatprep.mubr.bf16.mxu0 0
      %1838 = vmatmul.mubr.bf16.gmra.mrb[0].mxu0 %v1038
      %v1839 = vpop.f32.mrb[0].mxu0
      %v1840 = vadd.f32 0.0, %v1839
      %v1841 = vpop.f32.mrb[0].mxu0
      %v1842 = vpop.f32.mrb[0].mxu0
      %v1843 = vadd.f32 0.0, %v1842
      %v1844 = vpop.f32.mrb[0].mxu0
      %1845 = vmatprep.mubr.bf16.mxu0 0
      %1846 = vmatmul.mubr.bf16.gmra.mrb[0].mxu0 %v1039
      %v1847 = vpop.f32.mrb[0].mxu0
      %v1848 = vadd.f32 0.0, %v1847
      %v1849 = vpop.f32.mrb[0].mxu0
      %v1850 = vpop.f32.mrb[0].mxu0
      %v1851 = vadd.f32 0.0, %v1850
      %v1852 = vpop.f32.mrb[0].mxu0
      %1853 = vmatprep.mubr.bf16.mxu0 0
      %1854 = vmatmul.mubr.bf16.gmra.mrb[0].mxu0 %v1040
      %v1855 = vpop.f32.mrb[0].mxu0
      %v1856 = vadd.f32 0.0, %v1855
      %v1857 = vpop.f32.mrb[0].mxu0
      %v1858 = vpop.f32.mrb[0].mxu0
      %v1859 = vadd.f32 0.0, %v1858
      %v1860 = vpop.f32.mrb[0].mxu0
      %1861 = vmatprep.mubr.bf16.mxu0 0
      %1862 = vmatmul.mubr.bf16.gmra.mrb[0].mxu0 %v1041
      %v1863 = vpop.f32.mrb[0].mxu0
      %v1864 = vadd.f32 0.0, %v1863
      %v1865 = vpop.f32.mrb[0].mxu0
      %v1866 = vpop.f32.mrb[0].mxu0
      %v1867 = vadd.f32 0.0, %v1866
      %v1868 = vpop.f32.mrb[0].mxu0
      %1869 = vmatprep.mubr.bf16.mxu0 0
      %1870 = vmatmul.mubr.bf16.gmra.mrb[0].mxu0 %v1042
      %v1871 = vpop.f32.mrb[0].mxu0
      %v1872 = vadd.f32 0.0, %v1871
      %v1873 = vpop.f32.mrb[0].mxu0
      %v1874 = vpop.f32.mrb[0].mxu0
      %v1875 = vadd.f32 0.0, %v1874
      %v1876 = vpop.f32.mrb[0].mxu0
      %1877 = vmatprep.mubr.bf16.mxu0 0
      %1878 = vmatmul.mubr.bf16.gmra.mrb[0].mxu0 %v1043
      %v1879 = vpop.f32.mrb[0].mxu0
      %v1880 = vadd.f32 0.0, %v1879
      %v1881 = vpop.f32.mrb[0].mxu0
      %v1882 = vpop.f32.mrb[0].mxu0
      %v1883 = vadd.f32 0.0, %v1882
      %v1884 = vpop.f32.mrb[0].mxu0
      %1885 = vmatprep.mubr.bf16.mxu0 0
      %1886 = vmatmul.mubr.bf16.gmra.mrb[0].mxu0 %v1044
      %v1887 = vpop.f32.mrb[0].mxu0
      %v1888 = vadd.f32 0.0, %v1887
      %v1889 = vpop.f32.mrb[0].mxu0
      %v1890 = vpop.f32.mrb[0].mxu0
      %v1891 = vadd.f32 0.0, %v1890
      %v1892 = vpop.f32.mrb[0].mxu0
      %1893 = vmatprep.mubr.bf16.mxu0 0
      %1894 = vmatmul.mubr.bf16.gmra.mrb[0].mxu0 %v1045
      %v1895 = vpop.f32.mrb[0].mxu0
      %v1896 = vadd.f32 0.0, %v1895
      %v1897 = vpop.f32.mrb[0].mxu0
      %v1898 = vpop.f32.mrb[0].mxu0
      %v1899 = vadd.f32 0.0, %v1898
      %v1900 = vpop.f32.mrb[0].mxu0
      %1901 = vmatprep.mubr.bf16.mxu0 0
      %1902 = vmatmul.mubr.bf16.gmra.mrb[0].mxu0 %v1046
      %v1903 = vpop.f32.mrb[0].mxu0
      %v1904 = vadd.f32 0.0, %v1903
      %v1905 = vpop.f32.mrb[0].mxu0
      %v1906 = vpop.f32.mrb[0].mxu0
      %v1907 = vadd.f32 0.0, %v1906
      %v1908 = vpop.f32.mrb[0].mxu0
      %1909 = vmatprep.mubr.bf16.mxu0 0
      %1910 = vmatmul.mubr.bf16.gmra.mrb[0].mxu0 %v1047
      %v1911 = vpop.f32.mrb[0].mxu0
      %v1912 = vadd.f32 0.0, %v1911
      %v1913 = vpop.f32.mrb[0].mxu0
      %v1914 = vpop.f32.mrb[0].mxu0
      %v1915 = vadd.f32 0.0, %v1914
      %v1916 = vpop.f32.mrb[0].mxu0
      %1917 = vmatprep.mubr.bf16.mxu0 0
      %1918 = vmatmul.mubr.bf16.gmra.mrb[0].mxu0 %v1048
      %v1919 = vpop.f32.mrb[0].mxu0
      %v1920 = vadd.f32 0.0, %v1919
      %v1921 = vpop.f32.mrb[0].mxu0
      %v1922 = vpop.f32.mrb[0].mxu0
      %v1923 = vadd.f32 0.0, %v1922
      %v1924 = vpop.f32.mrb[0].mxu0
      %1925 = vmatprep.mubr.bf16.mxu0 0
      %1926 = vmatmul.mubr.bf16.gmra.mrb[0].mxu0 %v1049
      %v1927 = vpop.f32.mrb[0].mxu0
      %v1928 = vadd.f32 0.0, %v1927
      %v1929 = vpop.f32.mrb[0].mxu0
      %v1930 = vpop.f32.mrb[0].mxu0
      %v1931 = vadd.f32 0.0, %v1930
      %v1932 = vpop.f32.mrb[0].mxu0
      %1933 = vmatprep.mubr.bf16.mxu0 0
      %1934 = vmatmul.mubr.bf16.gmra.mrb[0].mxu0 %v1737
      %v1935 = vpop.f32.mrb[0].mxu0
      %v1936 = vadd.f32 0.0, %v1935
      %v1937 = vpop.f32.mrb[0].mxu0
      %v1938 = vpop.f32.mrb[0].mxu0
      %v1939 = vadd.f32 0.0, %v1938
      %v1940 = vpop.f32.mrb[0].mxu0
      %1941 = vmatprep.mubr.bf16.mxu0 0
      %1942 = vmatmul.mubr.bf16.gmra.mrb[0].mxu0 %v1738
      %v1943 = vpop.f32.mrb[0].mxu0
      %v1944 = vadd.f32 0.0, %v1943
      %v1945 = vpop.f32.mrb[0].mxu0
      %v1946 = vpop.f32.mrb[0].mxu0
      %v1947 = vadd.f32 0.0, %v1946
      %v1948 = vpop.f32.mrb[0].mxu0
      %1949 = vdwg.mxu0
      %v1950 = vadd.f32 %v1680, %v1824
      %v1951 = vadd.f32 %v1681, %v1827
      %v1952 = vadd.f32 %v1682, %v1832
      %v1953 = vadd.f32 %v1683, %v1835
      %v1954 = vadd.f32 %v1684, %v1840
      %v1955 = vadd.f32 %v1685, %v1843
      %v1956 = vadd.f32 %v1686, %v1848
      %v1957 = vadd.f32 %v1687, %v1851
      %v1958 = vadd.f32 %v1688, %v1856
      %v1959 = vadd.f32 %v1689, %v1859
      %v1960 = vadd.f32 %v1690, %v1864
      %v1961 = vadd.f32 %v1691, %v1867
      %v1962 = vadd.f32 %v1692, %v1872
      %v1963 = vadd.f32 %v1693, %v1875
      %v1964 = vadd.f32 %v1694, %v1880
      %v1965 = vadd.f32 %v1695, %v1883
      %v1966 = vadd.f32 %v1696, %v1888
      %v1967 = vadd.f32 %v1697, %v1891
      %v1968 = vadd.f32 %v1698, %v1896
      %v1969 = vadd.f32 %v1699, %v1899
      %v1970 = vadd.f32 %v1700, %v1904
      %v1971 = vadd.f32 %v1701, %v1907
      %v1972 = vadd.f32 %v1702, %v1912
      %v1973 = vadd.f32 %v1703, %v1915
      %v1974 = vadd.f32 %v1704, %v1920
      %v1975 = vadd.f32 %v1705, %v1923
      %v1976 = vadd.f32 %v1706, %v1928
      %v1977 = vadd.f32 %v1707, %v1931
      %v1978 = vadd.f32 %v1708, %v1936
      %v1979 = vadd.f32 %v1709, %v1939
      %v1980 = vadd.f32 %v1710, %v1944
      %v1981 = vadd.f32 %v1711, %v1947
      %v1983 = vshrl.u32 %v299, 16
      %v1985 = vrot.slane %v1983, 4
      %v1986 = vshll.u32 %v299, 16
      %v1988 = vrot.slane %v1986, 5
      %v1989 = vor.u32 %v1985, %v1988
      %v1990 = vrot.slane %v1989, 4
      %v1992 = vshll.u32 %v300, 16
      %v1994 = vrot.slane %v1992, 5
      %v1995 = vsel %vm327, %v1990, %v1994
      %v1996 = vshrl.u32 %v300, 16
      %v1998 = vrot.slane %v1996, 4
      %v1999 = vor.u32 %v1998, %v1994
      %v2000 = vrot.slane %v1999, 4
      %v2002 = vshll.u32 %v301, 16
      %v2004 = vrot.slane %v2002, 5
      %v2005 = vsel %vm327, %v2000, %v2004
      %v2006 = vshrl.u32 %v301, 16
      %v2008 = vrot.slane %v2006, 4
      %v2009 = vor.u32 %v2008, %v2004
      %v2010 = vrot.slane %v2009, 4
      %v2012 = vshll.u32 %v302, 16
      %v2014 = vrot.slane %v2012, 5
      %v2015 = vsel %vm327, %v2010, %v2014
      %v2016 = vshrl.u32 %v302, 16
      %v2018 = vrot.slane %v2016, 4
      %v2019 = vor.u32 %v2018, %v2014
      %v2020 = vrot.slane %v2019, 4
      %v2022 = vshll.u32 %v303, 16
      %v2024 = vrot.slane %v2022, 5
      %v2025 = vsel %vm327, %v2020, %v2024
      %s2026 = scalar_lea.vmem %s1, 256
      %v2027 = vld [vmem:[%s2026] sm:$0xf]
      %v2028 = vld [vmem:[%s2026 + $0x4] sm:$0xf]
      %v2029 = vld [vmem:[%s2026 + $0x8] sm:$0xf]
      %v2030 = vld [vmem:[%s2026 + $0xc] sm:$0xf]
      %v2031 = vld [vmem:[%s2026 + $0x10] sm:$0xf]
      %v2032 = vld [vmem:[%s2026 + $0x14] sm:$0xf]
      %v2033 = vld [vmem:[%s2026 + $0x18] sm:$0xf]
      %v2034 = vld [vmem:[%s2026 + $0x1c] sm:$0xf]
      %v2035 = vld [vmem:[%s2026 + $0x20] sm:$0xf]
      %v2036 = vld [vmem:[%s2026 + $0x24] sm:$0xf]
      %v2037 = vld [vmem:[%s2026 + $0x28] sm:$0xf]
      %v2038 = vld [vmem:[%s2026 + $0x2c] sm:$0xf]
      %v2039 = vld [vmem:[%s2026 + $0x30] sm:$0xf]
      %v2040 = vld [vmem:[%s2026 + $0x34] sm:$0xf]
      %v2041 = vld [vmem:[%s2026 + $0x38] sm:$0xf]
      %v2042 = vld [vmem:[%s2026 + $0x3c] sm:$0xf]
      %v2043 = vunpack.c.l.b16 %v1995
      %v2044 = vunpack.c.l.b16 %v2005
      %v2045 = vunpack.c.l.b16 %v2015
      %v2046 = vunpack.c.l.b16 %v2025
      %v2047 = vpack.c.b16 %v2044, %v2043
      %v2048 = vpack.c.b16 %v2046, %v2045
      %v2067 = vunpack.c.l.b16 %v2027
      %v2068 = vunpack.c.l.b16 %v2028
      %v2069 = vunpack.c.l.b16 %v2029
      %v2070 = vunpack.c.l.b16 %v2030
      %v2071 = vunpack.c.l.b16 %v2031
      %v2072 = vunpack.c.l.b16 %v2032
      %v2073 = vunpack.c.l.b16 %v2033
      %v2074 = vunpack.c.l.b16 %v2034
      %v2075 = vunpack.c.l.b16 %v2035
      %v2076 = vunpack.c.l.b16 %v2036
      %v2077 = vunpack.c.l.b16 %v2037
      %v2078 = vunpack.c.l.b16 %v2038
      %v2079 = vunpack.c.l.b16 %v2039
      %v2080 = vunpack.c.l.b16 %v2040
      %v2081 = vunpack.c.l.b16 %v2041
      %v2082 = vunpack.c.l.b16 %v2042
      %v2083 = vpack.c.b16 %v2068, %v2067
      %v2084 = vpack.c.b16 %v2070, %v2069
      %v2085 = vpack.c.b16 %v2072, %v2071
      %v2086 = vpack.c.b16 %v2074, %v2073
      %v2087 = vpack.c.b16 %v2076, %v2075
      %v2088 = vpack.c.b16 %v2078, %v2077
      %v2089 = vpack.c.b16 %v2080, %v2079
      %v2090 = vpack.c.b16 %v2082, %v2081
      %2099 = vmatprep.subr.bf16.mxu0 0
      %2100 = vmatpush1.bf16.msra.mxu0 %v2083
      %2101 = vmatprep.subr.bf16.mxu0 0
      %2102 = vmatpush1.bf16.msra.mxu0 %v2084
      %2103 = vmatprep.subr.bf16.mxu0 0
      %2104 = vmatpush1.bf16.msra.mxu0 %v2085
      %2105 = vmatprep.subr.bf16.mxu0 0
      %2106 = vmatpush1.bf16.msra.mxu0 %v2086
      %2107 = vmatprep.subr.bf16.mxu0 0
      %2108 = vmatpush1.bf16.msra.mxu0 %v2087
      %2109 = vmatprep.subr.bf16.mxu0 0
      %2110 = vmatpush1.bf16.msra.mxu0 %v2088
      %2111 = vmatprep.subr.bf16.mxu0 0
      %2112 = vmatpush1.bf16.msra.mxu0 %v2089
      %2113 = vmatprep.subr.bf16.mxu0 0
      %2114 = vmatpush1.bf16.msra.mxu0 %v2090
      %2115 = vmatprep.subr.bf16.mxu0 0
      %2116 = vmatpush1.bf16.msra.mxu0 0
      %2117 = vmatprep.subr.bf16.mxu0 0
      %2118 = vmatpush1.bf16.msra.mxu0 0
      %2119 = vmatprep.subr.bf16.mxu0 0
      %2120 = vmatpush1.bf16.msra.mxu0 0
      %2121 = vmatprep.subr.bf16.mxu0 0
      %2122 = vmatpush1.bf16.msra.mxu0 0
      %2123 = vmatprep.subr.bf16.mxu0 0
      %2124 = vmatpush1.bf16.msra.mxu0 0
      %2125 = vmatprep.subr.bf16.mxu0 0
      %2126 = vmatpush1.bf16.msra.mxu0 0
      %2127 = vmatprep.subr.bf16.mxu0 0
      %2128 = vmatpush1.bf16.msra.mxu0 0
      %2129 = vmatprep.subr.bf16.mxu0 0
      %2130 = vmatpush1.bf16.msra.mxu0 0
      %2131 = vmatprep.mubr.bf16.mxu0 0
      %2132 = vmatmul.mubr.bf16.gmra.mrb[0].mxu0 %v731
      %v2133 = vpop.f32.mrb[0].mxu0
      %v2134 = vadd.f32 0.0, %v2133
      %v2135 = vpop.f32.mrb[0].mxu0
      %v2136 = vpop.f32.mrb[0].mxu0
      %v2137 = vadd.f32 0.0, %v2136
      %v2138 = vpop.f32.mrb[0].mxu0
      %2139 = vmatprep.mubr.bf16.mxu0 0
      %2140 = vmatmul.mubr.bf16.gmra.mrb[0].mxu0 %v732
      %v2141 = vpop.f32.mrb[0].mxu0
      %v2142 = vadd.f32 0.0, %v2141
      %v2143 = vpop.f32.mrb[0].mxu0
      %v2144 = vpop.f32.mrb[0].mxu0
      %v2145 = vadd.f32 0.0, %v2144
      %v2146 = vpop.f32.mrb[0].mxu0
      %2147 = vmatprep.mubr.bf16.mxu0 0
      %2148 = vmatmul.mubr.bf16.gmra.mrb[0].mxu0 %v733
      %v2149 = vpop.f32.mrb[0].mxu0
      %v2150 = vadd.f32 0.0, %v2149
      %v2151 = vpop.f32.mrb[0].mxu0
      %v2152 = vpop.f32.mrb[0].mxu0
      %v2153 = vadd.f32 0.0, %v2152
      %v2154 = vpop.f32.mrb[0].mxu0
      %2155 = vmatprep.mubr.bf16.mxu0 0
      %2156 = vmatmul.mubr.bf16.gmra.mrb[0].mxu0 %v734
      %v2157 = vpop.f32.mrb[0].mxu0
      %v2158 = vadd.f32 0.0, %v2157
      %v2159 = vpop.f32.mrb[0].mxu0
      %v2160 = vpop.f32.mrb[0].mxu0
      %v2161 = vadd.f32 0.0, %v2160
      %v2162 = vpop.f32.mrb[0].mxu0
      %2163 = vmatprep.mubr.bf16.mxu0 0
      %2164 = vmatmul.mubr.bf16.gmra.mrb[0].mxu0 %v735
      %v2165 = vpop.f32.mrb[0].mxu0
      %v2166 = vadd.f32 0.0, %v2165
      %v2167 = vpop.f32.mrb[0].mxu0
      %v2168 = vpop.f32.mrb[0].mxu0
      %v2169 = vadd.f32 0.0, %v2168
      %v2170 = vpop.f32.mrb[0].mxu0
      %2171 = vmatprep.mubr.bf16.mxu0 0
      %2172 = vmatmul.mubr.bf16.gmra.mrb[0].mxu0 %v736
      %v2173 = vpop.f32.mrb[0].mxu0
      %v2174 = vadd.f32 0.0, %v2173
      %v2175 = vpop.f32.mrb[0].mxu0
      %v2176 = vpop.f32.mrb[0].mxu0
      %v2177 = vadd.f32 0.0, %v2176
      %v2178 = vpop.f32.mrb[0].mxu0
      %2179 = vmatprep.mubr.bf16.mxu0 0
      %2180 = vmatmul.mubr.bf16.gmra.mrb[0].mxu0 %v737
      %v2181 = vpop.f32.mrb[0].mxu0
      %v2182 = vadd.f32 0.0, %v2181
      %v2183 = vpop.f32.mrb[0].mxu0
      %v2184 = vpop.f32.mrb[0].mxu0
      %v2185 = vadd.f32 0.0, %v2184
      %v2186 = vpop.f32.mrb[0].mxu0
      %2187 = vmatprep.mubr.bf16.mxu0 0
      %2188 = vmatmul.mubr.bf16.gmra.mrb[0].mxu0 %v738
      %v2189 = vpop.f32.mrb[0].mxu0
      %v2190 = vadd.f32 0.0, %v2189
      %v2191 = vpop.f32.mrb[0].mxu0
      %v2192 = vpop.f32.mrb[0].mxu0
      %v2193 = vadd.f32 0.0, %v2192
      %v2194 = vpop.f32.mrb[0].mxu0
      %2195 = vmatprep.mubr.bf16.mxu0 0
      %2196 = vmatmul.mubr.bf16.gmra.mrb[0].mxu0 %v739
      %v2197 = vpop.f32.mrb[0].mxu0
      %v2198 = vadd.f32 0.0, %v2197
      %v2199 = vpop.f32.mrb[0].mxu0
      %v2200 = vpop.f32.mrb[0].mxu0
      %v2201 = vadd.f32 0.0, %v2200
      %v2202 = vpop.f32.mrb[0].mxu0
      %2203 = vmatprep.mubr.bf16.mxu0 0
      %2204 = vmatmul.mubr.bf16.gmra.mrb[0].mxu0 %v740
      %v2205 = vpop.f32.mrb[0].mxu0
      %v2206 = vadd.f32 0.0, %v2205
      %v2207 = vpop.f32.mrb[0].mxu0
      %v2208 = vpop.f32.mrb[0].mxu0
      %v2209 = vadd.f32 0.0, %v2208
      %v2210 = vpop.f32.mrb[0].mxu0
      %2211 = vmatprep.mubr.bf16.mxu0 0
      %2212 = vmatmul.mubr.bf16.gmra.mrb[0].mxu0 %v741
      %v2213 = vpop.f32.mrb[0].mxu0
      %v2214 = vadd.f32 0.0, %v2213
      %v2215 = vpop.f32.mrb[0].mxu0
      %v2216 = vpop.f32.mrb[0].mxu0
      %v2217 = vadd.f32 0.0, %v2216
      %v2218 = vpop.f32.mrb[0].mxu0
      %2219 = vmatprep.mubr.bf16.mxu0 0
      %2220 = vmatmul.mubr.bf16.gmra.mrb[0].mxu0 %v742
      %v2221 = vpop.f32.mrb[0].mxu0
      %v2222 = vadd.f32 0.0, %v2221
      %v2223 = vpop.f32.mrb[0].mxu0
      %v2224 = vpop.f32.mrb[0].mxu0
      %v2225 = vadd.f32 0.0, %v2224
      %v2226 = vpop.f32.mrb[0].mxu0
      %2227 = vmatprep.mubr.bf16.mxu0 0
      %2228 = vmatmul.mubr.bf16.gmra.mrb[0].mxu0 %v743
      %v2229 = vpop.f32.mrb[0].mxu0
      %v2230 = vadd.f32 0.0, %v2229
      %v2231 = vpop.f32.mrb[0].mxu0
      %v2232 = vpop.f32.mrb[0].mxu0
      %v2233 = vadd.f32 0.0, %v2232
      %v2234 = vpop.f32.mrb[0].mxu0
      %2235 = vmatprep.mubr.bf16.mxu0 0
      %2236 = vmatmul.mubr.bf16.gmra.mrb[0].mxu0 %v744
      %v2237 = vpop.f32.mrb[0].mxu0
      %v2238 = vadd.f32 0.0, %v2237
      %v2239 = vpop.f32.mrb[0].mxu0
      %v2240 = vpop.f32.mrb[0].mxu0
      %v2241 = vadd.f32 0.0, %v2240
      %v2242 = vpop.f32.mrb[0].mxu0
      %2243 = vmatprep.mubr.bf16.mxu0 0
      %2244 = vmatmul.mubr.bf16.gmra.mrb[0].mxu0 %v2047
      %v2245 = vpop.f32.mrb[0].mxu0
      %v2246 = vadd.f32 0.0, %v2245
      %v2247 = vpop.f32.mrb[0].mxu0
      %v2248 = vpop.f32.mrb[0].mxu0
      %v2249 = vadd.f32 0.0, %v2248
      %v2250 = vpop.f32.mrb[0].mxu0
      %2251 = vmatprep.mubr.bf16.mxu0 0
      %2252 = vmatmul.mubr.bf16.gmra.mrb[0].mxu0 %v2048
      %v2253 = vpop.f32.mrb[0].mxu0
      %v2254 = vadd.f32 0.0, %v2253
      %v2255 = vpop.f32.mrb[0].mxu0
      %v2256 = vpop.f32.mrb[0].mxu0
      %v2257 = vadd.f32 0.0, %v2256
      %v2258 = vpop.f32.mrb[0].mxu0
      %2259 = vdwg.mxu0
      %v2260 = vadd.f32 %v1950, %v2134
      %v2261 = vadd.f32 %v1951, %v2137
      %v2262 = vadd.f32 %v1952, %v2142
      %v2263 = vadd.f32 %v1953, %v2145
      %v2264 = vadd.f32 %v1954, %v2150
      %v2265 = vadd.f32 %v1955, %v2153
      %v2266 = vadd.f32 %v1956, %v2158
      %v2267 = vadd.f32 %v1957, %v2161
      %v2268 = vadd.f32 %v1958, %v2166
      %v2269 = vadd.f32 %v1959, %v2169
      %v2270 = vadd.f32 %v1960, %v2174
      %v2271 = vadd.f32 %v1961, %v2177
      %v2272 = vadd.f32 %v1962, %v2182
      %v2273 = vadd.f32 %v1963, %v2185
      %v2274 = vadd.f32 %v1964, %v2190
      %v2275 = vadd.f32 %v1965, %v2193
      %v2276 = vadd.f32 %v1966, %v2198
      %v2277 = vadd.f32 %v1967, %v2201
      %v2278 = vadd.f32 %v1968, %v2206
      %v2279 = vadd.f32 %v1969, %v2209
      %v2280 = vadd.f32 %v1970, %v2214
      %v2281 = vadd.f32 %v1971, %v2217
      %v2282 = vadd.f32 %v1972, %v2222
      %v2283 = vadd.f32 %v1973, %v2225
      %v2284 = vadd.f32 %v1974, %v2230
      %v2285 = vadd.f32 %v1975, %v2233
      %v2286 = vadd.f32 %v1976, %v2238
      %v2287 = vadd.f32 %v1977, %v2241
      %v2288 = vadd.f32 %v1978, %v2246
      %v2289 = vadd.f32 %v1979, %v2249
      %v2290 = vadd.f32 %v1980, %v2254
      %v2291 = vadd.f32 %v1981, %v2257
      %v2293 = vrot.slane %v299, 5
      %v2294 = vrot.slane %v2293, 4
      %v2295 = vrot.slane %v300, 5
      %v2296 = vsel %vm1285, %v2294, %v2295
      %v2297 = vrot.slane %v2295, 4
      %v2298 = vrot.slane %v301, 5
      %v2299 = vsel %vm1285, %v2297, %v2298
      %v2300 = vrot.slane %v2298, 4
      %v2301 = vrot.slane %v302, 5
      %v2302 = vsel %vm1285, %v2300, %v2301
      %v2303 = vrot.slane %v2301, 4
      %v2304 = vrot.slane %v303, 5
      %v2305 = vsel %vm1285, %v2303, %v2304
      %s2306 = scalar_lea.vmem %s1, 320
      %v2307 = vld [vmem:[%s2306] sm:$0xf]
      %v2308 = vld [vmem:[%s2306 + $0x4] sm:$0xf]
      %v2309 = vld [vmem:[%s2306 + $0x8] sm:$0xf]
      %v2310 = vld [vmem:[%s2306 + $0xc] sm:$0xf]
      %v2311 = vld [vmem:[%s2306 + $0x10] sm:$0xf]
      %v2312 = vld [vmem:[%s2306 + $0x14] sm:$0xf]
      %v2313 = vld [vmem:[%s2306 + $0x18] sm:$0xf]
      %v2314 = vld [vmem:[%s2306 + $0x1c] sm:$0xf]
      %v2315 = vld [vmem:[%s2306 + $0x20] sm:$0xf]
      %v2316 = vld [vmem:[%s2306 + $0x24] sm:$0xf]
      %v2317 = vld [vmem:[%s2306 + $0x28] sm:$0xf]
      %v2318 = vld [vmem:[%s2306 + $0x2c] sm:$0xf]
      %v2319 = vld [vmem:[%s2306 + $0x30] sm:$0xf]
      %v2320 = vld [vmem:[%s2306 + $0x34] sm:$0xf]
      %v2321 = vld [vmem:[%s2306 + $0x38] sm:$0xf]
      %v2322 = vld [vmem:[%s2306 + $0x3c] sm:$0xf]
      %v2323 = vunpack.c.l.b16 %v2296
      %v2324 = vunpack.c.l.b16 %v2299
      %v2325 = vunpack.c.l.b16 %v2302
      %v2326 = vunpack.c.l.b16 %v2305
      %v2327 = vpack.c.b16 %v2324, %v2323
      %v2328 = vpack.c.b16 %v2326, %v2325
      %v2347 = vunpack.c.l.b16 %v2307
      %v2348 = vunpack.c.l.b16 %v2308
      %v2349 = vunpack.c.l.b16 %v2309
      %v2350 = vunpack.c.l.b16 %v2310
      %v2351 = vunpack.c.l.b16 %v2311
      %v2352 = vunpack.c.l.b16 %v2312
      %v2353 = vunpack.c.l.b16 %v2313
      %v2354 = vunpack.c.l.b16 %v2314
      %v2355 = vunpack.c.l.b16 %v2315
      %v2356 = vunpack.c.l.b16 %v2316
      %v2357 = vunpack.c.l.b16 %v2317
      %v2358 = vunpack.c.l.b16 %v2318
      %v2359 = vunpack.c.l.b16 %v2319
      %v2360 = vunpack.c.l.b16 %v2320
      %v2361 = vunpack.c.l.b16 %v2321
      %v2362 = vunpack.c.l.b16 %v2322
      %v2363 = vpack.c.b16 %v2348, %v2347
      %v2364 = vpack.c.b16 %v2350, %v2349
      %v2365 = vpack.c.b16 %v2352, %v2351
      %v2366 = vpack.c.b16 %v2354, %v2353
      %v2367 = vpack.c.b16 %v2356, %v2355
      %v2368 = vpack.c.b16 %v2358, %v2357
      %v2369 = vpack.c.b16 %v2360, %v2359
      %v2370 = vpack.c.b16 %v2362, %v2361
      %2379 = vmatprep.subr.bf16.mxu0 0
      %2380 = vmatpush1.bf16.msra.mxu0 %v2363
      %2381 = vmatprep.subr.bf16.mxu0 0
      %2382 = vmatpush1.bf16.msra.mxu0 %v2364
      %2383 = vmatprep.subr.bf16.mxu0 0
      %2384 = vmatpush1.bf16.msra.mxu0 %v2365
      %2385 = vmatprep.subr.bf16.mxu0 0
      %2386 = vmatpush1.bf16.msra.mxu0 %v2366
      %2387 = vmatprep.subr.bf16.mxu0 0
      %2388 = vmatpush1.bf16.msra.mxu0 %v2367
      %2389 = vmatprep.subr.bf16.mxu0 0
      %2390 = vmatpush1.bf16.msra.mxu0 %v2368
      %2391 = vmatprep.subr.bf16.mxu0 0
      %2392 = vmatpush1.bf16.msra.mxu0 %v2369
      %2393 = vmatprep.subr.bf16.mxu0 0
      %2394 = vmatpush1.bf16.msra.mxu0 %v2370
      %2395 = vmatprep.subr.bf16.mxu0 0
      %2396 = vmatpush1.bf16.msra.mxu0 0
      %2397 = vmatprep.subr.bf16.mxu0 0
      %2398 = vmatpush1.bf16.msra.mxu0 0
      %2399 = vmatprep.subr.bf16.mxu0 0
      %2400 = vmatpush1.bf16.msra.mxu0 0
      %2401 = vmatprep.subr.bf16.mxu0 0
      %2402 = vmatpush1.bf16.msra.mxu0 0
      %2403 = vmatprep.subr.bf16.mxu0 0
      %2404 = vmatpush1.bf16.msra.mxu0 0
      %2405 = vmatprep.subr.bf16.mxu0 0
      %2406 = vmatpush1.bf16.msra.mxu0 0
      %2407 = vmatprep.subr.bf16.mxu0 0
      %2408 = vmatpush1.bf16.msra.mxu0 0
      %2409 = vmatprep.subr.bf16.mxu0 0
      %2410 = vmatpush1.bf16.msra.mxu0 0
      %2411 = vmatprep.mubr.bf16.mxu0 0
      %2412 = vmatmul.mubr.bf16.gmra.mrb[0].mxu0 %v1441
      %v2413 = vpop.f32.mrb[0].mxu0
      %v2414 = vadd.f32 0.0, %v2413
      %v2415 = vpop.f32.mrb[0].mxu0
      %v2416 = vpop.f32.mrb[0].mxu0
      %v2417 = vadd.f32 0.0, %v2416
      %v2418 = vpop.f32.mrb[0].mxu0
      %2419 = vmatprep.mubr.bf16.mxu0 0
      %2420 = vmatmul.mubr.bf16.gmra.mrb[0].mxu0 %v1442
      %v2421 = vpop.f32.mrb[0].mxu0
      %v2422 = vadd.f32 0.0, %v2421
      %v2423 = vpop.f32.mrb[0].mxu0
      %v2424 = vpop.f32.mrb[0].mxu0
      %v2425 = vadd.f32 0.0, %v2424
      %v2426 = vpop.f32.mrb[0].mxu0
      %2427 = vmatprep.mubr.bf16.mxu0 0
      %2428 = vmatmul.mubr.bf16.gmra.mrb[0].mxu0 %v1443
      %v2429 = vpop.f32.mrb[0].mxu0
      %v2430 = vadd.f32 0.0, %v2429
      %v2431 = vpop.f32.mrb[0].mxu0
      %v2432 = vpop.f32.mrb[0].mxu0
      %v2433 = vadd.f32 0.0, %v2432
      %v2434 = vpop.f32.mrb[0].mxu0
      %2435 = vmatprep.mubr.bf16.mxu0 0
      %2436 = vmatmul.mubr.bf16.gmra.mrb[0].mxu0 %v1444
      %v2437 = vpop.f32.mrb[0].mxu0
      %v2438 = vadd.f32 0.0, %v2437
      %v2439 = vpop.f32.mrb[0].mxu0
      %v2440 = vpop.f32.mrb[0].mxu0
      %v2441 = vadd.f32 0.0, %v2440
      %v2442 = vpop.f32.mrb[0].mxu0
      %2443 = vmatprep.mubr.bf16.mxu0 0
      %2444 = vmatmul.mubr.bf16.gmra.mrb[0].mxu0 %v1445
      %v2445 = vpop.f32.mrb[0].mxu0
      %v2446 = vadd.f32 0.0, %v2445
      %v2447 = vpop.f32.mrb[0].mxu0
      %v2448 = vpop.f32.mrb[0].mxu0
      %v2449 = vadd.f32 0.0, %v2448
      %v2450 = vpop.f32.mrb[0].mxu0
      %2451 = vmatprep.mubr.bf16.mxu0 0
      %2452 = vmatmul.mubr.bf16.gmra.mrb[0].mxu0 %v1446
      %v2453 = vpop.f32.mrb[0].mxu0
      %v2454 = vadd.f32 0.0, %v2453
      %v2455 = vpop.f32.mrb[0].mxu0
      %v2456 = vpop.f32.mrb[0].mxu0
      %v2457 = vadd.f32 0.0, %v2456
      %v2458 = vpop.f32.mrb[0].mxu0
      %2459 = vmatprep.mubr.bf16.mxu0 0
      %2460 = vmatmul.mubr.bf16.gmra.mrb[0].mxu0 %v1447
      %v2461 = vpop.f32.mrb[0].mxu0
      %v2462 = vadd.f32 0.0, %v2461
      %v2463 = vpop.f32.mrb[0].mxu0
      %v2464 = vpop.f32.mrb[0].mxu0
      %v2465 = vadd.f32 0.0, %v2464
      %v2466 = vpop.f32.mrb[0].mxu0
      %2467 = vmatprep.mubr.bf16.mxu0 0
      %2468 = vmatmul.mubr.bf16.gmra.mrb[0].mxu0 %v1448
      %v2469 = vpop.f32.mrb[0].mxu0
      %v2470 = vadd.f32 0.0, %v2469
      %v2471 = vpop.f32.mrb[0].mxu0
      %v2472 = vpop.f32.mrb[0].mxu0
      %v2473 = vadd.f32 0.0, %v2472
      %v2474 = vpop.f32.mrb[0].mxu0
      %2475 = vmatprep.mubr.bf16.mxu0 0
      %2476 = vmatmul.mubr.bf16.gmra.mrb[0].mxu0 %v1449
      %v2477 = vpop.f32.mrb[0].mxu0
      %v2478 = vadd.f32 0.0, %v2477
      %v2479 = vpop.f32.mrb[0].mxu0
      %v2480 = vpop.f32.mrb[0].mxu0
      %v2481 = vadd.f32 0.0, %v2480
      %v2482 = vpop.f32.mrb[0].mxu0
      %2483 = vmatprep.mubr.bf16.mxu0 0
      %2484 = vmatmul.mubr.bf16.gmra.mrb[0].mxu0 %v1450
      %v2485 = vpop.f32.mrb[0].mxu0
      %v2486 = vadd.f32 0.0, %v2485
      %v2487 = vpop.f32.mrb[0].mxu0
      %v2488 = vpop.f32.mrb[0].mxu0
      %v2489 = vadd.f32 0.0, %v2488
      %v2490 = vpop.f32.mrb[0].mxu0
      %2491 = vmatprep.mubr.bf16.mxu0 0
      %2492 = vmatmul.mubr.bf16.gmra.mrb[0].mxu0 %v1451
      %v2493 = vpop.f32.mrb[0].mxu0
      %v2494 = vadd.f32 0.0, %v2493
      %v2495 = vpop.f32.mrb[0].mxu0
      %v2496 = vpop.f32.mrb[0].mxu0
      %v2497 = vadd.f32 0.0, %v2496
      %v2498 = vpop.f32.mrb[0].mxu0
      %2499 = vmatprep.mubr.bf16.mxu0 0
      %2500 = vmatmul.mubr.bf16.gmra.mrb[0].mxu0 %v1452
      %v2501 = vpop.f32.mrb[0].mxu0
      %v2502 = vadd.f32 0.0, %v2501
      %v2503 = vpop.f32.mrb[0].mxu0
      %v2504 = vpop.f32.mrb[0].mxu0
      %v2505 = vadd.f32 0.0, %v2504
      %v2506 = vpop.f32.mrb[0].mxu0
      %2507 = vmatprep.mubr.bf16.mxu0 0
      %2508 = vmatmul.mubr.bf16.gmra.mrb[0].mxu0 %v1453
      %v2509 = vpop.f32.mrb[0].mxu0
      %v2510 = vadd.f32 0.0, %v2509
      %v2511 = vpop.f32.mrb[0].mxu0
      %v2512 = vpop.f32.mrb[0].mxu0
      %v2513 = vadd.f32 0.0, %v2512
      %v2514 = vpop.f32.mrb[0].mxu0
      %2515 = vmatprep.mubr.bf16.mxu0 0
      %2516 = vmatmul.mubr.bf16.gmra.mrb[0].mxu0 %v1454
      %v2517 = vpop.f32.mrb[0].mxu0
      %v2518 = vadd.f32 0.0, %v2517
      %v2519 = vpop.f32.mrb[0].mxu0
      %v2520 = vpop.f32.mrb[0].mxu0
      %v2521 = vadd.f32 0.0, %v2520
      %v2522 = vpop.f32.mrb[0].mxu0
      %2523 = vmatprep.mubr.bf16.mxu0 0
      %2524 = vmatmul.mubr.bf16.gmra.mrb[0].mxu0 %v2327
      %v2525 = vpop.f32.mrb[0].mxu0
      %v2526 = vadd.f32 0.0, %v2525
      %v2527 = vpop.f32.mrb[0].mxu0
      %v2528 = vpop.f32.mrb[0].mxu0
      %v2529 = vadd.f32 0.0, %v2528
      %v2530 = vpop.f32.mrb[0].mxu0
      %2531 = vmatprep.mubr.bf16.mxu0 0
      %2532 = vmatmul.mubr.bf16.gmra.mrb[0].mxu0 %v2328
      %v2533 = vpop.f32.mrb[0].mxu0
      %v2534 = vadd.f32 0.0, %v2533
      %v2535 = vpop.f32.mrb[0].mxu0
      %v2536 = vpop.f32.mrb[0].mxu0
      %v2537 = vadd.f32 0.0, %v2536
      %v2538 = vpop.f32.mrb[0].mxu0
      %2539 = vdwg.mxu0
      %v2540 = vadd.f32 %v2260, %v2414
      %v2541 = vadd.f32 %v2261, %v2417
      %v2542 = vadd.f32 %v2262, %v2422
      %v2543 = vadd.f32 %v2263, %v2425
      %v2544 = vadd.f32 %v2264, %v2430
      %v2545 = vadd.f32 %v2265, %v2433
      %v2546 = vadd.f32 %v2266, %v2438
      %v2547 = vadd.f32 %v2267, %v2441
      %v2548 = vadd.f32 %v2268, %v2446
      %v2549 = vadd.f32 %v2269, %v2449
      %v2550 = vadd.f32 %v2270, %v2454
      %v2551 = vadd.f32 %v2271, %v2457
      %v2552 = vadd.f32 %v2272, %v2462
      %v2553 = vadd.f32 %v2273, %v2465
      %v2554 = vadd.f32 %v2274, %v2470
      %v2555 = vadd.f32 %v2275, %v2473
      %v2556 = vadd.f32 %v2276, %v2478
      %v2557 = vadd.f32 %v2277, %v2481
      %v2558 = vadd.f32 %v2278, %v2486
      %v2559 = vadd.f32 %v2279, %v2489
      %v2560 = vadd.f32 %v2280, %v2494
      %v2561 = vadd.f32 %v2281, %v2497
      %v2562 = vadd.f32 %v2282, %v2502
      %v2563 = vadd.f32 %v2283, %v2505
      %v2564 = vadd.f32 %v2284, %v2510
      %v2565 = vadd.f32 %v2285, %v2513
      %v2566 = vadd.f32 %v2286, %v2518
      %v2567 = vadd.f32 %v2287, %v2521
      %v2568 = vadd.f32 %v2288, %v2526
      %v2569 = vadd.f32 %v2289, %v2529
      %v2570 = vadd.f32 %v2290, %v2534
      %v2571 = vadd.f32 %v2291, %v2537
      %s2572 = scalar_lea.vmem %s1, 384
      %v2573 = vld [vmem:[%s2572] sm:$0xf]
      %v2574 = vld [vmem:[%s2572 + $0x4] sm:$0xf]
      %v2575 = vld [vmem:[%s2572 + $0x8] sm:$0xf]
      %v2576 = vld [vmem:[%s2572 + $0xc] sm:$0xf]
      %v2577 = vld [vmem:[%s2572 + $0x10] sm:$0xf]
      %v2578 = vld [vmem:[%s2572 + $0x14] sm:$0xf]
      %v2579 = vld [vmem:[%s2572 + $0x18] sm:$0xf]
      %v2580 = vld [vmem:[%s2572 + $0x1c] sm:$0xf]
      %v2581 = vld [vmem:[%s2572 + $0x20] sm:$0xf]
      %v2582 = vld [vmem:[%s2572 + $0x24] sm:$0xf]
      %v2583 = vld [vmem:[%s2572 + $0x28] sm:$0xf]
      %v2584 = vld [vmem:[%s2572 + $0x2c] sm:$0xf]
      %v2585 = vld [vmem:[%s2572 + $0x30] sm:$0xf]
      %v2586 = vld [vmem:[%s2572 + $0x34] sm:$0xf]
      %v2587 = vld [vmem:[%s2572 + $0x38] sm:$0xf]
      %v2588 = vld [vmem:[%s2572 + $0x3c] sm:$0xf]
      %v2593 = vunpack.c.l.b16 %v304
      %v2594 = vunpack.c.l.b16 %v305
      %v2595 = vunpack.c.l.b16 %v306
      %v2596 = vunpack.c.l.b16 %v307
      %v2597 = vpack.c.b16 %v2594, %v2593
      %v2598 = vpack.c.b16 %v2596, %v2595
      %v2617 = vunpack.c.l.b16 %v2573
      %v2618 = vunpack.c.l.b16 %v2574
      %v2619 = vunpack.c.l.b16 %v2575
      %v2620 = vunpack.c.l.b16 %v2576
      %v2621 = vunpack.c.l.b16 %v2577
      %v2622 = vunpack.c.l.b16 %v2578
      %v2623 = vunpack.c.l.b16 %v2579
      %v2624 = vunpack.c.l.b16 %v2580
      %v2625 = vunpack.c.l.b16 %v2581
      %v2626 = vunpack.c.l.b16 %v2582
      %v2627 = vunpack.c.l.b16 %v2583
      %v2628 = vunpack.c.l.b16 %v2584
      %v2629 = vunpack.c.l.b16 %v2585
      %v2630 = vunpack.c.l.b16 %v2586
      %v2631 = vunpack.c.l.b16 %v2587
      %v2632 = vunpack.c.l.b16 %v2588
      %v2633 = vpack.c.b16 %v2618, %v2617
      %v2634 = vpack.c.b16 %v2620, %v2619
      %v2635 = vpack.c.b16 %v2622, %v2621
      %v2636 = vpack.c.b16 %v2624, %v2623
      %v2637 = vpack.c.b16 %v2626, %v2625
      %v2638 = vpack.c.b16 %v2628, %v2627
      %v2639 = vpack.c.b16 %v2630, %v2629
      %v2640 = vpack.c.b16 %v2632, %v2631
      %2649 = vmatprep.subr.bf16.mxu0 0
      %2650 = vmatpush1.bf16.msra.mxu0 %v2633
      %2651 = vmatprep.subr.bf16.mxu0 0
      %2652 = vmatpush1.bf16.msra.mxu0 %v2634
      %2653 = vmatprep.subr.bf16.mxu0 0
      %2654 = vmatpush1.bf16.msra.mxu0 %v2635
      %2655 = vmatprep.subr.bf16.mxu0 0
      %2656 = vmatpush1.bf16.msra.mxu0 %v2636
      %2657 = vmatprep.subr.bf16.mxu0 0
      %2658 = vmatpush1.bf16.msra.mxu0 %v2637
      %2659 = vmatprep.subr.bf16.mxu0 0
      %2660 = vmatpush1.bf16.msra.mxu0 %v2638
      %2661 = vmatprep.subr.bf16.mxu0 0
      %2662 = vmatpush1.bf16.msra.mxu0 %v2639
      %2663 = vmatprep.subr.bf16.mxu0 0
      %2664 = vmatpush1.bf16.msra.mxu0 %v2640
      %2665 = vmatprep.subr.bf16.mxu0 0
      %2666 = vmatpush1.bf16.msra.mxu0 0
      %2667 = vmatprep.subr.bf16.mxu0 0
      %2668 = vmatpush1.bf16.msra.mxu0 0
      %2669 = vmatprep.subr.bf16.mxu0 0
      %2670 = vmatpush1.bf16.msra.mxu0 0
      %2671 = vmatprep.subr.bf16.mxu0 0
      %2672 = vmatpush1.bf16.msra.mxu0 0
      %2673 = vmatprep.subr.bf16.mxu0 0
      %2674 = vmatpush1.bf16.msra.mxu0 0
      %2675 = vmatprep.subr.bf16.mxu0 0
      %2676 = vmatpush1.bf16.msra.mxu0 0
      %2677 = vmatprep.subr.bf16.mxu0 0
      %2678 = vmatpush1.bf16.msra.mxu0 0
      %2679 = vmatprep.subr.bf16.mxu0 0
      %2680 = vmatpush1.bf16.msra.mxu0 0
      %2681 = vmatprep.mubr.bf16.mxu0 0
      %2682 = vmatmul.mubr.bf16.gmra.mrb[0].mxu0 %v1038
      %v2683 = vpop.f32.mrb[0].mxu0
      %v2684 = vadd.f32 0.0, %v2683
      %v2685 = vpop.f32.mrb[0].mxu0
      %v2686 = vpop.f32.mrb[0].mxu0
      %v2687 = vadd.f32 0.0, %v2686
      %v2688 = vpop.f32.mrb[0].mxu0
      %2689 = vmatprep.mubr.bf16.mxu0 0
      %2690 = vmatmul.mubr.bf16.gmra.mrb[0].mxu0 %v1039
      %v2691 = vpop.f32.mrb[0].mxu0
      %v2692 = vadd.f32 0.0, %v2691
      %v2693 = vpop.f32.mrb[0].mxu0
      %v2694 = vpop.f32.mrb[0].mxu0
      %v2695 = vadd.f32 0.0, %v2694
      %v2696 = vpop.f32.mrb[0].mxu0
      %2697 = vmatprep.mubr.bf16.mxu0 0
      %2698 = vmatmul.mubr.bf16.gmra.mrb[0].mxu0 %v1040
      %v2699 = vpop.f32.mrb[0].mxu0
      %v2700 = vadd.f32 0.0, %v2699
      %v2701 = vpop.f32.mrb[0].mxu0
      %v2702 = vpop.f32.mrb[0].mxu0
      %v2703 = vadd.f32 0.0, %v2702
      %v2704 = vpop.f32.mrb[0].mxu0
      %2705 = vmatprep.mubr.bf16.mxu0 0
      %2706 = vmatmul.mubr.bf16.gmra.mrb[0].mxu0 %v1041
      %v2707 = vpop.f32.mrb[0].mxu0
      %v2708 = vadd.f32 0.0, %v2707
      %v2709 = vpop.f32.mrb[0].mxu0
      %v2710 = vpop.f32.mrb[0].mxu0
      %v2711 = vadd.f32 0.0, %v2710
      %v2712 = vpop.f32.mrb[0].mxu0
      %2713 = vmatprep.mubr.bf16.mxu0 0
      %2714 = vmatmul.mubr.bf16.gmra.mrb[0].mxu0 %v1042
      %v2715 = vpop.f32.mrb[0].mxu0
      %v2716 = vadd.f32 0.0, %v2715
      %v2717 = vpop.f32.mrb[0].mxu0
      %v2718 = vpop.f32.mrb[0].mxu0
      %v2719 = vadd.f32 0.0, %v2718
      %v2720 = vpop.f32.mrb[0].mxu0
      %2721 = vmatprep.mubr.bf16.mxu0 0
      %2722 = vmatmul.mubr.bf16.gmra.mrb[0].mxu0 %v1043
      %v2723 = vpop.f32.mrb[0].mxu0
      %v2724 = vadd.f32 0.0, %v2723
      %v2725 = vpop.f32.mrb[0].mxu0
      %v2726 = vpop.f32.mrb[0].mxu0
      %v2727 = vadd.f32 0.0, %v2726
      %v2728 = vpop.f32.mrb[0].mxu0
      %2729 = vmatprep.mubr.bf16.mxu0 0
      %2730 = vmatmul.mubr.bf16.gmra.mrb[0].mxu0 %v1044
      %v2731 = vpop.f32.mrb[0].mxu0
      %v2732 = vadd.f32 0.0, %v2731
      %v2733 = vpop.f32.mrb[0].mxu0
      %v2734 = vpop.f32.mrb[0].mxu0
      %v2735 = vadd.f32 0.0, %v2734
      %v2736 = vpop.f32.mrb[0].mxu0
      %2737 = vmatprep.mubr.bf16.mxu0 0
      %2738 = vmatmul.mubr.bf16.gmra.mrb[0].mxu0 %v1045
      %v2739 = vpop.f32.mrb[0].mxu0
      %v2740 = vadd.f32 0.0, %v2739
      %v2741 = vpop.f32.mrb[0].mxu0
      %v2742 = vpop.f32.mrb[0].mxu0
      %v2743 = vadd.f32 0.0, %v2742
      %v2744 = vpop.f32.mrb[0].mxu0
      %2745 = vmatprep.mubr.bf16.mxu0 0
      %2746 = vmatmul.mubr.bf16.gmra.mrb[0].mxu0 %v1046
      %v2747 = vpop.f32.mrb[0].mxu0
      %v2748 = vadd.f32 0.0, %v2747
      %v2749 = vpop.f32.mrb[0].mxu0
      %v2750 = vpop.f32.mrb[0].mxu0
      %v2751 = vadd.f32 0.0, %v2750
      %v2752 = vpop.f32.mrb[0].mxu0
      %2753 = vmatprep.mubr.bf16.mxu0 0
      %2754 = vmatmul.mubr.bf16.gmra.mrb[0].mxu0 %v1047
      %v2755 = vpop.f32.mrb[0].mxu0
      %v2756 = vadd.f32 0.0, %v2755
      %v2757 = vpop.f32.mrb[0].mxu0
      %v2758 = vpop.f32.mrb[0].mxu0
      %v2759 = vadd.f32 0.0, %v2758
      %v2760 = vpop.f32.mrb[0].mxu0
      %2761 = vmatprep.mubr.bf16.mxu0 0
      %2762 = vmatmul.mubr.bf16.gmra.mrb[0].mxu0 %v1048
      %v2763 = vpop.f32.mrb[0].mxu0
      %v2764 = vadd.f32 0.0, %v2763
      %v2765 = vpop.f32.mrb[0].mxu0
      %v2766 = vpop.f32.mrb[0].mxu0
      %v2767 = vadd.f32 0.0, %v2766
      %v2768 = vpop.f32.mrb[0].mxu0
      %2769 = vmatprep.mubr.bf16.mxu0 0
      %2770 = vmatmul.mubr.bf16.gmra.mrb[0].mxu0 %v1049
      %v2771 = vpop.f32.mrb[0].mxu0
      %v2772 = vadd.f32 0.0, %v2771
      %v2773 = vpop.f32.mrb[0].mxu0
      %v2774 = vpop.f32.mrb[0].mxu0
      %v2775 = vadd.f32 0.0, %v2774
      %v2776 = vpop.f32.mrb[0].mxu0
      %2777 = vmatprep.mubr.bf16.mxu0 0
      %2778 = vmatmul.mubr.bf16.gmra.mrb[0].mxu0 %v1737
      %v2779 = vpop.f32.mrb[0].mxu0
      %v2780 = vadd.f32 0.0, %v2779
      %v2781 = vpop.f32.mrb[0].mxu0
      %v2782 = vpop.f32.mrb[0].mxu0
      %v2783 = vadd.f32 0.0, %v2782
      %v2784 = vpop.f32.mrb[0].mxu0
      %2785 = vmatprep.mubr.bf16.mxu0 0
      %2786 = vmatmul.mubr.bf16.gmra.mrb[0].mxu0 %v1738
      %v2787 = vpop.f32.mrb[0].mxu0
      %v2788 = vadd.f32 0.0, %v2787
      %v2789 = vpop.f32.mrb[0].mxu0
      %v2790 = vpop.f32.mrb[0].mxu0
      %v2791 = vadd.f32 0.0, %v2790
      %v2792 = vpop.f32.mrb[0].mxu0
      %2793 = vmatprep.mubr.bf16.mxu0 0
      %2794 = vmatmul.mubr.bf16.gmra.mrb[0].mxu0 %v2597
      %v2795 = vpop.f32.mrb[0].mxu0
      %v2796 = vadd.f32 0.0, %v2795
      %v2797 = vpop.f32.mrb[0].mxu0
      %v2798 = vpop.f32.mrb[0].mxu0
      %v2799 = vadd.f32 0.0, %v2798
      %v2800 = vpop.f32.mrb[0].mxu0
      %2801 = vmatprep.mubr.bf16.mxu0 0
      %2802 = vmatmul.mubr.bf16.gmra.mrb[0].mxu0 %v2598
      %v2803 = vpop.f32.mrb[0].mxu0
      %v2804 = vadd.f32 0.0, %v2803
      %v2805 = vpop.f32.mrb[0].mxu0
      %v2806 = vpop.f32.mrb[0].mxu0
      %v2807 = vadd.f32 0.0, %v2806
      %v2808 = vpop.f32.mrb[0].mxu0
      %2809 = vdwg.mxu0
      %v2810 = vadd.f32 %v2540, %v2684
      %v2811 = vadd.f32 %v2541, %v2687
      %v2812 = vadd.f32 %v2542, %v2692
      %v2813 = vadd.f32 %v2543, %v2695
      %v2814 = vadd.f32 %v2544, %v2700
      %v2815 = vadd.f32 %v2545, %v2703
      %v2816 = vadd.f32 %v2546, %v2708
      %v2817 = vadd.f32 %v2547, %v2711
      %v2818 = vadd.f32 %v2548, %v2716
      %v2819 = vadd.f32 %v2549, %v2719
      %v2820 = vadd.f32 %v2550, %v2724
      %v2821 = vadd.f32 %v2551, %v2727
      %v2822 = vadd.f32 %v2552, %v2732
      %v2823 = vadd.f32 %v2553, %v2735
      %v2824 = vadd.f32 %v2554, %v2740
      %v2825 = vadd.f32 %v2555, %v2743
      %v2826 = vadd.f32 %v2556, %v2748
      %v2827 = vadd.f32 %v2557, %v2751
      %v2828 = vadd.f32 %v2558, %v2756
      %v2829 = vadd.f32 %v2559, %v2759
      %v2830 = vadd.f32 %v2560, %v2764
      %v2831 = vadd.f32 %v2561, %v2767
      %v2832 = vadd.f32 %v2562, %v2772
      %v2833 = vadd.f32 %v2563, %v2775
      %v2834 = vadd.f32 %v2564, %v2780
      %v2835 = vadd.f32 %v2565, %v2783
      %v2836 = vadd.f32 %v2566, %v2788
      %v2837 = vadd.f32 %v2567, %v2791
      %v2838 = vadd.f32 %v2568, %v2796
      %v2839 = vadd.f32 %v2569, %v2799
      %v2840 = vadd.f32 %v2570, %v2804
      %v2841 = vadd.f32 %v2571, %v2807
      %v2843 = vshrl.u32 %v304, 16
      %v2845 = vrot.slane %v2843, 4
      %v2846 = vshll.u32 %v304, 16
      %v2848 = vrot.slane %v2846, 5
      %v2849 = vor.u32 %v2845, %v2848
      %v2850 = vrot.slane %v2849, 4
      %v2852 = vshll.u32 %v305, 16
      %v2854 = vrot.slane %v2852, 5
      %v2855 = vsel %vm327, %v2850, %v2854
      %v2856 = vshrl.u32 %v305, 16
      %v2858 = vrot.slane %v2856, 4
      %v2859 = vor.u32 %v2858, %v2854
      %v2860 = vrot.slane %v2859, 4
      %v2862 = vshll.u32 %v306, 16
      %v2864 = vrot.slane %v2862, 5
      %v2865 = vsel %vm327, %v2860, %v2864
      %v2866 = vshrl.u32 %v306, 16
      %v2868 = vrot.slane %v2866, 4
      %v2869 = vor.u32 %v2868, %v2864
      %v2870 = vrot.slane %v2869, 4
      %v2872 = vshll.u32 %v307, 16
      %v2874 = vrot.slane %v2872, 5
      %v2875 = vsel %vm327, %v2870, %v2874
      %v2876 = vshrl.u32 %v307, 16
      %v2878 = vrot.slane %v2876, 4
      %v2879 = vor.u32 %v2878, %v2874
      %v2880 = vrot.slane %v2879, 4
      %v2882 = vshll.u32 %v308, 16
      %v2884 = vrot.slane %v2882, 5
      %v2885 = vsel %vm327, %v2880, %v2884
      %s2886 = scalar_lea.vmem %s1, 448
      %v2887 = vld [vmem:[%s2886] sm:$0xf]
      %v2888 = vld [vmem:[%s2886 + $0x4] sm:$0xf]
      %v2889 = vld [vmem:[%s2886 + $0x8] sm:$0xf]
      %v2890 = vld [vmem:[%s2886 + $0xc] sm:$0xf]
      %v2891 = vld [vmem:[%s2886 + $0x10] sm:$0xf]
      %v2892 = vld [vmem:[%s2886 + $0x14] sm:$0xf]
      %v2893 = vld [vmem:[%s2886 + $0x18] sm:$0xf]
      %v2894 = vld [vmem:[%s2886 + $0x1c] sm:$0xf]
      %v2895 = vld [vmem:[%s2886 + $0x20] sm:$0xf]
      %v2896 = vld [vmem:[%s2886 + $0x24] sm:$0xf]
      %v2897 = vld [vmem:[%s2886 + $0x28] sm:$0xf]
      %v2898 = vld [vmem:[%s2886 + $0x2c] sm:$0xf]
      %v2899 = vld [vmem:[%s2886 + $0x30] sm:$0xf]
      %v2900 = vld [vmem:[%s2886 + $0x34] sm:$0xf]
      %v2901 = vld [vmem:[%s2886 + $0x38] sm:$0xf]
      %v2902 = vld [vmem:[%s2886 + $0x3c] sm:$0xf]
      %v2903 = vunpack.c.l.b16 %v2855
      %v2904 = vunpack.c.l.b16 %v2865
      %v2905 = vunpack.c.l.b16 %v2875
      %v2906 = vunpack.c.l.b16 %v2885
      %v2907 = vpack.c.b16 %v2904, %v2903
      %v2908 = vpack.c.b16 %v2906, %v2905
      %v2927 = vunpack.c.l.b16 %v2887
      %v2928 = vunpack.c.l.b16 %v2888
      %v2929 = vunpack.c.l.b16 %v2889
      %v2930 = vunpack.c.l.b16 %v2890
      %v2931 = vunpack.c.l.b16 %v2891
      %v2932 = vunpack.c.l.b16 %v2892
      %v2933 = vunpack.c.l.b16 %v2893
      %v2934 = vunpack.c.l.b16 %v2894
      %v2935 = vunpack.c.l.b16 %v2895
      %v2936 = vunpack.c.l.b16 %v2896
      %v2937 = vunpack.c.l.b16 %v2897
      %v2938 = vunpack.c.l.b16 %v2898
      %v2939 = vunpack.c.l.b16 %v2899
      %v2940 = vunpack.c.l.b16 %v2900
      %v2941 = vunpack.c.l.b16 %v2901
      %v2942 = vunpack.c.l.b16 %v2902
      %v2943 = vpack.c.b16 %v2928, %v2927
      %v2944 = vpack.c.b16 %v2930, %v2929
      %v2945 = vpack.c.b16 %v2932, %v2931
      %v2946 = vpack.c.b16 %v2934, %v2933
      %v2947 = vpack.c.b16 %v2936, %v2935
      %v2948 = vpack.c.b16 %v2938, %v2937
      %v2949 = vpack.c.b16 %v2940, %v2939
      %v2950 = vpack.c.b16 %v2942, %v2941
      %2959 = vmatprep.subr.bf16.mxu0 0
      %2960 = vmatpush1.bf16.msra.mxu0 %v2943
      %2961 = vmatprep.subr.bf16.mxu0 0
      %2962 = vmatpush1.bf16.msra.mxu0 %v2944
      %2963 = vmatprep.subr.bf16.mxu0 0
      %2964 = vmatpush1.bf16.msra.mxu0 %v2945
      %2965 = vmatprep.subr.bf16.mxu0 0
      %2966 = vmatpush1.bf16.msra.mxu0 %v2946
      %2967 = vmatprep.subr.bf16.mxu0 0
      %2968 = vmatpush1.bf16.msra.mxu0 %v2947
      %2969 = vmatprep.subr.bf16.mxu0 0
      %2970 = vmatpush1.bf16.msra.mxu0 %v2948
      %2971 = vmatprep.subr.bf16.mxu0 0
      %2972 = vmatpush1.bf16.msra.mxu0 %v2949
      %2973 = vmatprep.subr.bf16.mxu0 0
      %2974 = vmatpush1.bf16.msra.mxu0 %v2950
      %2975 = vmatprep.subr.bf16.mxu0 0
      %2976 = vmatpush1.bf16.msra.mxu0 0
      %2977 = vmatprep.subr.bf16.mxu0 0
      %2978 = vmatpush1.bf16.msra.mxu0 0
      %2979 = vmatprep.subr.bf16.mxu0 0
      %2980 = vmatpush1.bf16.msra.mxu0 0
      %2981 = vmatprep.subr.bf16.mxu0 0
      %2982 = vmatpush1.bf16.msra.mxu0 0
      %2983 = vmatprep.subr.bf16.mxu0 0
      %2984 = vmatpush1.bf16.msra.mxu0 0
      %2985 = vmatprep.subr.bf16.mxu0 0
      %2986 = vmatpush1.bf16.msra.mxu0 0
      %2987 = vmatprep.subr.bf16.mxu0 0
      %2988 = vmatpush1.bf16.msra.mxu0 0
      %2989 = vmatprep.subr.bf16.mxu0 0
      %2990 = vmatpush1.bf16.msra.mxu0 0
      %2991 = vmatprep.mubr.bf16.mxu0 0
      %2992 = vmatmul.mubr.bf16.gmra.mrb[0].mxu0 %v733
      %v2993 = vpop.f32.mrb[0].mxu0
      %v2994 = vadd.f32 0.0, %v2993
      %v2995 = vpop.f32.mrb[0].mxu0
      %v2996 = vpop.f32.mrb[0].mxu0
      %v2997 = vadd.f32 0.0, %v2996
      %v2998 = vpop.f32.mrb[0].mxu0
      %2999 = vmatprep.mubr.bf16.mxu0 0
      %3000 = vmatmul.mubr.bf16.gmra.mrb[0].mxu0 %v734
      %v3001 = vpop.f32.mrb[0].mxu0
      %v3002 = vadd.f32 0.0, %v3001
      %v3003 = vpop.f32.mrb[0].mxu0
      %v3004 = vpop.f32.mrb[0].mxu0
      %v3005 = vadd.f32 0.0, %v3004
      %v3006 = vpop.f32.mrb[0].mxu0
      %3007 = vmatprep.mubr.bf16.mxu0 0
      %3008 = vmatmul.mubr.bf16.gmra.mrb[0].mxu0 %v735
      %v3009 = vpop.f32.mrb[0].mxu0
      %v3010 = vadd.f32 0.0, %v3009
      %v3011 = vpop.f32.mrb[0].mxu0
      %v3012 = vpop.f32.mrb[0].mxu0
      %v3013 = vadd.f32 0.0, %v3012
      %v3014 = vpop.f32.mrb[0].mxu0
      %3015 = vmatprep.mubr.bf16.mxu0 0
      %3016 = vmatmul.mubr.bf16.gmra.mrb[0].mxu0 %v736
      %v3017 = vpop.f32.mrb[0].mxu0
      %v3018 = vadd.f32 0.0, %v3017
      %v3019 = vpop.f32.mrb[0].mxu0
      %v3020 = vpop.f32.mrb[0].mxu0
      %v3021 = vadd.f32 0.0, %v3020
      %v3022 = vpop.f32.mrb[0].mxu0
      %3023 = vmatprep.mubr.bf16.mxu0 0
      %3024 = vmatmul.mubr.bf16.gmra.mrb[0].mxu0 %v737
      %v3025 = vpop.f32.mrb[0].mxu0
      %v3026 = vadd.f32 0.0, %v3025
      %v3027 = vpop.f32.mrb[0].mxu0
      %v3028 = vpop.f32.mrb[0].mxu0
      %v3029 = vadd.f32 0.0, %v3028
      %v3030 = vpop.f32.mrb[0].mxu0
      %3031 = vmatprep.mubr.bf16.mxu0 0
      %3032 = vmatmul.mubr.bf16.gmra.mrb[0].mxu0 %v738
      %v3033 = vpop.f32.mrb[0].mxu0
      %v3034 = vadd.f32 0.0, %v3033
      %v3035 = vpop.f32.mrb[0].mxu0
      %v3036 = vpop.f32.mrb[0].mxu0
      %v3037 = vadd.f32 0.0, %v3036
      %v3038 = vpop.f32.mrb[0].mxu0
      %3039 = vmatprep.mubr.bf16.mxu0 0
      %3040 = vmatmul.mubr.bf16.gmra.mrb[0].mxu0 %v739
      %v3041 = vpop.f32.mrb[0].mxu0
      %v3042 = vadd.f32 0.0, %v3041
      %v3043 = vpop.f32.mrb[0].mxu0
      %v3044 = vpop.f32.mrb[0].mxu0
      %v3045 = vadd.f32 0.0, %v3044
      %v3046 = vpop.f32.mrb[0].mxu0
      %3047 = vmatprep.mubr.bf16.mxu0 0
      %3048 = vmatmul.mubr.bf16.gmra.mrb[0].mxu0 %v740
      %v3049 = vpop.f32.mrb[0].mxu0
      %v3050 = vadd.f32 0.0, %v3049
      %v3051 = vpop.f32.mrb[0].mxu0
      %v3052 = vpop.f32.mrb[0].mxu0
      %v3053 = vadd.f32 0.0, %v3052
      %v3054 = vpop.f32.mrb[0].mxu0
      %3055 = vmatprep.mubr.bf16.mxu0 0
      %3056 = vmatmul.mubr.bf16.gmra.mrb[0].mxu0 %v741
      %v3057 = vpop.f32.mrb[0].mxu0
      %v3058 = vadd.f32 0.0, %v3057
      %v3059 = vpop.f32.mrb[0].mxu0
      %v3060 = vpop.f32.mrb[0].mxu0
      %v3061 = vadd.f32 0.0, %v3060
      %v3062 = vpop.f32.mrb[0].mxu0
      %3063 = vmatprep.mubr.bf16.mxu0 0
      %3064 = vmatmul.mubr.bf16.gmra.mrb[0].mxu0 %v742
      %v3065 = vpop.f32.mrb[0].mxu0
      %v3066 = vadd.f32 0.0, %v3065
      %v3067 = vpop.f32.mrb[0].mxu0
      %v3068 = vpop.f32.mrb[0].mxu0
      %v3069 = vadd.f32 0.0, %v3068
      %v3070 = vpop.f32.mrb[0].mxu0
      %3071 = vmatprep.mubr.bf16.mxu0 0
      %3072 = vmatmul.mubr.bf16.gmra.mrb[0].mxu0 %v743
      %v3073 = vpop.f32.mrb[0].mxu0
      %v3074 = vadd.f32 0.0, %v3073
      %v3075 = vpop.f32.mrb[0].mxu0
      %v3076 = vpop.f32.mrb[0].mxu0
      %v3077 = vadd.f32 0.0, %v3076
      %v3078 = vpop.f32.mrb[0].mxu0
      %3079 = vmatprep.mubr.bf16.mxu0 0
      %3080 = vmatmul.mubr.bf16.gmra.mrb[0].mxu0 %v744
      %v3081 = vpop.f32.mrb[0].mxu0
      %v3082 = vadd.f32 0.0, %v3081
      %v3083 = vpop.f32.mrb[0].mxu0
      %v3084 = vpop.f32.mrb[0].mxu0
      %v3085 = vadd.f32 0.0, %v3084
      %v3086 = vpop.f32.mrb[0].mxu0
      %3087 = vmatprep.mubr.bf16.mxu0 0
      %3088 = vmatmul.mubr.bf16.gmra.mrb[0].mxu0 %v2047
      %v3089 = vpop.f32.mrb[0].mxu0
      %v3090 = vadd.f32 0.0, %v3089
      %v3091 = vpop.f32.mrb[0].mxu0
      %v3092 = vpop.f32.mrb[0].mxu0
      %v3093 = vadd.f32 0.0, %v3092
      %v3094 = vpop.f32.mrb[0].mxu0
      %3095 = vmatprep.mubr.bf16.mxu0 0
      %3096 = vmatmul.mubr.bf16.gmra.mrb[0].mxu0 %v2048
      %v3097 = vpop.f32.mrb[0].mxu0
      %v3098 = vadd.f32 0.0, %v3097
      %v3099 = vpop.f32.mrb[0].mxu0
      %v3100 = vpop.f32.mrb[0].mxu0
      %v3101 = vadd.f32 0.0, %v3100
      %v3102 = vpop.f32.mrb[0].mxu0
      %3103 = vmatprep.mubr.bf16.mxu0 0
      %3104 = vmatmul.mubr.bf16.gmra.mrb[0].mxu0 %v2907
      %v3105 = vpop.f32.mrb[0].mxu0
      %v3106 = vadd.f32 0.0, %v3105
      %v3107 = vpop.f32.mrb[0].mxu0
      %v3108 = vpop.f32.mrb[0].mxu0
      %v3109 = vadd.f32 0.0, %v3108
      %v3110 = vpop.f32.mrb[0].mxu0
      %3111 = vmatprep.mubr.bf16.mxu0 0
      %3112 = vmatmul.mubr.bf16.gmra.mrb[0].mxu0 %v2908
      %v3113 = vpop.f32.mrb[0].mxu0
      %v3114 = vadd.f32 0.0, %v3113
      %v3115 = vpop.f32.mrb[0].mxu0
      %v3116 = vpop.f32.mrb[0].mxu0
      %v3117 = vadd.f32 0.0, %v3116
      %v3118 = vpop.f32.mrb[0].mxu0
      %3119 = vdwg.mxu0
      %v3120 = vadd.f32 %v2810, %v2994
      %v3121 = vadd.f32 %v2811, %v2997
      %v3122 = vadd.f32 %v2812, %v3002
      %v3123 = vadd.f32 %v2813, %v3005
      %v3124 = vadd.f32 %v2814, %v3010
      %v3125 = vadd.f32 %v2815, %v3013
      %v3126 = vadd.f32 %v2816, %v3018
      %v3127 = vadd.f32 %v2817, %v3021
      %v3128 = vadd.f32 %v2818, %v3026
      %v3129 = vadd.f32 %v2819, %v3029
      %v3130 = vadd.f32 %v2820, %v3034
      %v3131 = vadd.f32 %v2821, %v3037
      %v3132 = vadd.f32 %v2822, %v3042
      %v3133 = vadd.f32 %v2823, %v3045
      %v3134 = vadd.f32 %v2824, %v3050
      %v3135 = vadd.f32 %v2825, %v3053
      %v3136 = vadd.f32 %v2826, %v3058
      %v3137 = vadd.f32 %v2827, %v3061
      %v3138 = vadd.f32 %v2828, %v3066
      %v3139 = vadd.f32 %v2829, %v3069
      %v3140 = vadd.f32 %v2830, %v3074
      %v3141 = vadd.f32 %v2831, %v3077
      %v3142 = vadd.f32 %v2832, %v3082
      %v3143 = vadd.f32 %v2833, %v3085
      %v3144 = vadd.f32 %v2834, %v3090
      %v3145 = vadd.f32 %v2835, %v3093
      %v3146 = vadd.f32 %v2836, %v3098
      %v3147 = vadd.f32 %v2837, %v3101
      %v3148 = vadd.f32 %v2838, %v3106
      %v3149 = vadd.f32 %v2839, %v3109
      %v3150 = vadd.f32 %v2840, %v3114
      %v3151 = vadd.f32 %v2841, %v3117
      %v3153 = vrot.slane %v304, 5
      %v3154 = vrot.slane %v3153, 4
      %v3155 = vrot.slane %v305, 5
      %v3156 = vsel %vm1285, %v3154, %v3155
      %v3157 = vrot.slane %v3155, 4
      %v3158 = vrot.slane %v306, 5
      %v3159 = vsel %vm1285, %v3157, %v3158
      %v3160 = vrot.slane %v3158, 4
      %v3161 = vrot.slane %v307, 5
      %v3162 = vsel %vm1285, %v3160, %v3161
      %v3163 = vrot.slane %v3161, 4
      %v3164 = vrot.slane %v308, 5
      %v3165 = vsel %vm1285, %v3163, %v3164
      %s3166 = scalar_lea.vmem %s1, 512
      %v3167 = vld [vmem:[%s3166] sm:$0xf]
      %v3168 = vld [vmem:[%s3166 + $0x4] sm:$0xf]
      %v3169 = vld [vmem:[%s3166 + $0x8] sm:$0xf]
      %v3170 = vld [vmem:[%s3166 + $0xc] sm:$0xf]
      %v3171 = vld [vmem:[%s3166 + $0x10] sm:$0xf]
      %v3172 = vld [vmem:[%s3166 + $0x14] sm:$0xf]
      %v3173 = vld [vmem:[%s3166 + $0x18] sm:$0xf]
      %v3174 = vld [vmem:[%s3166 + $0x1c] sm:$0xf]
      %v3175 = vld [vmem:[%s3166 + $0x20] sm:$0xf]
      %v3176 = vld [vmem:[%s3166 + $0x24] sm:$0xf]
      %v3177 = vld [vmem:[%s3166 + $0x28] sm:$0xf]
      %v3178 = vld [vmem:[%s3166 + $0x2c] sm:$0xf]
      %v3179 = vld [vmem:[%s3166 + $0x30] sm:$0xf]
      %v3180 = vld [vmem:[%s3166 + $0x34] sm:$0xf]
      %v3181 = vld [vmem:[%s3166 + $0x38] sm:$0xf]
      %v3182 = vld [vmem:[%s3166 + $0x3c] sm:$0xf]
      %v3183 = vunpack.c.l.b16 %v3156
      %v3184 = vunpack.c.l.b16 %v3159
      %v3185 = vunpack.c.l.b16 %v3162
      %v3186 = vunpack.c.l.b16 %v3165
      %v3187 = vpack.c.b16 %v3184, %v3183
      %v3188 = vpack.c.b16 %v3186, %v3185
      %v3207 = vunpack.c.l.b16 %v3167
      %v3208 = vunpack.c.l.b16 %v3168
      %v3209 = vunpack.c.l.b16 %v3169
      %v3210 = vunpack.c.l.b16 %v3170
      %v3211 = vunpack.c.l.b16 %v3171
      %v3212 = vunpack.c.l.b16 %v3172
      %v3213 = vunpack.c.l.b16 %v3173
      %v3214 = vunpack.c.l.b16 %v3174
      %v3215 = vunpack.c.l.b16 %v3175
      %v3216 = vunpack.c.l.b16 %v3176
      %v3217 = vunpack.c.l.b16 %v3177
      %v3218 = vunpack.c.l.b16 %v3178
      %v3219 = vunpack.c.l.b16 %v3179
      %v3220 = vunpack.c.l.b16 %v3180
      %v3221 = vunpack.c.l.b16 %v3181
      %v3222 = vunpack.c.l.b16 %v3182
      %v3223 = vpack.c.b16 %v3208, %v3207
      %v3224 = vpack.c.b16 %v3210, %v3209
      %v3225 = vpack.c.b16 %v3212, %v3211
      %v3226 = vpack.c.b16 %v3214, %v3213
      %v3227 = vpack.c.b16 %v3216, %v3215
      %v3228 = vpack.c.b16 %v3218, %v3217
      %v3229 = vpack.c.b16 %v3220, %v3219
      %v3230 = vpack.c.b16 %v3222, %v3221
      %3239 = vmatprep.subr.bf16.mxu0 0
      %3240 = vmatpush1.bf16.msra.mxu0 %v3223
      %3241 = vmatprep.subr.bf16.mxu0 0
      %3242 = vmatpush1.bf16.msra.mxu0 %v3224
      %3243 = vmatprep.subr.bf16.mxu0 0
      %3244 = vmatpush1.bf16.msra.mxu0 %v3225
      %3245 = vmatprep.subr.bf16.mxu0 0
      %3246 = vmatpush1.bf16.msra.mxu0 %v3226
      %3247 = vmatprep.subr.bf16.mxu0 0
      %3248 = vmatpush1.bf16.msra.mxu0 %v3227
      %3249 = vmatprep.subr.bf16.mxu0 0
      %3250 = vmatpush1.bf16.msra.mxu0 %v3228
      %3251 = vmatprep.subr.bf16.mxu0 0
      %3252 = vmatpush1.bf16.msra.mxu0 %v3229
      %3253 = vmatprep.subr.bf16.mxu0 0
      %3254 = vmatpush1.bf16.msra.mxu0 %v3230
      %3255 = vmatprep.subr.bf16.mxu0 0
      %3256 = vmatpush1.bf16.msra.mxu0 0
      %3257 = vmatprep.subr.bf16.mxu0 0
      %3258 = vmatpush1.bf16.msra.mxu0 0
      %3259 = vmatprep.subr.bf16.mxu0 0
      %3260 = vmatpush1.bf16.msra.mxu0 0
      %3261 = vmatprep.subr.bf16.mxu0 0
      %3262 = vmatpush1.bf16.msra.mxu0 0
      %3263 = vmatprep.subr.bf16.mxu0 0
      %3264 = vmatpush1.bf16.msra.mxu0 0
      %3265 = vmatprep.subr.bf16.mxu0 0
      %3266 = vmatpush1.bf16.msra.mxu0 0
      %3267 = vmatprep.subr.bf16.mxu0 0
      %3268 = vmatpush1.bf16.msra.mxu0 0
      %3269 = vmatprep.subr.bf16.mxu0 0
      %3270 = vmatpush1.bf16.msra.mxu0 0
      %3271 = vmatprep.mubr.bf16.mxu0 0
      %3272 = vmatmul.mubr.bf16.gmra.mrb[0].mxu0 %v1443
      %v3273 = vpop.f32.mrb[0].mxu0
      %v3274 = vadd.f32 0.0, %v3273
      %v3275 = vpop.f32.mrb[0].mxu0
      %v3276 = vpop.f32.mrb[0].mxu0
      %v3277 = vadd.f32 0.0, %v3276
      %v3278 = vpop.f32.mrb[0].mxu0
      %3279 = vmatprep.mubr.bf16.mxu0 0
      %3280 = vmatmul.mubr.bf16.gmra.mrb[0].mxu0 %v1444
      %v3281 = vpop.f32.mrb[0].mxu0
      %v3282 = vadd.f32 0.0, %v3281
      %v3283 = vpop.f32.mrb[0].mxu0
      %v3284 = vpop.f32.mrb[0].mxu0
      %v3285 = vadd.f32 0.0, %v3284
      %v3286 = vpop.f32.mrb[0].mxu0
      %3287 = vmatprep.mubr.bf16.mxu0 0
      %3288 = vmatmul.mubr.bf16.gmra.mrb[0].mxu0 %v1445
      %v3289 = vpop.f32.mrb[0].mxu0
      %v3290 = vadd.f32 0.0, %v3289
      %v3291 = vpop.f32.mrb[0].mxu0
      %v3292 = vpop.f32.mrb[0].mxu0
      %v3293 = vadd.f32 0.0, %v3292
      %v3294 = vpop.f32.mrb[0].mxu0
      %3295 = vmatprep.mubr.bf16.mxu0 0
      %3296 = vmatmul.mubr.bf16.gmra.mrb[0].mxu0 %v1446
      %v3297 = vpop.f32.mrb[0].mxu0
      %v3298 = vadd.f32 0.0, %v3297
      %v3299 = vpop.f32.mrb[0].mxu0
      %v3300 = vpop.f32.mrb[0].mxu0
      %v3301 = vadd.f32 0.0, %v3300
      %v3302 = vpop.f32.mrb[0].mxu0
      %3303 = vmatprep.mubr.bf16.mxu0 0
      %3304 = vmatmul.mubr.bf16.gmra.mrb[0].mxu0 %v1447
      %v3305 = vpop.f32.mrb[0].mxu0
      %v3306 = vadd.f32 0.0, %v3305
      %v3307 = vpop.f32.mrb[0].mxu0
      %v3308 = vpop.f32.mrb[0].mxu0
      %v3309 = vadd.f32 0.0, %v3308
      %v3310 = vpop.f32.mrb[0].mxu0
      %3311 = vmatprep.mubr.bf16.mxu0 0
      %3312 = vmatmul.mubr.bf16.gmra.mrb[0].mxu0 %v1448
      %v3313 = vpop.f32.mrb[0].mxu0
      %v3314 = vadd.f32 0.0, %v3313
      %v3315 = vpop.f32.mrb[0].mxu0
      %v3316 = vpop.f32.mrb[0].mxu0
      %v3317 = vadd.f32 0.0, %v3316
      %v3318 = vpop.f32.mrb[0].mxu0
      %3319 = vmatprep.mubr.bf16.mxu0 0
      %3320 = vmatmul.mubr.bf16.gmra.mrb[0].mxu0 %v1449
      %v3321 = vpop.f32.mrb[0].mxu0
      %v3322 = vadd.f32 0.0, %v3321
      %v3323 = vpop.f32.mrb[0].mxu0
      %v3324 = vpop.f32.mrb[0].mxu0
      %v3325 = vadd.f32 0.0, %v3324
      %v3326 = vpop.f32.mrb[0].mxu0
      %3327 = vmatprep.mubr.bf16.mxu0 0
      %3328 = vmatmul.mubr.bf16.gmra.mrb[0].mxu0 %v1450
      %v3329 = vpop.f32.mrb[0].mxu0
      %v3330 = vadd.f32 0.0, %v3329
      %v3331 = vpop.f32.mrb[0].mxu0
      %v3332 = vpop.f32.mrb[0].mxu0
      %v3333 = vadd.f32 0.0, %v3332
      %v3334 = vpop.f32.mrb[0].mxu0
      %3335 = vmatprep.mubr.bf16.mxu0 0
      %3336 = vmatmul.mubr.bf16.gmra.mrb[0].mxu0 %v1451
      %v3337 = vpop.f32.mrb[0].mxu0
      %v3338 = vadd.f32 0.0, %v3337
      %v3339 = vpop.f32.mrb[0].mxu0
      %v3340 = vpop.f32.mrb[0].mxu0
      %v3341 = vadd.f32 0.0, %v3340
      %v3342 = vpop.f32.mrb[0].mxu0
      %3343 = vmatprep.mubr.bf16.mxu0 0
      %3344 = vmatmul.mubr.bf16.gmra.mrb[0].mxu0 %v1452
      %v3345 = vpop.f32.mrb[0].mxu0
      %v3346 = vadd.f32 0.0, %v3345
      %v3347 = vpop.f32.mrb[0].mxu0
      %v3348 = vpop.f32.mrb[0].mxu0
      %v3349 = vadd.f32 0.0, %v3348
      %v3350 = vpop.f32.mrb[0].mxu0
      %3351 = vmatprep.mubr.bf16.mxu0 0
      %3352 = vmatmul.mubr.bf16.gmra.mrb[0].mxu0 %v1453
      %v3353 = vpop.f32.mrb[0].mxu0
      %v3354 = vadd.f32 0.0, %v3353
      %v3355 = vpop.f32.mrb[0].mxu0
      %v3356 = vpop.f32.mrb[0].mxu0
      %v3357 = vadd.f32 0.0, %v3356
      %v3358 = vpop.f32.mrb[0].mxu0
      %3359 = vmatprep.mubr.bf16.mxu0 0
      %3360 = vmatmul.mubr.bf16.gmra.mrb[0].mxu0 %v1454
      %v3361 = vpop.f32.mrb[0].mxu0
      %v3362 = vadd.f32 0.0, %v3361
      %v3363 = vpop.f32.mrb[0].mxu0
      %v3364 = vpop.f32.mrb[0].mxu0
      %v3365 = vadd.f32 0.0, %v3364
      %v3366 = vpop.f32.mrb[0].mxu0
      %3367 = vmatprep.mubr.bf16.mxu0 0
      %3368 = vmatmul.mubr.bf16.gmra.mrb[0].mxu0 %v2327
      %v3369 = vpop.f32.mrb[0].mxu0
      %v3370 = vadd.f32 0.0, %v3369
      %v3371 = vpop.f32.mrb[0].mxu0
      %v3372 = vpop.f32.mrb[0].mxu0
      %v3373 = vadd.f32 0.0, %v3372
      %v3374 = vpop.f32.mrb[0].mxu0
      %3375 = vmatprep.mubr.bf16.mxu0 0
      %3376 = vmatmul.mubr.bf16.gmra.mrb[0].mxu0 %v2328
      %v3377 = vpop.f32.mrb[0].mxu0
      %v3378 = vadd.f32 0.0, %v3377
      %v3379 = vpop.f32.mrb[0].mxu0
      %v3380 = vpop.f32.mrb[0].mxu0
      %v3381 = vadd.f32 0.0, %v3380
      %v3382 = vpop.f32.mrb[0].mxu0
      %3383 = vmatprep.mubr.bf16.mxu0 0
      %3384 = vmatmul.mubr.bf16.gmra.mrb[0].mxu0 %v3187
      %v3385 = vpop.f32.mrb[0].mxu0
      %v3386 = vadd.f32 0.0, %v3385
      %v3387 = vpop.f32.mrb[0].mxu0
      %v3388 = vpop.f32.mrb[0].mxu0
      %v3389 = vadd.f32 0.0, %v3388
      %v3390 = vpop.f32.mrb[0].mxu0
      %3391 = vmatprep.mubr.bf16.mxu0 0
      %3392 = vmatmul.mubr.bf16.gmra.mrb[0].mxu0 %v3188
      %v3393 = vpop.f32.mrb[0].mxu0
      %v3394 = vadd.f32 0.0, %v3393
      %v3395 = vpop.f32.mrb[0].mxu0
      %v3396 = vpop.f32.mrb[0].mxu0
      %v3397 = vadd.f32 0.0, %v3396
      %v3398 = vpop.f32.mrb[0].mxu0
      %3399 = vdwg.mxu0
      %v3400 = vadd.f32 %v3120, %v3274
      %v3401 = vadd.f32 %v3121, %v3277
      %v3402 = vadd.f32 %v3122, %v3282
      %v3403 = vadd.f32 %v3123, %v3285
      %v3404 = vadd.f32 %v3124, %v3290
      %v3405 = vadd.f32 %v3125, %v3293
      %v3406 = vadd.f32 %v3126, %v3298
      %v3407 = vadd.f32 %v3127, %v3301
      %v3408 = vadd.f32 %v3128, %v3306
      %v3409 = vadd.f32 %v3129, %v3309
      %v3410 = vadd.f32 %v3130, %v3314
      %v3411 = vadd.f32 %v3131, %v3317
      %v3412 = vadd.f32 %v3132, %v3322
      %v3413 = vadd.f32 %v3133, %v3325
      %v3414 = vadd.f32 %v3134, %v3330
      %v3415 = vadd.f32 %v3135, %v3333
      %v3416 = vadd.f32 %v3136, %v3338
      %v3417 = vadd.f32 %v3137, %v3341
      %v3418 = vadd.f32 %v3138, %v3346
      %v3419 = vadd.f32 %v3139, %v3349
      %v3420 = vadd.f32 %v3140, %v3354
      %v3421 = vadd.f32 %v3141, %v3357
      %v3422 = vadd.f32 %v3142, %v3362
      %v3423 = vadd.f32 %v3143, %v3365
      %v3424 = vadd.f32 %v3144, %v3370
      %v3425 = vadd.f32 %v3145, %v3373
      %v3426 = vadd.f32 %v3146, %v3378
      %v3427 = vadd.f32 %v3147, %v3381
      %v3428 = vadd.f32 %v3148, %v3386
      %v3429 = vadd.f32 %v3149, %v3389
      %v3430 = vadd.f32 %v3150, %v3394
      %v3431 = vadd.f32 %v3151, %v3397
      %v3432 = vld [vmem:[%s2] sm:$0x1]
      %v3434 = vlaneseq
      %v3435 = vshrl.u32 %v3434, 7
      %v3436 = vsub.s32 0, %v3435
      %v3437 = vrot.slane %v3432, %v3436
      %v3439 = vadd.f32 %v3400, %v3437
      %v3440 = vadd.f32 %v3401, %v3437
      %v3441 = vadd.f32 %v3402, %v3437
      %v3442 = vadd.f32 %v3403, %v3437
      %v3443 = vadd.f32 %v3404, %v3437
      %v3444 = vadd.f32 %v3405, %v3437
      %v3445 = vadd.f32 %v3406, %v3437
      %v3446 = vadd.f32 %v3407, %v3437
      %v3447 = vadd.f32 %v3408, %v3437
      %v3448 = vadd.f32 %v3409, %v3437
      %v3449 = vadd.f32 %v3410, %v3437
      %v3450 = vadd.f32 %v3411, %v3437
      %v3451 = vadd.f32 %v3412, %v3437
      %v3452 = vadd.f32 %v3413, %v3437
      %v3453 = vadd.f32 %v3414, %v3437
      %v3454 = vadd.f32 %v3415, %v3437
      %v3455 = vadd.f32 %v3416, %v3437
      %v3456 = vadd.f32 %v3417, %v3437
      %v3457 = vadd.f32 %v3418, %v3437
      %v3458 = vadd.f32 %v3419, %v3437
      %v3459 = vadd.f32 %v3420, %v3437
      %v3460 = vadd.f32 %v3421, %v3437
      %v3461 = vadd.f32 %v3422, %v3437
      %v3462 = vadd.f32 %v3423, %v3437
      %v3463 = vadd.f32 %v3424, %v3437
      %v3464 = vadd.f32 %v3425, %v3437
      %v3465 = vadd.f32 %v3426, %v3437
      %v3466 = vadd.f32 %v3427, %v3437
      %v3467 = vadd.f32 %v3428, %v3437
      %v3468 = vadd.f32 %v3429, %v3437
      %v3469 = vadd.f32 %v3430, %v3437
      %v3470 = vadd.f32 %v3431, %v3437
      %3471 = vst [vmem:[%s248] sm:$0xff] %v3439
      %3472 = vst [vmem:[%s248 + $0x8] sm:$0xff] %v3440
      %3473 = vst [vmem:[%s248 + $0x10] sm:$0xff] %v3441
      %3474 = vst [vmem:[%s248 + $0x18] sm:$0xff] %v3442
      %3475 = vst [vmem:[%s248 + $0x20] sm:$0xff] %v3443
      %3476 = vst [vmem:[%s248 + $0x28] sm:$0xff] %v3444
      %3477 = vst [vmem:[%s248 + $0x30] sm:$0xff] %v3445
      %3478 = vst [vmem:[%s248 + $0x38] sm:$0xff] %v3446
      %3479 = vst [vmem:[%s248 + $0x40] sm:$0xff] %v3447
      %3480 = vst [vmem:[%s248 + $0x48] sm:$0xff] %v3448
      %3481 = vst [vmem:[%s248 + $0x50] sm:$0xff] %v3449
      %3482 = vst [vmem:[%s248 + $0x58] sm:$0xff] %v3450
      %3483 = vst [vmem:[%s248 + $0x60] sm:$0xff] %v3451
      %3484 = vst [vmem:[%s248 + $0x68] sm:$0xff] %v3452
      %3485 = vst [vmem:[%s248 + $0x70] sm:$0xff] %v3453
      %3486 = vst [vmem:[%s248 + $0x78] sm:$0xff] %v3454
      %3487 = vst [vmem:[%s248 + $0x80] sm:$0xff] %v3455
      %3488 = vst [vmem:[%s248 + $0x88] sm:$0xff] %v3456
      %3489 = vst [vmem:[%s248 + $0x90] sm:$0xff] %v3457
      %3490 = vst [vmem:[%s248 + $0x98] sm:$0xff] %v3458
      %3491 = vst [vmem:[%s248 + $0xa0] sm:$0xff] %v3459
      %3492 = vst [vmem:[%s248 + $0xa8] sm:$0xff] %v3460
      %3493 = vst [vmem:[%s248 + $0xb0] sm:$0xff] %v3461
      %3494 = vst [vmem:[%s248 + $0xb8] sm:$0xff] %v3462
      %3495 = vst [vmem:[%s248 + $0xc0] sm:$0xff] %v3463
      %3496 = vst [vmem:[%s248 + $0xc8] sm:$0xff] %v3464
      %3497 = vst [vmem:[%s248 + $0xd0] sm:$0xff] %v3465
      %3498 = vst [vmem:[%s248 + $0xd8] sm:$0xff] %v3466
      %3499 = vst [vmem:[%s248 + $0xe0] sm:$0xff] %v3467
      %3500 = vst [vmem:[%s248 + $0xe8] sm:$0xff] %v3468
      %3501 = vst [vmem:[%s248 + $0xf0] sm:$0xff] %v3469
      %3502 = vst [vmem:[%s248 + $0xf8] sm:$0xff] %v3470
      %v3503 = vadd.f32 %v3439, %v3440
      %v3504 = vadd.f32 %v3503, %v3441
      %v3505 = vadd.f32 %v3504, %v3442
      %v3506 = vadd.f32 %v3505, %v3443
      %v3507 = vadd.f32 %v3506, %v3444
      %v3508 = vadd.f32 %v3507, %v3445
      %v3509 = vadd.f32 %v3508, %v3446
      %v3510 = vadd.f32 %v3509, %v3447
      %v3511 = vadd.f32 %v3510, %v3448
      %v3512 = vadd.f32 %v3511, %v3449
      %v3513 = vadd.f32 %v3512, %v3450
      %v3514 = vadd.f32 %v3513, %v3451
      %v3515 = vadd.f32 %v3514, %v3452
      %v3516 = vadd.f32 %v3515, %v3453
      %v3517 = vadd.f32 %v3516, %v3454
      %v3518 = vadd.f32 %v3517, %v3455
      %v3519 = vadd.f32 %v3518, %v3456
      %v3520 = vadd.f32 %v3519, %v3457
      %v3521 = vadd.f32 %v3520, %v3458
      %v3522 = vadd.f32 %v3521, %v3459
      %v3523 = vadd.f32 %v3522, %v3460
      %v3524 = vadd.f32 %v3523, %v3461
      %v3525 = vadd.f32 %v3524, %v3462
      %v3526 = vadd.f32 %v3525, %v3463
      %v3527 = vadd.f32 %v3526, %v3464
      %v3528 = vadd.f32 %v3527, %v3465
      %v3529 = vadd.f32 %v3528, %v3466
      %v3530 = vadd.f32 %v3529, %v3467
      %v3531 = vadd.f32 %v3530, %v3468
      %v3532 = vadd.f32 %v3531, %v3469
      %v3533 = vadd.f32 %v3532, %v3470
      %v3534 = vrot.slane %v3533, 4
      %v3535 = vadd.f32 %v3533, %v3534
      %v3536 = vrot.slane %v3535, 2
      %v3537 = vadd.f32 %v3535, %v3536
      %v3538 = vrot.slane %v3537, 1
      %v3539 = vadd.f32 %v3537, %v3538
      %v3540 = vmul.f32 %v3439, %v3439
      %v3541 = vmul.f32 %v3440, %v3440
      %v3542 = vmul.f32 %v3441, %v3441
      %v3543 = vmul.f32 %v3442, %v3442
      %v3544 = vmul.f32 %v3443, %v3443
      %v3545 = vmul.f32 %v3444, %v3444
      %v3546 = vmul.f32 %v3445, %v3445
      %v3547 = vmul.f32 %v3446, %v3446
      %v3548 = vmul.f32 %v3447, %v3447
      %v3549 = vmul.f32 %v3448, %v3448
      %v3550 = vmul.f32 %v3449, %v3449
      %v3551 = vmul.f32 %v3450, %v3450
      %v3552 = vmul.f32 %v3451, %v3451
      %v3553 = vmul.f32 %v3452, %v3452
      %v3554 = vmul.f32 %v3453, %v3453
      %v3555 = vmul.f32 %v3454, %v3454
      %v3556 = vmul.f32 %v3455, %v3455
      %v3557 = vmul.f32 %v3456, %v3456
      %v3558 = vmul.f32 %v3457, %v3457
      %v3559 = vmul.f32 %v3458, %v3458
      %v3560 = vmul.f32 %v3459, %v3459
      %v3561 = vmul.f32 %v3460, %v3460
      %v3562 = vmul.f32 %v3461, %v3461
      %v3563 = vmul.f32 %v3462, %v3462
      %v3564 = vmul.f32 %v3463, %v3463
      %v3565 = vmul.f32 %v3464, %v3464
      %v3566 = vmul.f32 %v3465, %v3465
      %v3567 = vmul.f32 %v3466, %v3466
      %v3568 = vmul.f32 %v3467, %v3467
      %v3569 = vmul.f32 %v3468, %v3468
      %v3570 = vmul.f32 %v3469, %v3469
      %v3571 = vmul.f32 %v3470, %v3470
      %v3572 = vadd.f32 %v3540, %v3541
      %v3573 = vadd.f32 %v3572, %v3542
      %v3574 = vadd.f32 %v3573, %v3543
      %v3575 = vadd.f32 %v3574, %v3544
      %v3576 = vadd.f32 %v3575, %v3545
      %v3577 = vadd.f32 %v3576, %v3546
      %v3578 = vadd.f32 %v3577, %v3547
      %v3579 = vadd.f32 %v3578, %v3548
      %v3580 = vadd.f32 %v3579, %v3549
      %v3581 = vadd.f32 %v3580, %v3550
      %v3582 = vadd.f32 %v3581, %v3551
      %v3583 = vadd.f32 %v3582, %v3552
      %v3584 = vadd.f32 %v3583, %v3553
      %v3585 = vadd.f32 %v3584, %v3554
      %v3586 = vadd.f32 %v3585, %v3555
      %v3587 = vadd.f32 %v3586, %v3556
      %v3588 = vadd.f32 %v3587, %v3557
      %v3589 = vadd.f32 %v3588, %v3558
      %v3590 = vadd.f32 %v3589, %v3559
      %v3591 = vadd.f32 %v3590, %v3560
      %v3592 = vadd.f32 %v3591, %v3561
      %v3593 = vadd.f32 %v3592, %v3562
      %v3594 = vadd.f32 %v3593, %v3563
      %v3595 = vadd.f32 %v3594, %v3564
      %v3596 = vadd.f32 %v3595, %v3565
      %v3597 = vadd.f32 %v3596, %v3566
      %v3598 = vadd.f32 %v3597, %v3567
      %v3599 = vadd.f32 %v3598, %v3568
      %v3600 = vadd.f32 %v3599, %v3569
      %v3601 = vadd.f32 %v3600, %v3570
      %v3602 = vadd.f32 %v3601, %v3571
      %v3603 = vrot.slane %v3602, 4
      %v3604 = vadd.f32 %v3602, %v3603
      %v3605 = vrot.slane %v3604, 2
      %v3606 = vadd.f32 %v3604, %v3605
      %v3607 = vrot.slane %v3606, 1
      %v3608 = vadd.f32 %v3606, %v3607
      %vm3609 = vcmask 1040384
      %v3610 = vsel %vm3609, %v3539, %v3608
      %3611 = vst [vmem:[%s257] sm:$0x3] %v3610
      %s3612 = smul.u32 8, %s21
      %p3613 = scmp.lt.s32.totalorder %s20, 1
      %s3614 = scalar_select %p3613, %s20, 1
      %p3615 = scmp.lt.s32.totalorder %s3612, 31
      %s3616 = scalar_select %p3615, %s3612, 31
      %s3617 = smul.addr %s3616, 4
      %s3618 = smul.addr %s3614, 128
      %s3619 = sadd.s32 %s3617, %s3618
      %s3620 = smul.addr %s3619, 8
      %s3621 = scalar_lea.vmem %s3, %s3620
      %p3622 = scmp.lt.s32.totalorder %s20, 1
      %s3623 = scalar_select %p3622, %s20, 1
      %p3624 = scmp.lt.s32.totalorder %s21, 3
      %s3625 = scalar_select %p3624, %s21, 3
      %s3626 = smul.addr %s3623, 4
      %s3627 = sadd.s32 %s3625, %s3626
      %s3628 = smul.addr %s3627, 2
      %s3629 = scalar_lea.vmem %s4, %s3628
      // Predicated region
      $region33: #{unet_up_forward.7} parent=31 // pred_check
        %p3630 = pneg %p118
      $region34: #{unet_up_forward.7} parent=31 // pred_check_branch
        %3632 = sbr.rel (%p3630) target = $region36
      $region35: #{unet_up_forward.7} parent=31 // pred_region
        %s3633 = smul.u32 8, %s21
      $region36: #{unet_up_forward.7} parent=31 // pred_fallthru
        _
      // Predicated region
      $region37: #{unet_up_forward.7} parent=31 // pred_check
        %p3634 = pneg %p146
      $region38: #{unet_up_forward.7} parent=31 // pred_check_branch
        %3636 = sbr.rel (%p3634) target = $region40
      $region39: #{unet_up_forward.7} parent=31 // pred_region
        _
      $region40: #{unet_up_forward.7} parent=31 // pred_fallthru
        _
    $region32: #{unet_up_forward.7} parent=5 // pred_fallthru
      _
    %p3637 = scmp.le.s32.totalorder 2, %s11
    // Predicated region
    $region41: #{unet_up_forward.7} parent=5 // pred_check
      %p3638 = pneg %p3637
    $region42: #{unet_up_forward.7} parent=5 // pred_check_branch
      %3640 = sbr.rel (%p3638) target = $region44
    $region43: #{unet_up_forward.7} parent=5 // pred_region
      %s3641 = ssub.s32 %s11, 2
      // Predicated region
      $region45: #{unet_up_forward.7} parent=43 // pred_check
        %p3642 = pneg %p124
      $region46: #{unet_up_forward.7} parent=43 // pred_check_branch
        %3644 = sbr.rel (%p3642) target = $region48
      $region47: #{unet_up_forward.7} parent=43 // pred_region
        %s3645 = smul.u32 8, %s23
        %p3646 = scmp.lt.s32.totalorder %s22, 1
        %s3647 = scalar_select %p3646, %s22, 1
        %p3648 = scmp.lt.s32.totalorder %s3645, 31
        %s3649 = scalar_select %p3648, %s3645, 31
        %s3650 = smul.addr %s3649, 4
        %s3651 = smul.addr %s3647, 128
        %s3652 = sadd.s32 %s3650, %s3651
        %s3653 = smul.addr %s3652, 8
        %s3654 = scalar_lea.vmem %s3, %s3653
      $region48: #{unet_up_forward.7} parent=43 // pred_fallthru
        _
      // Predicated region
      $region49: #{unet_up_forward.7} parent=43 // pred_check
        %p3655 = pneg %p152
      $region50: #{unet_up_forward.7} parent=43 // pred_check_branch
        %3657 = sbr.rel (%p3655) target = $region52
      $region51: #{unet_up_forward.7} parent=43 // pred_region
        %p3658 = scmp.lt.s32.totalorder %s22, 1
        %s3659 = scalar_select %p3658, %s22, 1
        %p3660 = scmp.lt.s32.totalorder %s23, 3
        %s3661 = scalar_select %p3660, %s23, 3
        %s3662 = smul.addr %s3659, 4
        %s3663 = sadd.s32 %s3661, %s3662
        %s3664 = smul.addr %s3663, 2
        %s3665 = scalar_lea.vmem %s4, %s3664
      $region52: #{unet_up_forward.7} parent=43 // pred_fallthru
        _
    $region44: #{unet_up_forward.7} parent=5 // pred_fallthru
      _
  $region6: #{unet_up_forward.7} parent=0 // loop_footer
    %s15 = sadd.s32 1, %s11
  $region7: #{unet_up_forward.7} parent=0 // loop_footer_branch
    %10 = sbr.rel target = $region3
  $region8: #{unet_up_forward.7} parent=0 // loop_exit
    _

// kernel: unet_up_forward.11
$region0: #{unet_up_forward.11}
  #allocation0 [shape = 'u32[]', space=smem, size = 0x4, offset = 0x4, fixed_abs, tag = 'smem constant byte address 0x4 - core index']
  #allocation1 [shape = 'u32[144,128]{1,0:T(1,128)}', space=vmem, size = 0x12000, scoped, tag = 'internal scratch']
  %s0 = inlined_call_operand.vmem [shape: f32[2,32,32,128], index: 0, kind: input, shape index: {}]
  %s1 = inlined_call_operand.vmem [shape: f32[2,128], index: 1, kind: input, shape index: {}]
  %s2 = inlined_call_operand.vmem [shape: f32[2,32,32,128], index: 2, kind: output, shape index: {}]
  %s3 = sld [smem:[#allocation0]]
  $region41: #{unet_up_forward.11} parent=0
    _
  %s5 = ssub.s32 1, %s3
  %s6 = scalar_select 0, %s5, %s3
  loop: start=0, step=1, limit=10
  $region2: #{unet_up_forward.11} parent=0 // loop_pre_header
    _
  $region3: #{unet_up_forward.11} parent=0 // loop_header
    %s8 = sphi 0, %s12
    %p9 = scmp.ge.s32.totalorder %s8, 10
    %s15 = sphi 0, %s27
    %s16 = sphi 0, %s23
    %s17 = sphi 0, %s15
    %s18 = sphi 0, %s16
    %s19 = sphi 0, %s17
    %s20 = sphi 0, %s18
    %s32 = sphi 0, %s34
    %s35 = sphi 0, %s32
    %s36 = sphi 0, %s35
    %s52 = sphi 0, %s36
    %s56 = sphi 0, %s56
    %s58 = sphi 0, %s56
    %s59 = sphi 0, %s58
    %s73 = sphi 0, %s59
    %s81 = sphi 0, %s83
    %s84 = sphi 0, %s81
    %s85 = sphi 0, %s84
    %s101 = sphi 0, %s85
  $region4: #{unet_up_forward.11} parent=0 // loop_header_branch
    %11 = sbr.rel (%p9) target = $region8
  $region5: #{unet_up_forward.11} parent=0 // loop_body
    %s13 = ssub.s32 %s8, 1
    %s14 = ssub.s32 %s8, 2
    %s21 = sadd.s32 1, %s16
    %p22 = scmp.ge.s32.totalorder %s21, 4
    %s23 = scalar_select %p22, 0, %s21
    %s24 = sadd.s32 1, %s15
    %s25 = scalar_select %p22, %s24, %s15
    %p26 = scmp.ge.s32.totalorder %s25, 2
    %s27 = scalar_select %p26, 0, %s25
    %s28 = ssub.s32 %s15, %s27
    %s29 = ssub.s32 %s16, %s23
    %s30 = sor.u32 %s28, %s29
    %p31 = scmp.eq.s32.totalorder %s30, 0
    %s33 = sadd.s32 %s32, 1
    %s34 = scalar_select %p31, %s32, %s33
    %p37 = pneg %p31
    %p38 = scmp.eq.s32.totalorder %s8, 7
    %p39 = por %p37, %p38
    %p40 = scmp.ne.s32.totalorder %s32, %s35
    %p41 = scmp.eq.s32.totalorder %s8, 0
    %p42 = por %p40, %p41
    %p43 = scmp.ne.s32.totalorder %s32, %s35
    %p44 = scmp.eq.s32.totalorder %s13, 7
    %p45 = por %p43, %p44
    %p46 = scmp.ne.s32.totalorder %s35, %s36
    %p47 = scmp.eq.s32.totalorder %s13, 0
    %p48 = por %p46, %p47
    %p49 = scmp.ne.s32.totalorder %s35, %s36
    %p50 = scmp.eq.s32.totalorder %s14, 7
    %p51 = por %p49, %p50
    %p53 = scmp.ne.s32.totalorder %s36, %s52
    %p54 = scmp.eq.s32.totalorder %s14, 0
    %p55 = por %p53, %p54
    %s57 = sadd.s32 %s56, 1
    %p60 = scmp.eq.s32.totalorder %s8, 7
    %p61 = scmp.ne.s32.totalorder %s56, %s58
    %p62 = scmp.eq.s32.totalorder %s8, 0
    %p63 = por %p61, %p62
    %p64 = scmp.ne.s32.totalorder %s56, %s58
    %p65 = scmp.eq.s32.totalorder %s13, 7
    %p66 = por %p64, %p65
    %p67 = scmp.ne.s32.totalorder %s58, %s59
    %p68 = scmp.eq.s32.totalorder %s13, 0
    %p69 = por %p67, %p68
    %p70 = scmp.ne.s32.totalorder %s58, %s59
    %p71 = scmp.eq.s32.totalorder %s14, 7
    %p72 = por %p70, %p71
    %p74 = scmp.ne.s32.totalorder %s59, %s73
    %p75 = scmp.eq.s32.totalorder %s14, 0
    %p76 = por %p74, %p75
    %s77 = ssub.s32 %s15, %s27
    %s78 = ssub.s32 %s16, %s23
    %s79 = sor.u32 %s77, %s78
    %p80 = scmp.eq.s32.totalorder %s79, 0
    %s82 = sadd.s32 %s81, 1
    %s83 = scalar_select %p80, %s81, %s82
    %p86 = pneg %p80
    %p87 = scmp.eq.s32.totalorder %s8, 7
    %p88 = por %p86, %p87
    %p89 = scmp.ne.s32.totalorder %s81, %s84
    %p90 = scmp.eq.s32.totalorder %s8, 0
    %p91 = por %p89, %p90
    %p92 = scmp.ne.s32.totalorder %s81, %s84
    %p93 = scmp.eq.s32.totalorder %s13, 7
    %p94 = por %p92, %p93
    %p95 = scmp.ne.s32.totalorder %s84, %s85
    %p96 = scmp.eq.s32.totalorder %s13, 0
    %p97 = por %p95, %p96
    %p98 = scmp.ne.s32.totalorder %s84, %s85
    %p99 = scmp.eq.s32.totalorder %s14, 7
    %p100 = por %p98, %p99
    %p102 = scmp.ne.s32.totalorder %s85, %s101
    %p103 = scmp.eq.s32.totalorder %s14, 0
    %p104 = por %p102, %p103
    %p105 = scmp.le.s32.totalorder 1, %s8
    %p106 = scmp.lt.s32.totalorder %s8, 9
    %p107 = pnand %p105, %p106
    %p108 = pneg %p107
    // Predicated region
    $region9: #{unet_up_forward.11} parent=5 // pred_check
      _
    $region10: #{unet_up_forward.11} parent=5 // pred_check_branch
      %110 = sbr.rel (%p107) target = $region12
    $region11: #{unet_up_forward.11} parent=5 // pred_region
      %s111 = ssub.s32 %s8, 1
      // Predicated region
      $region13: #{unet_up_forward.11} parent=11 // pred_check
        %p112 = pneg %p69
      $region14: #{unet_up_forward.11} parent=11 // pred_check_branch
        %114 = sbr.rel (%p112) target = $region16
      $region15: #{unet_up_forward.11} parent=11 // pred_region
        _
      $region16: #{unet_up_forward.11} parent=11 // pred_fallthru
        _
    $region12: #{unet_up_forward.11} parent=5 // pred_fallthru
      _
    %p115 = scmp.lt.s32.totalorder %s8, 8
    // Predicated region
    $region17: #{unet_up_forward.11} parent=5 // pred_check
      %p116 = pneg %p115
    $region18: #{unet_up_forward.11} parent=5 // pred_check_branch
      %118 = sbr.rel (%p116) target = $region20
    $region19: #{unet_up_forward.11} parent=5 // pred_region
      // Predicated region
      $region21: #{unet_up_forward.11} parent=19 // pred_check
        %p119 = pneg %p42
      $region22: #{unet_up_forward.11} parent=19 // pred_check_branch
        %121 = sbr.rel (%p119) target = $region24
      $region23: #{unet_up_forward.11} parent=19 // pred_region
        %s122 = smul.u32 8, %s16
        %p123 = scmp.lt.s32.totalorder %s15, 1
        %s124 = scalar_select %p123, %s15, 1
        %p125 = scmp.lt.s32.totalorder %s122, 31
        %s126 = scalar_select %p125, %s122, 31
        %s127 = smul.addr %s126, 4
        %s128 = smul.addr %s124, 128
        %s129 = sadd.s32 %s127, %s128
        %s130 = smul.addr %s129, 8
        %s131 = scalar_lea.vmem %s0, %s130
        %s132 = smul.u32 8, %s16
      $region24: #{unet_up_forward.11} parent=19 // pred_fallthru
        _
    $region20: #{unet_up_forward.11} parent=5 // pred_fallthru
      _
    %p133 = scmp.le.s32.totalorder 1, %s8
    %p134 = scmp.lt.s32.totalorder %s8, 9
    %p135 = pnand %p133, %p134
    %p136 = pneg %p135
    // Predicated region
    $region25: #{unet_up_forward.11} parent=5 // pred_check
      _
    $region26: #{unet_up_forward.11} parent=5 // pred_check_branch
      %138 = sbr.rel (%p135) target = $region28
    $region27: #{unet_up_forward.11} parent=5 // pred_region
      %s139 = ssub.s32 %s8, 1
      %s140 = smul.u32 8, %s18
      %p141 = scmp.lt.s32.totalorder %s17, 1
      %s142 = scalar_select %p141, %s17, 1
      %p143 = scmp.lt.s32.totalorder %s140, 31
      %s144 = scalar_select %p143, %s140, 31
      %s145 = smul.addr %s144, 4
      %s146 = smul.addr %s142, 128
      %s147 = sadd.s32 %s145, %s146
      %s148 = smul.addr %s147, 8
      %s149 = scalar_lea.vmem %s0, %s148
      %p150 = pneg %p48
      %p151 = pneg %p45
      %p152 = pneg %p69
      %p153 = pneg %p66
      %p154 = pneg %p97
      %p155 = pneg %p94
      %s156 = smul.u32 8, %s18
      %p157 = scmp.lt.s32.totalorder %s17, 1
      %s158 = scalar_select %p157, %s17, 1
      %p159 = scmp.lt.s32.totalorder %s156, 31
      %s160 = scalar_select %p159, %s156, 31
      %s161 = smul.addr %s160, 4
      %s162 = smul.addr %s158, 128
      %s163 = sadd.s32 %s161, %s162
      %s164 = smul.addr %s163, 8
      %s165 = scalar_lea.vmem %s2, %s164
      %s166 = smul.u32 8, %s18
      %p167 = scmp.lt.s32.totalorder %s17, 1
      %s168 = scalar_select %p167, %s17, 1
      %p169 = scmp.lt.s32.totalorder %s166, 31
      %s170 = scalar_select %p169, %s166, 31
      %s171 = smul.addr %s170, 4
      %s172 = smul.addr %s168, 128
      %s173 = sadd.s32 %s171, %s172
      %s174 = smul.addr %s173, 8
      %s175 = scalar_lea.vmem %s0, %s174
      %s176 = smul.u32 8, %s18
      %s177 = smul.u32 8, %s18
      %p178 = scmp.lt.s32.totalorder %s17, 1
      %s179 = scalar_select %p178, %s17, 1
      %p180 = scmp.lt.s32.totalorder %s177, 31
      %s181 = scalar_select %p180, %s177, 31
      %s182 = smul.addr %s181, 4
      %s183 = smul.addr %s179, 128
      %s184 = sadd.s32 %s182, %s183
      %s185 = smul.addr %s184, 8
      %s186 = scalar_lea.vmem %s2, %s185
      %s187 = smul.u32 8, %s18
      %v188 = vld [vmem:[%s1] sm:$0x1]
      %v189 = vld [vmem:[%s1 + $0x1] sm:$0x1]
      %v190 = vld [vmem:[%s175] sm:$0xff]
      %v191 = vld [vmem:[%s175 + $0x8] sm:$0xff]
      %v192 = vld [vmem:[%s175 + $0x10] sm:$0xff]
      %v193 = vld [vmem:[%s175 + $0x18] sm:$0xff]
      %v194 = vld [vmem:[%s175 + $0x20] sm:$0xff]
      %v195 = vld [vmem:[%s175 + $0x28] sm:$0xff]
      %v196 = vld [vmem:[%s175 + $0x30] sm:$0xff]
      %v197 = vld [vmem:[%s175 + $0x38] sm:$0xff]
      %v198 = vld [vmem:[%s175 + $0x40] sm:$0xff]
      %v199 = vld [vmem:[%s175 + $0x48] sm:$0xff]
      %v200 = vld [vmem:[%s175 + $0x50] sm:$0xff]
      %v201 = vld [vmem:[%s175 + $0x58] sm:$0xff]
      %v202 = vld [vmem:[%s175 + $0x60] sm:$0xff]
      %v203 = vld [vmem:[%s175 + $0x68] sm:$0xff]
      %v204 = vld [vmem:[%s175 + $0x70] sm:$0xff]
      %v205 = vld [vmem:[%s175 + $0x78] sm:$0xff]
      %v206 = vld [vmem:[%s175 + $0x80] sm:$0xff]
      %v207 = vld [vmem:[%s175 + $0x88] sm:$0xff]
      %v208 = vld [vmem:[%s175 + $0x90] sm:$0xff]
      %v209 = vld [vmem:[%s175 + $0x98] sm:$0xff]
      %v210 = vld [vmem:[%s175 + $0xa0] sm:$0xff]
      %v211 = vld [vmem:[%s175 + $0xa8] sm:$0xff]
      %v212 = vld [vmem:[%s175 + $0xb0] sm:$0xff]
      %v213 = vld [vmem:[%s175 + $0xb8] sm:$0xff]
      %v214 = vld [vmem:[%s175 + $0xc0] sm:$0xff]
      %v215 = vld [vmem:[%s175 + $0xc8] sm:$0xff]
      %v216 = vld [vmem:[%s175 + $0xd0] sm:$0xff]
      %v217 = vld [vmem:[%s175 + $0xd8] sm:$0xff]
      %v218 = vld [vmem:[%s175 + $0xe0] sm:$0xff]
      %v219 = vld [vmem:[%s175 + $0xe8] sm:$0xff]
      %v220 = vld [vmem:[%s175 + $0xf0] sm:$0xff]
      %v221 = vld [vmem:[%s175 + $0xf8] sm:$0xff]
      %v222 = vlaneseq
      %v223 = vshrl.u32 %v222, 7
      %v224 = vsub.s32 0, %v223
      %v225 = vrot.slane %v188, %v224
      %v226 = vmul.f32 %v190, %v225
      %v227 = vmul.f32 %v191, %v225
      %v228 = vmul.f32 %v192, %v225
      %v229 = vmul.f32 %v193, %v225
      %v230 = vmul.f32 %v194, %v225
      %v231 = vmul.f32 %v195, %v225
      %v232 = vmul.f32 %v196, %v225
      %v233 = vmul.f32 %v197, %v225
      %v234 = vmul.f32 %v198, %v225
      %v235 = vmul.f32 %v199, %v225
      %v236 = vmul.f32 %v200, %v225
      %v237 = vmul.f32 %v201, %v225
      %v238 = vmul.f32 %v202, %v225
      %v239 = vmul.f32 %v203, %v225
      %v240 = vmul.f32 %v204, %v225
      %v241 = vmul.f32 %v205, %v225
      %v242 = vmul.f32 %v206, %v225
      %v243 = vmul.f32 %v207, %v225
      %v244 = vmul.f32 %v208, %v225
      %v245 = vmul.f32 %v209, %v225
      %v246 = vmul.f32 %v210, %v225
      %v247 = vmul.f32 %v211, %v225
      %v248 = vmul.f32 %v212, %v225
      %v249 = vmul.f32 %v213, %v225
      %v250 = vmul.f32 %v214, %v225
      %v251 = vmul.f32 %v215, %v225
      %v252 = vmul.f32 %v216, %v225
      %v253 = vmul.f32 %v217, %v225
      %v254 = vmul.f32 %v218, %v225
      %v255 = vmul.f32 %v219, %v225
      %v256 = vmul.f32 %v220, %v225
      %v257 = vmul.f32 %v221, %v225
      %v258 = vlaneseq
      %v259 = vshrl.u32 %v258, 7
      %v260 = vsub.s32 0, %v259
      %v261 = vrot.slane %v189, %v260
      %v262 = vadd.f32 %v226, %v261
      %v263 = vadd.f32 %v227, %v261
      %v264 = vadd.f32 %v228, %v261
      %v265 = vadd.f32 %v229, %v261
      %v266 = vadd.f32 %v230, %v261
      %v267 = vadd.f32 %v231, %v261
      %v268 = vadd.f32 %v232, %v261
      %v269 = vadd.f32 %v233, %v261
      %v270 = vadd.f32 %v234, %v261
      %v271 = vadd.f32 %v235, %v261
      %v272 = vadd.f32 %v236, %v261
      %v273 = vadd.f32 %v237, %v261
      %v274 = vadd.f32 %v238, %v261
      %v275 = vadd.f32 %v239, %v261
      %v276 = vadd.f32 %v240, %v261
      %v277 = vadd.f32 %v241, %v261
      %v278 = vadd.f32 %v242, %v261
      %v279 = vadd.f32 %v243, %v261
      %v280 = vadd.f32 %v244, %v261
      %v281 = vadd.f32 %v245, %v261
      %v282 = vadd.f32 %v246, %v261
      %v283 = vadd.f32 %v247, %v261
      %v284 = vadd.f32 %v248, %v261
      %v285 = vadd.f32 %v249, %v261
      %v286 = vadd.f32 %v250, %v261
      %v287 = vadd.f32 %v251, %v261
      %v288 = vadd.f32 %v252, %v261
      %v289 = vadd.f32 %v253, %v261
      %v290 = vadd.f32 %v254, %v261
      %v291 = vadd.f32 %v255, %v261
      %v292 = vadd.f32 %v256, %v261
      %v293 = vadd.f32 %v257, %v261
      %v294 = vmul.f32 %v262, 0.5
      %v295 = vmul.f32 %v263, 0.5
      %v296 = vmul.f32 %v264, 0.5
      %v297 = vmul.f32 %v265, 0.5
      %v298 = vmul.f32 %v266, 0.5
      %v299 = vmul.f32 %v267, 0.5
      %v300 = vmul.f32 %v268, 0.5
      %v301 = vmul.f32 %v269, 0.5
      %v302 = vmul.f32 %v270, 0.5
      %v303 = vmul.f32 %v271, 0.5
      %v304 = vmul.f32 %v272, 0.5
      %v305 = vmul.f32 %v273, 0.5
      %v306 = vmul.f32 %v274, 0.5
      %v307 = vmul.f32 %v275, 0.5
      %v308 = vmul.f32 %v276, 0.5
      %v309 = vmul.f32 %v277, 0.5
      %v310 = vmul.f32 %v278, 0.5
      %v311 = vmul.f32 %v279, 0.5
      %v312 = vmul.f32 %v280, 0.5
      %v313 = vmul.f32 %v281, 0.5
      %v314 = vmul.f32 %v282, 0.5
      %v315 = vmul.f32 %v283, 0.5
      %v316 = vmul.f32 %v284, 0.5
      %v317 = vmul.f32 %v285, 0.5
      %v318 = vmul.f32 %v286, 0.5
      %v319 = vmul.f32 %v287, 0.5
      %v320 = vmul.f32 %v288, 0.5
      %v321 = vmul.f32 %v289, 0.5
      %v322 = vmul.f32 %v290, 0.5
      %v323 = vmul.f32 %v291, 0.5
      %v324 = vmul.f32 %v292, 0.5
      %v325 = vmul.f32 %v293, 0.5
      %v326 = vmul.f32 %v262, 0.70710677
      %v327 = vmul.f32 %v263, 0.70710677
      %v328 = vmul.f32 %v264, 0.70710677
      %v329 = vmul.f32 %v265, 0.70710677
      %v330 = vmul.f32 %v266, 0.70710677
      %v331 = vmul.f32 %v267, 0.70710677
      %v332 = vmul.f32 %v268, 0.70710677
      %v333 = vmul.f32 %v269, 0.70710677
      %v334 = vmul.f32 %v270, 0.70710677
      %v335 = vmul.f32 %v271, 0.70710677
      %v336 = vmul.f32 %v272, 0.70710677
      %v337 = vmul.f32 %v273, 0.70710677
      %v338 = vmul.f32 %v274, 0.70710677
      %v339 = vmul.f32 %v275, 0.70710677
      %v340 = vmul.f32 %v276, 0.70710677
      %v341 = vmul.f32 %v277, 0.70710677
      %v342 = vmul.f32 %v278, 0.70710677
      %v343 = vmul.f32 %v279, 0.70710677
      %v344 = vmul.f32 %v280, 0.70710677
      %v345 = vmul.f32 %v281, 0.70710677
      %v346 = vmul.f32 %v282, 0.70710677
      %v347 = vmul.f32 %v283, 0.70710677
      %v348 = vmul.f32 %v284, 0.70710677
      %v349 = vmul.f32 %v285, 0.70710677
      %v350 = vmul.f32 %v286, 0.70710677
      %v351 = vmul.f32 %v287, 0.70710677
      %v352 = vmul.f32 %v288, 0.70710677
      %v353 = vmul.f32 %v289, 0.70710677
      %v354 = vmul.f32 %v290, 0.70710677
      %v355 = vmul.f32 %v291, 0.70710677
      %v356 = vmul.f32 %v292, 0.70710677
      %v357 = vmul.f32 %v293, 0.70710677
      %v358 = vand.u32 2147483647, %v326
      %v359 = vand.u32 2147483647, %v327
      %v360 = vand.u32 2147483647, %v328
      %v361 = vand.u32 2147483647, %v329
      %v362 = vand.u32 2147483647, %v330
      %v363 = vand.u32 2147483647, %v331
      %v364 = vand.u32 2147483647, %v332
      %v365 = vand.u32 2147483647, %v333
      %v366 = vand.u32 2147483647, %v334
      %v367 = vand.u32 2147483647, %v335
      %v368 = vand.u32 2147483647, %v336
      %v369 = vand.u32 2147483647, %v337
      %v370 = vand.u32 2147483647, %v338
      %v371 = vand.u32 2147483647, %v339
      %v372 = vand.u32 2147483647, %v340
      %v373 = vand.u32 2147483647, %v341
      %v374 = vand.u32 2147483647, %v342
      %v375 = vand.u32 2147483647, %v343
      %v376 = vand.u32 2147483647, %v344
      %v377 = vand.u32 2147483647, %v345
      %v378 = vand.u32 2147483647, %v346
      %v379 = vand.u32 2147483647, %v347
      %v380 = vand.u32 2147483647, %v348
      %v381 = vand.u32 2147483647, %v349
      %v382 = vand.u32 2147483647, %v350
      %v383 = vand.u32 2147483647, %v351
      %v384 = vand.u32 2147483647, %v352
      %v385 = vand.u32 2147483647, %v353
      %v386 = vand.u32 2147483647, %v354
      %v387 = vand.u32 2147483647, %v355
      %v388 = vand.u32 2147483647, %v356
      %v389 = vand.u32 2147483647, %v357
      %v390 = vmul.f32 %v358, 0.3275911
      %v391 = vmul.f32 %v359, 0.3275911
      %v392 = vmul.f32 %v360, 0.3275911
      %v393 = vmul.f32 %v361, 0.3275911
      %v394 = vmul.f32 %v362, 0.3275911
      %v395 = vmul.f32 %v363, 0.3275911
      %v396 = vmul.f32 %v364, 0.3275911
      %v397 = vmul.f32 %v365, 0.3275911
      %v398 = vmul.f32 %v366, 0.3275911
      %v399 = vmul.f32 %v367, 0.3275911
      %v400 = vmul.f32 %v368, 0.3275911
      %v401 = vmul.f32 %v369, 0.3275911
      %v402 = vmul.f32 %v370, 0.3275911
      %v403 = vmul.f32 %v371, 0.3275911
      %v404 = vmul.f32 %v372, 0.3275911
      %v405 = vmul.f32 %v373, 0.3275911
      %v406 = vmul.f32 %v374, 0.3275911
      %v407 = vmul.f32 %v375, 0.3275911
      %v408 = vmul.f32 %v376, 0.3275911
      %v409 = vmul.f32 %v377, 0.3275911
      %v410 = vmul.f32 %v378, 0.3275911
      %v411 = vmul.f32 %v379, 0.3275911
      %v412 = vmul.f32 %v380, 0.3275911
      %v413 = vmul.f32 %v381, 0.3275911
      %v414 = vmul.f32 %v382, 0.3275911
      %v415 = vmul.f32 %v383, 0.3275911
      %v416 = vmul.f32 %v384, 0.3275911
      %v417 = vmul.f32 %v385, 0.3275911
      %v418 = vmul.f32 %v386, 0.3275911
      %v419 = vmul.f32 %v387, 0.3275911
      %v420 = vmul.f32 %v388, 0.3275911
      %v421 = vmul.f32 %v389, 0.3275911
      %v422 = vadd.f32 %v390, 1.0
      %v423 = vadd.f32 %v391, 1.0
      %v424 = vadd.f32 %v392, 1.0
      %v425 = vadd.f32 %v393, 1.0
      %v426 = vadd.f32 %v394, 1.0
      %v427 = vadd.f32 %v395, 1.0
      %v428 = vadd.f32 %v396, 1.0
      %v429 = vadd.f32 %v397, 1.0
      %v430 = vadd.f32 %v398, 1.0
      %v431 = vadd.f32 %v399, 1.0
      %v432 = vadd.f32 %v400, 1.0
      %v433 = vadd.f32 %v401, 1.0
      %v434 = vadd.f32 %v402, 1.0
      %v435 = vadd.f32 %v403, 1.0
      %v436 = vadd.f32 %v404, 1.0
      %v437 = vadd.f32 %v405, 1.0
      %v438 = vadd.f32 %v406, 1.0
      %v439 = vadd.f32 %v407, 1.0
      %v440 = vadd.f32 %v408, 1.0
      %v441 = vadd.f32 %v409, 1.0
      %v442 = vadd.f32 %v410, 1.0
      %v443 = vadd.f32 %v411, 1.0
      %v444 = vadd.f32 %v412, 1.0
      %v445 = vadd.f32 %v413, 1.0
      %v446 = vadd.f32 %v414, 1.0
      %v447 = vadd.f32 %v415, 1.0
      %v448 = vadd.f32 %v416, 1.0
      %v449 = vadd.f32 %v417, 1.0
      %v450 = vadd.f32 %v418, 1.0
      %v451 = vadd.f32 %v419, 1.0
      %v452 = vadd.f32 %v420, 1.0
      %v453 = vadd.f32 %v421, 1.0
      %v454 = vrcp.pop %v422
      %v455 = vrcp.pop %v423
      %v456 = vrcp.pop %v424
      %v457 = vrcp.pop %v425
      %v458 = vrcp.pop %v426
      %v459 = vrcp.pop %v427
      %v460 = vrcp.pop %v428
      %v461 = vrcp.pop %v429
      %v462 = vrcp.pop %v430
      %v463 = vrcp.pop %v431
      %v464 = vrcp.pop %v432
      %v465 = vrcp.pop %v433
      %v466 = vrcp.pop %v434
      %v467 = vrcp.pop %v435
      %v468 = vrcp.pop %v436
      %v469 = vrcp.pop %v437
      %v470 = vrcp.pop %v438
      %v471 = vrcp.pop %v439
      %v472 = vrcp.pop %v440
      %v473 = vrcp.pop %v441
      %v474 = vrcp.pop %v442
      %v475 = vrcp.pop %v443
      %v476 = vrcp.pop %v444
      %v477 = vrcp.pop %v445
      %v478 = vrcp.pop %v446
      %v479 = vrcp.pop %v447
      %v480 = vrcp.pop %v448
      %v481 = vrcp.pop %v449
      %v482 = vrcp.pop %v450
      %v483 = vrcp.pop %v451
      %v484 = vrcp.pop %v452
      %v485 = vrcp.pop %v453
      %v486 = vmul.f32 %v454, 1.0614054
      %v487 = vmul.f32 %v455, 1.0614054
      %v488 = vmul.f32 %v456, 1.0614054
      %v489 = vmul.f32 %v457, 1.0614054
      %v490 = vmul.f32 %v458, 1.0614054
      %v491 = vmul.f32 %v459, 1.0614054
      %v492 = vmul.f32 %v460, 1.0614054
      %v493 = vmul.f32 %v461, 1.0614054
      %v494 = vmul.f32 %v462, 1.0614054
      %v495 = vmul.f32 %v463, 1.0614054
      %v496 = vmul.f32 %v464, 1.0614054
      %v497 = vmul.f32 %v465, 1.0614054
      %v498 = vmul.f32 %v466, 1.0614054
      %v499 = vmul.f32 %v467, 1.0614054
      %v500 = vmul.f32 %v468, 1.0614054
      %v501 = vmul.f32 %v469, 1.0614054
      %v502 = vmul.f32 %v470, 1.0614054
      %v503 = vmul.f32 %v471, 1.0614054
      %v504 = vmul.f32 %v472, 1.0614054
      %v505 = vmul.f32 %v473, 1.0614054
      %v506 = vmul.f32 %v474, 1.0614054
      %v507 = vmul.f32 %v475, 1.0614054
      %v508 = vmul.f32 %v476, 1.0614054
      %v509 = vmul.f32 %v477, 1.0614054
      %v510 = vmul.f32 %v478, 1.0614054
      %v511 = vmul.f32 %v479, 1.0614054
      %v512 = vmul.f32 %v480, 1.0614054
      %v513 = vmul.f32 %v481, 1.0614054
      %v514 = vmul.f32 %v482, 1.0614054
      %v515 = vmul.f32 %v483, 1.0614054
      %v516 = vmul.f32 %v484, 1.0614054
      %v517 = vmul.f32 %v485, 1.0614054
      %v518 = vadd.f32 %v486, -1.4531521
      %v519 = vadd.f32 %v487, -1.4531521
      %v520 = vadd.f32 %v488, -1.4531521
      %v521 = vadd.f32 %v489, -1.4531521
      %v522 = vadd.f32 %v490, -1.4531521
      %v523 = vadd.f32 %v491, -1.4531521
      %v524 = vadd.f32 %v492, -1.4531521
      %v525 = vadd.f32 %v493, -1.4531521
      %v526 = vadd.f32 %v494, -1.4531521
      %v527 = vadd.f32 %v495, -1.4531521
      %v528 = vadd.f32 %v496, -1.4531521
      %v529 = vadd.f32 %v497, -1.4531521
      %v530 = vadd.f32 %v498, -1.4531521
      %v531 = vadd.f32 %v499, -1.4531521
      %v532 = vadd.f32 %v500, -1.4531521
      %v533 = vadd.f32 %v501, -1.4531521
      %v534 = vadd.f32 %v502, -1.4531521
      %v535 = vadd.f32 %v503, -1.4531521
      %v536 = vadd.f32 %v504, -1.4531521
      %v537 = vadd.f32 %v505, -1.4531521
      %v538 = vadd.f32 %v506, -1.4531521
      %v539 = vadd.f32 %v507, -1.4531521
      %v540 = vadd.f32 %v508, -1.4531521
      %v541 = vadd.f32 %v509, -1.4531521
      %v542 = vadd.f32 %v510, -1.4531521
      %v543 = vadd.f32 %v511, -1.4531521
      %v544 = vadd.f32 %v512, -1.4531521
      %v545 = vadd.f32 %v513, -1.4531521
      %v546 = vadd.f32 %v514, -1.4531521
      %v547 = vadd.f32 %v515, -1.4531521
      %v548 = vadd.f32 %v516, -1.4531521
      %v549 = vadd.f32 %v517, -1.4531521
      %v550 = vmul.f32 %v454, %v518
      %v551 = vmul.f32 %v455, %v519
      %v552 = vmul.f32 %v456, %v520
      %v553 = vmul.f32 %v457, %v521
      %v554 = vmul.f32 %v458, %v522
      %v555 = vmul.f32 %v459, %v523
      %v556 = vmul.f32 %v460, %v524
      %v557 = vmul.f32 %v461, %v525
      %v558 = vmul.f32 %v462, %v526
      %v559 = vmul.f32 %v463, %v527
      %v560 = vmul.f32 %v464, %v528
      %v561 = vmul.f32 %v465, %v529
      %v562 = vmul.f32 %v466, %v530
      %v563 = vmul.f32 %v467, %v531
      %v564 = vmul.f32 %v468, %v532
      %v565 = vmul.f32 %v469, %v533
      %v566 = vmul.f32 %v470, %v534
      %v567 = vmul.f32 %v471, %v535
      %v568 = vmul.f32 %v472, %v536
      %v569 = vmul.f32 %v473, %v537
      %v570 = vmul.f32 %v474, %v538
      %v571 = vmul.f32 %v475, %v539
      %v572 = vmul.f32 %v476, %v540
      %v573 = vmul.f32 %v477, %v541
      %v574 = vmul.f32 %v478, %v542
      %v575 = vmul.f32 %v479, %v543
      %v576 = vmul.f32 %v480, %v544
      %v577 = vmul.f32 %v481, %v545
      %v578 = vmul.f32 %v482, %v546
      %v579 = vmul.f32 %v483, %v547
      %v580 = vmul.f32 %v484, %v548
      %v581 = vmul.f32 %v485, %v549
      %v582 = vadd.f32 %v550, 1.4214138
      %v583 = vadd.f32 %v551, 1.4214138
      %v584 = vadd.f32 %v552, 1.4214138
      %v585 = vadd.f32 %v553, 1.4214138
      %v586 = vadd.f32 %v554, 1.4214138
      %v587 = vadd.f32 %v555, 1.4214138
      %v588 = vadd.f32 %v556, 1.4214138
      %v589 = vadd.f32 %v557, 1.4214138
      %v590 = vadd.f32 %v558, 1.4214138
      %v591 = vadd.f32 %v559, 1.4214138
      %v592 = vadd.f32 %v560, 1.4214138
      %v593 = vadd.f32 %v561, 1.4214138
      %v594 = vadd.f32 %v562, 1.4214138
      %v595 = vadd.f32 %v563, 1.4214138
      %v596 = vadd.f32 %v564, 1.4214138
      %v597 = vadd.f32 %v565, 1.4214138
      %v598 = vadd.f32 %v566, 1.4214138
      %v599 = vadd.f32 %v567, 1.4214138
      %v600 = vadd.f32 %v568, 1.4214138
      %v601 = vadd.f32 %v569, 1.4214138
      %v602 = vadd.f32 %v570, 1.4214138
      %v603 = vadd.f32 %v571, 1.4214138
      %v604 = vadd.f32 %v572, 1.4214138
      %v605 = vadd.f32 %v573, 1.4214138
      %v606 = vadd.f32 %v574, 1.4214138
      %v607 = vadd.f32 %v575, 1.4214138
      %v608 = vadd.f32 %v576, 1.4214138
      %v609 = vadd.f32 %v577, 1.4214138
      %v610 = vadd.f32 %v578, 1.4214138
      %v611 = vadd.f32 %v579, 1.4214138
      %v612 = vadd.f32 %v580, 1.4214138
      %v613 = vadd.f32 %v581, 1.4214138
      %v614 = vmul.f32 %v454, %v582
      %v615 = vmul.f32 %v455, %v583
      %v616 = vmul.f32 %v456, %v584
      %v617 = vmul.f32 %v457, %v585
      %v618 = vmul.f32 %v458, %v586
      %v619 = vmul.f32 %v459, %v587
      %v620 = vmul.f32 %v460, %v588
      %v621 = vmul.f32 %v461, %v589
      %v622 = vmul.f32 %v462, %v590
      %v623 = vmul.f32 %v463, %v591
      %v624 = vmul.f32 %v464, %v592
      %v625 = vmul.f32 %v465, %v593
      %v626 = vmul.f32 %v466, %v594
      %v627 = vmul.f32 %v467, %v595
      %v628 = vmul.f32 %v468, %v596
      %v629 = vmul.f32 %v469, %v597
      %v630 = vmul.f32 %v470, %v598
      %v631 = vmul.f32 %v471, %v599
      %v632 = vmul.f32 %v472, %v600
      %v633 = vmul.f32 %v473, %v601
      %v634 = vmul.f32 %v474, %v602
      %v635 = vmul.f32 %v475, %v603
      %v636 = vmul.f32 %v476, %v604
      %v637 = vmul.f32 %v477, %v605
      %v638 = vmul.f32 %v478, %v606
      %v639 = vmul.f32 %v479, %v607
      %v640 = vmul.f32 %v480, %v608
      %v641 = vmul.f32 %v481, %v609
      %v642 = vmul.f32 %v482, %v610
      %v643 = vmul.f32 %v483, %v611
      %v644 = vmul.f32 %v484, %v612
      %v645 = vmul.f32 %v485, %v613
      %v646 = vadd.f32 %v614, -0.28449672
      %v647 = vadd.f32 %v615, -0.28449672
      %v648 = vadd.f32 %v616, -0.28449672
      %v649 = vadd.f32 %v617, -0.28449672
      %v650 = vadd.f32 %v618, -0.28449672
      %v651 = vadd.f32 %v619, -0.28449672
      %v652 = vadd.f32 %v620, -0.28449672
      %v653 = vadd.f32 %v621, -0.28449672
      %v654 = vadd.f32 %v622, -0.28449672
      %v655 = vadd.f32 %v623, -0.28449672
      %v656 = vadd.f32 %v624, -0.28449672
      %v657 = vadd.f32 %v625, -0.28449672
      %v658 = vadd.f32 %v626, -0.28449672
      %v659 = vadd.f32 %v627, -0.28449672
      %v660 = vadd.f32 %v628, -0.28449672
      %v661 = vadd.f32 %v629, -0.28449672
      %v662 = vadd.f32 %v630, -0.28449672
      %v663 = vadd.f32 %v631, -0.28449672
      %v664 = vadd.f32 %v632, -0.28449672
      %v665 = vadd.f32 %v633, -0.28449672
      %v666 = vadd.f32 %v634, -0.28449672
      %v667 = vadd.f32 %v635, -0.28449672
      %v668 = vadd.f32 %v636, -0.28449672
      %v669 = vadd.f32 %v637, -0.28449672
      %v670 = vadd.f32 %v638, -0.28449672
      %v671 = vadd.f32 %v639, -0.28449672
      %v672 = vadd.f32 %v640, -0.28449672
      %v673 = vadd.f32 %v641, -0.28449672
      %v674 = vadd.f32 %v642, -0.28449672
      %v675 = vadd.f32 %v643, -0.28449672
      %v676 = vadd.f32 %v644, -0.28449672
      %v677 = vadd.f32 %v645, -0.28449672
      %v678 = vmul.f32 %v454, %v646
      %v679 = vmul.f32 %v455, %v647
      %v680 = vmul.f32 %v456, %v648
      %v681 = vmul.f32 %v457, %v649
      %v682 = vmul.f32 %v458, %v650
      %v683 = vmul.f32 %v459, %v651
      %v684 = vmul.f32 %v460, %v652
      %v685 = vmul.f32 %v461, %v653
      %v686 = vmul.f32 %v462, %v654
      %v687 = vmul.f32 %v463, %v655
      %v688 = vmul.f32 %v464, %v656
      %v689 = vmul.f32 %v465, %v657
      %v690 = vmul.f32 %v466, %v658
      %v691 = vmul.f32 %v467, %v659
      %v692 = vmul.f32 %v468, %v660
      %v693 = vmul.f32 %v469, %v661
      %v694 = vmul.f32 %v470, %v662
      %v695 = vmul.f32 %v471, %v663
      %v696 = vmul.f32 %v472, %v664
      %v697 = vmul.f32 %v473, %v665
      %v698 = vmul.f32 %v474, %v666
      %v699 = vmul.f32 %v475, %v667
      %v700 = vmul.f32 %v476, %v668
      %v701 = vmul.f32 %v477, %v669
      %v702 = vmul.f32 %v478, %v670
      %v703 = vmul.f32 %v479, %v671
      %v704 = vmul.f32 %v480, %v672
      %v705 = vmul.f32 %v481, %v673
      %v706 = vmul.f32 %v482, %v674
      %v707 = vmul.f32 %v483, %v675
      %v708 = vmul.f32 %v484, %v676
      %v709 = vmul.f32 %v485, %v677
      %v710 = vadd.f32 %v678, 0.2548296
      %v711 = vadd.f32 %v679, 0.2548296
      %v712 = vadd.f32 %v680, 0.2548296
      %v713 = vadd.f32 %v681, 0.2548296
      %v714 = vadd.f32 %v682, 0.2548296
      %v715 = vadd.f32 %v683, 0.2548296
      %v716 = vadd.f32 %v684, 0.2548296
      %v717 = vadd.f32 %v685, 0.2548296
      %v718 = vadd.f32 %v686, 0.2548296
      %v719 = vadd.f32 %v687, 0.2548296
      %v720 = vadd.f32 %v688, 0.2548296
      %v721 = vadd.f32 %v689, 0.2548296
      %v722 = vadd.f32 %v690, 0.2548296
      %v723 = vadd.f32 %v691, 0.2548296
      %v724 = vadd.f32 %v692, 0.2548296
      %v725 = vadd.f32 %v693, 0.2548296
      %v726 = vadd.f32 %v694, 0.2548296
      %v727 = vadd.f32 %v695, 0.2548296
      %v728 = vadd.f32 %v696, 0.2548296
      %v729 = vadd.f32 %v697, 0.2548296
      %v730 = vadd.f32 %v698, 0.2548296
      %v731 = vadd.f32 %v699, 0.2548296
      %v732 = vadd.f32 %v700, 0.2548296
      %v733 = vadd.f32 %v701, 0.2548296
      %v734 = vadd.f32 %v702, 0.2548296
      %v735 = vadd.f32 %v703, 0.2548296
      %v736 = vadd.f32 %v704, 0.2548296
      %v737 = vadd.f32 %v705, 0.2548296
      %v738 = vadd.f32 %v706, 0.2548296
      %v739 = vadd.f32 %v707, 0.2548296
      %v740 = vadd.f32 %v708, 0.2548296
      %v741 = vadd.f32 %v709, 0.2548296
      %v742 = vmul.f32 %v454, %v710
      %v743 = vmul.f32 %v455, %v711
      %v744 = vmul.f32 %v456, %v712
      %v745 = vmul.f32 %v457, %v713
      %v746 = vmul.f32 %v458, %v714
      %v747 = vmul.f32 %v459, %v715
      %v748 = vmul.f32 %v460, %v716
      %v749 = vmul.f32 %v461, %v717
      %v750 = vmul.f32 %v462, %v718
      %v751 = vmul.f32 %v463, %v719
      %v752 = vmul.f32 %v464, %v720
      %v753 = vmul.f32 %v465, %v721
      %v754 = vmul.f32 %v466, %v722
      %v755 = vmul.f32 %v467, %v723
      %v756 = vmul.f32 %v468, %v724
      %v757 = vmul.f32 %v469, %v725
      %v758 = vmul.f32 %v470, %v726
      %v759 = vmul.f32 %v471, %v727
      %v760 = vmul.f32 %v472, %v728
      %v761 = vmul.f32 %v473, %v729
      %v762 = vmul.f32 %v474, %v730
      %v763 = vmul.f32 %v475, %v731
      %v764 = vmul.f32 %v476, %v732
      %v765 = vmul.f32 %v477, %v733
      %v766 = vmul.f32 %v478, %v734
      %v767 = vmul.f32 %v479, %v735
      %v768 = vmul.f32 %v480, %v736
      %v769 = vmul.f32 %v481, %v737
      %v770 = vmul.f32 %v482, %v738
      %v771 = vmul.f32 %v483, %v739
      %v772 = vmul.f32 %v484, %v740
      %v773 = vmul.f32 %v485, %v741
      %v774 = vsub.f32 0.0, %v358
      %v775 = vsub.f32 0.0, %v359
      %v776 = vsub.f32 0.0, %v360
      %v777 = vsub.f32 0.0, %v361
      %v778 = vsub.f32 0.0, %v362
      %v779 = vsub.f32 0.0, %v363
      %v780 = vsub.f32 0.0, %v364
      %v781 = vsub.f32 0.0, %v365
      %v782 = vsub.f32 0.0, %v366
      %v783 = vsub.f32 0.0, %v367
      %v784 = vsub.f32 0.0, %v368
      %v785 = vsub.f32 0.0, %v369
      %v786 = vsub.f32 0.0, %v370
      %v787 = vsub.f32 0.0, %v371
      %v788 = vsub.f32 0.0, %v372
      %v789 = vsub.f32 0.0, %v373
      %v790 = vsub.f32 0.0, %v374
      %v791 = vsub.f32 0.0, %v375
      %v792 = vsub.f32 0.0, %v376
      %v793 = vsub.f32 0.0, %v377
      %v794 = vsub.f32 0.0, %v378
      %v795 = vsub.f32 0.0, %v379
      %v796 = vsub.f32 0.0, %v380
      %v797 = vsub.f32 0.0, %v381
      %v798 = vsub.f32 0.0, %v382
      %v799 = vsub.f32 0.0, %v383
      %v800 = vsub.f32 0.0, %v384
      %v801 = vsub.f32 0.0, %v385
      %v802 = vsub.f32 0.0, %v386
      %v803 = vsub.f32 0.0, %v387
      %v804 = vsub.f32 0.0, %v388
      %v805 = vsub.f32 0.0, %v389
      %v806 = vmul.f32 %v774, %v358
      %v807 = vmul.f32 %v775, %v359
      %v808 = vmul.f32 %v776, %v360
      %v809 = vmul.f32 %v777, %v361
      %v810 = vmul.f32 %v778, %v362
      %v811 = vmul.f32 %v779, %v363
      %v812 = vmul.f32 %v780, %v364
      %v813 = vmul.f32 %v781, %v365
      %v814 = vmul.f32 %v782, %v366
      %v815 = vmul.f32 %v783, %v367
      %v816 = vmul.f32 %v784, %v368
      %v817 = vmul.f32 %v785, %v369
      %v818 = vmul.f32 %v786, %v370
      %v819 = vmul.f32 %v787, %v371
      %v820 = vmul.f32 %v788, %v372
      %v821 = vmul.f32 %v789, %v373
      %v822 = vmul.f32 %v790, %v374
      %v823 = vmul.f32 %v791, %v375
      %v824 = vmul.f32 %v792, %v376
      %v825 = vmul.f32 %v793, %v377
      %v826 = vmul.f32 %v794, %v378
      %v827 = vmul.f32 %v795, %v379
      %v828 = vmul.f32 %v796, %v380
      %v829 = vmul.f32 %v797, %v381
      %v830 = vmul.f32 %v798, %v382
      %v831 = vmul.f32 %v799, %v383
      %v832 = vmul.f32 %v800, %v384
      %v833 = vmul.f32 %v801, %v385
      %v834 = vmul.f32 %v802, %v386
      %v835 = vmul.f32 %v803, %v387
      %v836 = vmul.f32 %v804, %v388
      %v837 = vmul.f32 %v805, %v389
      %v838 = vmul.f32 %v806, 1.442695
      %v839 = vpow.pop %v838
      %v840 = vmul.f32 %v807, 1.442695
      %v841 = vpow.pop %v840
      %v842 = vmul.f32 %v808, 1.442695
      %v843 = vpow.pop %v842
      %v844 = vmul.f32 %v809, 1.442695
      %v845 = vpow.pop %v844
      %v846 = vmul.f32 %v810, 1.442695
      %v847 = vpow.pop %v846
      %v848 = vmul.f32 %v811, 1.442695
      %v849 = vpow.pop %v848
      %v850 = vmul.f32 %v812, 1.442695
      %v851 = vpow.pop %v850
      %v852 = vmul.f32 %v813, 1.442695
      %v853 = vpow.pop %v852
      %v854 = vmul.f32 %v814, 1.442695
      %v855 = vpow.pop %v854
      %v856 = vmul.f32 %v815, 1.442695
      %v857 = vpow.pop %v856
      %v858 = vmul.f32 %v816, 1.442695
      %v859 = vpow.pop %v858
      %v860 = vmul.f32 %v817, 1.442695
      %v861 = vpow.pop %v860
      %v862 = vmul.f32 %v818, 1.442695
      %v863 = vpow.pop %v862
      %v864 = vmul.f32 %v819, 1.442695
      %v865 = vpow.pop %v864
      %v866 = vmul.f32 %v820, 1.442695
      %v867 = vpow.pop %v866
      %v868 = vmul.f32 %v821, 1.442695
      %v869 = vpow.pop %v868
      %v870 = vmul.f32 %v822, 1.442695
      %v871 = vpow.pop %v870
      %v872 = vmul.f32 %v823, 1.442695
      %v873 = vpow.pop %v872
      %v874 = vmul.f32 %v824, 1.442695
      %v875 = vpow.pop %v874
      %v876 = vmul.f32 %v825, 1.442695
      %v877 = vpow.pop %v876
      %v878 = vmul.f32 %v826, 1.442695
      %v879 = vpow.pop %v878
      %v880 = vmul.f32 %v827, 1.442695
      %v881 = vpow.pop %v880
      %v882 = vmul.f32 %v828, 1.442695
      %v883 = vpow.pop %v882
      %v884 = vmul.f32 %v829, 1.442695
      %v885 = vpow.pop %v884
      %v886 = vmul.f32 %v830, 1.442695
      %v887 = vpow.pop %v886
      %v888 = vmul.f32 %v831, 1.442695
      %v889 = vpow.pop %v888
      %v890 = vmul.f32 %v832, 1.442695
      %v891 = vpow.pop %v890
      %v892 = vmul.f32 %v833, 1.442695
      %v893 = vpow.pop %v892
      %v894 = vmul.f32 %v834, 1.442695
      %v895 = vpow.pop %v894
      %v896 = vmul.f32 %v835, 1.442695
      %v897 = vpow.pop %v896
      %v898 = vmul.f32 %v836, 1.442695
      %v899 = vpow.pop %v898
      %v900 = vmul.f32 %v837, 1.442695
      %v901 = vpow.pop %v900
      %v902 = vmul.f32 %v742, %v839
      %v903 = vmul.f32 %v743, %v841
      %v904 = vmul.f32 %v744, %v843
      %v905 = vmul.f32 %v745, %v845
      %v906 = vmul.f32 %v746, %v847
      %v907 = vmul.f32 %v747, %v849
      %v908 = vmul.f32 %v748, %v851
      %v909 = vmul.f32 %v749, %v853
      %v910 = vmul.f32 %v750, %v855
      %v911 = vmul.f32 %v751, %v857
      %v912 = vmul.f32 %v752, %v859
      %v913 = vmul.f32 %v753, %v861
      %v914 = vmul.f32 %v754, %v863
      %v915 = vmul.f32 %v755, %v865
      %v916 = vmul.f32 %v756, %v867
      %v917 = vmul.f32 %v757, %v869
      %v918 = vmul.f32 %v758, %v871
      %v919 = vmul.f32 %v759, %v873
      %v920 = vmul.f32 %v760, %v875
      %v921 = vmul.f32 %v761, %v877
      %v922 = vmul.f32 %v762, %v879
      %v923 = vmul.f32 %v763, %v881
      %v924 = vmul.f32 %v764, %v883
      %v925 = vmul.f32 %v765, %v885
      %v926 = vmul.f32 %v766, %v887
      %v927 = vmul.f32 %v767, %v889
      %v928 = vmul.f32 %v768, %v891
      %v929 = vmul.f32 %v769, %v893
      %v930 = vmul.f32 %v770, %v895
      %v931 = vmul.f32 %v771, %v897
      %v932 = vmul.f32 %v772, %v899
      %v933 = vmul.f32 %v773, %v901
      %v934 = vsub.f32 1.0, %v902
      %v935 = vsub.f32 1.0, %v903
      %v936 = vsub.f32 1.0, %v904
      %v937 = vsub.f32 1.0, %v905
      %v938 = vsub.f32 1.0, %v906
      %v939 = vsub.f32 1.0, %v907
      %v940 = vsub.f32 1.0, %v908
      %v941 = vsub.f32 1.0, %v909
      %v942 = vsub.f32 1.0, %v910
      %v943 = vsub.f32 1.0, %v911
      %v944 = vsub.f32 1.0, %v912
      %v945 = vsub.f32 1.0, %v913
      %v946 = vsub.f32 1.0, %v914
      %v947 = vsub.f32 1.0, %v915
      %v948 = vsub.f32 1.0, %v916
      %v949 = vsub.f32 1.0, %v917
      %v950 = vsub.f32 1.0, %v918
      %v951 = vsub.f32 1.0, %v919
      %v952 = vsub.f32 1.0, %v920
      %v953 = vsub.f32 1.0, %v921
      %v954 = vsub.f32 1.0, %v922
      %v955 = vsub.f32 1.0, %v923
      %v956 = vsub.f32 1.0, %v924
      %v957 = vsub.f32 1.0, %v925
      %v958 = vsub.f32 1.0, %v926
      %v959 = vsub.f32 1.0, %v927
      %v960 = vsub.f32 1.0, %v928
      %v961 = vsub.f32 1.0, %v929
      %v962 = vsub.f32 1.0, %v930
      %v963 = vsub.f32 1.0, %v931
      %v964 = vsub.f32 1.0, %v932
      %v965 = vsub.f32 1.0, %v933
      %vm966 = vcmp.ge.f32.partialorder %v326, 0.0
      %vm967 = vcmp.ge.f32.partialorder %v327, 0.0
      %vm968 = vcmp.ge.f32.partialorder %v328, 0.0
      %vm969 = vcmp.ge.f32.partialorder %v329, 0.0
      %vm970 = vcmp.ge.f32.partialorder %v330, 0.0
      %vm971 = vcmp.ge.f32.partialorder %v331, 0.0
      %vm972 = vcmp.ge.f32.partialorder %v332, 0.0
      %vm973 = vcmp.ge.f32.partialorder %v333, 0.0
      %vm974 = vcmp.ge.f32.partialorder %v334, 0.0
      %vm975 = vcmp.ge.f32.partialorder %v335, 0.0
      %vm976 = vcmp.ge.f32.partialorder %v336, 0.0
      %vm977 = vcmp.ge.f32.partialorder %v337, 0.0
      %vm978 = vcmp.ge.f32.partialorder %v338, 0.0
      %vm979 = vcmp.ge.f32.partialorder %v339, 0.0
      %vm980 = vcmp.ge.f32.partialorder %v340, 0.0
      %vm981 = vcmp.ge.f32.partialorder %v341, 0.0
      %vm982 = vcmp.ge.f32.partialorder %v342, 0.0
      %vm983 = vcmp.ge.f32.partialorder %v343, 0.0
      %vm984 = vcmp.ge.f32.partialorder %v344, 0.0
      %vm985 = vcmp.ge.f32.partialorder %v345, 0.0
      %vm986 = vcmp.ge.f32.partialorder %v346, 0.0
      %vm987 = vcmp.ge.f32.partialorder %v347, 0.0
      %vm988 = vcmp.ge.f32.partialorder %v348, 0.0
      %vm989 = vcmp.ge.f32.partialorder %v349, 0.0
      %vm990 = vcmp.ge.f32.partialorder %v350, 0.0
      %vm991 = vcmp.ge.f32.partialorder %v351, 0.0
      %vm992 = vcmp.ge.f32.partialorder %v352, 0.0
      %vm993 = vcmp.ge.f32.partialorder %v353, 0.0
      %vm994 = vcmp.ge.f32.partialorder %v354, 0.0
      %vm995 = vcmp.ge.f32.partialorder %v355, 0.0
      %vm996 = vcmp.ge.f32.partialorder %v356, 0.0
      %vm997 = vcmp.ge.f32.partialorder %v357, 0.0
      %v998 = vsub.f32 0.0, %v934
      %v999 = vsub.f32 0.0, %v935
      %v1000 = vsub.f32 0.0, %v936
      %v1001 = vsub.f32 0.0, %v937
      %v1002 = vsub.f32 0.0, %v938
      %v1003 = vsub.f32 0.0, %v939
      %v1004 = vsub.f32 0.0, %v940
      %v1005 = vsub.f32 0.0, %v941
      %v1006 = vsub.f32 0.0, %v942
      %v1007 = vsub.f32 0.0, %v943
      %v1008 = vsub.f32 0.0, %v944
      %v1009 = vsub.f32 0.0, %v945
      %v1010 = vsub.f32 0.0, %v946
      %v1011 = vsub.f32 0.0, %v947
      %v1012 = vsub.f32 0.0, %v948
      %v1013 = vsub.f32 0.0, %v949
      %v1014 = vsub.f32 0.0, %v950
      %v1015 = vsub.f32 0.0, %v951
      %v1016 = vsub.f32 0.0, %v952
      %v1017 = vsub.f32 0.0, %v953
      %v1018 = vsub.f32 0.0, %v954
      %v1019 = vsub.f32 0.0, %v955
      %v1020 = vsub.f32 0.0, %v956
      %v1021 = vsub.f32 0.0, %v957
      %v1022 = vsub.f32 0.0, %v958
      %v1023 = vsub.f32 0.0, %v959
      %v1024 = vsub.f32 0.0, %v960
      %v1025 = vsub.f32 0.0, %v961
      %v1026 = vsub.f32 0.0, %v962
      %v1027 = vsub.f32 0.0, %v963
      %v1028 = vsub.f32 0.0, %v964
      %v1029 = vsub.f32 0.0, %v965
      %v1030 = vsel %vm966, %v934, %v998
      %v1031 = vsel %vm967, %v935, %v999
      %v1032 = vsel %vm968, %v936, %v1000
      %v1033 = vsel %vm969, %v937, %v1001
      %v1034 = vsel %vm970, %v938, %v1002
      %v1035 = vsel %vm971, %v939, %v1003
      %v1036 = vsel %vm972, %v940, %v1004
      %v1037 = vsel %vm973, %v941, %v1005
      %v1038 = vsel %vm974, %v942, %v1006
      %v1039 = vsel %vm975, %v943, %v1007
      %v1040 = vsel %vm976, %v944, %v1008
      %v1041 = vsel %vm977, %v945, %v1009
      %v1042 = vsel %vm978, %v946, %v1010
      %v1043 = vsel %vm979, %v947, %v1011
      %v1044 = vsel %vm980, %v948, %v1012
      %v1045 = vsel %vm981, %v949, %v1013
      %v1046 = vsel %vm982, %v950, %v1014
      %v1047 = vsel %vm983, %v951, %v1015
      %v1048 = vsel %vm984, %v952, %v1016
      %v1049 = vsel %vm985, %v953, %v1017
      %v1050 = vsel %vm986, %v954, %v1018
      %v1051 = vsel %vm987, %v955, %v1019
      %v1052 = vsel %vm988, %v956, %v1020
      %v1053 = vsel %vm989, %v957, %v1021
      %v1054 = vsel %vm990, %v958, %v1022
      %v1055 = vsel %vm991, %v959, %v1023
      %v1056 = vsel %vm992, %v960, %v1024
      %v1057 = vsel %vm993, %v961, %v1025
      %v1058 = vsel %vm994, %v962, %v1026
      %v1059 = vsel %vm995, %v963, %v1027
      %v1060 = vsel %vm996, %v964, %v1028
      %v1061 = vsel %vm997, %v965, %v1029
      %v1062 = vadd.f32 %v1030, 1.0
      %v1063 = vadd.f32 %v1031, 1.0
      %v1064 = vadd.f32 %v1032, 1.0
      %v1065 = vadd.f32 %v1033, 1.0
      %v1066 = vadd.f32 %v1034, 1.0
      %v1067 = vadd.f32 %v1035, 1.0
      %v1068 = vadd.f32 %v1036, 1.0
      %v1069 = vadd.f32 %v1037, 1.0
      %v1070 = vadd.f32 %v1038, 1.0
      %v1071 = vadd.f32 %v1039, 1.0
      %v1072 = vadd.f32 %v1040, 1.0
      %v1073 = vadd.f32 %v1041, 1.0
      %v1074 = vadd.f32 %v1042, 1.0
      %v1075 = vadd.f32 %v1043, 1.0
      %v1076 = vadd.f32 %v1044, 1.0
      %v1077 = vadd.f32 %v1045, 1.0
      %v1078 = vadd.f32 %v1046, 1.0
      %v1079 = vadd.f32 %v1047, 1.0
      %v1080 = vadd.f32 %v1048, 1.0
      %v1081 = vadd.f32 %v1049, 1.0
      %v1082 = vadd.f32 %v1050, 1.0
      %v1083 = vadd.f32 %v1051, 1.0
      %v1084 = vadd.f32 %v1052, 1.0
      %v1085 = vadd.f32 %v1053, 1.0
      %v1086 = vadd.f32 %v1054, 1.0
      %v1087 = vadd.f32 %v1055, 1.0
      %v1088 = vadd.f32 %v1056, 1.0
      %v1089 = vadd.f32 %v1057, 1.0
      %v1090 = vadd.f32 %v1058, 1.0
      %v1091 = vadd.f32 %v1059, 1.0
      %v1092 = vadd.f32 %v1060, 1.0
      %v1093 = vadd.f32 %v1061, 1.0
      %v1094 = vmul.f32 %v294, %v1062
      %v1095 = vmul.f32 %v295, %v1063
      %v1096 = vmul.f32 %v296, %v1064
      %v1097 = vmul.f32 %v297, %v1065
      %v1098 = vmul.f32 %v298, %v1066
      %v1099 = vmul.f32 %v299, %v1067
      %v1100 = vmul.f32 %v300, %v1068
      %v1101 = vmul.f32 %v301, %v1069
      %v1102 = vmul.f32 %v302, %v1070
      %v1103 = vmul.f32 %v303, %v1071
      %v1104 = vmul.f32 %v304, %v1072
      %v1105 = vmul.f32 %v305, %v1073
      %v1106 = vmul.f32 %v306, %v1074
      %v1107 = vmul.f32 %v307, %v1075
      %v1108 = vmul.f32 %v308, %v1076
      %v1109 = vmul.f32 %v309, %v1077
      %v1110 = vmul.f32 %v310, %v1078
      %v1111 = vmul.f32 %v311, %v1079
      %v1112 = vmul.f32 %v312, %v1080
      %v1113 = vmul.f32 %v313, %v1081
      %v1114 = vmul.f32 %v314, %v1082
      %v1115 = vmul.f32 %v315, %v1083
      %v1116 = vmul.f32 %v316, %v1084
      %v1117 = vmul.f32 %v317, %v1085
      %v1118 = vmul.f32 %v318, %v1086
      %v1119 = vmul.f32 %v319, %v1087
      %v1120 = vmul.f32 %v320, %v1088
      %v1121 = vmul.f32 %v321, %v1089
      %v1122 = vmul.f32 %v322, %v1090
      %v1123 = vmul.f32 %v323, %v1091
      %v1124 = vmul.f32 %v324, %v1092
      %v1125 = vmul.f32 %v325, %v1093
      %1126 = vst [vmem:[%s186] sm:$0xff] %v1094
      %1127 = vst [vmem:[%s186 + $0x8] sm:$0xff] %v1095
      %1128 = vst [vmem:[%s186 + $0x10] sm:$0xff] %v1096
      %1129 = vst [vmem:[%s186 + $0x18] sm:$0xff] %v1097
      %1130 = vst [vmem:[%s186 + $0x20] sm:$0xff] %v1098
      %1131 = vst [vmem:[%s186 + $0x28] sm:$0xff] %v1099
      %1132 = vst [vmem:[%s186 + $0x30] sm:$0xff] %v1100
      %1133 = vst [vmem:[%s186 + $0x38] sm:$0xff] %v1101
      %1134 = vst [vmem:[%s186 + $0x40] sm:$0xff] %v1102
      %1135 = vst [vmem:[%s186 + $0x48] sm:$0xff] %v1103
      %1136 = vst [vmem:[%s186 + $0x50] sm:$0xff] %v1104
      %1137 = vst [vmem:[%s186 + $0x58] sm:$0xff] %v1105
      %1138 = vst [vmem:[%s186 + $0x60] sm:$0xff] %v1106
      %1139 = vst [vmem:[%s186 + $0x68] sm:$0xff] %v1107
      %1140 = vst [vmem:[%s186 + $0x70] sm:$0xff] %v1108
      %1141 = vst [vmem:[%s186 + $0x78] sm:$0xff] %v1109
      %1142 = vst [vmem:[%s186 + $0x80] sm:$0xff] %v1110
      %1143 = vst [vmem:[%s186 + $0x88] sm:$0xff] %v1111
      %1144 = vst [vmem:[%s186 + $0x90] sm:$0xff] %v1112
      %1145 = vst [vmem:[%s186 + $0x98] sm:$0xff] %v1113
      %1146 = vst [vmem:[%s186 + $0xa0] sm:$0xff] %v1114
      %1147 = vst [vmem:[%s186 + $0xa8] sm:$0xff] %v1115
      %1148 = vst [vmem:[%s186 + $0xb0] sm:$0xff] %v1116
      %1149 = vst [vmem:[%s186 + $0xb8] sm:$0xff] %v1117
      %1150 = vst [vmem:[%s186 + $0xc0] sm:$0xff] %v1118
      %1151 = vst [vmem:[%s186 + $0xc8] sm:$0xff] %v1119
      %1152 = vst [vmem:[%s186 + $0xd0] sm:$0xff] %v1120
      %1153 = vst [vmem:[%s186 + $0xd8] sm:$0xff] %v1121
      %1154 = vst [vmem:[%s186 + $0xe0] sm:$0xff] %v1122
      %1155 = vst [vmem:[%s186 + $0xe8] sm:$0xff] %v1123
      %1156 = vst [vmem:[%s186 + $0xf0] sm:$0xff] %v1124
      %1157 = vst [vmem:[%s186 + $0xf8] sm:$0xff] %v1125
      %s1158 = smul.u32 8, %s18
      %p1159 = scmp.lt.s32.totalorder %s17, 1
      %s1160 = scalar_select %p1159, %s17, 1
      %p1161 = scmp.lt.s32.totalorder %s1158, 31
      %s1162 = scalar_select %p1161, %s1158, 31
      %s1163 = smul.addr %s1162, 4
      %s1164 = smul.addr %s1160, 128
      %s1165 = sadd.s32 %s1163, %s1164
      %s1166 = smul.addr %s1165, 8
      %s1167 = scalar_lea.vmem %s2, %s1166
      // Predicated region
      $region29: #{unet_up_forward.11} parent=27 // pred_check
        %p1168 = pneg %p94
      $region30: #{unet_up_forward.11} parent=27 // pred_check_branch
        %1170 = sbr.rel (%p1168) target = $region32
      $region31: #{unet_up_forward.11} parent=27 // pred_region
        %s1171 = smul.u32 8, %s18
      $region32: #{unet_up_forward.11} parent=27 // pred_fallthru
        _
    $region28: #{unet_up_forward.11} parent=5 // pred_fallthru
      _
    %p1172 = scmp.le.s32.totalorder 2, %s8
    // Predicated region
    $region33: #{unet_up_forward.11} parent=5 // pred_check
      %p1173 = pneg %p1172
    $region34: #{unet_up_forward.11} parent=5 // pred_check_branch
      %1175 = sbr.rel (%p1173) target = $region36
    $region35: #{unet_up_forward.11} parent=5 // pred_region
      %s1176 = ssub.s32 %s8, 2
      // Predicated region
      $region37: #{unet_up_forward.11} parent=35 // pred_check
        %p1177 = pneg %p100
      $region38: #{unet_up_forward.11} parent=35 // pred_check_branch
        %1179 = sbr.rel (%p1177) target = $region40
      $region39: #{unet_up_forward.11} parent=35 // pred_region
        %s1180 = smul.u32 8, %s20
        %p1181 = scmp.lt.s32.totalorder %s19, 1
        %s1182 = scalar_select %p1181, %s19, 1
        %p1183 = scmp.lt.s32.totalorder %s1180, 31
        %s1184 = scalar_select %p1183, %s1180, 31
        %s1185 = smul.addr %s1184, 4
        %s1186 = smul.addr %s1182, 128
        %s1187 = sadd.s32 %s1185, %s1186
        %s1188 = smul.addr %s1187, 8
        %s1189 = scalar_lea.vmem %s2, %s1188
      $region40: #{unet_up_forward.11} parent=35 // pred_fallthru
        _
    $region36: #{unet_up_forward.11} parent=5 // pred_fallthru
      _
  $region6: #{unet_up_forward.11} parent=0 // loop_footer
    %s12 = sadd.s32 1, %s8
  $region7: #{unet_up_forward.11} parent=0 // loop_footer_branch
    %7 = sbr.rel target = $region3
  $region8: #{unet_up_forward.11} parent=0 // loop_exit
    _

// kernel: unet_up_forward.8
$region0: #{unet_up_forward.8}
  #allocation0 [shape = 'u32[]', space=smem, size = 0x4, offset = 0x4, fixed_abs, tag = 'smem constant byte address 0x4 - core index']
  #allocation1 [shape = 'u32[144,128]{1,0:T(1,128)}', space=vmem, size = 0x12000, scoped, tag = 'internal scratch']
  %s0 = inlined_call_operand.vmem [shape: f32[2,4,10,34,128], index: 0, kind: input, shape index: {}]
  %s1 = inlined_call_operand.vmem [shape: f32[2,128], index: 1, kind: input, shape index: {}]
  %s2 = inlined_call_operand.vmem [shape: bf16[3,3,128,128], index: 2, kind: input, shape index: {}]
  %s3 = inlined_call_operand.vmem [shape: f32[1,128], index: 3, kind: input, shape index: {}]
  %s4 = inlined_call_operand.vmem [shape: f32[2,32,32,128], index: 4, kind: output, shape index: {0}]
  %s5 = inlined_call_operand.vmem [shape: f32[2,4,2,128], index: 5, kind: output, shape index: {1}]
  %6 = xla_tuple %s4, %s5
  %s7 = sld [smem:[#allocation0]]
  $region57: #{unet_up_forward.8} parent=0
    _
  %s9 = ssub.s32 1, %s7
  %s10 = scalar_select 0, %s9, %s7
  loop: start=0, step=1, limit=10
  $region2: #{unet_up_forward.8} parent=0 // loop_pre_header
    _
  $region3: #{unet_up_forward.8} parent=0 // loop_header
    %s12 = sphi 0, %s16
    %p13 = scmp.ge.s32.totalorder %s12, 10
    %s19 = sphi 0, %s31
    %s20 = sphi 0, %s27
    %s21 = sphi 0, %s19
    %s22 = sphi 0, %s20
    %s23 = sphi 0, %s21
    %s24 = sphi 0, %s22
    %s36 = sphi 0, %s38
    %s39 = sphi 0, %s36
    %s40 = sphi 0, %s39
    %s56 = sphi 0, %s40
    %s60 = sphi 0, %s60
    %s62 = sphi 0, %s60
    %s63 = sphi 0, %s62
    %s77 = sphi 0, %s63
    %s81 = sphi 0, %s81
    %s83 = sphi 0, %s81
    %s84 = sphi 0, %s83
    %s98 = sphi 0, %s84
    %s102 = sphi 0, %s102
    %s104 = sphi 0, %s102
    %s105 = sphi 0, %s104
    %s119 = sphi 0, %s105
    %s127 = sphi 0, %s129
    %s130 = sphi 0, %s127
    %s131 = sphi 0, %s130
    %s147 = sphi 0, %s131
    %s155 = sphi 0, %s157
    %s158 = sphi 0, %s155
    %s159 = sphi 0, %s158
    %s175 = sphi 0, %s159
  $region4: #{unet_up_forward.8} parent=0 // loop_header_branch
    %15 = sbr.rel (%p13) target = $region8
  $region5: #{unet_up_forward.8} parent=0 // loop_body
    %s17 = ssub.s32 %s12, 1
    %s18 = ssub.s32 %s12, 2
    %s25 = sadd.s32 1, %s20
    %p26 = scmp.ge.s32.totalorder %s25, 4
    %s27 = scalar_select %p26, 0, %s25
    %s28 = sadd.s32 1, %s19
    %s29 = scalar_select %p26, %s28, %s19
    %p30 = scmp.ge.s32.totalorder %s29, 2
    %s31 = scalar_select %p30, 0, %s29
    %s32 = ssub.s32 %s19, %s31
    %s33 = ssub.s32 %s20, %s27
    %s34 = sor.u32 %s32, %s33
    %p35 = scmp.eq.s32.totalorder %s34, 0
    %s37 = sadd.s32 %s36, 1
    %s38 = scalar_select %p35, %s36, %s37
    %p41 = pneg %p35
    %p42 = scmp.eq.s32.totalorder %s12, 7
    %p43 = por %p41, %p42
    %p44 = scmp.ne.s32.totalorder %s36, %s39
    %p45 = scmp.eq.s32.totalorder %s12, 0
    %p46 = por %p44, %p45
    %p47 = scmp.ne.s32.totalorder %s36, %s39
    %p48 = scmp.eq.s32.totalorder %s17, 7
    %p49 = por %p47, %p48
    %p50 = scmp.ne.s32.totalorder %s39, %s40
    %p51 = scmp.eq.s32.totalorder %s17, 0
    %p52 = por %p50, %p51
    %p53 = scmp.ne.s32.totalorder %s39, %s40
    %p54 = scmp.eq.s32.totalorder %s18, 7
    %p55 = por %p53, %p54
    %p57 = scmp.ne.s32.totalorder %s40, %s56
    %p58 = scmp.eq.s32.totalorder %s18, 0
    %p59 = por %p57, %p58
    %s61 = sadd.s32 %s60, 1
    %p64 = scmp.eq.s32.totalorder %s12, 7
    %p65 = scmp.ne.s32.totalorder %s60, %s62
    %p66 = scmp.eq.s32.totalorder %s12, 0
    %p67 = por %p65, %p66
    %p68 = scmp.ne.s32.totalorder %s60, %s62
    %p69 = scmp.eq.s32.totalorder %s17, 7
    %p70 = por %p68, %p69
    %p71 = scmp.ne.s32.totalorder %s62, %s63
    %p72 = scmp.eq.s32.totalorder %s17, 0
    %p73 = por %p71, %p72
    %p74 = scmp.ne.s32.totalorder %s62, %s63
    %p75 = scmp.eq.s32.totalorder %s18, 7
    %p76 = por %p74, %p75
    %p78 = scmp.ne.s32.totalorder %s63, %s77
    %p79 = scmp.eq.s32.totalorder %s18, 0
    %p80 = por %p78, %p79
    %s82 = sadd.s32 %s81, 1
    %p85 = scmp.eq.s32.totalorder %s12, 7
    %p86 = scmp.ne.s32.totalorder %s81, %s83
    %p87 = scmp.eq.s32.totalorder %s12, 0
    %p88 = por %p86, %p87
    %p89 = scmp.ne.s32.totalorder %s81, %s83
    %p90 = scmp.eq.s32.totalorder %s17, 7
    %p91 = por %p89, %p90
    %p92 = scmp.ne.s32.totalorder %s83, %s84
    %p93 = scmp.eq.s32.totalorder %s17, 0
    %p94 = por %p92, %p93
    %p95 = scmp.ne.s32.totalorder %s83, %s84
    %p96 = scmp.eq.s32.totalorder %s18, 7
    %p97 = por %p95, %p96
    %p99 = scmp.ne.s32.totalorder %s84, %s98
    %p100 = scmp.eq.s32.totalorder %s18, 0
    %p101 = por %p99, %p100
    %s103 = sadd.s32 %s102, 1
    %p106 = scmp.eq.s32.totalorder %s12, 7
    %p107 = scmp.ne.s32.totalorder %s102, %s104
    %p108 = scmp.eq.s32.totalorder %s12, 0
    %p109 = por %p107, %p108
    %p110 = scmp.ne.s32.totalorder %s102, %s104
    %p111 = scmp.eq.s32.totalorder %s17, 7
    %p112 = por %p110, %p111
    %p113 = scmp.ne.s32.totalorder %s104, %s105
    %p114 = scmp.eq.s32.totalorder %s17, 0
    %p115 = por %p113, %p114
    %p116 = scmp.ne.s32.totalorder %s104, %s105
    %p117 = scmp.eq.s32.totalorder %s18, 7
    %p118 = por %p116, %p117
    %p120 = scmp.ne.s32.totalorder %s105, %s119
    %p121 = scmp.eq.s32.totalorder %s18, 0
    %p122 = por %p120, %p121
    %s123 = ssub.s32 %s19, %s31
    %s124 = ssub.s32 %s20, %s27
    %s125 = sor.u32 %s123, %s124
    %p126 = scmp.eq.s32.totalorder %s125, 0
    %s128 = sadd.s32 %s127, 1
    %s129 = scalar_select %p126, %s127, %s128
    %p132 = pneg %p126
    %p133 = scmp.eq.s32.totalorder %s12, 7
    %p134 = por %p132, %p133
    %p135 = scmp.ne.s32.totalorder %s127, %s130
    %p136 = scmp.eq.s32.totalorder %s12, 0
    %p137 = por %p135, %p136
    %p138 = scmp.ne.s32.totalorder %s127, %s130
    %p139 = scmp.eq.s32.totalorder %s17, 7
    %p140 = por %p138, %p139
    %p141 = scmp.ne.s32.totalorder %s130, %s131
    %p142 = scmp.eq.s32.totalorder %s17, 0
    %p143 = por %p141, %p142
    %p144 = scmp.ne.s32.totalorder %s130, %s131
    %p145 = scmp.eq.s32.totalorder %s18, 7
    %p146 = por %p144, %p145
    %p148 = scmp.ne.s32.totalorder %s131, %s147
    %p149 = scmp.eq.s32.totalorder %s18, 0
    %p150 = por %p148, %p149
    %s151 = ssub.s32 %s19, %s31
    %s152 = ssub.s32 %s20, %s27
    %s153 = sor.u32 %s151, %s152
    %p154 = scmp.eq.s32.totalorder %s153, 0
    %s156 = sadd.s32 %s155, 1
    %s157 = scalar_select %p154, %s155, %s156
    %p160 = pneg %p154
    %p161 = scmp.eq.s32.totalorder %s12, 7
    %p162 = por %p160, %p161
    %p163 = scmp.ne.s32.totalorder %s155, %s158
    %p164 = scmp.eq.s32.totalorder %s12, 0
    %p165 = por %p163, %p164
    %p166 = scmp.ne.s32.totalorder %s155, %s158
    %p167 = scmp.eq.s32.totalorder %s17, 7
    %p168 = por %p166, %p167
    %p169 = scmp.ne.s32.totalorder %s158, %s159
    %p170 = scmp.eq.s32.totalorder %s17, 0
    %p171 = por %p169, %p170
    %p172 = scmp.ne.s32.totalorder %s158, %s159
    %p173 = scmp.eq.s32.totalorder %s18, 7
    %p174 = por %p172, %p173
    %p176 = scmp.ne.s32.totalorder %s159, %s175
    %p177 = scmp.eq.s32.totalorder %s18, 0
    %p178 = por %p176, %p177
    %p179 = scmp.le.s32.totalorder 1, %s12
    %p180 = scmp.lt.s32.totalorder %s12, 9
    %p181 = pnand %p179, %p180
    %p182 = pneg %p181
    // Predicated region
    $region9: #{unet_up_forward.8} parent=5 // pred_check
      _
    $region10: #{unet_up_forward.8} parent=5 // pred_check_branch
      %184 = sbr.rel (%p181) target = $region12
    $region11: #{unet_up_forward.8} parent=5 // pred_region
      %s185 = ssub.s32 %s12, 1
      // Predicated region
      $region13: #{unet_up_forward.8} parent=11 // pred_check
        %p186 = pneg %p73
      $region14: #{unet_up_forward.8} parent=11 // pred_check_branch
        %188 = sbr.rel (%p186) target = $region16
      $region15: #{unet_up_forward.8} parent=11 // pred_region
        _
      $region16: #{unet_up_forward.8} parent=11 // pred_fallthru
        _
      // Predicated region
      $region17: #{unet_up_forward.8} parent=11 // pred_check
        %p189 = pneg %p94
      $region18: #{unet_up_forward.8} parent=11 // pred_check_branch
        %191 = sbr.rel (%p189) target = $region20
      $region19: #{unet_up_forward.8} parent=11 // pred_region
        _
      $region20: #{unet_up_forward.8} parent=11 // pred_fallthru
        _
      // Predicated region
      $region21: #{unet_up_forward.8} parent=11 // pred_check
        %p192 = pneg %p115
      $region22: #{unet_up_forward.8} parent=11 // pred_check_branch
        %194 = sbr.rel (%p192) target = $region24
      $region23: #{unet_up_forward.8} parent=11 // pred_region
        _
      $region24: #{unet_up_forward.8} parent=11 // pred_fallthru
        _
    $region12: #{unet_up_forward.8} parent=5 // pred_fallthru
      _
    %p195 = scmp.lt.s32.totalorder %s12, 8
    // Predicated region
    $region25: #{unet_up_forward.8} parent=5 // pred_check
      %p196 = pneg %p195
    $region26: #{unet_up_forward.8} parent=5 // pred_check_branch
      %198 = sbr.rel (%p196) target = $region28
    $region27: #{unet_up_forward.8} parent=5 // pred_region
      // Predicated region
      $region29: #{unet_up_forward.8} parent=27 // pred_check
        %p199 = pneg %p46
      $region30: #{unet_up_forward.8} parent=27 // pred_check_branch
        %201 = sbr.rel (%p199) target = $region32
      $region31: #{unet_up_forward.8} parent=27 // pred_region
        %p202 = scmp.lt.s32.totalorder %s19, 1
        %s203 = scalar_select %p202, %s19, 1
        %p204 = scmp.lt.s32.totalorder %s20, 3
        %s205 = scalar_select %p204, %s20, 3
        %s206 = smul.addr %s205, 50
        %s207 = smul.addr %s203, 200
        %s208 = sadd.s32 %s206, %s207
        %s209 = smul.addr %s208, 8
        %s210 = scalar_lea.vmem %s0, %s209
      $region32: #{unet_up_forward.8} parent=27 // pred_fallthru
        _
    $region28: #{unet_up_forward.8} parent=5 // pred_fallthru
      _
    %p211 = scmp.le.s32.totalorder 1, %s12
    %p212 = scmp.lt.s32.totalorder %s12, 9
    %p213 = pnand %p211, %p212
    %p214 = pneg %p213
    // Predicated region
    $region33: #{unet_up_forward.8} parent=5 // pred_check
      _
    $region34: #{unet_up_forward.8} parent=5 // pred_check_branch
      %216 = sbr.rel (%p213) target = $region36
    $region35: #{unet_up_forward.8} parent=5 // pred_region
      %s217 = ssub.s32 %s12, 1
      %p218 = scmp.lt.s32.totalorder %s21, 1
      %s219 = scalar_select %p218, %s21, 1
      %p220 = scmp.lt.s32.totalorder %s22, 3
      %s221 = scalar_select %p220, %s22, 3
      %s222 = smul.addr %s221, 50
      %s223 = smul.addr %s219, 200
      %s224 = sadd.s32 %s222, %s223
      %s225 = smul.addr %s224, 8
      %s226 = scalar_lea.vmem %s0, %s225
      %p227 = pneg %p52
      %p228 = pneg %p49
      %p229 = pneg %p73
      %p230 = pneg %p70
      %p231 = pneg %p94
      %p232 = pneg %p91
      %p233 = pneg %p115
      %p234 = pneg %p112
      %p235 = pneg %p143
      %p236 = pneg %p140
      %s237 = smul.u32 8, %s22
      %p238 = scmp.lt.s32.totalorder %s21, 1
      %s239 = scalar_select %p238, %s21, 1
      %p240 = scmp.lt.s32.totalorder %s237, 31
      %s241 = scalar_select %p240, %s237, 31
      %s242 = smul.addr %s241, 4
      %s243 = smul.addr %s239, 128
      %s244 = sadd.s32 %s242, %s243
      %s245 = smul.addr %s244, 8
      %s246 = scalar_lea.vmem %s4, %s245
      %p247 = pneg %p171
      %p248 = pneg %p168
      %p249 = scmp.lt.s32.totalorder %s21, 1
      %s250 = scalar_select %p249, %s21, 1
      %p251 = scmp.lt.s32.totalorder %s22, 3
      %s252 = scalar_select %p251, %s22, 3
      %s253 = smul.addr %s250, 4
      %s254 = sadd.s32 %s252, %s253
      %s255 = smul.addr %s254, 2
      %s256 = scalar_lea.vmem %s5, %s255
      %p257 = scmp.lt.s32.totalorder %s21, 1
      %s258 = scalar_select %p257, %s21, 1
      %p259 = scmp.lt.s32.totalorder %s22, 3
      %s260 = scalar_select %p259, %s22, 3
      %s261 = smul.addr %s260, 50
      %s262 = smul.addr %s258, 200
      %s263 = sadd.s32 %s261, %s262
      %s264 = smul.addr %s263, 8
      %s265 = scalar_lea.vmem %s0, %s264
      %s266 = smul.u32 8, %s22
      %p267 = scmp.lt.s32.totalorder %s21, 1
      %s268 = scalar_select %p267, %s21, 1
      %p269 = scmp.lt.s32.totalorder %s266, 31
      %s270 = scalar_select %p269, %s266, 31
      %s271 = smul.addr %s270, 4
      %s272 = smul.addr %s268, 128
      %s273 = sadd.s32 %s271, %s272
      %s274 = smul.addr %s273, 8
      %s275 = scalar_lea.vmem %s4, %s274
      %s276 = smul.u32 8, %s22
      %p277 = scmp.lt.s32.totalorder %s21, 1
      %s278 = scalar_select %p277, %s21, 1
      %p279 = scmp.lt.s32.totalorder %s22, 3
      %s280 = scalar_select %p279, %s22, 3
      %s281 = smul.addr %s278, 4
      %s282 = sadd.s32 %s280, %s281
      %s283 = smul.addr %s282, 2
      %s284 = scalar_lea.vmem %s5, %s283
      %v286 = vld [vmem:[%s265] sm:$0xff]
      %v287 = vld [vmem:[%s265 + $0x8] sm:$0xff]
      %v288 = vld [vmem:[%s265 + $0x10] sm:$0xff]
      %v289 = vld [vmem:[%s265 + $0x18] sm:$0xff]
      %v290 = vld [vmem:[%s265 + $0x20] sm:$0x3]
      %v291 = vld [vmem:[%s265 + $0x28] sm:$0xff]
      %v292 = vld [vmem:[%s265 + $0x30] sm:$0xff]
      %v293 = vld [vmem:[%s265 + $0x38] sm:$0xff]
      %v294 = vld [vmem:[%s265 + $0x40] sm:$0xff]
      %v295 = vld [vmem:[%s265 + $0x48] sm:$0x3]
      %v296 = vld [vmem:[%s265 + $0x50] sm:$0xff]
      %v297 = vld [vmem:[%s265 + $0x58] sm:$0xff]
      %v298 = vld [vmem:[%s265 + $0x60] sm:$0xff]
      %v299 = vld [vmem:[%s265 + $0x68] sm:$0xff]
      %v300 = vld [vmem:[%s265 + $0x70] sm:$0x3]
      %v301 = vld [vmem:[%s265 + $0x78] sm:$0xff]
      %v302 = vld [vmem:[%s265 + $0x80] sm:$0xff]
      %v303 = vld [vmem:[%s265 + $0x88] sm:$0xff]
      %v304 = vld [vmem:[%s265 + $0x90] sm:$0xff]
      %v305 = vld [vmem:[%s265 + $0x98] sm:$0x3]
      %v306 = vld [vmem:[%s265 + $0xa0] sm:$0xff]
      %v307 = vld [vmem:[%s265 + $0xa8] sm:$0xff]
      %v308 = vld [vmem:[%s265 + $0xb0] sm:$0xff]
      %v309 = vld [vmem:[%s265 + $0xb8] sm:$0xff]
      %v310 = vld [vmem:[%s265 + $0xc0] sm:$0x3]
      %v311 = vld [vmem:[%s265 + $0xc8] sm:$0xff]
      %v312 = vld [vmem:[%s265 + $0xd0] sm:$0xff]
      %v313 = vld [vmem:[%s265 + $0xd8] sm:$0xff]
      %v314 = vld [vmem:[%s265 + $0xe0] sm:$0xff]
      %v315 = vld [vmem:[%s265 + $0xe8] sm:$0x3]
      %v316 = vld [vmem:[%s265 + $0xf0] sm:$0xff]
      %v317 = vld [vmem:[%s265 + $0xf8] sm:$0xff]
      %v318 = vld [vmem:[%s265 + $0x100] sm:$0xff]
      %v319 = vld [vmem:[%s265 + $0x108] sm:$0xff]
      %v320 = vld [vmem:[%s265 + $0x110] sm:$0x3]
      %v321 = vld [vmem:[%s265 + $0x118] sm:$0xff]
      %v322 = vld [vmem:[%s265 + $0x120] sm:$0xff]
      %v323 = vld [vmem:[%s265 + $0x128] sm:$0xff]
      %v324 = vld [vmem:[%s265 + $0x130] sm:$0xff]
      %v325 = vld [vmem:[%s265 + $0x138] sm:$0x3]
      %v326 = vld [vmem:[%s265 + $0x140] sm:$0xff]
      %v327 = vld [vmem:[%s265 + $0x148] sm:$0xff]
      %v328 = vld [vmem:[%s265 + $0x150] sm:$0xff]
      %v329 = vld [vmem:[%s265 + $0x158] sm:$0xff]
      %v330 = vld [vmem:[%s265 + $0x160] sm:$0x3]
      %v331 = vld [vmem:[%s265 + $0x168] sm:$0xff]
      %v332 = vld [vmem:[%s265 + $0x170] sm:$0xff]
      %v333 = vld [vmem:[%s265 + $0x178] sm:$0xff]
      %v334 = vld [vmem:[%s265 + $0x180] sm:$0xff]
      %v335 = vld [vmem:[%s265 + $0x188] sm:$0x3]
      %v336 = vld [vmem:[%s1] sm:$0x1]
      %v337 = vld [vmem:[%s1 + $0x1] sm:$0x1]
      %v338 = vlaneseq
      %v339 = vshrl.u32 %v338, 7
      %v340 = vsub.s32 0, %v339
      %v341 = vrot.slane %v336, %v340
      %v342 = vmul.f32 %v286, %v341
      %v343 = vmul.f32 %v287, %v341
      %v344 = vmul.f32 %v288, %v341
      %v345 = vmul.f32 %v289, %v341
      %v346 = vmul.f32 %v290, %v341
      %v347 = vmul.f32 %v291, %v341
      %v348 = vmul.f32 %v292, %v341
      %v349 = vmul.f32 %v293, %v341
      %v350 = vmul.f32 %v294, %v341
      %v351 = vmul.f32 %v295, %v341
      %v352 = vmul.f32 %v296, %v341
      %v353 = vmul.f32 %v297, %v341
      %v354 = vmul.f32 %v298, %v341
      %v355 = vmul.f32 %v299, %v341
      %v356 = vmul.f32 %v300, %v341
      %v357 = vmul.f32 %v301, %v341
      %v358 = vmul.f32 %v302, %v341
      %v359 = vmul.f32 %v303, %v341
      %v360 = vmul.f32 %v304, %v341
      %v361 = vmul.f32 %v305, %v341
      %v362 = vmul.f32 %v306, %v341
      %v363 = vmul.f32 %v307, %v341
      %v364 = vmul.f32 %v308, %v341
      %v365 = vmul.f32 %v309, %v341
      %v366 = vmul.f32 %v310, %v341
      %v367 = vmul.f32 %v311, %v341
      %v368 = vmul.f32 %v312, %v341
      %v369 = vmul.f32 %v313, %v341
      %v370 = vmul.f32 %v314, %v341
      %v371 = vmul.f32 %v315, %v341
      %v372 = vmul.f32 %v316, %v341
      %v373 = vmul.f32 %v317, %v341
      %v374 = vmul.f32 %v318, %v341
      %v375 = vmul.f32 %v319, %v341
      %v376 = vmul.f32 %v320, %v341
      %v377 = vmul.f32 %v321, %v341
      %v378 = vmul.f32 %v322, %v341
      %v379 = vmul.f32 %v323, %v341
      %v380 = vmul.f32 %v324, %v341
      %v381 = vmul.f32 %v325, %v341
      %v382 = vmul.f32 %v326, %v341
      %v383 = vmul.f32 %v327, %v341
      %v384 = vmul.f32 %v328, %v341
      %v385 = vmul.f32 %v329, %v341
      %v386 = vmul.f32 %v330, %v341
      %v387 = vmul.f32 %v331, %v341
      %v388 = vmul.f32 %v332, %v341
      %v389 = vmul.f32 %v333, %v341
      %v390 = vmul.f32 %v334, %v341
      %v391 = vmul.f32 %v335, %v341
      %v392 = vlaneseq
      %v393 = vshrl.u32 %v392, 7
      %v394 = vsub.s32 0, %v393
      %v395 = vrot.slane %v337, %v394
      %v396 = vadd.f32 %v342, %v395
      %v397 = vadd.f32 %v343, %v395
      %v398 = vadd.f32 %v344, %v395
      %v399 = vadd.f32 %v345, %v395
      %v400 = vadd.f32 %v346, %v395
      %v401 = vadd.f32 %v347, %v395
      %v402 = vadd.f32 %v348, %v395
      %v403 = vadd.f32 %v349, %v395
      %v404 = vadd.f32 %v350, %v395
      %v405 = vadd.f32 %v351, %v395
      %v406 = vadd.f32 %v352, %v395
      %v407 = vadd.f32 %v353, %v395
      %v408 = vadd.f32 %v354, %v395
      %v409 = vadd.f32 %v355, %v395
      %v410 = vadd.f32 %v356, %v395
      %v411 = vadd.f32 %v357, %v395
      %v412 = vadd.f32 %v358, %v395
      %v413 = vadd.f32 %v359, %v395
      %v414 = vadd.f32 %v360, %v395
      %v415 = vadd.f32 %v361, %v395
      %v416 = vadd.f32 %v362, %v395
      %v417 = vadd.f32 %v363, %v395
      %v418 = vadd.f32 %v364, %v395
      %v419 = vadd.f32 %v365, %v395
      %v420 = vadd.f32 %v366, %v395
      %v421 = vadd.f32 %v367, %v395
      %v422 = vadd.f32 %v368, %v395
      %v423 = vadd.f32 %v369, %v395
      %v424 = vadd.f32 %v370, %v395
      %v425 = vadd.f32 %v371, %v395
      %v426 = vadd.f32 %v372, %v395
      %v427 = vadd.f32 %v373, %v395
      %v428 = vadd.f32 %v374, %v395
      %v429 = vadd.f32 %v375, %v395
      %v430 = vadd.f32 %v376, %v395
      %v431 = vadd.f32 %v377, %v395
      %v432 = vadd.f32 %v378, %v395
      %v433 = vadd.f32 %v379, %v395
      %v434 = vadd.f32 %v380, %v395
      %v435 = vadd.f32 %v381, %v395
      %v436 = vadd.f32 %v382, %v395
      %v437 = vadd.f32 %v383, %v395
      %v438 = vadd.f32 %v384, %v395
      %v439 = vadd.f32 %v385, %v395
      %v440 = vadd.f32 %v386, %v395
      %v441 = vadd.f32 %v387, %v395
      %v442 = vadd.f32 %v388, %v395
      %v443 = vadd.f32 %v389, %v395
      %v444 = vadd.f32 %v390, %v395
      %v445 = vadd.f32 %v391, %v395
      %v446 = vmul.f32 %v396, 0.5
      %v447 = vmul.f32 %v397, 0.5
      %v448 = vmul.f32 %v398, 0.5
      %v449 = vmul.f32 %v399, 0.5
      %v450 = vmul.f32 %v400, 0.5
      %v451 = vmul.f32 %v401, 0.5
      %v452 = vmul.f32 %v402, 0.5
      %v453 = vmul.f32 %v403, 0.5
      %v454 = vmul.f32 %v404, 0.5
      %v455 = vmul.f32 %v405, 0.5
      %v456 = vmul.f32 %v406, 0.5
      %v457 = vmul.f32 %v407, 0.5
      %v458 = vmul.f32 %v408, 0.5
      %v459 = vmul.f32 %v409, 0.5
      %v460 = vmul.f32 %v410, 0.5
      %v461 = vmul.f32 %v411, 0.5
      %v462 = vmul.f32 %v412, 0.5
      %v463 = vmul.f32 %v413, 0.5
      %v464 = vmul.f32 %v414, 0.5
      %v465 = vmul.f32 %v415, 0.5
      %v466 = vmul.f32 %v416, 0.5
      %v467 = vmul.f32 %v417, 0.5
      %v468 = vmul.f32 %v418, 0.5
      %v469 = vmul.f32 %v419, 0.5
      %v470 = vmul.f32 %v420, 0.5
      %v471 = vmul.f32 %v421, 0.5
      %v472 = vmul.f32 %v422, 0.5
      %v473 = vmul.f32 %v423, 0.5
      %v474 = vmul.f32 %v424, 0.5
      %v475 = vmul.f32 %v425, 0.5
      %v476 = vmul.f32 %v426, 0.5
      %v477 = vmul.f32 %v427, 0.5
      %v478 = vmul.f32 %v428, 0.5
      %v479 = vmul.f32 %v429, 0.5
      %v480 = vmul.f32 %v430, 0.5
      %v481 = vmul.f32 %v431, 0.5
      %v482 = vmul.f32 %v432, 0.5
      %v483 = vmul.f32 %v433, 0.5
      %v484 = vmul.f32 %v434, 0.5
      %v485 = vmul.f32 %v435, 0.5
      %v486 = vmul.f32 %v436, 0.5
      %v487 = vmul.f32 %v437, 0.5
      %v488 = vmul.f32 %v438, 0.5
      %v489 = vmul.f32 %v439, 0.5
      %v490 = vmul.f32 %v440, 0.5
      %v491 = vmul.f32 %v441, 0.5
      %v492 = vmul.f32 %v442, 0.5
      %v493 = vmul.f32 %v443, 0.5
      %v494 = vmul.f32 %v444, 0.5
      %v495 = vmul.f32 %v445, 0.5
      %v496 = vmul.f32 %v396, 0.70710677
      %v497 = vmul.f32 %v397, 0.70710677
      %v498 = vmul.f32 %v398, 0.70710677
      %v499 = vmul.f32 %v399, 0.70710677
      %v500 = vmul.f32 %v400, 0.70710677
      %v501 = vmul.f32 %v401, 0.70710677
      %v502 = vmul.f32 %v402, 0.70710677
      %v503 = vmul.f32 %v403, 0.70710677
      %v504 = vmul.f32 %v404, 0.70710677
      %v505 = vmul.f32 %v405, 0.70710677
      %v506 = vmul.f32 %v406, 0.70710677
      %v507 = vmul.f32 %v407, 0.70710677
      %v508 = vmul.f32 %v408, 0.70710677
      %v509 = vmul.f32 %v409, 0.70710677
      %v510 = vmul.f32 %v410, 0.70710677
      %v511 = vmul.f32 %v411, 0.70710677
      %v512 = vmul.f32 %v412, 0.70710677
      %v513 = vmul.f32 %v413, 0.70710677
      %v514 = vmul.f32 %v414, 0.70710677
      %v515 = vmul.f32 %v415, 0.70710677
      %v516 = vmul.f32 %v416, 0.70710677
      %v517 = vmul.f32 %v417, 0.70710677
      %v518 = vmul.f32 %v418, 0.70710677
      %v519 = vmul.f32 %v419, 0.70710677
      %v520 = vmul.f32 %v420, 0.70710677
      %v521 = vmul.f32 %v421, 0.70710677
      %v522 = vmul.f32 %v422, 0.70710677
      %v523 = vmul.f32 %v423, 0.70710677
      %v524 = vmul.f32 %v424, 0.70710677
      %v525 = vmul.f32 %v425, 0.70710677
      %v526 = vmul.f32 %v426, 0.70710677
      %v527 = vmul.f32 %v427, 0.70710677
      %v528 = vmul.f32 %v428, 0.70710677
      %v529 = vmul.f32 %v429, 0.70710677
      %v530 = vmul.f32 %v430, 0.70710677
      %v531 = vmul.f32 %v431, 0.70710677
      %v532 = vmul.f32 %v432, 0.70710677
      %v533 = vmul.f32 %v433, 0.70710677
      %v534 = vmul.f32 %v434, 0.70710677
      %v535 = vmul.f32 %v435, 0.70710677
      %v536 = vmul.f32 %v436, 0.70710677
      %v537 = vmul.f32 %v437, 0.70710677
      %v538 = vmul.f32 %v438, 0.70710677
      %v539 = vmul.f32 %v439, 0.70710677
      %v540 = vmul.f32 %v440, 0.70710677
      %v541 = vmul.f32 %v441, 0.70710677
      %v542 = vmul.f32 %v442, 0.70710677
      %v543 = vmul.f32 %v443, 0.70710677
      %v544 = vmul.f32 %v444, 0.70710677
      %v545 = vmul.f32 %v445, 0.70710677
      %v546 = vand.u32 2147483647, %v496
      %v547 = vand.u32 2147483647, %v497
      %v548 = vand.u32 2147483647, %v498
      %v549 = vand.u32 2147483647, %v499
      %v550 = vand.u32 2147483647, %v500
      %v551 = vand.u32 2147483647, %v501
      %v552 = vand.u32 2147483647, %v502
      %v553 = vand.u32 2147483647, %v503
      %v554 = vand.u32 2147483647, %v504
      %v555 = vand.u32 2147483647, %v505
      %v556 = vand.u32 2147483647, %v506
      %v557 = vand.u32 2147483647, %v507
      %v558 = vand.u32 2147483647, %v508
      %v559 = vand.u32 2147483647, %v509
      %v560 = vand.u32 2147483647, %v510
      %v561 = vand.u32 2147483647, %v511
      %v562 = vand.u32 2147483647, %v512
      %v563 = vand.u32 2147483647, %v513
      %v564 = vand.u32 2147483647, %v514
      %v565 = vand.u32 2147483647, %v515
      %v566 = vand.u32 2147483647, %v516
      %v567 = vand.u32 2147483647, %v517
      %v568 = vand.u32 2147483647, %v518
      %v569 = vand.u32 2147483647, %v519
      %v570 = vand.u32 2147483647, %v520
      %v571 = vand.u32 2147483647, %v521
      %v572 = vand.u32 2147483647, %v522
      %v573 = vand.u32 2147483647, %v523
      %v574 = vand.u32 2147483647, %v524
      %v575 = vand.u32 2147483647, %v525
      %v576 = vand.u32 2147483647, %v526
      %v577 = vand.u32 2147483647, %v527
      %v578 = vand.u32 2147483647, %v528
      %v579 = vand.u32 2147483647, %v529
      %v580 = vand.u32 2147483647, %v530
      %v581 = vand.u32 2147483647, %v531
      %v582 = vand.u32 2147483647, %v532
      %v583 = vand.u32 2147483647, %v533
      %v584 = vand.u32 2147483647, %v534
      %v585 = vand.u32 2147483647, %v535
      %v586 = vand.u32 2147483647, %v536
      %v587 = vand.u32 2147483647, %v537
      %v588 = vand.u32 2147483647, %v538
      %v589 = vand.u32 2147483647, %v539
      %v590 = vand.u32 2147483647, %v540
      %v591 = vand.u32 2147483647, %v541
      %v592 = vand.u32 2147483647, %v542
      %v593 = vand.u32 2147483647, %v543
      %v594 = vand.u32 2147483647, %v544
      %v595 = vand.u32 2147483647, %v545
      %v596 = vmul.f32 %v546, 0.3275911
      %v597 = vmul.f32 %v547, 0.3275911
      %v598 = vmul.f32 %v548, 0.3275911
      %v599 = vmul.f32 %v549, 0.3275911
      %v600 = vmul.f32 %v550, 0.3275911
      %v601 = vmul.f32 %v551, 0.3275911
      %v602 = vmul.f32 %v552, 0.3275911
      %v603 = vmul.f32 %v553, 0.3275911
      %v604 = vmul.f32 %v554, 0.3275911
      %v605 = vmul.f32 %v555, 0.3275911
      %v606 = vmul.f32 %v556, 0.3275911
      %v607 = vmul.f32 %v557, 0.3275911
      %v608 = vmul.f32 %v558, 0.3275911
      %v609 = vmul.f32 %v559, 0.3275911
      %v610 = vmul.f32 %v560, 0.3275911
      %v611 = vmul.f32 %v561, 0.3275911
      %v612 = vmul.f32 %v562, 0.3275911
      %v613 = vmul.f32 %v563, 0.3275911
      %v614 = vmul.f32 %v564, 0.3275911
      %v615 = vmul.f32 %v565, 0.3275911
      %v616 = vmul.f32 %v566, 0.3275911
      %v617 = vmul.f32 %v567, 0.3275911
      %v618 = vmul.f32 %v568, 0.3275911
      %v619 = vmul.f32 %v569, 0.3275911
      %v620 = vmul.f32 %v570, 0.3275911
      %v621 = vmul.f32 %v571, 0.3275911
      %v622 = vmul.f32 %v572, 0.3275911
      %v623 = vmul.f32 %v573, 0.3275911
      %v624 = vmul.f32 %v574, 0.3275911
      %v625 = vmul.f32 %v575, 0.3275911
      %v626 = vmul.f32 %v576, 0.3275911
      %v627 = vmul.f32 %v577, 0.3275911
      %v628 = vmul.f32 %v578, 0.3275911
      %v629 = vmul.f32 %v579, 0.3275911
      %v630 = vmul.f32 %v580, 0.3275911
      %v631 = vmul.f32 %v581, 0.3275911
      %v632 = vmul.f32 %v582, 0.3275911
      %v633 = vmul.f32 %v583, 0.3275911
      %v634 = vmul.f32 %v584, 0.3275911
      %v635 = vmul.f32 %v585, 0.3275911
      %v636 = vmul.f32 %v586, 0.3275911
      %v637 = vmul.f32 %v587, 0.3275911
      %v638 = vmul.f32 %v588, 0.3275911
      %v639 = vmul.f32 %v589, 0.3275911
      %v640 = vmul.f32 %v590, 0.3275911
      %v641 = vmul.f32 %v591, 0.3275911
      %v642 = vmul.f32 %v592, 0.3275911
      %v643 = vmul.f32 %v593, 0.3275911
      %v644 = vmul.f32 %v594, 0.3275911
      %v645 = vmul.f32 %v595, 0.3275911
      %v646 = vadd.f32 %v596, 1.0
      %v647 = vadd.f32 %v597, 1.0
      %v648 = vadd.f32 %v598, 1.0
      %v649 = vadd.f32 %v599, 1.0
      %v650 = vadd.f32 %v600, 1.0
      %v651 = vadd.f32 %v601, 1.0
      %v652 = vadd.f32 %v602, 1.0
      %v653 = vadd.f32 %v603, 1.0
      %v654 = vadd.f32 %v604, 1.0
      %v655 = vadd.f32 %v605, 1.0
      %v656 = vadd.f32 %v606, 1.0
      %v657 = vadd.f32 %v607, 1.0
      %v658 = vadd.f32 %v608, 1.0
      %v659 = vadd.f32 %v609, 1.0
      %v660 = vadd.f32 %v610, 1.0
      %v661 = vadd.f32 %v611, 1.0
      %v662 = vadd.f32 %v612, 1.0
      %v663 = vadd.f32 %v613, 1.0
      %v664 = vadd.f32 %v614, 1.0
      %v665 = vadd.f32 %v615, 1.0
      %v666 = vadd.f32 %v616, 1.0
      %v667 = vadd.f32 %v617, 1.0
      %v668 = vadd.f32 %v618, 1.0
      %v669 = vadd.f32 %v619, 1.0
      %v670 = vadd.f32 %v620, 1.0
      %v671 = vadd.f32 %v621, 1.0
      %v672 = vadd.f32 %v622, 1.0
      %v673 = vadd.f32 %v623, 1.0
      %v674 = vadd.f32 %v624, 1.0
      %v675 = vadd.f32 %v625, 1.0
      %v676 = vadd.f32 %v626, 1.0
      %v677 = vadd.f32 %v627, 1.0
      %v678 = vadd.f32 %v628, 1.0
      %v679 = vadd.f32 %v629, 1.0
      %v680 = vadd.f32 %v630, 1.0
      %v681 = vadd.f32 %v631, 1.0
      %v682 = vadd.f32 %v632, 1.0
      %v683 = vadd.f32 %v633, 1.0
      %v684 = vadd.f32 %v634, 1.0
      %v685 = vadd.f32 %v635, 1.0
      %v686 = vadd.f32 %v636, 1.0
      %v687 = vadd.f32 %v637, 1.0
      %v688 = vadd.f32 %v638, 1.0
      %v689 = vadd.f32 %v639, 1.0
      %v690 = vadd.f32 %v640, 1.0
      %v691 = vadd.f32 %v641, 1.0
      %v692 = vadd.f32 %v642, 1.0
      %v693 = vadd.f32 %v643, 1.0
      %v694 = vadd.f32 %v644, 1.0
      %v695 = vadd.f32 %v645, 1.0
      %v696 = vrcp.pop %v646
      %v697 = vrcp.pop %v647
      %v698 = vrcp.pop %v648
      %v699 = vrcp.pop %v649
      %v700 = vrcp.pop %v650
      %v701 = vrcp.pop %v651
      %v702 = vrcp.pop %v652
      %v703 = vrcp.pop %v653
      %v704 = vrcp.pop %v654
      %v705 = vrcp.pop %v655
      %v706 = vrcp.pop %v656
      %v707 = vrcp.pop %v657
      %v708 = vrcp.pop %v658
      %v709 = vrcp.pop %v659
      %v710 = vrcp.pop %v660
      %v711 = vrcp.pop %v661
      %v712 = vrcp.pop %v662
      %v713 = vrcp.pop %v663
      %v714 = vrcp.pop %v664
      %v715 = vrcp.pop %v665
      %v716 = vrcp.pop %v666
      %v717 = vrcp.pop %v667
      %v718 = vrcp.pop %v668
      %v719 = vrcp.pop %v669
      %v720 = vrcp.pop %v670
      %v721 = vrcp.pop %v671
      %v722 = vrcp.pop %v672
      %v723 = vrcp.pop %v673
      %v724 = vrcp.pop %v674
      %v725 = vrcp.pop %v675
      %v726 = vrcp.pop %v676
      %v727 = vrcp.pop %v677
      %v728 = vrcp.pop %v678
      %v729 = vrcp.pop %v679
      %v730 = vrcp.pop %v680
      %v731 = vrcp.pop %v681
      %v732 = vrcp.pop %v682
      %v733 = vrcp.pop %v683
      %v734 = vrcp.pop %v684
      %v735 = vrcp.pop %v685
      %v736 = vrcp.pop %v686
      %v737 = vrcp.pop %v687
      %v738 = vrcp.pop %v688
      %v739 = vrcp.pop %v689
      %v740 = vrcp.pop %v690
      %v741 = vrcp.pop %v691
      %v742 = vrcp.pop %v692
      %v743 = vrcp.pop %v693
      %v744 = vrcp.pop %v694
      %v745 = vrcp.pop %v695
      %v746 = vmul.f32 %v696, 1.0614054
      %v747 = vmul.f32 %v697, 1.0614054
      %v748 = vmul.f32 %v698, 1.0614054
      %v749 = vmul.f32 %v699, 1.0614054
      %v750 = vmul.f32 %v700, 1.0614054
      %v751 = vmul.f32 %v701, 1.0614054
      %v752 = vmul.f32 %v702, 1.0614054
      %v753 = vmul.f32 %v703, 1.0614054
      %v754 = vmul.f32 %v704, 1.0614054
      %v755 = vmul.f32 %v705, 1.0614054
      %v756 = vmul.f32 %v706, 1.0614054
      %v757 = vmul.f32 %v707, 1.0614054
      %v758 = vmul.f32 %v708, 1.0614054
      %v759 = vmul.f32 %v709, 1.0614054
      %v760 = vmul.f32 %v710, 1.0614054
      %v761 = vmul.f32 %v711, 1.0614054
      %v762 = vmul.f32 %v712, 1.0614054
      %v763 = vmul.f32 %v713, 1.0614054
      %v764 = vmul.f32 %v714, 1.0614054
      %v765 = vmul.f32 %v715, 1.0614054
      %v766 = vmul.f32 %v716, 1.0614054
      %v767 = vmul.f32 %v717, 1.0614054
      %v768 = vmul.f32 %v718, 1.0614054
      %v769 = vmul.f32 %v719, 1.0614054
      %v770 = vmul.f32 %v720, 1.0614054
      %v771 = vmul.f32 %v721, 1.0614054
      %v772 = vmul.f32 %v722, 1.0614054
      %v773 = vmul.f32 %v723, 1.0614054
      %v774 = vmul.f32 %v724, 1.0614054
      %v775 = vmul.f32 %v725, 1.0614054
      %v776 = vmul.f32 %v726, 1.0614054
      %v777 = vmul.f32 %v727, 1.0614054
      %v778 = vmul.f32 %v728, 1.0614054
      %v779 = vmul.f32 %v729, 1.0614054
      %v780 = vmul.f32 %v730, 1.0614054
      %v781 = vmul.f32 %v731, 1.0614054
      %v782 = vmul.f32 %v732, 1.0614054
      %v783 = vmul.f32 %v733, 1.0614054
      %v784 = vmul.f32 %v734, 1.0614054
      %v785 = vmul.f32 %v735, 1.0614054
      %v786 = vmul.f32 %v736, 1.0614054
      %v787 = vmul.f32 %v737, 1.0614054
      %v788 = vmul.f32 %v738, 1.0614054
      %v789 = vmul.f32 %v739, 1.0614054
      %v790 = vmul.f32 %v740, 1.0614054
      %v791 = vmul.f32 %v741, 1.0614054
      %v792 = vmul.f32 %v742, 1.0614054
      %v793 = vmul.f32 %v743, 1.0614054
      %v794 = vmul.f32 %v744, 1.0614054
      %v795 = vmul.f32 %v745, 1.0614054
      %v796 = vadd.f32 %v746, -1.4531521
      %v797 = vadd.f32 %v747, -1.4531521
      %v798 = vadd.f32 %v748, -1.4531521
      %v799 = vadd.f32 %v749, -1.4531521
      %v800 = vadd.f32 %v750, -1.4531521
      %v801 = vadd.f32 %v751, -1.4531521
      %v802 = vadd.f32 %v752, -1.4531521
      %v803 = vadd.f32 %v753, -1.4531521
      %v804 = vadd.f32 %v754, -1.4531521
      %v805 = vadd.f32 %v755, -1.4531521
      %v806 = vadd.f32 %v756, -1.4531521
      %v807 = vadd.f32 %v757, -1.4531521
      %v808 = vadd.f32 %v758, -1.4531521
      %v809 = vadd.f32 %v759, -1.4531521
      %v810 = vadd.f32 %v760, -1.4531521
      %v811 = vadd.f32 %v761, -1.4531521
      %v812 = vadd.f32 %v762, -1.4531521
      %v813 = vadd.f32 %v763, -1.4531521
      %v814 = vadd.f32 %v764, -1.4531521
      %v815 = vadd.f32 %v765, -1.4531521
      %v816 = vadd.f32 %v766, -1.4531521
      %v817 = vadd.f32 %v767, -1.4531521
      %v818 = vadd.f32 %v768, -1.4531521
      %v819 = vadd.f32 %v769, -1.4531521
      %v820 = vadd.f32 %v770, -1.4531521
      %v821 = vadd.f32 %v771, -1.4531521
      %v822 = vadd.f32 %v772, -1.4531521
      %v823 = vadd.f32 %v773, -1.4531521
      %v824 = vadd.f32 %v774, -1.4531521
      %v825 = vadd.f32 %v775, -1.4531521
      %v826 = vadd.f32 %v776, -1.4531521
      %v827 = vadd.f32 %v777, -1.4531521
      %v828 = vadd.f32 %v778, -1.4531521
      %v829 = vadd.f32 %v779, -1.4531521
      %v830 = vadd.f32 %v780, -1.4531521
      %v831 = vadd.f32 %v781, -1.4531521
      %v832 = vadd.f32 %v782, -1.4531521
      %v833 = vadd.f32 %v783, -1.4531521
      %v834 = vadd.f32 %v784, -1.4531521
      %v835 = vadd.f32 %v785, -1.4531521
      %v836 = vadd.f32 %v786, -1.4531521
      %v837 = vadd.f32 %v787, -1.4531521
      %v838 = vadd.f32 %v788, -1.4531521
      %v839 = vadd.f32 %v789, -1.4531521
      %v840 = vadd.f32 %v790, -1.4531521
      %v841 = vadd.f32 %v791, -1.4531521
      %v842 = vadd.f32 %v792, -1.4531521
      %v843 = vadd.f32 %v793, -1.4531521
      %v844 = vadd.f32 %v794, -1.4531521
      %v845 = vadd.f32 %v795, -1.4531521
      %v846 = vmul.f32 %v696, %v796
      %v847 = vmul.f32 %v697, %v797
      %v848 = vmul.f32 %v698, %v798
      %v849 = vmul.f32 %v699, %v799
      %v850 = vmul.f32 %v700, %v800
      %v851 = vmul.f32 %v701, %v801
      %v852 = vmul.f32 %v702, %v802
      %v853 = vmul.f32 %v703, %v803
      %v854 = vmul.f32 %v704, %v804
      %v855 = vmul.f32 %v705, %v805
      %v856 = vmul.f32 %v706, %v806
      %v857 = vmul.f32 %v707, %v807
      %v858 = vmul.f32 %v708, %v808
      %v859 = vmul.f32 %v709, %v809
      %v860 = vmul.f32 %v710, %v810
      %v861 = vmul.f32 %v711, %v811
      %v862 = vmul.f32 %v712, %v812
      %v863 = vmul.f32 %v713, %v813
      %v864 = vmul.f32 %v714, %v814
      %v865 = vmul.f32 %v715, %v815
      %v866 = vmul.f32 %v716, %v816
      %v867 = vmul.f32 %v717, %v817
      %v868 = vmul.f32 %v718, %v818
      %v869 = vmul.f32 %v719, %v819
      %v870 = vmul.f32 %v720, %v820
      %v871 = vmul.f32 %v721, %v821
      %v872 = vmul.f32 %v722, %v822
      %v873 = vmul.f32 %v723, %v823
      %v874 = vmul.f32 %v724, %v824
      %v875 = vmul.f32 %v725, %v825
      %v876 = vmul.f32 %v726, %v826
      %v877 = vmul.f32 %v727, %v827
      %v878 = vmul.f32 %v728, %v828
      %v879 = vmul.f32 %v729, %v829
      %v880 = vmul.f32 %v730, %v830
      %v881 = vmul.f32 %v731, %v831
      %v882 = vmul.f32 %v732, %v832
      %v883 = vmul.f32 %v733, %v833
      %v884 = vmul.f32 %v734, %v834
      %v885 = vmul.f32 %v735, %v835
      %v886 = vmul.f32 %v736, %v836
      %v887 = vmul.f32 %v737, %v837
      %v888 = vmul.f32 %v738, %v838
      %v889 = vmul.f32 %v739, %v839
      %v890 = vmul.f32 %v740, %v840
      %v891 = vmul.f32 %v741, %v841
      %v892 = vmul.f32 %v742, %v842
      %v893 = vmul.f32 %v743, %v843
      %v894 = vmul.f32 %v744, %v844
      %v895 = vmul.f32 %v745, %v845
      %v896 = vadd.f32 %v846, 1.4214138
      %v897 = vadd.f32 %v847, 1.4214138
      %v898 = vadd.f32 %v848, 1.4214138
      %v899 = vadd.f32 %v849, 1.4214138
      %v900 = vadd.f32 %v850, 1.4214138
      %v901 = vadd.f32 %v851, 1.4214138
      %v902 = vadd.f32 %v852, 1.4214138
      %v903 = vadd.f32 %v853, 1.4214138
      %v904 = vadd.f32 %v854, 1.4214138
      %v905 = vadd.f32 %v855, 1.4214138
      %v906 = vadd.f32 %v856, 1.4214138
      %v907 = vadd.f32 %v857, 1.4214138
      %v908 = vadd.f32 %v858, 1.4214138
      %v909 = vadd.f32 %v859, 1.4214138
      %v910 = vadd.f32 %v860, 1.4214138
      %v911 = vadd.f32 %v861, 1.4214138
      %v912 = vadd.f32 %v862, 1.4214138
      %v913 = vadd.f32 %v863, 1.4214138
      %v914 = vadd.f32 %v864, 1.4214138
      %v915 = vadd.f32 %v865, 1.4214138
      %v916 = vadd.f32 %v866, 1.4214138
      %v917 = vadd.f32 %v867, 1.4214138
      %v918 = vadd.f32 %v868, 1.4214138
      %v919 = vadd.f32 %v869, 1.4214138
      %v920 = vadd.f32 %v870, 1.4214138
      %v921 = vadd.f32 %v871, 1.4214138
      %v922 = vadd.f32 %v872, 1.4214138
      %v923 = vadd.f32 %v873, 1.4214138
      %v924 = vadd.f32 %v874, 1.4214138
      %v925 = vadd.f32 %v875, 1.4214138
      %v926 = vadd.f32 %v876, 1.4214138
      %v927 = vadd.f32 %v877, 1.4214138
      %v928 = vadd.f32 %v878, 1.4214138
      %v929 = vadd.f32 %v879, 1.4214138
      %v930 = vadd.f32 %v880, 1.4214138
      %v931 = vadd.f32 %v881, 1.4214138
      %v932 = vadd.f32 %v882, 1.4214138
      %v933 = vadd.f32 %v883, 1.4214138
      %v934 = vadd.f32 %v884, 1.4214138
      %v935 = vadd.f32 %v885, 1.4214138
      %v936 = vadd.f32 %v886, 1.4214138
      %v937 = vadd.f32 %v887, 1.4214138
      %v938 = vadd.f32 %v888, 1.4214138
      %v939 = vadd.f32 %v889, 1.4214138
      %v940 = vadd.f32 %v890, 1.4214138
      %v941 = vadd.f32 %v891, 1.4214138
      %v942 = vadd.f32 %v892, 1.4214138
      %v943 = vadd.f32 %v893, 1.4214138
      %v944 = vadd.f32 %v894, 1.4214138
      %v945 = vadd.f32 %v895, 1.4214138
      %v946 = vmul.f32 %v696, %v896
      %v947 = vmul.f32 %v697, %v897
      %v948 = vmul.f32 %v698, %v898
      %v949 = vmul.f32 %v699, %v899
      %v950 = vmul.f32 %v700, %v900
      %v951 = vmul.f32 %v701, %v901
      %v952 = vmul.f32 %v702, %v902
      %v953 = vmul.f32 %v703, %v903
      %v954 = vmul.f32 %v704, %v904
      %v955 = vmul.f32 %v705, %v905
      %v956 = vmul.f32 %v706, %v906
      %v957 = vmul.f32 %v707, %v907
      %v958 = vmul.f32 %v708, %v908
      %v959 = vmul.f32 %v709, %v909
      %v960 = vmul.f32 %v710, %v910
      %v961 = vmul.f32 %v711, %v911
      %v962 = vmul.f32 %v712, %v912
      %v963 = vmul.f32 %v713, %v913
      %v964 = vmul.f32 %v714, %v914
      %v965 = vmul.f32 %v715, %v915
      %v966 = vmul.f32 %v716, %v916
      %v967 = vmul.f32 %v717, %v917
      %v968 = vmul.f32 %v718, %v918
      %v969 = vmul.f32 %v719, %v919
      %v970 = vmul.f32 %v720, %v920
      %v971 = vmul.f32 %v721, %v921
      %v972 = vmul.f32 %v722, %v922
      %v973 = vmul.f32 %v723, %v923
      %v974 = vmul.f32 %v724, %v924
      %v975 = vmul.f32 %v725, %v925
      %v976 = vmul.f32 %v726, %v926
      %v977 = vmul.f32 %v727, %v927
      %v978 = vmul.f32 %v728, %v928
      %v979 = vmul.f32 %v729, %v929
      %v980 = vmul.f32 %v730, %v930
      %v981 = vmul.f32 %v731, %v931
      %v982 = vmul.f32 %v732, %v932
      %v983 = vmul.f32 %v733, %v933
      %v984 = vmul.f32 %v734, %v934
      %v985 = vmul.f32 %v735, %v935
      %v986 = vmul.f32 %v736, %v936
      %v987 = vmul.f32 %v737, %v937
      %v988 = vmul.f32 %v738, %v938
      %v989 = vmul.f32 %v739, %v939
      %v990 = vmul.f32 %v740, %v940
      %v991 = vmul.f32 %v741, %v941
      %v992 = vmul.f32 %v742, %v942
      %v993 = vmul.f32 %v743, %v943
      %v994 = vmul.f32 %v744, %v944
      %v995 = vmul.f32 %v745, %v945
      %v996 = vadd.f32 %v946, -0.28449672
      %v997 = vadd.f32 %v947, -0.28449672
      %v998 = vadd.f32 %v948, -0.28449672
      %v999 = vadd.f32 %v949, -0.28449672
      %v1000 = vadd.f32 %v950, -0.28449672
      %v1001 = vadd.f32 %v951, -0.28449672
      %v1002 = vadd.f32 %v952, -0.28449672
      %v1003 = vadd.f32 %v953, -0.28449672
      %v1004 = vadd.f32 %v954, -0.28449672
      %v1005 = vadd.f32 %v955, -0.28449672
      %v1006 = vadd.f32 %v956, -0.28449672
      %v1007 = vadd.f32 %v957, -0.28449672
      %v1008 = vadd.f32 %v958, -0.28449672
      %v1009 = vadd.f32 %v959, -0.28449672
      %v1010 = vadd.f32 %v960, -0.28449672
      %v1011 = vadd.f32 %v961, -0.28449672
      %v1012 = vadd.f32 %v962, -0.28449672
      %v1013 = vadd.f32 %v963, -0.28449672
      %v1014 = vadd.f32 %v964, -0.28449672
      %v1015 = vadd.f32 %v965, -0.28449672
      %v1016 = vadd.f32 %v966, -0.28449672
      %v1017 = vadd.f32 %v967, -0.28449672
      %v1018 = vadd.f32 %v968, -0.28449672
      %v1019 = vadd.f32 %v969, -0.28449672
      %v1020 = vadd.f32 %v970, -0.28449672
      %v1021 = vadd.f32 %v971, -0.28449672
      %v1022 = vadd.f32 %v972, -0.28449672
      %v1023 = vadd.f32 %v973, -0.28449672
      %v1024 = vadd.f32 %v974, -0.28449672
      %v1025 = vadd.f32 %v975, -0.28449672
      %v1026 = vadd.f32 %v976, -0.28449672
      %v1027 = vadd.f32 %v977, -0.28449672
      %v1028 = vadd.f32 %v978, -0.28449672
      %v1029 = vadd.f32 %v979, -0.28449672
      %v1030 = vadd.f32 %v980, -0.28449672
      %v1031 = vadd.f32 %v981, -0.28449672
      %v1032 = vadd.f32 %v982, -0.28449672
      %v1033 = vadd.f32 %v983, -0.28449672
      %v1034 = vadd.f32 %v984, -0.28449672
      %v1035 = vadd.f32 %v985, -0.28449672
      %v1036 = vadd.f32 %v986, -0.28449672
      %v1037 = vadd.f32 %v987, -0.28449672
      %v1038 = vadd.f32 %v988, -0.28449672
      %v1039 = vadd.f32 %v989, -0.28449672
      %v1040 = vadd.f32 %v990, -0.28449672
      %v1041 = vadd.f32 %v991, -0.28449672
      %v1042 = vadd.f32 %v992, -0.28449672
      %v1043 = vadd.f32 %v993, -0.28449672
      %v1044 = vadd.f32 %v994, -0.28449672
      %v1045 = vadd.f32 %v995, -0.28449672
      %v1046 = vmul.f32 %v696, %v996
      %v1047 = vmul.f32 %v697, %v997
      %v1048 = vmul.f32 %v698, %v998
      %v1049 = vmul.f32 %v699, %v999
      %v1050 = vmul.f32 %v700, %v1000
      %v1051 = vmul.f32 %v701, %v1001
      %v1052 = vmul.f32 %v702, %v1002
      %v1053 = vmul.f32 %v703, %v1003
      %v1054 = vmul.f32 %v704, %v1004
      %v1055 = vmul.f32 %v705, %v1005
      %v1056 = vmul.f32 %v706, %v1006
      %v1057 = vmul.f32 %v707, %v1007
      %v1058 = vmul.f32 %v708, %v1008
      %v1059 = vmul.f32 %v709, %v1009
      %v1060 = vmul.f32 %v710, %v1010
      %v1061 = vmul.f32 %v711, %v1011
      %v1062 = vmul.f32 %v712, %v1012
      %v1063 = vmul.f32 %v713, %v1013
      %v1064 = vmul.f32 %v714, %v1014
      %v1065 = vmul.f32 %v715, %v1015
      %v1066 = vmul.f32 %v716, %v1016
      %v1067 = vmul.f32 %v717, %v1017
      %v1068 = vmul.f32 %v718, %v1018
      %v1069 = vmul.f32 %v719, %v1019
      %v1070 = vmul.f32 %v720, %v1020
      %v1071 = vmul.f32 %v721, %v1021
      %v1072 = vmul.f32 %v722, %v1022
      %v1073 = vmul.f32 %v723, %v1023
      %v1074 = vmul.f32 %v724, %v1024
      %v1075 = vmul.f32 %v725, %v1025
      %v1076 = vmul.f32 %v726, %v1026
      %v1077 = vmul.f32 %v727, %v1027
      %v1078 = vmul.f32 %v728, %v1028
      %v1079 = vmul.f32 %v729, %v1029
      %v1080 = vmul.f32 %v730, %v1030
      %v1081 = vmul.f32 %v731, %v1031
      %v1082 = vmul.f32 %v732, %v1032
      %v1083 = vmul.f32 %v733, %v1033
      %v1084 = vmul.f32 %v734, %v1034
      %v1085 = vmul.f32 %v735, %v1035
      %v1086 = vmul.f32 %v736, %v1036
      %v1087 = vmul.f32 %v737, %v1037
      %v1088 = vmul.f32 %v738, %v1038
      %v1089 = vmul.f32 %v739, %v1039
      %v1090 = vmul.f32 %v740, %v1040
      %v1091 = vmul.f32 %v741, %v1041
      %v1092 = vmul.f32 %v742, %v1042
      %v1093 = vmul.f32 %v743, %v1043
      %v1094 = vmul.f32 %v744, %v1044
      %v1095 = vmul.f32 %v745, %v1045
      %v1096 = vadd.f32 %v1046, 0.2548296
      %v1097 = vadd.f32 %v1047, 0.2548296
      %v1098 = vadd.f32 %v1048, 0.2548296
      %v1099 = vadd.f32 %v1049, 0.2548296
      %v1100 = vadd.f32 %v1050, 0.2548296
      %v1101 = vadd.f32 %v1051, 0.2548296
      %v1102 = vadd.f32 %v1052, 0.2548296
      %v1103 = vadd.f32 %v1053, 0.2548296
      %v1104 = vadd.f32 %v1054, 0.2548296
      %v1105 = vadd.f32 %v1055, 0.2548296
      %v1106 = vadd.f32 %v1056, 0.2548296
      %v1107 = vadd.f32 %v1057, 0.2548296
      %v1108 = vadd.f32 %v1058, 0.2548296
      %v1109 = vadd.f32 %v1059, 0.2548296
      %v1110 = vadd.f32 %v1060, 0.2548296
      %v1111 = vadd.f32 %v1061, 0.2548296
      %v1112 = vadd.f32 %v1062, 0.2548296
      %v1113 = vadd.f32 %v1063, 0.2548296
      %v1114 = vadd.f32 %v1064, 0.2548296
      %v1115 = vadd.f32 %v1065, 0.2548296
      %v1116 = vadd.f32 %v1066, 0.2548296
      %v1117 = vadd.f32 %v1067, 0.2548296
      %v1118 = vadd.f32 %v1068, 0.2548296
      %v1119 = vadd.f32 %v1069, 0.2548296
      %v1120 = vadd.f32 %v1070, 0.2548296
      %v1121 = vadd.f32 %v1071, 0.2548296
      %v1122 = vadd.f32 %v1072, 0.2548296
      %v1123 = vadd.f32 %v1073, 0.2548296
      %v1124 = vadd.f32 %v1074, 0.2548296
      %v1125 = vadd.f32 %v1075, 0.2548296
      %v1126 = vadd.f32 %v1076, 0.2548296
      %v1127 = vadd.f32 %v1077, 0.2548296
      %v1128 = vadd.f32 %v1078, 0.2548296
      %v1129 = vadd.f32 %v1079, 0.2548296
      %v1130 = vadd.f32 %v1080, 0.2548296
      %v1131 = vadd.f32 %v1081, 0.2548296
      %v1132 = vadd.f32 %v1082, 0.2548296
      %v1133 = vadd.f32 %v1083, 0.2548296
      %v1134 = vadd.f32 %v1084, 0.2548296
      %v1135 = vadd.f32 %v1085, 0.2548296
      %v1136 = vadd.f32 %v1086, 0.2548296
      %v1137 = vadd.f32 %v1087, 0.2548296
      %v1138 = vadd.f32 %v1088, 0.2548296
      %v1139 = vadd.f32 %v1089, 0.2548296
      %v1140 = vadd.f32 %v1090, 0.2548296
      %v1141 = vadd.f32 %v1091, 0.2548296
      %v1142 = vadd.f32 %v1092, 0.2548296
      %v1143 = vadd.f32 %v1093, 0.2548296
      %v1144 = vadd.f32 %v1094, 0.2548296
      %v1145 = vadd.f32 %v1095, 0.2548296
      %v1146 = vmul.f32 %v696, %v1096
      %v1147 = vmul.f32 %v697, %v1097
      %v1148 = vmul.f32 %v698, %v1098
      %v1149 = vmul.f32 %v699, %v1099
      %v1150 = vmul.f32 %v700, %v1100
      %v1151 = vmul.f32 %v701, %v1101
      %v1152 = vmul.f32 %v702, %v1102
      %v1153 = vmul.f32 %v703, %v1103
      %v1154 = vmul.f32 %v704, %v1104
      %v1155 = vmul.f32 %v705, %v1105
      %v1156 = vmul.f32 %v706, %v1106
      %v1157 = vmul.f32 %v707, %v1107
      %v1158 = vmul.f32 %v708, %v1108
      %v1159 = vmul.f32 %v709, %v1109
      %v1160 = vmul.f32 %v710, %v1110
      %v1161 = vmul.f32 %v711, %v1111
      %v1162 = vmul.f32 %v712, %v1112
      %v1163 = vmul.f32 %v713, %v1113
      %v1164 = vmul.f32 %v714, %v1114
      %v1165 = vmul.f32 %v715, %v1115
      %v1166 = vmul.f32 %v716, %v1116
      %v1167 = vmul.f32 %v717, %v1117
      %v1168 = vmul.f32 %v718, %v1118
      %v1169 = vmul.f32 %v719, %v1119
      %v1170 = vmul.f32 %v720, %v1120
      %v1171 = vmul.f32 %v721, %v1121
      %v1172 = vmul.f32 %v722, %v1122
      %v1173 = vmul.f32 %v723, %v1123
      %v1174 = vmul.f32 %v724, %v1124
      %v1175 = vmul.f32 %v725, %v1125
      %v1176 = vmul.f32 %v726, %v1126
      %v1177 = vmul.f32 %v727, %v1127
      %v1178 = vmul.f32 %v728, %v1128
      %v1179 = vmul.f32 %v729, %v1129
      %v1180 = vmul.f32 %v730, %v1130
      %v1181 = vmul.f32 %v731, %v1131
      %v1182 = vmul.f32 %v732, %v1132
      %v1183 = vmul.f32 %v733, %v1133
      %v1184 = vmul.f32 %v734, %v1134
      %v1185 = vmul.f32 %v735, %v1135
      %v1186 = vmul.f32 %v736, %v1136
      %v1187 = vmul.f32 %v737, %v1137
      %v1188 = vmul.f32 %v738, %v1138
      %v1189 = vmul.f32 %v739, %v1139
      %v1190 = vmul.f32 %v740, %v1140
      %v1191 = vmul.f32 %v741, %v1141
      %v1192 = vmul.f32 %v742, %v1142
      %v1193 = vmul.f32 %v743, %v1143
      %v1194 = vmul.f32 %v744, %v1144
      %v1195 = vmul.f32 %v745, %v1145
      %v1196 = vsub.f32 0.0, %v546
      %v1197 = vsub.f32 0.0, %v547
      %v1198 = vsub.f32 0.0, %v548
      %v1199 = vsub.f32 0.0, %v549
      %v1200 = vsub.f32 0.0, %v550
      %v1201 = vsub.f32 0.0, %v551
      %v1202 = vsub.f32 0.0, %v552
      %v1203 = vsub.f32 0.0, %v553
      %v1204 = vsub.f32 0.0, %v554
      %v1205 = vsub.f32 0.0, %v555
      %v1206 = vsub.f32 0.0, %v556
      %v1207 = vsub.f32 0.0, %v557
      %v1208 = vsub.f32 0.0, %v558
      %v1209 = vsub.f32 0.0, %v559
      %v1210 = vsub.f32 0.0, %v560
      %v1211 = vsub.f32 0.0, %v561
      %v1212 = vsub.f32 0.0, %v562
      %v1213 = vsub.f32 0.0, %v563
      %v1214 = vsub.f32 0.0, %v564
      %v1215 = vsub.f32 0.0, %v565
      %v1216 = vsub.f32 0.0, %v566
      %v1217 = vsub.f32 0.0, %v567
      %v1218 = vsub.f32 0.0, %v568
      %v1219 = vsub.f32 0.0, %v569
      %v1220 = vsub.f32 0.0, %v570
      %v1221 = vsub.f32 0.0, %v571
      %v1222 = vsub.f32 0.0, %v572
      %v1223 = vsub.f32 0.0, %v573
      %v1224 = vsub.f32 0.0, %v574
      %v1225 = vsub.f32 0.0, %v575
      %v1226 = vsub.f32 0.0, %v576
      %v1227 = vsub.f32 0.0, %v577
      %v1228 = vsub.f32 0.0, %v578
      %v1229 = vsub.f32 0.0, %v579
      %v1230 = vsub.f32 0.0, %v580
      %v1231 = vsub.f32 0.0, %v581
      %v1232 = vsub.f32 0.0, %v582
      %v1233 = vsub.f32 0.0, %v583
      %v1234 = vsub.f32 0.0, %v584
      %v1235 = vsub.f32 0.0, %v585
      %v1236 = vsub.f32 0.0, %v586
      %v1237 = vsub.f32 0.0, %v587
      %v1238 = vsub.f32 0.0, %v588
      %v1239 = vsub.f32 0.0, %v589
      %v1240 = vsub.f32 0.0, %v590
      %v1241 = vsub.f32 0.0, %v591
      %v1242 = vsub.f32 0.0, %v592
      %v1243 = vsub.f32 0.0, %v593
      %v1244 = vsub.f32 0.0, %v594
      %v1245 = vsub.f32 0.0, %v595
      %v1246 = vmul.f32 %v1196, %v546
      %v1247 = vmul.f32 %v1197, %v547
      %v1248 = vmul.f32 %v1198, %v548
      %v1249 = vmul.f32 %v1199, %v549
      %v1250 = vmul.f32 %v1200, %v550
      %v1251 = vmul.f32 %v1201, %v551
      %v1252 = vmul.f32 %v1202, %v552
      %v1253 = vmul.f32 %v1203, %v553
      %v1254 = vmul.f32 %v1204, %v554
      %v1255 = vmul.f32 %v1205, %v555
      %v1256 = vmul.f32 %v1206, %v556
      %v1257 = vmul.f32 %v1207, %v557
      %v1258 = vmul.f32 %v1208, %v558
      %v1259 = vmul.f32 %v1209, %v559
      %v1260 = vmul.f32 %v1210, %v560
      %v1261 = vmul.f32 %v1211, %v561
      %v1262 = vmul.f32 %v1212, %v562
      %v1263 = vmul.f32 %v1213, %v563
      %v1264 = vmul.f32 %v1214, %v564
      %v1265 = vmul.f32 %v1215, %v565
      %v1266 = vmul.f32 %v1216, %v566
      %v1267 = vmul.f32 %v1217, %v567
      %v1268 = vmul.f32 %v1218, %v568
      %v1269 = vmul.f32 %v1219, %v569
      %v1270 = vmul.f32 %v1220, %v570
      %v1271 = vmul.f32 %v1221, %v571
      %v1272 = vmul.f32 %v1222, %v572
      %v1273 = vmul.f32 %v1223, %v573
      %v1274 = vmul.f32 %v1224, %v574
      %v1275 = vmul.f32 %v1225, %v575
      %v1276 = vmul.f32 %v1226, %v576
      %v1277 = vmul.f32 %v1227, %v577
      %v1278 = vmul.f32 %v1228, %v578
      %v1279 = vmul.f32 %v1229, %v579
      %v1280 = vmul.f32 %v1230, %v580
      %v1281 = vmul.f32 %v1231, %v581
      %v1282 = vmul.f32 %v1232, %v582
      %v1283 = vmul.f32 %v1233, %v583
      %v1284 = vmul.f32 %v1234, %v584
      %v1285 = vmul.f32 %v1235, %v585
      %v1286 = vmul.f32 %v1236, %v586
      %v1287 = vmul.f32 %v1237, %v587
      %v1288 = vmul.f32 %v1238, %v588
      %v1289 = vmul.f32 %v1239, %v589
      %v1290 = vmul.f32 %v1240, %v590
      %v1291 = vmul.f32 %v1241, %v591
      %v1292 = vmul.f32 %v1242, %v592
      %v1293 = vmul.f32 %v1243, %v593
      %v1294 = vmul.f32 %v1244, %v594
      %v1295 = vmul.f32 %v1245, %v595
      %v1296 = vmul.f32 %v1246, 1.442695
      %v1297 = vpow.pop %v1296
      %v1298 = vmul.f32 %v1247, 1.442695
      %v1299 = vpow.pop %v1298
      %v1300 = vmul.f32 %v1248, 1.442695
      %v1301 = vpow.pop %v1300
      %v1302 = vmul.f32 %v1249, 1.442695
      %v1303 = vpow.pop %v1302
      %v1304 = vmul.f32 %v1250, 1.442695
      %v1305 = vpow.pop %v1304
      %v1306 = vmul.f32 %v1251, 1.442695
      %v1307 = vpow.pop %v1306
      %v1308 = vmul.f32 %v1252, 1.442695
      %v1309 = vpow.pop %v1308
      %v1310 = vmul.f32 %v1253, 1.442695
      %v1311 = vpow.pop %v1310
      %v1312 = vmul.f32 %v1254, 1.442695
      %v1313 = vpow.pop %v1312
      %v1314 = vmul.f32 %v1255, 1.442695
      %v1315 = vpow.pop %v1314
      %v1316 = vmul.f32 %v1256, 1.442695
      %v1317 = vpow.pop %v1316
      %v1318 = vmul.f32 %v1257, 1.442695
      %v1319 = vpow.pop %v1318
      %v1320 = vmul.f32 %v1258, 1.442695
      %v1321 = vpow.pop %v1320
      %v1322 = vmul.f32 %v1259, 1.442695
      %v1323 = vpow.pop %v1322
      %v1324 = vmul.f32 %v1260, 1.442695
      %v1325 = vpow.pop %v1324
      %v1326 = vmul.f32 %v1261, 1.442695
      %v1327 = vpow.pop %v1326
      %v1328 = vmul.f32 %v1262, 1.442695
      %v1329 = vpow.pop %v1328
      %v1330 = vmul.f32 %v1263, 1.442695
      %v1331 = vpow.pop %v1330
      %v1332 = vmul.f32 %v1264, 1.442695
      %v1333 = vpow.pop %v1332
      %v1334 = vmul.f32 %v1265, 1.442695
      %v1335 = vpow.pop %v1334
      %v1336 = vmul.f32 %v1266, 1.442695
      %v1337 = vpow.pop %v1336
      %v1338 = vmul.f32 %v1267, 1.442695
      %v1339 = vpow.pop %v1338
      %v1340 = vmul.f32 %v1268, 1.442695
      %v1341 = vpow.pop %v1340
      %v1342 = vmul.f32 %v1269, 1.442695
      %v1343 = vpow.pop %v1342
      %v1344 = vmul.f32 %v1270, 1.442695
      %v1345 = vpow.pop %v1344
      %v1346 = vmul.f32 %v1271, 1.442695
      %v1347 = vpow.pop %v1346
      %v1348 = vmul.f32 %v1272, 1.442695
      %v1349 = vpow.pop %v1348
      %v1350 = vmul.f32 %v1273, 1.442695
      %v1351 = vpow.pop %v1350
      %v1352 = vmul.f32 %v1274, 1.442695
      %v1353 = vpow.pop %v1352
      %v1354 = vmul.f32 %v1275, 1.442695
      %v1355 = vpow.pop %v1354
      %v1356 = vmul.f32 %v1276, 1.442695
      %v1357 = vpow.pop %v1356
      %v1358 = vmul.f32 %v1277, 1.442695
      %v1359 = vpow.pop %v1358
      %v1360 = vmul.f32 %v1278, 1.442695
      %v1361 = vpow.pop %v1360
      %v1362 = vmul.f32 %v1279, 1.442695
      %v1363 = vpow.pop %v1362
      %v1364 = vmul.f32 %v1280, 1.442695
      %v1365 = vpow.pop %v1364
      %v1366 = vmul.f32 %v1281, 1.442695
      %v1367 = vpow.pop %v1366
      %v1368 = vmul.f32 %v1282, 1.442695
      %v1369 = vpow.pop %v1368
      %v1370 = vmul.f32 %v1283, 1.442695
      %v1371 = vpow.pop %v1370
      %v1372 = vmul.f32 %v1284, 1.442695
      %v1373 = vpow.pop %v1372
      %v1374 = vmul.f32 %v1285, 1.442695
      %v1375 = vpow.pop %v1374
      %v1376 = vmul.f32 %v1286, 1.442695
      %v1377 = vpow.pop %v1376
      %v1378 = vmul.f32 %v1287, 1.442695
      %v1379 = vpow.pop %v1378
      %v1380 = vmul.f32 %v1288, 1.442695
      %v1381 = vpow.pop %v1380
      %v1382 = vmul.f32 %v1289, 1.442695
      %v1383 = vpow.pop %v1382
      %v1384 = vmul.f32 %v1290, 1.442695
      %v1385 = vpow.pop %v1384
      %v1386 = vmul.f32 %v1291, 1.442695
      %v1387 = vpow.pop %v1386
      %v1388 = vmul.f32 %v1292, 1.442695
      %v1389 = vpow.pop %v1388
      %v1390 = vmul.f32 %v1293, 1.442695
      %v1391 = vpow.pop %v1390
      %v1392 = vmul.f32 %v1294, 1.442695
      %v1393 = vpow.pop %v1392
      %v1394 = vmul.f32 %v1295, 1.442695
      %v1395 = vpow.pop %v1394
      %v1396 = vmul.f32 %v1146, %v1297
      %v1397 = vmul.f32 %v1147, %v1299
      %v1398 = vmul.f32 %v1148, %v1301
      %v1399 = vmul.f32 %v1149, %v1303
      %v1400 = vmul.f32 %v1150, %v1305
      %v1401 = vmul.f32 %v1151, %v1307
      %v1402 = vmul.f32 %v1152, %v1309
      %v1403 = vmul.f32 %v1153, %v1311
      %v1404 = vmul.f32 %v1154, %v1313
      %v1405 = vmul.f32 %v1155, %v1315
      %v1406 = vmul.f32 %v1156, %v1317
      %v1407 = vmul.f32 %v1157, %v1319
      %v1408 = vmul.f32 %v1158, %v1321
      %v1409 = vmul.f32 %v1159, %v1323
      %v1410 = vmul.f32 %v1160, %v1325
      %v1411 = vmul.f32 %v1161, %v1327
      %v1412 = vmul.f32 %v1162, %v1329
      %v1413 = vmul.f32 %v1163, %v1331
      %v1414 = vmul.f32 %v1164, %v1333
      %v1415 = vmul.f32 %v1165, %v1335
      %v1416 = vmul.f32 %v1166, %v1337
      %v1417 = vmul.f32 %v1167, %v1339
      %v1418 = vmul.f32 %v1168, %v1341
      %v1419 = vmul.f32 %v1169, %v1343
      %v1420 = vmul.f32 %v1170, %v1345
      %v1421 = vmul.f32 %v1171, %v1347
      %v1422 = vmul.f32 %v1172, %v1349
      %v1423 = vmul.f32 %v1173, %v1351
      %v1424 = vmul.f32 %v1174, %v1353
      %v1425 = vmul.f32 %v1175, %v1355
      %v1426 = vmul.f32 %v1176, %v1357
      %v1427 = vmul.f32 %v1177, %v1359
      %v1428 = vmul.f32 %v1178, %v1361
      %v1429 = vmul.f32 %v1179, %v1363
      %v1430 = vmul.f32 %v1180, %v1365
      %v1431 = vmul.f32 %v1181, %v1367
      %v1432 = vmul.f32 %v1182, %v1369
      %v1433 = vmul.f32 %v1183, %v1371
      %v1434 = vmul.f32 %v1184, %v1373
      %v1435 = vmul.f32 %v1185, %v1375
      %v1436 = vmul.f32 %v1186, %v1377
      %v1437 = vmul.f32 %v1187, %v1379
      %v1438 = vmul.f32 %v1188, %v1381
      %v1439 = vmul.f32 %v1189, %v1383
      %v1440 = vmul.f32 %v1190, %v1385
      %v1441 = vmul.f32 %v1191, %v1387
      %v1442 = vmul.f32 %v1192, %v1389
      %v1443 = vmul.f32 %v1193, %v1391
      %v1444 = vmul.f32 %v1194, %v1393
      %v1445 = vmul.f32 %v1195, %v1395
      %v1446 = vsub.f32 1.0, %v1396
      %v1447 = vsub.f32 1.0, %v1397
      %v1448 = vsub.f32 1.0, %v1398
      %v1449 = vsub.f32 1.0, %v1399
      %v1450 = vsub.f32 1.0, %v1400
      %v1451 = vsub.f32 1.0, %v1401
      %v1452 = vsub.f32 1.0, %v1402
      %v1453 = vsub.f32 1.0, %v1403
      %v1454 = vsub.f32 1.0, %v1404
      %v1455 = vsub.f32 1.0, %v1405
      %v1456 = vsub.f32 1.0, %v1406
      %v1457 = vsub.f32 1.0, %v1407
      %v1458 = vsub.f32 1.0, %v1408
      %v1459 = vsub.f32 1.0, %v1409
      %v1460 = vsub.f32 1.0, %v1410
      %v1461 = vsub.f32 1.0, %v1411
      %v1462 = vsub.f32 1.0, %v1412
      %v1463 = vsub.f32 1.0, %v1413
      %v1464 = vsub.f32 1.0, %v1414
      %v1465 = vsub.f32 1.0, %v1415
      %v1466 = vsub.f32 1.0, %v1416
      %v1467 = vsub.f32 1.0, %v1417
      %v1468 = vsub.f32 1.0, %v1418
      %v1469 = vsub.f32 1.0, %v1419
      %v1470 = vsub.f32 1.0, %v1420
      %v1471 = vsub.f32 1.0, %v1421
      %v1472 = vsub.f32 1.0, %v1422
      %v1473 = vsub.f32 1.0, %v1423
      %v1474 = vsub.f32 1.0, %v1424
      %v1475 = vsub.f32 1.0, %v1425
      %v1476 = vsub.f32 1.0, %v1426
      %v1477 = vsub.f32 1.0, %v1427
      %v1478 = vsub.f32 1.0, %v1428
      %v1479 = vsub.f32 1.0, %v1429
      %v1480 = vsub.f32 1.0, %v1430
      %v1481 = vsub.f32 1.0, %v1431
      %v1482 = vsub.f32 1.0, %v1432
      %v1483 = vsub.f32 1.0, %v1433
      %v1484 = vsub.f32 1.0, %v1434
      %v1485 = vsub.f32 1.0, %v1435
      %v1486 = vsub.f32 1.0, %v1436
      %v1487 = vsub.f32 1.0, %v1437
      %v1488 = vsub.f32 1.0, %v1438
      %v1489 = vsub.f32 1.0, %v1439
      %v1490 = vsub.f32 1.0, %v1440
      %v1491 = vsub.f32 1.0, %v1441
      %v1492 = vsub.f32 1.0, %v1442
      %v1493 = vsub.f32 1.0, %v1443
      %v1494 = vsub.f32 1.0, %v1444
      %v1495 = vsub.f32 1.0, %v1445
      %vm1496 = vcmp.ge.f32.partialorder %v496, 0.0
      %vm1497 = vcmp.ge.f32.partialorder %v497, 0.0
      %vm1498 = vcmp.ge.f32.partialorder %v498, 0.0
      %vm1499 = vcmp.ge.f32.partialorder %v499, 0.0
      %vm1500 = vcmp.ge.f32.partialorder %v500, 0.0
      %vm1501 = vcmp.ge.f32.partialorder %v501, 0.0
      %vm1502 = vcmp.ge.f32.partialorder %v502, 0.0
      %vm1503 = vcmp.ge.f32.partialorder %v503, 0.0
      %vm1504 = vcmp.ge.f32.partialorder %v504, 0.0
      %vm1505 = vcmp.ge.f32.partialorder %v505, 0.0
      %vm1506 = vcmp.ge.f32.partialorder %v506, 0.0
      %vm1507 = vcmp.ge.f32.partialorder %v507, 0.0
      %vm1508 = vcmp.ge.f32.partialorder %v508, 0.0
      %vm1509 = vcmp.ge.f32.partialorder %v509, 0.0
      %vm1510 = vcmp.ge.f32.partialorder %v510, 0.0
      %vm1511 = vcmp.ge.f32.partialorder %v511, 0.0
      %vm1512 = vcmp.ge.f32.partialorder %v512, 0.0
      %vm1513 = vcmp.ge.f32.partialorder %v513, 0.0
      %vm1514 = vcmp.ge.f32.partialorder %v514, 0.0
      %vm1515 = vcmp.ge.f32.partialorder %v515, 0.0
      %vm1516 = vcmp.ge.f32.partialorder %v516, 0.0
      %vm1517 = vcmp.ge.f32.partialorder %v517, 0.0
      %vm1518 = vcmp.ge.f32.partialorder %v518, 0.0
      %vm1519 = vcmp.ge.f32.partialorder %v519, 0.0
      %vm1520 = vcmp.ge.f32.partialorder %v520, 0.0
      %vm1521 = vcmp.ge.f32.partialorder %v521, 0.0
      %vm1522 = vcmp.ge.f32.partialorder %v522, 0.0
      %vm1523 = vcmp.ge.f32.partialorder %v523, 0.0
      %vm1524 = vcmp.ge.f32.partialorder %v524, 0.0
      %vm1525 = vcmp.ge.f32.partialorder %v525, 0.0
      %vm1526 = vcmp.ge.f32.partialorder %v526, 0.0
      %vm1527 = vcmp.ge.f32.partialorder %v527, 0.0
      %vm1528 = vcmp.ge.f32.partialorder %v528, 0.0
      %vm1529 = vcmp.ge.f32.partialorder %v529, 0.0
      %vm1530 = vcmp.ge.f32.partialorder %v530, 0.0
      %vm1531 = vcmp.ge.f32.partialorder %v531, 0.0
      %vm1532 = vcmp.ge.f32.partialorder %v532, 0.0
      %vm1533 = vcmp.ge.f32.partialorder %v533, 0.0
      %vm1534 = vcmp.ge.f32.partialorder %v534, 0.0
      %vm1535 = vcmp.ge.f32.partialorder %v535, 0.0
      %vm1536 = vcmp.ge.f32.partialorder %v536, 0.0
      %vm1537 = vcmp.ge.f32.partialorder %v537, 0.0
      %vm1538 = vcmp.ge.f32.partialorder %v538, 0.0
      %vm1539 = vcmp.ge.f32.partialorder %v539, 0.0
      %vm1540 = vcmp.ge.f32.partialorder %v540, 0.0
      %vm1541 = vcmp.ge.f32.partialorder %v541, 0.0
      %vm1542 = vcmp.ge.f32.partialorder %v542, 0.0
      %vm1543 = vcmp.ge.f32.partialorder %v543, 0.0
      %vm1544 = vcmp.ge.f32.partialorder %v544, 0.0
      %vm1545 = vcmp.ge.f32.partialorder %v545, 0.0
      %v1546 = vsub.f32 0.0, %v1446
      %v1547 = vsub.f32 0.0, %v1447
      %v1548 = vsub.f32 0.0, %v1448
      %v1549 = vsub.f32 0.0, %v1449
      %v1550 = vsub.f32 0.0, %v1450
      %v1551 = vsub.f32 0.0, %v1451
      %v1552 = vsub.f32 0.0, %v1452
      %v1553 = vsub.f32 0.0, %v1453
      %v1554 = vsub.f32 0.0, %v1454
      %v1555 = vsub.f32 0.0, %v1455
      %v1556 = vsub.f32 0.0, %v1456
      %v1557 = vsub.f32 0.0, %v1457
      %v1558 = vsub.f32 0.0, %v1458
      %v1559 = vsub.f32 0.0, %v1459
      %v1560 = vsub.f32 0.0, %v1460
      %v1561 = vsub.f32 0.0, %v1461
      %v1562 = vsub.f32 0.0, %v1462
      %v1563 = vsub.f32 0.0, %v1463
      %v1564 = vsub.f32 0.0, %v1464
      %v1565 = vsub.f32 0.0, %v1465
      %v1566 = vsub.f32 0.0, %v1466
      %v1567 = vsub.f32 0.0, %v1467
      %v1568 = vsub.f32 0.0, %v1468
      %v1569 = vsub.f32 0.0, %v1469
      %v1570 = vsub.f32 0.0, %v1470
      %v1571 = vsub.f32 0.0, %v1471
      %v1572 = vsub.f32 0.0, %v1472
      %v1573 = vsub.f32 0.0, %v1473
      %v1574 = vsub.f32 0.0, %v1474
      %v1575 = vsub.f32 0.0, %v1475
      %v1576 = vsub.f32 0.0, %v1476
      %v1577 = vsub.f32 0.0, %v1477
      %v1578 = vsub.f32 0.0, %v1478
      %v1579 = vsub.f32 0.0, %v1479
      %v1580 = vsub.f32 0.0, %v1480
      %v1581 = vsub.f32 0.0, %v1481
      %v1582 = vsub.f32 0.0, %v1482
      %v1583 = vsub.f32 0.0, %v1483
      %v1584 = vsub.f32 0.0, %v1484
      %v1585 = vsub.f32 0.0, %v1485
      %v1586 = vsub.f32 0.0, %v1486
      %v1587 = vsub.f32 0.0, %v1487
      %v1588 = vsub.f32 0.0, %v1488
      %v1589 = vsub.f32 0.0, %v1489
      %v1590 = vsub.f32 0.0, %v1490
      %v1591 = vsub.f32 0.0, %v1491
      %v1592 = vsub.f32 0.0, %v1492
      %v1593 = vsub.f32 0.0, %v1493
      %v1594 = vsub.f32 0.0, %v1494
      %v1595 = vsub.f32 0.0, %v1495
      %v1596 = vsel %vm1496, %v1446, %v1546
      %v1597 = vsel %vm1497, %v1447, %v1547
      %v1598 = vsel %vm1498, %v1448, %v1548
      %v1599 = vsel %vm1499, %v1449, %v1549
      %v1600 = vsel %vm1500, %v1450, %v1550
      %v1601 = vsel %vm1501, %v1451, %v1551
      %v1602 = vsel %vm1502, %v1452, %v1552
      %v1603 = vsel %vm1503, %v1453, %v1553
      %v1604 = vsel %vm1504, %v1454, %v1554
      %v1605 = vsel %vm1505, %v1455, %v1555
      %v1606 = vsel %vm1506, %v1456, %v1556
      %v1607 = vsel %vm1507, %v1457, %v1557
      %v1608 = vsel %vm1508, %v1458, %v1558
      %v1609 = vsel %vm1509, %v1459, %v1559
      %v1610 = vsel %vm1510, %v1460, %v1560
      %v1611 = vsel %vm1511, %v1461, %v1561
      %v1612 = vsel %vm1512, %v1462, %v1562
      %v1613 = vsel %vm1513, %v1463, %v1563
      %v1614 = vsel %vm1514, %v1464, %v1564
      %v1615 = vsel %vm1515, %v1465, %v1565
      %v1616 = vsel %vm1516, %v1466, %v1566
      %v1617 = vsel %vm1517, %v1467, %v1567
      %v1618 = vsel %vm1518, %v1468, %v1568
      %v1619 = vsel %vm1519, %v1469, %v1569
      %v1620 = vsel %vm1520, %v1470, %v1570
      %v1621 = vsel %vm1521, %v1471, %v1571
      %v1622 = vsel %vm1522, %v1472, %v1572
      %v1623 = vsel %vm1523, %v1473, %v1573
      %v1624 = vsel %vm1524, %v1474, %v1574
      %v1625 = vsel %vm1525, %v1475, %v1575
      %v1626 = vsel %vm1526, %v1476, %v1576
      %v1627 = vsel %vm1527, %v1477, %v1577
      %v1628 = vsel %vm1528, %v1478, %v1578
      %v1629 = vsel %vm1529, %v1479, %v1579
      %v1630 = vsel %vm1530, %v1480, %v1580
      %v1631 = vsel %vm1531, %v1481, %v1581
      %v1632 = vsel %vm1532, %v1482, %v1582
      %v1633 = vsel %vm1533, %v1483, %v1583
      %v1634 = vsel %vm1534, %v1484, %v1584
      %v1635 = vsel %vm1535, %v1485, %v1585
      %v1636 = vsel %vm1536, %v1486, %v1586
      %v1637 = vsel %vm1537, %v1487, %v1587
      %v1638 = vsel %vm1538, %v1488, %v1588
      %v1639 = vsel %vm1539, %v1489, %v1589
      %v1640 = vsel %vm1540, %v1490, %v1590
      %v1641 = vsel %vm1541, %v1491, %v1591
      %v1642 = vsel %vm1542, %v1492, %v1592
      %v1643 = vsel %vm1543, %v1493, %v1593
      %v1644 = vsel %vm1544, %v1494, %v1594
      %v1645 = vsel %vm1545, %v1495, %v1595
      %v1646 = vadd.f32 %v1596, 1.0
      %v1647 = vadd.f32 %v1597, 1.0
      %v1648 = vadd.f32 %v1598, 1.0
      %v1649 = vadd.f32 %v1599, 1.0
      %v1650 = vadd.f32 %v1600, 1.0
      %v1651 = vadd.f32 %v1601, 1.0
      %v1652 = vadd.f32 %v1602, 1.0
      %v1653 = vadd.f32 %v1603, 1.0
      %v1654 = vadd.f32 %v1604, 1.0
      %v1655 = vadd.f32 %v1605, 1.0
      %v1656 = vadd.f32 %v1606, 1.0
      %v1657 = vadd.f32 %v1607, 1.0
      %v1658 = vadd.f32 %v1608, 1.0
      %v1659 = vadd.f32 %v1609, 1.0
      %v1660 = vadd.f32 %v1610, 1.0
      %v1661 = vadd.f32 %v1611, 1.0
      %v1662 = vadd.f32 %v1612, 1.0
      %v1663 = vadd.f32 %v1613, 1.0
      %v1664 = vadd.f32 %v1614, 1.0
      %v1665 = vadd.f32 %v1615, 1.0
      %v1666 = vadd.f32 %v1616, 1.0
      %v1667 = vadd.f32 %v1617, 1.0
      %v1668 = vadd.f32 %v1618, 1.0
      %v1669 = vadd.f32 %v1619, 1.0
      %v1670 = vadd.f32 %v1620, 1.0
      %v1671 = vadd.f32 %v1621, 1.0
      %v1672 = vadd.f32 %v1622, 1.0
      %v1673 = vadd.f32 %v1623, 1.0
      %v1674 = vadd.f32 %v1624, 1.0
      %v1675 = vadd.f32 %v1625, 1.0
      %v1676 = vadd.f32 %v1626, 1.0
      %v1677 = vadd.f32 %v1627, 1.0
      %v1678 = vadd.f32 %v1628, 1.0
      %v1679 = vadd.f32 %v1629, 1.0
      %v1680 = vadd.f32 %v1630, 1.0
      %v1681 = vadd.f32 %v1631, 1.0
      %v1682 = vadd.f32 %v1632, 1.0
      %v1683 = vadd.f32 %v1633, 1.0
      %v1684 = vadd.f32 %v1634, 1.0
      %v1685 = vadd.f32 %v1635, 1.0
      %v1686 = vadd.f32 %v1636, 1.0
      %v1687 = vadd.f32 %v1637, 1.0
      %v1688 = vadd.f32 %v1638, 1.0
      %v1689 = vadd.f32 %v1639, 1.0
      %v1690 = vadd.f32 %v1640, 1.0
      %v1691 = vadd.f32 %v1641, 1.0
      %v1692 = vadd.f32 %v1642, 1.0
      %v1693 = vadd.f32 %v1643, 1.0
      %v1694 = vadd.f32 %v1644, 1.0
      %v1695 = vadd.f32 %v1645, 1.0
      %v1696 = vmul.f32 %v446, %v1646
      %v1697 = vmul.f32 %v447, %v1647
      %v1698 = vmul.f32 %v448, %v1648
      %v1699 = vmul.f32 %v449, %v1649
      %v1700 = vmul.f32 %v450, %v1650
      %v1701 = vmul.f32 %v451, %v1651
      %v1702 = vmul.f32 %v452, %v1652
      %v1703 = vmul.f32 %v453, %v1653
      %v1704 = vmul.f32 %v454, %v1654
      %v1705 = vmul.f32 %v455, %v1655
      %v1706 = vmul.f32 %v456, %v1656
      %v1707 = vmul.f32 %v457, %v1657
      %v1708 = vmul.f32 %v458, %v1658
      %v1709 = vmul.f32 %v459, %v1659
      %v1710 = vmul.f32 %v460, %v1660
      %v1711 = vmul.f32 %v461, %v1661
      %v1712 = vmul.f32 %v462, %v1662
      %v1713 = vmul.f32 %v463, %v1663
      %v1714 = vmul.f32 %v464, %v1664
      %v1715 = vmul.f32 %v465, %v1665
      %v1716 = vmul.f32 %v466, %v1666
      %v1717 = vmul.f32 %v467, %v1667
      %v1718 = vmul.f32 %v468, %v1668
      %v1719 = vmul.f32 %v469, %v1669
      %v1720 = vmul.f32 %v470, %v1670
      %v1721 = vmul.f32 %v471, %v1671
      %v1722 = vmul.f32 %v472, %v1672
      %v1723 = vmul.f32 %v473, %v1673
      %v1724 = vmul.f32 %v474, %v1674
      %v1725 = vmul.f32 %v475, %v1675
      %v1726 = vmul.f32 %v476, %v1676
      %v1727 = vmul.f32 %v477, %v1677
      %v1728 = vmul.f32 %v478, %v1678
      %v1729 = vmul.f32 %v479, %v1679
      %v1730 = vmul.f32 %v480, %v1680
      %v1731 = vmul.f32 %v481, %v1681
      %v1732 = vmul.f32 %v482, %v1682
      %v1733 = vmul.f32 %v483, %v1683
      %v1734 = vmul.f32 %v484, %v1684
      %v1735 = vmul.f32 %v485, %v1685
      %v1736 = vmul.f32 %v486, %v1686
      %v1737 = vmul.f32 %v487, %v1687
      %v1738 = vmul.f32 %v488, %v1688
      %v1739 = vmul.f32 %v489, %v1689
      %v1740 = vmul.f32 %v490, %v1690
      %v1741 = vmul.f32 %v491, %v1691
      %v1742 = vmul.f32 %v492, %v1692
      %v1743 = vmul.f32 %v493, %v1693
      %v1744 = vmul.f32 %v494, %v1694
      %v1745 = vmul.f32 %v495, %v1695
      %v1746 = vpack.c.bf16 %v1697, %v1696
      %v1747 = vpack.c.bf16 %v1699, %v1698
      %v1748 = vpack.c.bf16 %v1700, %v1700
      %v1749 = vpack.c.bf16 %v1702, %v1701
      %v1750 = vpack.c.bf16 %v1704, %v1703
      %v1751 = vpack.c.bf16 %v1705, %v1705
      %v1752 = vpack.c.bf16 %v1707, %v1706
      %v1753 = vpack.c.bf16 %v1709, %v1708
      %v1754 = vpack.c.bf16 %v1710, %v1710
      %v1755 = vpack.c.bf16 %v1712, %v1711
      %v1756 = vpack.c.bf16 %v1714, %v1713
      %v1757 = vpack.c.bf16 %v1715, %v1715
      %v1758 = vpack.c.bf16 %v1717, %v1716
      %v1759 = vpack.c.bf16 %v1719, %v1718
      %v1760 = vpack.c.bf16 %v1720, %v1720
      %v1761 = vpack.c.bf16 %v1722, %v1721
      %v1762 = vpack.c.bf16 %v1724, %v1723
      %v1763 = vpack.c.bf16 %v1725, %v1725
      %v1764 = vpack.c.bf16 %v1727, %v1726
      %v1765 = vpack.c.bf16 %v1729, %v1728
      %v1766 = vpack.c.bf16 %v1730, %v1730
      %v1767 = vpack.c.bf16 %v1732, %v1731
      %v1768 = vpack.c.bf16 %v1734, %v1733
      %v1769 = vpack.c.bf16 %v1735, %v1735
      %v1770 = vpack.c.bf16 %v1737, %v1736
      %v1771 = vpack.c.bf16 %v1739, %v1738
      %v1772 = vpack.c.bf16 %v1740, %v1740
      %v1773 = vpack.c.bf16 %v1742, %v1741
      %v1774 = vpack.c.bf16 %v1744, %v1743
      %v1775 = vpack.c.bf16 %v1745, %v1745
      %v1776 = vld [vmem:[%s2] sm:$0xf]
      %v1777 = vld [vmem:[%s2 + $0x4] sm:$0xf]
      %v1778 = vld [vmem:[%s2 + $0x8] sm:$0xf]
      %v1779 = vld [vmem:[%s2 + $0xc] sm:$0xf]
      %v1780 = vld [vmem:[%s2 + $0x10] sm:$0xf]
      %v1781 = vld [vmem:[%s2 + $0x14] sm:$0xf]
      %v1782 = vld [vmem:[%s2 + $0x18] sm:$0xf]
      %v1783 = vld [vmem:[%s2 + $0x1c] sm:$0xf]
      %v1784 = vld [vmem:[%s2 + $0x20] sm:$0xf]
      %v1785 = vld [vmem:[%s2 + $0x24] sm:$0xf]
      %v1786 = vld [vmem:[%s2 + $0x28] sm:$0xf]
      %v1787 = vld [vmem:[%s2 + $0x2c] sm:$0xf]
      %v1788 = vld [vmem:[%s2 + $0x30] sm:$0xf]
      %v1789 = vld [vmem:[%s2 + $0x34] sm:$0xf]
      %v1790 = vld [vmem:[%s2 + $0x38] sm:$0xf]
      %v1791 = vld [vmem:[%s2 + $0x3c] sm:$0xf]
      %vm1792 = vsmask.f32 7424
      %v1794 = vshrl.u32 %v1746, 16
      %v1796 = vshll.u32 %v1746, 16
      %v1798 = vrot.slane %v1796, 1
      %v1799 = vor.u32 %v1794, %v1798
      %v1801 = vshll.u32 %v1747, 16
      %v1803 = vrot.slane %v1801, 1
      %v1804 = vsel %vm1792, %v1799, %v1803
      %v1805 = vshrl.u32 %v1747, 16
      %v1807 = vor.u32 %v1805, %v1803
      %v1809 = vshll.u32 %v1748, 16
      %v1811 = vrot.slane %v1809, 1
      %v1812 = vsel %vm1792, %v1807, %v1811
      %v1814 = vshrl.u32 %v1749, 16
      %v1816 = vshll.u32 %v1749, 16
      %v1818 = vrot.slane %v1816, 1
      %v1819 = vor.u32 %v1814, %v1818
      %v1821 = vshll.u32 %v1750, 16
      %v1823 = vrot.slane %v1821, 1
      %v1824 = vsel %vm1792, %v1819, %v1823
      %v1825 = vshrl.u32 %v1750, 16
      %v1827 = vor.u32 %v1825, %v1823
      %v1829 = vshll.u32 %v1751, 16
      %v1831 = vrot.slane %v1829, 1
      %v1832 = vsel %vm1792, %v1827, %v1831
      %v1834 = vshrl.u32 %v1752, 16
      %v1836 = vshll.u32 %v1752, 16
      %v1838 = vrot.slane %v1836, 1
      %v1839 = vor.u32 %v1834, %v1838
      %v1841 = vshll.u32 %v1753, 16
      %v1843 = vrot.slane %v1841, 1
      %v1844 = vsel %vm1792, %v1839, %v1843
      %v1845 = vshrl.u32 %v1753, 16
      %v1847 = vor.u32 %v1845, %v1843
      %v1849 = vshll.u32 %v1754, 16
      %v1851 = vrot.slane %v1849, 1
      %v1852 = vsel %vm1792, %v1847, %v1851
      %v1854 = vshrl.u32 %v1755, 16
      %v1856 = vshll.u32 %v1755, 16
      %v1858 = vrot.slane %v1856, 1
      %v1859 = vor.u32 %v1854, %v1858
      %v1861 = vshll.u32 %v1756, 16
      %v1863 = vrot.slane %v1861, 1
      %v1864 = vsel %vm1792, %v1859, %v1863
      %v1865 = vshrl.u32 %v1756, 16
      %v1867 = vor.u32 %v1865, %v1863
      %v1869 = vshll.u32 %v1757, 16
      %v1871 = vrot.slane %v1869, 1
      %v1872 = vsel %vm1792, %v1867, %v1871
      %v1874 = vshrl.u32 %v1758, 16
      %v1876 = vshll.u32 %v1758, 16
      %v1878 = vrot.slane %v1876, 1
      %v1879 = vor.u32 %v1874, %v1878
      %v1881 = vshll.u32 %v1759, 16
      %v1883 = vrot.slane %v1881, 1
      %v1884 = vsel %vm1792, %v1879, %v1883
      %v1885 = vshrl.u32 %v1759, 16
      %v1887 = vor.u32 %v1885, %v1883
      %v1889 = vshll.u32 %v1760, 16
      %v1891 = vrot.slane %v1889, 1
      %v1892 = vsel %vm1792, %v1887, %v1891
      %v1894 = vshrl.u32 %v1761, 16
      %v1896 = vshll.u32 %v1761, 16
      %v1898 = vrot.slane %v1896, 1
      %v1899 = vor.u32 %v1894, %v1898
      %v1901 = vshll.u32 %v1762, 16
      %v1903 = vrot.slane %v1901, 1
      %v1904 = vsel %vm1792, %v1899, %v1903
      %v1905 = vshrl.u32 %v1762, 16
      %v1907 = vor.u32 %v1905, %v1903
      %v1909 = vshll.u32 %v1763, 16
      %v1911 = vrot.slane %v1909, 1
      %v1912 = vsel %vm1792, %v1907, %v1911
      %v1914 = vshrl.u32 %v1764, 16
      %v1916 = vshll.u32 %v1764, 16
      %v1918 = vrot.slane %v1916, 1
      %v1919 = vor.u32 %v1914, %v1918
      %v1921 = vshll.u32 %v1765, 16
      %v1923 = vrot.slane %v1921, 1
      %v1924 = vsel %vm1792, %v1919, %v1923
      %v1925 = vshrl.u32 %v1765, 16
      %v1927 = vor.u32 %v1925, %v1923
      %v1929 = vshll.u32 %v1766, 16
      %v1931 = vrot.slane %v1929, 1
      %v1932 = vsel %vm1792, %v1927, %v1931
      %v1934 = vshrl.u32 %v1767, 16
      %v1936 = vshll.u32 %v1767, 16
      %v1938 = vrot.slane %v1936, 1
      %v1939 = vor.u32 %v1934, %v1938
      %v1941 = vshll.u32 %v1768, 16
      %v1943 = vrot.slane %v1941, 1
      %v1944 = vsel %vm1792, %v1939, %v1943
      %v1945 = vshrl.u32 %v1768, 16
      %v1947 = vor.u32 %v1945, %v1943
      %v1949 = vshll.u32 %v1769, 16
      %v1951 = vrot.slane %v1949, 1
      %v1952 = vsel %vm1792, %v1947, %v1951
      %s1969 = scalar_lea.vmem %s2, 64
      %v1970 = vld [vmem:[%s1969] sm:$0xf]
      %v1971 = vld [vmem:[%s1969 + $0x4] sm:$0xf]
      %v1972 = vld [vmem:[%s1969 + $0x8] sm:$0xf]
      %v1973 = vld [vmem:[%s1969 + $0xc] sm:$0xf]
      %v1974 = vld [vmem:[%s1969 + $0x10] sm:$0xf]
      %v1975 = vld [vmem:[%s1969 + $0x14] sm:$0xf]
      %v1976 = vld [vmem:[%s1969 + $0x18] sm:$0xf]
      %v1977 = vld [vmem:[%s1969 + $0x1c] sm:$0xf]
      %v1978 = vld [vmem:[%s1969 + $0x20] sm:$0xf]
      %v1979 = vld [vmem:[%s1969 + $0x24] sm:$0xf]
      %v1980 = vld [vmem:[%s1969 + $0x28] sm:$0xf]
      %v1981 = vld [vmem:[%s1969 + $0x2c] sm:$0xf]
      %v1982 = vld [vmem:[%s1969 + $0x30] sm:$0xf]
      %v1983 = vld [vmem:[%s1969 + $0x34] sm:$0xf]
      %v1984 = vld [vmem:[%s1969 + $0x38] sm:$0xf]
      %v1985 = vld [vmem:[%s1969 + $0x3c] sm:$0xf]
      %v2002 = vunpack.c.l.b16 %v1970
      %v2003 = vunpack.c.l.b16 %v1971
      %v2004 = vunpack.c.l.b16 %v1972
      %v2005 = vunpack.c.l.b16 %v1973
      %v2006 = vunpack.c.l.b16 %v1974
      %v2007 = vunpack.c.l.b16 %v1975
      %v2008 = vunpack.c.l.b16 %v1976
      %v2009 = vunpack.c.l.b16 %v1977
      %v2010 = vunpack.c.l.b16 %v1978
      %v2011 = vunpack.c.l.b16 %v1979
      %v2012 = vunpack.c.l.b16 %v1980
      %v2013 = vunpack.c.l.b16 %v1981
      %v2014 = vunpack.c.l.b16 %v1982
      %v2015 = vunpack.c.l.b16 %v1983
      %v2016 = vunpack.c.l.b16 %v1984
      %v2017 = vunpack.c.l.b16 %v1985
      %v2018 = vpack.c.b16 %v2003, %v2002
      %v2019 = vpack.c.b16 %v2005, %v2004
      %v2020 = vpack.c.b16 %v2007, %v2006
      %v2021 = vpack.c.b16 %v2009, %v2008
      %v2022 = vpack.c.b16 %v2011, %v2010
      %v2023 = vpack.c.b16 %v2013, %v2012
      %v2024 = vpack.c.b16 %v2015, %v2014
      %v2025 = vpack.c.b16 %v2017, %v2016
      %2034 = vmatprep.subr.bf16.mxu0 0
      %2035 = vmatpush1.bf16.msra.mxu0 %v2018
      %2036 = vmatprep.subr.bf16.mxu0 0
      %2037 = vmatpush1.bf16.msra.mxu0 %v2019
      %2038 = vmatprep.subr.bf16.mxu0 0
      %2039 = vmatpush1.bf16.msra.mxu0 %v2020
      %2040 = vmatprep.subr.bf16.mxu0 0
      %2041 = vmatpush1.bf16.msra.mxu0 %v2021
      %2042 = vmatprep.subr.bf16.mxu0 0
      %2043 = vmatpush1.bf16.msra.mxu0 %v2022
      %2044 = vmatprep.subr.bf16.mxu0 0
      %2045 = vmatpush1.bf16.msra.mxu0 %v2023
      %2046 = vmatprep.subr.bf16.mxu0 0
      %2047 = vmatpush1.bf16.msra.mxu0 %v2024
      %2048 = vmatprep.subr.bf16.mxu0 0
      %2049 = vmatpush1.bf16.msra.mxu0 %v2025
      %2050 = vmatprep.subr.bf16.mxu0 0
      %2051 = vmatpush1.bf16.msra.mxu0 0
      %2052 = vmatprep.subr.bf16.mxu0 0
      %2053 = vmatpush1.bf16.msra.mxu0 0
      %2054 = vmatprep.subr.bf16.mxu0 0
      %2055 = vmatpush1.bf16.msra.mxu0 0
      %2056 = vmatprep.subr.bf16.mxu0 0
      %2057 = vmatpush1.bf16.msra.mxu0 0
      %2058 = vmatprep.subr.bf16.mxu0 0
      %2059 = vmatpush1.bf16.msra.mxu0 0
      %2060 = vmatprep.subr.bf16.mxu0 0
      %2061 = vmatpush1.bf16.msra.mxu0 0
      %2062 = vmatprep.subr.bf16.mxu0 0
      %2063 = vmatpush1.bf16.msra.mxu0 0
      %2064 = vmatprep.subr.bf16.mxu0 0
      %2065 = vmatpush1.bf16.msra.mxu0 0
      %2066 = vmatprep.mubr.bf16.mxu0 0
      %2067 = vmatmul.mubr.bf16.gmra.mrb[0].mxu0 %v1804
      %v2068 = vpop.f32.mrb[0].mxu0
      %v2069 = vadd.f32 0.0, %v2068
      %v2070 = vpop.f32.mrb[0].mxu0
      %v2071 = vpop.f32.mrb[0].mxu0
      %v2072 = vadd.f32 0.0, %v2071
      %v2073 = vpop.f32.mrb[0].mxu0
      %2074 = vmatprep.mubr.bf16.mxu0 0
      %2075 = vmatmul.mubr.bf16.gmra.mrb[0].mxu0 %v1812
      %v2076 = vpop.f32.mrb[0].mxu0
      %v2077 = vadd.f32 0.0, %v2076
      %v2078 = vpop.f32.mrb[0].mxu0
      %v2079 = vpop.f32.mrb[0].mxu0
      %v2080 = vadd.f32 0.0, %v2079
      %v2081 = vpop.f32.mrb[0].mxu0
      %2082 = vmatprep.mubr.bf16.mxu0 0
      %2083 = vmatmul.mubr.bf16.gmra.mrb[0].mxu0 %v1824
      %v2084 = vpop.f32.mrb[0].mxu0
      %v2085 = vadd.f32 0.0, %v2084
      %v2086 = vpop.f32.mrb[0].mxu0
      %v2087 = vpop.f32.mrb[0].mxu0
      %v2088 = vadd.f32 0.0, %v2087
      %v2089 = vpop.f32.mrb[0].mxu0
      %2090 = vmatprep.mubr.bf16.mxu0 0
      %2091 = vmatmul.mubr.bf16.gmra.mrb[0].mxu0 %v1832
      %v2092 = vpop.f32.mrb[0].mxu0
      %v2093 = vadd.f32 0.0, %v2092
      %v2094 = vpop.f32.mrb[0].mxu0
      %v2095 = vpop.f32.mrb[0].mxu0
      %v2096 = vadd.f32 0.0, %v2095
      %v2097 = vpop.f32.mrb[0].mxu0
      %2098 = vmatprep.mubr.bf16.mxu0 0
      %2099 = vmatmul.mubr.bf16.gmra.mrb[0].mxu0 %v1844
      %v2100 = vpop.f32.mrb[0].mxu0
      %v2101 = vadd.f32 0.0, %v2100
      %v2102 = vpop.f32.mrb[0].mxu0
      %v2103 = vpop.f32.mrb[0].mxu0
      %v2104 = vadd.f32 0.0, %v2103
      %v2105 = vpop.f32.mrb[0].mxu0
      %2106 = vmatprep.mubr.bf16.mxu0 0
      %2107 = vmatmul.mubr.bf16.gmra.mrb[0].mxu0 %v1852
      %v2108 = vpop.f32.mrb[0].mxu0
      %v2109 = vadd.f32 0.0, %v2108
      %v2110 = vpop.f32.mrb[0].mxu0
      %v2111 = vpop.f32.mrb[0].mxu0
      %v2112 = vadd.f32 0.0, %v2111
      %v2113 = vpop.f32.mrb[0].mxu0
      %2114 = vmatprep.mubr.bf16.mxu0 0
      %2115 = vmatmul.mubr.bf16.gmra.mrb[0].mxu0 %v1864
      %v2116 = vpop.f32.mrb[0].mxu0
      %v2117 = vadd.f32 0.0, %v2116
      %v2118 = vpop.f32.mrb[0].mxu0
      %v2119 = vpop.f32.mrb[0].mxu0
      %v2120 = vadd.f32 0.0, %v2119
      %v2121 = vpop.f32.mrb[0].mxu0
      %2122 = vmatprep.mubr.bf16.mxu0 0
      %2123 = vmatmul.mubr.bf16.gmra.mrb[0].mxu0 %v1872
      %v2124 = vpop.f32.mrb[0].mxu0
      %v2125 = vadd.f32 0.0, %v2124
      %v2126 = vpop.f32.mrb[0].mxu0
      %v2127 = vpop.f32.mrb[0].mxu0
      %v2128 = vadd.f32 0.0, %v2127
      %v2129 = vpop.f32.mrb[0].mxu0
      %2130 = vmatprep.mubr.bf16.mxu0 0
      %2131 = vmatmul.mubr.bf16.gmra.mrb[0].mxu0 %v1884
      %v2132 = vpop.f32.mrb[0].mxu0
      %v2133 = vadd.f32 0.0, %v2132
      %v2134 = vpop.f32.mrb[0].mxu0
      %v2135 = vpop.f32.mrb[0].mxu0
      %v2136 = vadd.f32 0.0, %v2135
      %v2137 = vpop.f32.mrb[0].mxu0
      %2138 = vmatprep.mubr.bf16.mxu0 0
      %2139 = vmatmul.mubr.bf16.gmra.mrb[0].mxu0 %v1892
      %v2140 = vpop.f32.mrb[0].mxu0
      %v2141 = vadd.f32 0.0, %v2140
      %v2142 = vpop.f32.mrb[0].mxu0
      %v2143 = vpop.f32.mrb[0].mxu0
      %v2144 = vadd.f32 0.0, %v2143
      %v2145 = vpop.f32.mrb[0].mxu0
      %2146 = vmatprep.mubr.bf16.mxu0 0
      %2147 = vmatmul.mubr.bf16.gmra.mrb[0].mxu0 %v1904
      %v2148 = vpop.f32.mrb[0].mxu0
      %v2149 = vadd.f32 0.0, %v2148
      %v2150 = vpop.f32.mrb[0].mxu0
      %v2151 = vpop.f32.mrb[0].mxu0
      %v2152 = vadd.f32 0.0, %v2151
      %v2153 = vpop.f32.mrb[0].mxu0
      %2154 = vmatprep.mubr.bf16.mxu0 0
      %2155 = vmatmul.mubr.bf16.gmra.mrb[0].mxu0 %v1912
      %v2156 = vpop.f32.mrb[0].mxu0
      %v2157 = vadd.f32 0.0, %v2156
      %v2158 = vpop.f32.mrb[0].mxu0
      %v2159 = vpop.f32.mrb[0].mxu0
      %v2160 = vadd.f32 0.0, %v2159
      %v2161 = vpop.f32.mrb[0].mxu0
      %2162 = vmatprep.mubr.bf16.mxu0 0
      %2163 = vmatmul.mubr.bf16.gmra.mrb[0].mxu0 %v1924
      %v2164 = vpop.f32.mrb[0].mxu0
      %v2165 = vadd.f32 0.0, %v2164
      %v2166 = vpop.f32.mrb[0].mxu0
      %v2167 = vpop.f32.mrb[0].mxu0
      %v2168 = vadd.f32 0.0, %v2167
      %v2169 = vpop.f32.mrb[0].mxu0
      %2170 = vmatprep.mubr.bf16.mxu0 0
      %2171 = vmatmul.mubr.bf16.gmra.mrb[0].mxu0 %v1932
      %v2172 = vpop.f32.mrb[0].mxu0
      %v2173 = vadd.f32 0.0, %v2172
      %v2174 = vpop.f32.mrb[0].mxu0
      %v2175 = vpop.f32.mrb[0].mxu0
      %v2176 = vadd.f32 0.0, %v2175
      %v2177 = vpop.f32.mrb[0].mxu0
      %2178 = vmatprep.mubr.bf16.mxu0 0
      %2179 = vmatmul.mubr.bf16.gmra.mrb[0].mxu0 %v1944
      %v2180 = vpop.f32.mrb[0].mxu0
      %v2181 = vadd.f32 0.0, %v2180
      %v2182 = vpop.f32.mrb[0].mxu0
      %v2183 = vpop.f32.mrb[0].mxu0
      %v2184 = vadd.f32 0.0, %v2183
      %v2185 = vpop.f32.mrb[0].mxu0
      %2186 = vmatprep.mubr.bf16.mxu0 0
      %2187 = vmatmul.mubr.bf16.gmra.mrb[0].mxu0 %v1952
      %v2188 = vpop.f32.mrb[0].mxu0
      %v2189 = vadd.f32 0.0, %v2188
      %v2190 = vpop.f32.mrb[0].mxu0
      %v2191 = vpop.f32.mrb[0].mxu0
      %v2192 = vadd.f32 0.0, %v2191
      %v2193 = vpop.f32.mrb[0].mxu0
      %2194 = vdwg.mxu0
      %v2211 = vunpack.c.l.b16 %v1776
      %v2212 = vunpack.c.l.b16 %v1777
      %v2213 = vunpack.c.l.b16 %v1778
      %v2214 = vunpack.c.l.b16 %v1779
      %v2215 = vunpack.c.l.b16 %v1780
      %v2216 = vunpack.c.l.b16 %v1781
      %v2217 = vunpack.c.l.b16 %v1782
      %v2218 = vunpack.c.l.b16 %v1783
      %v2219 = vunpack.c.l.b16 %v1784
      %v2220 = vunpack.c.l.b16 %v1785
      %v2221 = vunpack.c.l.b16 %v1786
      %v2222 = vunpack.c.l.b16 %v1787
      %v2223 = vunpack.c.l.b16 %v1788
      %v2224 = vunpack.c.l.b16 %v1789
      %v2225 = vunpack.c.l.b16 %v1790
      %v2226 = vunpack.c.l.b16 %v1791
      %v2227 = vpack.c.b16 %v2212, %v2211
      %v2228 = vpack.c.b16 %v2214, %v2213
      %v2229 = vpack.c.b16 %v2216, %v2215
      %v2230 = vpack.c.b16 %v2218, %v2217
      %v2231 = vpack.c.b16 %v2220, %v2219
      %v2232 = vpack.c.b16 %v2222, %v2221
      %v2233 = vpack.c.b16 %v2224, %v2223
      %v2234 = vpack.c.b16 %v2226, %v2225
      %2243 = vmatprep.subr.bf16.mxu0 0
      %2244 = vmatpush1.bf16.msra.mxu0 %v2227
      %2245 = vmatprep.subr.bf16.mxu0 0
      %2246 = vmatpush1.bf16.msra.mxu0 %v2228
      %2247 = vmatprep.subr.bf16.mxu0 0
      %2248 = vmatpush1.bf16.msra.mxu0 %v2229
      %2249 = vmatprep.subr.bf16.mxu0 0
      %2250 = vmatpush1.bf16.msra.mxu0 %v2230
      %2251 = vmatprep.subr.bf16.mxu0 0
      %2252 = vmatpush1.bf16.msra.mxu0 %v2231
      %2253 = vmatprep.subr.bf16.mxu0 0
      %2254 = vmatpush1.bf16.msra.mxu0 %v2232
      %2255 = vmatprep.subr.bf16.mxu0 0
      %2256 = vmatpush1.bf16.msra.mxu0 %v2233
      %2257 = vmatprep.subr.bf16.mxu0 0
      %2258 = vmatpush1.bf16.msra.mxu0 %v2234
      %2259 = vmatprep.subr.bf16.mxu0 0
      %2260 = vmatpush1.bf16.msra.mxu0 0
      %2261 = vmatprep.subr.bf16.mxu0 0
      %2262 = vmatpush1.bf16.msra.mxu0 0
      %2263 = vmatprep.subr.bf16.mxu0 0
      %2264 = vmatpush1.bf16.msra.mxu0 0
      %2265 = vmatprep.subr.bf16.mxu0 0
      %2266 = vmatpush1.bf16.msra.mxu0 0
      %2267 = vmatprep.subr.bf16.mxu0 0
      %2268 = vmatpush1.bf16.msra.mxu0 0
      %2269 = vmatprep.subr.bf16.mxu0 0
      %2270 = vmatpush1.bf16.msra.mxu0 0
      %2271 = vmatprep.subr.bf16.mxu0 0
      %2272 = vmatpush1.bf16.msra.mxu0 0
      %2273 = vmatprep.subr.bf16.mxu0 0
      %2274 = vmatpush1.bf16.msra.mxu0 0
      %2275 = vmatprep.mubr.bf16.mxu0 0
      %2276 = vmatmul.mubr.bf16.gmra.mrb[0].mxu0 %v1746
      %v2277 = vpop.f32.mrb[0].mxu0
      %v2278 = vadd.f32 %v2069, %v2277
      %v2279 = vpop.f32.mrb[0].mxu0
      %v2280 = vpop.f32.mrb[0].mxu0
      %v2281 = vadd.f32 %v2072, %v2280
      %v2282 = vpop.f32.mrb[0].mxu0
      %2283 = vmatprep.mubr.bf16.mxu0 0
      %2284 = vmatmul.mubr.bf16.gmra.mrb[0].mxu0 %v1747
      %v2285 = vpop.f32.mrb[0].mxu0
      %v2286 = vadd.f32 %v2077, %v2285
      %v2287 = vpop.f32.mrb[0].mxu0
      %v2288 = vpop.f32.mrb[0].mxu0
      %v2289 = vadd.f32 %v2080, %v2288
      %v2290 = vpop.f32.mrb[0].mxu0
      %2291 = vmatprep.mubr.bf16.mxu0 0
      %2292 = vmatmul.mubr.bf16.gmra.mrb[0].mxu0 %v1749
      %v2293 = vpop.f32.mrb[0].mxu0
      %v2294 = vadd.f32 %v2085, %v2293
      %v2295 = vpop.f32.mrb[0].mxu0
      %v2296 = vpop.f32.mrb[0].mxu0
      %v2297 = vadd.f32 %v2088, %v2296
      %v2298 = vpop.f32.mrb[0].mxu0
      %2299 = vmatprep.mubr.bf16.mxu0 0
      %2300 = vmatmul.mubr.bf16.gmra.mrb[0].mxu0 %v1750
      %v2301 = vpop.f32.mrb[0].mxu0
      %v2302 = vadd.f32 %v2093, %v2301
      %v2303 = vpop.f32.mrb[0].mxu0
      %v2304 = vpop.f32.mrb[0].mxu0
      %v2305 = vadd.f32 %v2096, %v2304
      %v2306 = vpop.f32.mrb[0].mxu0
      %2307 = vmatprep.mubr.bf16.mxu0 0
      %2308 = vmatmul.mubr.bf16.gmra.mrb[0].mxu0 %v1752
      %v2309 = vpop.f32.mrb[0].mxu0
      %v2310 = vadd.f32 %v2101, %v2309
      %v2311 = vpop.f32.mrb[0].mxu0
      %v2312 = vpop.f32.mrb[0].mxu0
      %v2313 = vadd.f32 %v2104, %v2312
      %v2314 = vpop.f32.mrb[0].mxu0
      %2315 = vmatprep.mubr.bf16.mxu0 0
      %2316 = vmatmul.mubr.bf16.gmra.mrb[0].mxu0 %v1753
      %v2317 = vpop.f32.mrb[0].mxu0
      %v2318 = vadd.f32 %v2109, %v2317
      %v2319 = vpop.f32.mrb[0].mxu0
      %v2320 = vpop.f32.mrb[0].mxu0
      %v2321 = vadd.f32 %v2112, %v2320
      %v2322 = vpop.f32.mrb[0].mxu0
      %2323 = vmatprep.mubr.bf16.mxu0 0
      %2324 = vmatmul.mubr.bf16.gmra.mrb[0].mxu0 %v1755
      %v2325 = vpop.f32.mrb[0].mxu0
      %v2326 = vadd.f32 %v2117, %v2325
      %v2327 = vpop.f32.mrb[0].mxu0
      %v2328 = vpop.f32.mrb[0].mxu0
      %v2329 = vadd.f32 %v2120, %v2328
      %v2330 = vpop.f32.mrb[0].mxu0
      %2331 = vmatprep.mubr.bf16.mxu0 0
      %2332 = vmatmul.mubr.bf16.gmra.mrb[0].mxu0 %v1756
      %v2333 = vpop.f32.mrb[0].mxu0
      %v2334 = vadd.f32 %v2125, %v2333
      %v2335 = vpop.f32.mrb[0].mxu0
      %v2336 = vpop.f32.mrb[0].mxu0
      %v2337 = vadd.f32 %v2128, %v2336
      %v2338 = vpop.f32.mrb[0].mxu0
      %2339 = vmatprep.mubr.bf16.mxu0 0
      %2340 = vmatmul.mubr.bf16.gmra.mrb[0].mxu0 %v1758
      %v2341 = vpop.f32.mrb[0].mxu0
      %v2342 = vadd.f32 %v2133, %v2341
      %v2343 = vpop.f32.mrb[0].mxu0
      %v2344 = vpop.f32.mrb[0].mxu0
      %v2345 = vadd.f32 %v2136, %v2344
      %v2346 = vpop.f32.mrb[0].mxu0
      %2347 = vmatprep.mubr.bf16.mxu0 0
      %2348 = vmatmul.mubr.bf16.gmra.mrb[0].mxu0 %v1759
      %v2349 = vpop.f32.mrb[0].mxu0
      %v2350 = vadd.f32 %v2141, %v2349
      %v2351 = vpop.f32.mrb[0].mxu0
      %v2352 = vpop.f32.mrb[0].mxu0
      %v2353 = vadd.f32 %v2144, %v2352
      %v2354 = vpop.f32.mrb[0].mxu0
      %2355 = vmatprep.mubr.bf16.mxu0 0
      %2356 = vmatmul.mubr.bf16.gmra.mrb[0].mxu0 %v1761
      %v2357 = vpop.f32.mrb[0].mxu0
      %v2358 = vadd.f32 %v2149, %v2357
      %v2359 = vpop.f32.mrb[0].mxu0
      %v2360 = vpop.f32.mrb[0].mxu0
      %v2361 = vadd.f32 %v2152, %v2360
      %v2362 = vpop.f32.mrb[0].mxu0
      %2363 = vmatprep.mubr.bf16.mxu0 0
      %2364 = vmatmul.mubr.bf16.gmra.mrb[0].mxu0 %v1762
      %v2365 = vpop.f32.mrb[0].mxu0
      %v2366 = vadd.f32 %v2157, %v2365
      %v2367 = vpop.f32.mrb[0].mxu0
      %v2368 = vpop.f32.mrb[0].mxu0
      %v2369 = vadd.f32 %v2160, %v2368
      %v2370 = vpop.f32.mrb[0].mxu0
      %2371 = vmatprep.mubr.bf16.mxu0 0
      %2372 = vmatmul.mubr.bf16.gmra.mrb[0].mxu0 %v1764
      %v2373 = vpop.f32.mrb[0].mxu0
      %v2374 = vadd.f32 %v2165, %v2373
      %v2375 = vpop.f32.mrb[0].mxu0
      %v2376 = vpop.f32.mrb[0].mxu0
      %v2377 = vadd.f32 %v2168, %v2376
      %v2378 = vpop.f32.mrb[0].mxu0
      %2379 = vmatprep.mubr.bf16.mxu0 0
      %2380 = vmatmul.mubr.bf16.gmra.mrb[0].mxu0 %v1765
      %v2381 = vpop.f32.mrb[0].mxu0
      %v2382 = vadd.f32 %v2173, %v2381
      %v2383 = vpop.f32.mrb[0].mxu0
      %v2384 = vpop.f32.mrb[0].mxu0
      %v2385 = vadd.f32 %v2176, %v2384
      %v2386 = vpop.f32.mrb[0].mxu0
      %2387 = vmatprep.mubr.bf16.mxu0 0
      %2388 = vmatmul.mubr.bf16.gmra.mrb[0].mxu0 %v1767
      %v2389 = vpop.f32.mrb[0].mxu0
      %v2390 = vadd.f32 %v2181, %v2389
      %v2391 = vpop.f32.mrb[0].mxu0
      %v2392 = vpop.f32.mrb[0].mxu0
      %v2393 = vadd.f32 %v2184, %v2392
      %v2394 = vpop.f32.mrb[0].mxu0
      %2395 = vmatprep.mubr.bf16.mxu0 0
      %2396 = vmatmul.mubr.bf16.gmra.mrb[0].mxu0 %v1768
      %v2397 = vpop.f32.mrb[0].mxu0
      %v2398 = vadd.f32 %v2189, %v2397
      %v2399 = vpop.f32.mrb[0].mxu0
      %v2400 = vpop.f32.mrb[0].mxu0
      %v2401 = vadd.f32 %v2192, %v2400
      %v2402 = vpop.f32.mrb[0].mxu0
      %2403 = vdwg.mxu0
      %vm2428 = vcmask 1046528
      %v2429 = vrot.slane %v1746, 1
      %v2430 = vrot.slane %v1747, 1
      %v2431 = vsel %vm2428, %v2429, %v2430
      %v2432 = vrot.slane %v1748, 1
      %v2433 = vsel %vm2428, %v2430, %v2432
      %v2434 = vrot.slane %v1749, 1
      %v2435 = vrot.slane %v1750, 1
      %v2436 = vsel %vm2428, %v2434, %v2435
      %v2437 = vrot.slane %v1751, 1
      %v2438 = vsel %vm2428, %v2435, %v2437
      %v2439 = vrot.slane %v1752, 1
      %v2440 = vrot.slane %v1753, 1
      %v2441 = vsel %vm2428, %v2439, %v2440
      %v2442 = vrot.slane %v1754, 1
      %v2443 = vsel %vm2428, %v2440, %v2442
      %v2444 = vrot.slane %v1755, 1
      %v2445 = vrot.slane %v1756, 1
      %v2446 = vsel %vm2428, %v2444, %v2445
      %v2447 = vrot.slane %v1757, 1
      %v2448 = vsel %vm2428, %v2445, %v2447
      %v2449 = vrot.slane %v1758, 1
      %v2450 = vrot.slane %v1759, 1
      %v2451 = vsel %vm2428, %v2449, %v2450
      %v2452 = vrot.slane %v1760, 1
      %v2453 = vsel %vm2428, %v2450, %v2452
      %v2454 = vrot.slane %v1761, 1
      %v2455 = vrot.slane %v1762, 1
      %v2456 = vsel %vm2428, %v2454, %v2455
      %v2457 = vrot.slane %v1763, 1
      %v2458 = vsel %vm2428, %v2455, %v2457
      %v2459 = vrot.slane %v1764, 1
      %v2460 = vrot.slane %v1765, 1
      %v2461 = vsel %vm2428, %v2459, %v2460
      %v2462 = vrot.slane %v1766, 1
      %v2463 = vsel %vm2428, %v2460, %v2462
      %v2464 = vrot.slane %v1767, 1
      %v2465 = vrot.slane %v1768, 1
      %v2466 = vsel %vm2428, %v2464, %v2465
      %v2467 = vrot.slane %v1769, 1
      %v2468 = vsel %vm2428, %v2465, %v2467
      %s2485 = scalar_lea.vmem %s2, 128
      %v2486 = vld [vmem:[%s2485] sm:$0xf]
      %v2487 = vld [vmem:[%s2485 + $0x4] sm:$0xf]
      %v2488 = vld [vmem:[%s2485 + $0x8] sm:$0xf]
      %v2489 = vld [vmem:[%s2485 + $0xc] sm:$0xf]
      %v2490 = vld [vmem:[%s2485 + $0x10] sm:$0xf]
      %v2491 = vld [vmem:[%s2485 + $0x14] sm:$0xf]
      %v2492 = vld [vmem:[%s2485 + $0x18] sm:$0xf]
      %v2493 = vld [vmem:[%s2485 + $0x1c] sm:$0xf]
      %v2494 = vld [vmem:[%s2485 + $0x20] sm:$0xf]
      %v2495 = vld [vmem:[%s2485 + $0x24] sm:$0xf]
      %v2496 = vld [vmem:[%s2485 + $0x28] sm:$0xf]
      %v2497 = vld [vmem:[%s2485 + $0x2c] sm:$0xf]
      %v2498 = vld [vmem:[%s2485 + $0x30] sm:$0xf]
      %v2499 = vld [vmem:[%s2485 + $0x34] sm:$0xf]
      %v2500 = vld [vmem:[%s2485 + $0x38] sm:$0xf]
      %v2501 = vld [vmem:[%s2485 + $0x3c] sm:$0xf]
      %v2518 = vunpack.c.l.b16 %v2486
      %v2519 = vunpack.c.l.b16 %v2487
      %v2520 = vunpack.c.l.b16 %v2488
      %v2521 = vunpack.c.l.b16 %v2489
      %v2522 = vunpack.c.l.b16 %v2490
      %v2523 = vunpack.c.l.b16 %v2491
      %v2524 = vunpack.c.l.b16 %v2492
      %v2525 = vunpack.c.l.b16 %v2493
      %v2526 = vunpack.c.l.b16 %v2494
      %v2527 = vunpack.c.l.b16 %v2495
      %v2528 = vunpack.c.l.b16 %v2496
      %v2529 = vunpack.c.l.b16 %v2497
      %v2530 = vunpack.c.l.b16 %v2498
      %v2531 = vunpack.c.l.b16 %v2499
      %v2532 = vunpack.c.l.b16 %v2500
      %v2533 = vunpack.c.l.b16 %v2501
      %v2534 = vpack.c.b16 %v2519, %v2518
      %v2535 = vpack.c.b16 %v2521, %v2520
      %v2536 = vpack.c.b16 %v2523, %v2522
      %v2537 = vpack.c.b16 %v2525, %v2524
      %v2538 = vpack.c.b16 %v2527, %v2526
      %v2539 = vpack.c.b16 %v2529, %v2528
      %v2540 = vpack.c.b16 %v2531, %v2530
      %v2541 = vpack.c.b16 %v2533, %v2532
      %2550 = vmatprep.subr.bf16.mxu0 0
      %2551 = vmatpush1.bf16.msra.mxu0 %v2534
      %2552 = vmatprep.subr.bf16.mxu0 0
      %2553 = vmatpush1.bf16.msra.mxu0 %v2535
      %2554 = vmatprep.subr.bf16.mxu0 0
      %2555 = vmatpush1.bf16.msra.mxu0 %v2536
      %2556 = vmatprep.subr.bf16.mxu0 0
      %2557 = vmatpush1.bf16.msra.mxu0 %v2537
      %2558 = vmatprep.subr.bf16.mxu0 0
      %2559 = vmatpush1.bf16.msra.mxu0 %v2538
      %2560 = vmatprep.subr.bf16.mxu0 0
      %2561 = vmatpush1.bf16.msra.mxu0 %v2539
      %2562 = vmatprep.subr.bf16.mxu0 0
      %2563 = vmatpush1.bf16.msra.mxu0 %v2540
      %2564 = vmatprep.subr.bf16.mxu0 0
      %2565 = vmatpush1.bf16.msra.mxu0 %v2541
      %2566 = vmatprep.subr.bf16.mxu0 0
      %2567 = vmatpush1.bf16.msra.mxu0 0
      %2568 = vmatprep.subr.bf16.mxu0 0
      %2569 = vmatpush1.bf16.msra.mxu0 0
      %2570 = vmatprep.subr.bf16.mxu0 0
      %2571 = vmatpush1.bf16.msra.mxu0 0
      %2572 = vmatprep.subr.bf16.mxu0 0
      %2573 = vmatpush1.bf16.msra.mxu0 0
      %2574 = vmatprep.subr.bf16.mxu0 0
      %2575 = vmatpush1.bf16.msra.mxu0 0
      %2576 = vmatprep.subr.bf16.mxu0 0
      %2577 = vmatpush1.bf16.msra.mxu0 0
      %2578 = vmatprep.subr.bf16.mxu0 0
      %2579 = vmatpush1.bf16.msra.mxu0 0
      %2580 = vmatprep.subr.bf16.mxu0 0
      %2581 = vmatpush1.bf16.msra.mxu0 0
      %2582 = vmatprep.mubr.bf16.mxu0 0
      %2583 = vmatmul.mubr.bf16.gmra.mrb[0].mxu0 %v2431
      %v2584 = vpop.f32.mrb[0].mxu0
      %v2585 = vadd.f32 0.0, %v2584
      %v2586 = vpop.f32.mrb[0].mxu0
      %v2587 = vpop.f32.mrb[0].mxu0
      %v2588 = vadd.f32 0.0, %v2587
      %v2589 = vpop.f32.mrb[0].mxu0
      %2590 = vmatprep.mubr.bf16.mxu0 0
      %2591 = vmatmul.mubr.bf16.gmra.mrb[0].mxu0 %v2433
      %v2592 = vpop.f32.mrb[0].mxu0
      %v2593 = vadd.f32 0.0, %v2592
      %v2594 = vpop.f32.mrb[0].mxu0
      %v2595 = vpop.f32.mrb[0].mxu0
      %v2596 = vadd.f32 0.0, %v2595
      %v2597 = vpop.f32.mrb[0].mxu0
      %2598 = vmatprep.mubr.bf16.mxu0 0
      %2599 = vmatmul.mubr.bf16.gmra.mrb[0].mxu0 %v2436
      %v2600 = vpop.f32.mrb[0].mxu0
      %v2601 = vadd.f32 0.0, %v2600
      %v2602 = vpop.f32.mrb[0].mxu0
      %v2603 = vpop.f32.mrb[0].mxu0
      %v2604 = vadd.f32 0.0, %v2603
      %v2605 = vpop.f32.mrb[0].mxu0
      %2606 = vmatprep.mubr.bf16.mxu0 0
      %2607 = vmatmul.mubr.bf16.gmra.mrb[0].mxu0 %v2438
      %v2608 = vpop.f32.mrb[0].mxu0
      %v2609 = vadd.f32 0.0, %v2608
      %v2610 = vpop.f32.mrb[0].mxu0
      %v2611 = vpop.f32.mrb[0].mxu0
      %v2612 = vadd.f32 0.0, %v2611
      %v2613 = vpop.f32.mrb[0].mxu0
      %2614 = vmatprep.mubr.bf16.mxu0 0
      %2615 = vmatmul.mubr.bf16.gmra.mrb[0].mxu0 %v2441
      %v2616 = vpop.f32.mrb[0].mxu0
      %v2617 = vadd.f32 0.0, %v2616
      %v2618 = vpop.f32.mrb[0].mxu0
      %v2619 = vpop.f32.mrb[0].mxu0
      %v2620 = vadd.f32 0.0, %v2619
      %v2621 = vpop.f32.mrb[0].mxu0
      %2622 = vmatprep.mubr.bf16.mxu0 0
      %2623 = vmatmul.mubr.bf16.gmra.mrb[0].mxu0 %v2443
      %v2624 = vpop.f32.mrb[0].mxu0
      %v2625 = vadd.f32 0.0, %v2624
      %v2626 = vpop.f32.mrb[0].mxu0
      %v2627 = vpop.f32.mrb[0].mxu0
      %v2628 = vadd.f32 0.0, %v2627
      %v2629 = vpop.f32.mrb[0].mxu0
      %2630 = vmatprep.mubr.bf16.mxu0 0
      %2631 = vmatmul.mubr.bf16.gmra.mrb[0].mxu0 %v2446
      %v2632 = vpop.f32.mrb[0].mxu0
      %v2633 = vadd.f32 0.0, %v2632
      %v2634 = vpop.f32.mrb[0].mxu0
      %v2635 = vpop.f32.mrb[0].mxu0
      %v2636 = vadd.f32 0.0, %v2635
      %v2637 = vpop.f32.mrb[0].mxu0
      %2638 = vmatprep.mubr.bf16.mxu0 0
      %2639 = vmatmul.mubr.bf16.gmra.mrb[0].mxu0 %v2448
      %v2640 = vpop.f32.mrb[0].mxu0
      %v2641 = vadd.f32 0.0, %v2640
      %v2642 = vpop.f32.mrb[0].mxu0
      %v2643 = vpop.f32.mrb[0].mxu0
      %v2644 = vadd.f32 0.0, %v2643
      %v2645 = vpop.f32.mrb[0].mxu0
      %2646 = vmatprep.mubr.bf16.mxu0 0
      %2647 = vmatmul.mubr.bf16.gmra.mrb[0].mxu0 %v2451
      %v2648 = vpop.f32.mrb[0].mxu0
      %v2649 = vadd.f32 0.0, %v2648
      %v2650 = vpop.f32.mrb[0].mxu0
      %v2651 = vpop.f32.mrb[0].mxu0
      %v2652 = vadd.f32 0.0, %v2651
      %v2653 = vpop.f32.mrb[0].mxu0
      %2654 = vmatprep.mubr.bf16.mxu0 0
      %2655 = vmatmul.mubr.bf16.gmra.mrb[0].mxu0 %v2453
      %v2656 = vpop.f32.mrb[0].mxu0
      %v2657 = vadd.f32 0.0, %v2656
      %v2658 = vpop.f32.mrb[0].mxu0
      %v2659 = vpop.f32.mrb[0].mxu0
      %v2660 = vadd.f32 0.0, %v2659
      %v2661 = vpop.f32.mrb[0].mxu0
      %2662 = vmatprep.mubr.bf16.mxu0 0
      %2663 = vmatmul.mubr.bf16.gmra.mrb[0].mxu0 %v2456
      %v2664 = vpop.f32.mrb[0].mxu0
      %v2665 = vadd.f32 0.0, %v2664
      %v2666 = vpop.f32.mrb[0].mxu0
      %v2667 = vpop.f32.mrb[0].mxu0
      %v2668 = vadd.f32 0.0, %v2667
      %v2669 = vpop.f32.mrb[0].mxu0
      %2670 = vmatprep.mubr.bf16.mxu0 0
      %2671 = vmatmul.mubr.bf16.gmra.mrb[0].mxu0 %v2458
      %v2672 = vpop.f32.mrb[0].mxu0
      %v2673 = vadd.f32 0.0, %v2672
      %v2674 = vpop.f32.mrb[0].mxu0
      %v2675 = vpop.f32.mrb[0].mxu0
      %v2676 = vadd.f32 0.0, %v2675
      %v2677 = vpop.f32.mrb[0].mxu0
      %2678 = vmatprep.mubr.bf16.mxu0 0
      %2679 = vmatmul.mubr.bf16.gmra.mrb[0].mxu0 %v2461
      %v2680 = vpop.f32.mrb[0].mxu0
      %v2681 = vadd.f32 0.0, %v2680
      %v2682 = vpop.f32.mrb[0].mxu0
      %v2683 = vpop.f32.mrb[0].mxu0
      %v2684 = vadd.f32 0.0, %v2683
      %v2685 = vpop.f32.mrb[0].mxu0
      %2686 = vmatprep.mubr.bf16.mxu0 0
      %2687 = vmatmul.mubr.bf16.gmra.mrb[0].mxu0 %v2463
      %v2688 = vpop.f32.mrb[0].mxu0
      %v2689 = vadd.f32 0.0, %v2688
      %v2690 = vpop.f32.mrb[0].mxu0
      %v2691 = vpop.f32.mrb[0].mxu0
      %v2692 = vadd.f32 0.0, %v2691
      %v2693 = vpop.f32.mrb[0].mxu0
      %2694 = vmatprep.mubr.bf16.mxu0 0
      %2695 = vmatmul.mubr.bf16.gmra.mrb[0].mxu0 %v2466
      %v2696 = vpop.f32.mrb[0].mxu0
      %v2697 = vadd.f32 0.0, %v2696
      %v2698 = vpop.f32.mrb[0].mxu0
      %v2699 = vpop.f32.mrb[0].mxu0
      %v2700 = vadd.f32 0.0, %v2699
      %v2701 = vpop.f32.mrb[0].mxu0
      %2702 = vmatprep.mubr.bf16.mxu0 0
      %2703 = vmatmul.mubr.bf16.gmra.mrb[0].mxu0 %v2468
      %v2704 = vpop.f32.mrb[0].mxu0
      %v2705 = vadd.f32 0.0, %v2704
      %v2706 = vpop.f32.mrb[0].mxu0
      %v2707 = vpop.f32.mrb[0].mxu0
      %v2708 = vadd.f32 0.0, %v2707
      %v2709 = vpop.f32.mrb[0].mxu0
      %2710 = vdwg.mxu0
      %v2711 = vadd.f32 %v2278, %v2585
      %v2712 = vadd.f32 %v2281, %v2588
      %v2713 = vadd.f32 %v2286, %v2593
      %v2714 = vadd.f32 %v2289, %v2596
      %v2715 = vadd.f32 %v2294, %v2601
      %v2716 = vadd.f32 %v2297, %v2604
      %v2717 = vadd.f32 %v2302, %v2609
      %v2718 = vadd.f32 %v2305, %v2612
      %v2719 = vadd.f32 %v2310, %v2617
      %v2720 = vadd.f32 %v2313, %v2620
      %v2721 = vadd.f32 %v2318, %v2625
      %v2722 = vadd.f32 %v2321, %v2628
      %v2723 = vadd.f32 %v2326, %v2633
      %v2724 = vadd.f32 %v2329, %v2636
      %v2725 = vadd.f32 %v2334, %v2641
      %v2726 = vadd.f32 %v2337, %v2644
      %v2727 = vadd.f32 %v2342, %v2649
      %v2728 = vadd.f32 %v2345, %v2652
      %v2729 = vadd.f32 %v2350, %v2657
      %v2730 = vadd.f32 %v2353, %v2660
      %v2731 = vadd.f32 %v2358, %v2665
      %v2732 = vadd.f32 %v2361, %v2668
      %v2733 = vadd.f32 %v2366, %v2673
      %v2734 = vadd.f32 %v2369, %v2676
      %v2735 = vadd.f32 %v2374, %v2681
      %v2736 = vadd.f32 %v2377, %v2684
      %v2737 = vadd.f32 %v2382, %v2689
      %v2738 = vadd.f32 %v2385, %v2692
      %v2739 = vadd.f32 %v2390, %v2697
      %v2740 = vadd.f32 %v2393, %v2700
      %v2741 = vadd.f32 %v2398, %v2705
      %v2742 = vadd.f32 %v2401, %v2708
      %s2743 = scalar_lea.vmem %s2, 192
      %v2744 = vld [vmem:[%s2743] sm:$0xf]
      %v2745 = vld [vmem:[%s2743 + $0x4] sm:$0xf]
      %v2746 = vld [vmem:[%s2743 + $0x8] sm:$0xf]
      %v2747 = vld [vmem:[%s2743 + $0xc] sm:$0xf]
      %v2748 = vld [vmem:[%s2743 + $0x10] sm:$0xf]
      %v2749 = vld [vmem:[%s2743 + $0x14] sm:$0xf]
      %v2750 = vld [vmem:[%s2743 + $0x18] sm:$0xf]
      %v2751 = vld [vmem:[%s2743 + $0x1c] sm:$0xf]
      %v2752 = vld [vmem:[%s2743 + $0x20] sm:$0xf]
      %v2753 = vld [vmem:[%s2743 + $0x24] sm:$0xf]
      %v2754 = vld [vmem:[%s2743 + $0x28] sm:$0xf]
      %v2755 = vld [vmem:[%s2743 + $0x2c] sm:$0xf]
      %v2756 = vld [vmem:[%s2743 + $0x30] sm:$0xf]
      %v2757 = vld [vmem:[%s2743 + $0x34] sm:$0xf]
      %v2758 = vld [vmem:[%s2743 + $0x38] sm:$0xf]
      %v2759 = vld [vmem:[%s2743 + $0x3c] sm:$0xf]
      %v2776 = vunpack.c.l.b16 %v2744
      %v2777 = vunpack.c.l.b16 %v2745
      %v2778 = vunpack.c.l.b16 %v2746
      %v2779 = vunpack.c.l.b16 %v2747
      %v2780 = vunpack.c.l.b16 %v2748
      %v2781 = vunpack.c.l.b16 %v2749
      %v2782 = vunpack.c.l.b16 %v2750
      %v2783 = vunpack.c.l.b16 %v2751
      %v2784 = vunpack.c.l.b16 %v2752
      %v2785 = vunpack.c.l.b16 %v2753
      %v2786 = vunpack.c.l.b16 %v2754
      %v2787 = vunpack.c.l.b16 %v2755
      %v2788 = vunpack.c.l.b16 %v2756
      %v2789 = vunpack.c.l.b16 %v2757
      %v2790 = vunpack.c.l.b16 %v2758
      %v2791 = vunpack.c.l.b16 %v2759
      %v2792 = vpack.c.b16 %v2777, %v2776
      %v2793 = vpack.c.b16 %v2779, %v2778
      %v2794 = vpack.c.b16 %v2781, %v2780
      %v2795 = vpack.c.b16 %v2783, %v2782
      %v2796 = vpack.c.b16 %v2785, %v2784
      %v2797 = vpack.c.b16 %v2787, %v2786
      %v2798 = vpack.c.b16 %v2789, %v2788
      %v2799 = vpack.c.b16 %v2791, %v2790
      %2808 = vmatprep.subr.bf16.mxu0 0
      %2809 = vmatpush1.bf16.msra.mxu0 %v2792
      %2810 = vmatprep.subr.bf16.mxu0 0
      %2811 = vmatpush1.bf16.msra.mxu0 %v2793
      %2812 = vmatprep.subr.bf16.mxu0 0
      %2813 = vmatpush1.bf16.msra.mxu0 %v2794
      %2814 = vmatprep.subr.bf16.mxu0 0
      %2815 = vmatpush1.bf16.msra.mxu0 %v2795
      %2816 = vmatprep.subr.bf16.mxu0 0
      %2817 = vmatpush1.bf16.msra.mxu0 %v2796
      %2818 = vmatprep.subr.bf16.mxu0 0
      %2819 = vmatpush1.bf16.msra.mxu0 %v2797
      %2820 = vmatprep.subr.bf16.mxu0 0
      %2821 = vmatpush1.bf16.msra.mxu0 %v2798
      %2822 = vmatprep.subr.bf16.mxu0 0
      %2823 = vmatpush1.bf16.msra.mxu0 %v2799
      %2824 = vmatprep.subr.bf16.mxu0 0
      %2825 = vmatpush1.bf16.msra.mxu0 0
      %2826 = vmatprep.subr.bf16.mxu0 0
      %2827 = vmatpush1.bf16.msra.mxu0 0
      %2828 = vmatprep.subr.bf16.mxu0 0
      %2829 = vmatpush1.bf16.msra.mxu0 0
      %2830 = vmatprep.subr.bf16.mxu0 0
      %2831 = vmatpush1.bf16.msra.mxu0 0
      %2832 = vmatprep.subr.bf16.mxu0 0
      %2833 = vmatpush1.bf16.msra.mxu0 0
      %2834 = vmatprep.subr.bf16.mxu0 0
      %2835 = vmatpush1.bf16.msra.mxu0 0
      %2836 = vmatprep.subr.bf16.mxu0 0
      %2837 = vmatpush1.bf16.msra.mxu0 0
      %2838 = vmatprep.subr.bf16.mxu0 0
      %2839 = vmatpush1.bf16.msra.mxu0 0
      %2840 = vmatprep.mubr.bf16.mxu0 0
      %2841 = vmatmul.mubr.bf16.gmra.mrb[0].mxu0 %v1749
      %v2842 = vpop.f32.mrb[0].mxu0
      %v2843 = vadd.f32 0.0, %v2842
      %v2844 = vpop.f32.mrb[0].mxu0
      %v2845 = vpop.f32.mrb[0].mxu0
      %v2846 = vadd.f32 0.0, %v2845
      %v2847 = vpop.f32.mrb[0].mxu0
      %2848 = vmatprep.mubr.bf16.mxu0 0
      %2849 = vmatmul.mubr.bf16.gmra.mrb[0].mxu0 %v1750
      %v2850 = vpop.f32.mrb[0].mxu0
      %v2851 = vadd.f32 0.0, %v2850
      %v2852 = vpop.f32.mrb[0].mxu0
      %v2853 = vpop.f32.mrb[0].mxu0
      %v2854 = vadd.f32 0.0, %v2853
      %v2855 = vpop.f32.mrb[0].mxu0
      %2856 = vmatprep.mubr.bf16.mxu0 0
      %2857 = vmatmul.mubr.bf16.gmra.mrb[0].mxu0 %v1752
      %v2858 = vpop.f32.mrb[0].mxu0
      %v2859 = vadd.f32 0.0, %v2858
      %v2860 = vpop.f32.mrb[0].mxu0
      %v2861 = vpop.f32.mrb[0].mxu0
      %v2862 = vadd.f32 0.0, %v2861
      %v2863 = vpop.f32.mrb[0].mxu0
      %2864 = vmatprep.mubr.bf16.mxu0 0
      %2865 = vmatmul.mubr.bf16.gmra.mrb[0].mxu0 %v1753
      %v2866 = vpop.f32.mrb[0].mxu0
      %v2867 = vadd.f32 0.0, %v2866
      %v2868 = vpop.f32.mrb[0].mxu0
      %v2869 = vpop.f32.mrb[0].mxu0
      %v2870 = vadd.f32 0.0, %v2869
      %v2871 = vpop.f32.mrb[0].mxu0
      %2872 = vmatprep.mubr.bf16.mxu0 0
      %2873 = vmatmul.mubr.bf16.gmra.mrb[0].mxu0 %v1755
      %v2874 = vpop.f32.mrb[0].mxu0
      %v2875 = vadd.f32 0.0, %v2874
      %v2876 = vpop.f32.mrb[0].mxu0
      %v2877 = vpop.f32.mrb[0].mxu0
      %v2878 = vadd.f32 0.0, %v2877
      %v2879 = vpop.f32.mrb[0].mxu0
      %2880 = vmatprep.mubr.bf16.mxu0 0
      %2881 = vmatmul.mubr.bf16.gmra.mrb[0].mxu0 %v1756
      %v2882 = vpop.f32.mrb[0].mxu0
      %v2883 = vadd.f32 0.0, %v2882
      %v2884 = vpop.f32.mrb[0].mxu0
      %v2885 = vpop.f32.mrb[0].mxu0
      %v2886 = vadd.f32 0.0, %v2885
      %v2887 = vpop.f32.mrb[0].mxu0
      %2888 = vmatprep.mubr.bf16.mxu0 0
      %2889 = vmatmul.mubr.bf16.gmra.mrb[0].mxu0 %v1758
      %v2890 = vpop.f32.mrb[0].mxu0
      %v2891 = vadd.f32 0.0, %v2890
      %v2892 = vpop.f32.mrb[0].mxu0
      %v2893 = vpop.f32.mrb[0].mxu0
      %v2894 = vadd.f32 0.0, %v2893
      %v2895 = vpop.f32.mrb[0].mxu0
      %2896 = vmatprep.mubr.bf16.mxu0 0
      %2897 = vmatmul.mubr.bf16.gmra.mrb[0].mxu0 %v1759
      %v2898 = vpop.f32.mrb[0].mxu0
      %v2899 = vadd.f32 0.0, %v2898
      %v2900 = vpop.f32.mrb[0].mxu0
      %v2901 = vpop.f32.mrb[0].mxu0
      %v2902 = vadd.f32 0.0, %v2901
      %v2903 = vpop.f32.mrb[0].mxu0
      %2904 = vmatprep.mubr.bf16.mxu0 0
      %2905 = vmatmul.mubr.bf16.gmra.mrb[0].mxu0 %v1761
      %v2906 = vpop.f32.mrb[0].mxu0
      %v2907 = vadd.f32 0.0, %v2906
      %v2908 = vpop.f32.mrb[0].mxu0
      %v2909 = vpop.f32.mrb[0].mxu0
      %v2910 = vadd.f32 0.0, %v2909
      %v2911 = vpop.f32.mrb[0].mxu0
      %2912 = vmatprep.mubr.bf16.mxu0 0
      %2913 = vmatmul.mubr.bf16.gmra.mrb[0].mxu0 %v1762
      %v2914 = vpop.f32.mrb[0].mxu0
      %v2915 = vadd.f32 0.0, %v2914
      %v2916 = vpop.f32.mrb[0].mxu0
      %v2917 = vpop.f32.mrb[0].mxu0
      %v2918 = vadd.f32 0.0, %v2917
      %v2919 = vpop.f32.mrb[0].mxu0
      %2920 = vmatprep.mubr.bf16.mxu0 0
      %2921 = vmatmul.mubr.bf16.gmra.mrb[0].mxu0 %v1764
      %v2922 = vpop.f32.mrb[0].mxu0
      %v2923 = vadd.f32 0.0, %v2922
      %v2924 = vpop.f32.mrb[0].mxu0
      %v2925 = vpop.f32.mrb[0].mxu0
      %v2926 = vadd.f32 0.0, %v2925
      %v2927 = vpop.f32.mrb[0].mxu0
      %2928 = vmatprep.mubr.bf16.mxu0 0
      %2929 = vmatmul.mubr.bf16.gmra.mrb[0].mxu0 %v1765
      %v2930 = vpop.f32.mrb[0].mxu0
      %v2931 = vadd.f32 0.0, %v2930
      %v2932 = vpop.f32.mrb[0].mxu0
      %v2933 = vpop.f32.mrb[0].mxu0
      %v2934 = vadd.f32 0.0, %v2933
      %v2935 = vpop.f32.mrb[0].mxu0
      %2936 = vmatprep.mubr.bf16.mxu0 0
      %2937 = vmatmul.mubr.bf16.gmra.mrb[0].mxu0 %v1767
      %v2938 = vpop.f32.mrb[0].mxu0
      %v2939 = vadd.f32 0.0, %v2938
      %v2940 = vpop.f32.mrb[0].mxu0
      %v2941 = vpop.f32.mrb[0].mxu0
      %v2942 = vadd.f32 0.0, %v2941
      %v2943 = vpop.f32.mrb[0].mxu0
      %2944 = vmatprep.mubr.bf16.mxu0 0
      %2945 = vmatmul.mubr.bf16.gmra.mrb[0].mxu0 %v1768
      %v2946 = vpop.f32.mrb[0].mxu0
      %v2947 = vadd.f32 0.0, %v2946
      %v2948 = vpop.f32.mrb[0].mxu0
      %v2949 = vpop.f32.mrb[0].mxu0
      %v2950 = vadd.f32 0.0, %v2949
      %v2951 = vpop.f32.mrb[0].mxu0
      %2952 = vmatprep.mubr.bf16.mxu0 0
      %2953 = vmatmul.mubr.bf16.gmra.mrb[0].mxu0 %v1770
      %v2954 = vpop.f32.mrb[0].mxu0
      %v2955 = vadd.f32 0.0, %v2954
      %v2956 = vpop.f32.mrb[0].mxu0
      %v2957 = vpop.f32.mrb[0].mxu0
      %v2958 = vadd.f32 0.0, %v2957
      %v2959 = vpop.f32.mrb[0].mxu0
      %2960 = vmatprep.mubr.bf16.mxu0 0
      %2961 = vmatmul.mubr.bf16.gmra.mrb[0].mxu0 %v1771
      %v2962 = vpop.f32.mrb[0].mxu0
      %v2963 = vadd.f32 0.0, %v2962
      %v2964 = vpop.f32.mrb[0].mxu0
      %v2965 = vpop.f32.mrb[0].mxu0
      %v2966 = vadd.f32 0.0, %v2965
      %v2967 = vpop.f32.mrb[0].mxu0
      %2968 = vdwg.mxu0
      %v2969 = vadd.f32 %v2711, %v2843
      %v2970 = vadd.f32 %v2712, %v2846
      %v2971 = vadd.f32 %v2713, %v2851
      %v2972 = vadd.f32 %v2714, %v2854
      %v2973 = vadd.f32 %v2715, %v2859
      %v2974 = vadd.f32 %v2716, %v2862
      %v2975 = vadd.f32 %v2717, %v2867
      %v2976 = vadd.f32 %v2718, %v2870
      %v2977 = vadd.f32 %v2719, %v2875
      %v2978 = vadd.f32 %v2720, %v2878
      %v2979 = vadd.f32 %v2721, %v2883
      %v2980 = vadd.f32 %v2722, %v2886
      %v2981 = vadd.f32 %v2723, %v2891
      %v2982 = vadd.f32 %v2724, %v2894
      %v2983 = vadd.f32 %v2725, %v2899
      %v2984 = vadd.f32 %v2726, %v2902
      %v2985 = vadd.f32 %v2727, %v2907
      %v2986 = vadd.f32 %v2728, %v2910
      %v2987 = vadd.f32 %v2729, %v2915
      %v2988 = vadd.f32 %v2730, %v2918
      %v2989 = vadd.f32 %v2731, %v2923
      %v2990 = vadd.f32 %v2732, %v2926
      %v2991 = vadd.f32 %v2733, %v2931
      %v2992 = vadd.f32 %v2734, %v2934
      %v2993 = vadd.f32 %v2735, %v2939
      %v2994 = vadd.f32 %v2736, %v2942
      %v2995 = vadd.f32 %v2737, %v2947
      %v2996 = vadd.f32 %v2738, %v2950
      %v2997 = vadd.f32 %v2739, %v2955
      %v2998 = vadd.f32 %v2740, %v2958
      %v2999 = vadd.f32 %v2741, %v2963
      %v3000 = vadd.f32 %v2742, %v2966
      %v3002 = vshrl.u32 %v1770, 16
      %v3004 = vshll.u32 %v1770, 16
      %v3006 = vrot.slane %v3004, 1
      %v3007 = vor.u32 %v3002, %v3006
      %v3009 = vshll.u32 %v1771, 16
      %v3011 = vrot.slane %v3009, 1
      %v3012 = vsel %vm1792, %v3007, %v3011
      %v3013 = vshrl.u32 %v1771, 16
      %v3015 = vor.u32 %v3013, %v3011
      %v3017 = vshll.u32 %v1772, 16
      %v3019 = vrot.slane %v3017, 1
      %v3020 = vsel %vm1792, %v3015, %v3019
      %s3023 = scalar_lea.vmem %s2, 256
      %v3024 = vld [vmem:[%s3023] sm:$0xf]
      %v3025 = vld [vmem:[%s3023 + $0x4] sm:$0xf]
      %v3026 = vld [vmem:[%s3023 + $0x8] sm:$0xf]
      %v3027 = vld [vmem:[%s3023 + $0xc] sm:$0xf]
      %v3028 = vld [vmem:[%s3023 + $0x10] sm:$0xf]
      %v3029 = vld [vmem:[%s3023 + $0x14] sm:$0xf]
      %v3030 = vld [vmem:[%s3023 + $0x18] sm:$0xf]
      %v3031 = vld [vmem:[%s3023 + $0x1c] sm:$0xf]
      %v3032 = vld [vmem:[%s3023 + $0x20] sm:$0xf]
      %v3033 = vld [vmem:[%s3023 + $0x24] sm:$0xf]
      %v3034 = vld [vmem:[%s3023 + $0x28] sm:$0xf]
      %v3035 = vld [vmem:[%s3023 + $0x2c] sm:$0xf]
      %v3036 = vld [vmem:[%s3023 + $0x30] sm:$0xf]
      %v3037 = vld [vmem:[%s3023 + $0x34] sm:$0xf]
      %v3038 = vld [vmem:[%s3023 + $0x38] sm:$0xf]
      %v3039 = vld [vmem:[%s3023 + $0x3c] sm:$0xf]
      %v3056 = vunpack.c.l.b16 %v3024
      %v3057 = vunpack.c.l.b16 %v3025
      %v3058 = vunpack.c.l.b16 %v3026
      %v3059 = vunpack.c.l.b16 %v3027
      %v3060 = vunpack.c.l.b16 %v3028
      %v3061 = vunpack.c.l.b16 %v3029
      %v3062 = vunpack.c.l.b16 %v3030
      %v3063 = vunpack.c.l.b16 %v3031
      %v3064 = vunpack.c.l.b16 %v3032
      %v3065 = vunpack.c.l.b16 %v3033
      %v3066 = vunpack.c.l.b16 %v3034
      %v3067 = vunpack.c.l.b16 %v3035
      %v3068 = vunpack.c.l.b16 %v3036
      %v3069 = vunpack.c.l.b16 %v3037
      %v3070 = vunpack.c.l.b16 %v3038
      %v3071 = vunpack.c.l.b16 %v3039
      %v3072 = vpack.c.b16 %v3057, %v3056
      %v3073 = vpack.c.b16 %v3059, %v3058
      %v3074 = vpack.c.b16 %v3061, %v3060
      %v3075 = vpack.c.b16 %v3063, %v3062
      %v3076 = vpack.c.b16 %v3065, %v3064
      %v3077 = vpack.c.b16 %v3067, %v3066
      %v3078 = vpack.c.b16 %v3069, %v3068
      %v3079 = vpack.c.b16 %v3071, %v3070
      %3088 = vmatprep.subr.bf16.mxu0 0
      %3089 = vmatpush1.bf16.msra.mxu0 %v3072
      %3090 = vmatprep.subr.bf16.mxu0 0
      %3091 = vmatpush1.bf16.msra.mxu0 %v3073
      %3092 = vmatprep.subr.bf16.mxu0 0
      %3093 = vmatpush1.bf16.msra.mxu0 %v3074
      %3094 = vmatprep.subr.bf16.mxu0 0
      %3095 = vmatpush1.bf16.msra.mxu0 %v3075
      %3096 = vmatprep.subr.bf16.mxu0 0
      %3097 = vmatpush1.bf16.msra.mxu0 %v3076
      %3098 = vmatprep.subr.bf16.mxu0 0
      %3099 = vmatpush1.bf16.msra.mxu0 %v3077
      %3100 = vmatprep.subr.bf16.mxu0 0
      %3101 = vmatpush1.bf16.msra.mxu0 %v3078
      %3102 = vmatprep.subr.bf16.mxu0 0
      %3103 = vmatpush1.bf16.msra.mxu0 %v3079
      %3104 = vmatprep.subr.bf16.mxu0 0
      %3105 = vmatpush1.bf16.msra.mxu0 0
      %3106 = vmatprep.subr.bf16.mxu0 0
      %3107 = vmatpush1.bf16.msra.mxu0 0
      %3108 = vmatprep.subr.bf16.mxu0 0
      %3109 = vmatpush1.bf16.msra.mxu0 0
      %3110 = vmatprep.subr.bf16.mxu0 0
      %3111 = vmatpush1.bf16.msra.mxu0 0
      %3112 = vmatprep.subr.bf16.mxu0 0
      %3113 = vmatpush1.bf16.msra.mxu0 0
      %3114 = vmatprep.subr.bf16.mxu0 0
      %3115 = vmatpush1.bf16.msra.mxu0 0
      %3116 = vmatprep.subr.bf16.mxu0 0
      %3117 = vmatpush1.bf16.msra.mxu0 0
      %3118 = vmatprep.subr.bf16.mxu0 0
      %3119 = vmatpush1.bf16.msra.mxu0 0
      %3120 = vmatprep.mubr.bf16.mxu0 0
      %3121 = vmatmul.mubr.bf16.gmra.mrb[0].mxu0 %v1824
      %v3122 = vpop.f32.mrb[0].mxu0
      %v3123 = vadd.f32 0.0, %v3122
      %v3124 = vpop.f32.mrb[0].mxu0
      %v3125 = vpop.f32.mrb[0].mxu0
      %v3126 = vadd.f32 0.0, %v3125
      %v3127 = vpop.f32.mrb[0].mxu0
      %3128 = vmatprep.mubr.bf16.mxu0 0
      %3129 = vmatmul.mubr.bf16.gmra.mrb[0].mxu0 %v1832
      %v3130 = vpop.f32.mrb[0].mxu0
      %v3131 = vadd.f32 0.0, %v3130
      %v3132 = vpop.f32.mrb[0].mxu0
      %v3133 = vpop.f32.mrb[0].mxu0
      %v3134 = vadd.f32 0.0, %v3133
      %v3135 = vpop.f32.mrb[0].mxu0
      %3136 = vmatprep.mubr.bf16.mxu0 0
      %3137 = vmatmul.mubr.bf16.gmra.mrb[0].mxu0 %v1844
      %v3138 = vpop.f32.mrb[0].mxu0
      %v3139 = vadd.f32 0.0, %v3138
      %v3140 = vpop.f32.mrb[0].mxu0
      %v3141 = vpop.f32.mrb[0].mxu0
      %v3142 = vadd.f32 0.0, %v3141
      %v3143 = vpop.f32.mrb[0].mxu0
      %3144 = vmatprep.mubr.bf16.mxu0 0
      %3145 = vmatmul.mubr.bf16.gmra.mrb[0].mxu0 %v1852
      %v3146 = vpop.f32.mrb[0].mxu0
      %v3147 = vadd.f32 0.0, %v3146
      %v3148 = vpop.f32.mrb[0].mxu0
      %v3149 = vpop.f32.mrb[0].mxu0
      %v3150 = vadd.f32 0.0, %v3149
      %v3151 = vpop.f32.mrb[0].mxu0
      %3152 = vmatprep.mubr.bf16.mxu0 0
      %3153 = vmatmul.mubr.bf16.gmra.mrb[0].mxu0 %v1864
      %v3154 = vpop.f32.mrb[0].mxu0
      %v3155 = vadd.f32 0.0, %v3154
      %v3156 = vpop.f32.mrb[0].mxu0
      %v3157 = vpop.f32.mrb[0].mxu0
      %v3158 = vadd.f32 0.0, %v3157
      %v3159 = vpop.f32.mrb[0].mxu0
      %3160 = vmatprep.mubr.bf16.mxu0 0
      %3161 = vmatmul.mubr.bf16.gmra.mrb[0].mxu0 %v1872
      %v3162 = vpop.f32.mrb[0].mxu0
      %v3163 = vadd.f32 0.0, %v3162
      %v3164 = vpop.f32.mrb[0].mxu0
      %v3165 = vpop.f32.mrb[0].mxu0
      %v3166 = vadd.f32 0.0, %v3165
      %v3167 = vpop.f32.mrb[0].mxu0
      %3168 = vmatprep.mubr.bf16.mxu0 0
      %3169 = vmatmul.mubr.bf16.gmra.mrb[0].mxu0 %v1884
      %v3170 = vpop.f32.mrb[0].mxu0
      %v3171 = vadd.f32 0.0, %v3170
      %v3172 = vpop.f32.mrb[0].mxu0
      %v3173 = vpop.f32.mrb[0].mxu0
      %v3174 = vadd.f32 0.0, %v3173
      %v3175 = vpop.f32.mrb[0].mxu0
      %3176 = vmatprep.mubr.bf16.mxu0 0
      %3177 = vmatmul.mubr.bf16.gmra.mrb[0].mxu0 %v1892
      %v3178 = vpop.f32.mrb[0].mxu0
      %v3179 = vadd.f32 0.0, %v3178
      %v3180 = vpop.f32.mrb[0].mxu0
      %v3181 = vpop.f32.mrb[0].mxu0
      %v3182 = vadd.f32 0.0, %v3181
      %v3183 = vpop.f32.mrb[0].mxu0
      %3184 = vmatprep.mubr.bf16.mxu0 0
      %3185 = vmatmul.mubr.bf16.gmra.mrb[0].mxu0 %v1904
      %v3186 = vpop.f32.mrb[0].mxu0
      %v3187 = vadd.f32 0.0, %v3186
      %v3188 = vpop.f32.mrb[0].mxu0
      %v3189 = vpop.f32.mrb[0].mxu0
      %v3190 = vadd.f32 0.0, %v3189
      %v3191 = vpop.f32.mrb[0].mxu0
      %3192 = vmatprep.mubr.bf16.mxu0 0
      %3193 = vmatmul.mubr.bf16.gmra.mrb[0].mxu0 %v1912
      %v3194 = vpop.f32.mrb[0].mxu0
      %v3195 = vadd.f32 0.0, %v3194
      %v3196 = vpop.f32.mrb[0].mxu0
      %v3197 = vpop.f32.mrb[0].mxu0
      %v3198 = vadd.f32 0.0, %v3197
      %v3199 = vpop.f32.mrb[0].mxu0
      %3200 = vmatprep.mubr.bf16.mxu0 0
      %3201 = vmatmul.mubr.bf16.gmra.mrb[0].mxu0 %v1924
      %v3202 = vpop.f32.mrb[0].mxu0
      %v3203 = vadd.f32 0.0, %v3202
      %v3204 = vpop.f32.mrb[0].mxu0
      %v3205 = vpop.f32.mrb[0].mxu0
      %v3206 = vadd.f32 0.0, %v3205
      %v3207 = vpop.f32.mrb[0].mxu0
      %3208 = vmatprep.mubr.bf16.mxu0 0
      %3209 = vmatmul.mubr.bf16.gmra.mrb[0].mxu0 %v1932
      %v3210 = vpop.f32.mrb[0].mxu0
      %v3211 = vadd.f32 0.0, %v3210
      %v3212 = vpop.f32.mrb[0].mxu0
      %v3213 = vpop.f32.mrb[0].mxu0
      %v3214 = vadd.f32 0.0, %v3213
      %v3215 = vpop.f32.mrb[0].mxu0
      %3216 = vmatprep.mubr.bf16.mxu0 0
      %3217 = vmatmul.mubr.bf16.gmra.mrb[0].mxu0 %v1944
      %v3218 = vpop.f32.mrb[0].mxu0
      %v3219 = vadd.f32 0.0, %v3218
      %v3220 = vpop.f32.mrb[0].mxu0
      %v3221 = vpop.f32.mrb[0].mxu0
      %v3222 = vadd.f32 0.0, %v3221
      %v3223 = vpop.f32.mrb[0].mxu0
      %3224 = vmatprep.mubr.bf16.mxu0 0
      %3225 = vmatmul.mubr.bf16.gmra.mrb[0].mxu0 %v1952
      %v3226 = vpop.f32.mrb[0].mxu0
      %v3227 = vadd.f32 0.0, %v3226
      %v3228 = vpop.f32.mrb[0].mxu0
      %v3229 = vpop.f32.mrb[0].mxu0
      %v3230 = vadd.f32 0.0, %v3229
      %v3231 = vpop.f32.mrb[0].mxu0
      %3232 = vmatprep.mubr.bf16.mxu0 0
      %3233 = vmatmul.mubr.bf16.gmra.mrb[0].mxu0 %v3012
      %v3234 = vpop.f32.mrb[0].mxu0
      %v3235 = vadd.f32 0.0, %v3234
      %v3236 = vpop.f32.mrb[0].mxu0
      %v3237 = vpop.f32.mrb[0].mxu0
      %v3238 = vadd.f32 0.0, %v3237
      %v3239 = vpop.f32.mrb[0].mxu0
      %3240 = vmatprep.mubr.bf16.mxu0 0
      %3241 = vmatmul.mubr.bf16.gmra.mrb[0].mxu0 %v3020
      %v3242 = vpop.f32.mrb[0].mxu0
      %v3243 = vadd.f32 0.0, %v3242
      %v3244 = vpop.f32.mrb[0].mxu0
      %v3245 = vpop.f32.mrb[0].mxu0
      %v3246 = vadd.f32 0.0, %v3245
      %v3247 = vpop.f32.mrb[0].mxu0
      %3248 = vdwg.mxu0
      %v3249 = vadd.f32 %v2969, %v3123
      %v3250 = vadd.f32 %v2970, %v3126
      %v3251 = vadd.f32 %v2971, %v3131
      %v3252 = vadd.f32 %v2972, %v3134
      %v3253 = vadd.f32 %v2973, %v3139
      %v3254 = vadd.f32 %v2974, %v3142
      %v3255 = vadd.f32 %v2975, %v3147
      %v3256 = vadd.f32 %v2976, %v3150
      %v3257 = vadd.f32 %v2977, %v3155
      %v3258 = vadd.f32 %v2978, %v3158
      %v3259 = vadd.f32 %v2979, %v3163
      %v3260 = vadd.f32 %v2980, %v3166
      %v3261 = vadd.f32 %v2981, %v3171
      %v3262 = vadd.f32 %v2982, %v3174
      %v3263 = vadd.f32 %v2983, %v3179
      %v3264 = vadd.f32 %v2984, %v3182
      %v3265 = vadd.f32 %v2985, %v3187
      %v3266 = vadd.f32 %v2986, %v3190
      %v3267 = vadd.f32 %v2987, %v3195
      %v3268 = vadd.f32 %v2988, %v3198
      %v3269 = vadd.f32 %v2989, %v3203
      %v3270 = vadd.f32 %v2990, %v3206
      %v3271 = vadd.f32 %v2991, %v3211
      %v3272 = vadd.f32 %v2992, %v3214
      %v3273 = vadd.f32 %v2993, %v3219
      %v3274 = vadd.f32 %v2994, %v3222
      %v3275 = vadd.f32 %v2995, %v3227
      %v3276 = vadd.f32 %v2996, %v3230
      %v3277 = vadd.f32 %v2997, %v3235
      %v3278 = vadd.f32 %v2998, %v3238
      %v3279 = vadd.f32 %v2999, %v3243
      %v3280 = vadd.f32 %v3000, %v3246
      %v3284 = vrot.slane %v1770, 1
      %v3285 = vrot.slane %v1771, 1
      %v3286 = vsel %vm2428, %v3284, %v3285
      %v3287 = vrot.slane %v1772, 1
      %v3288 = vsel %vm2428, %v3285, %v3287
      %s3291 = scalar_lea.vmem %s2, 320
      %v3292 = vld [vmem:[%s3291] sm:$0xf]
      %v3293 = vld [vmem:[%s3291 + $0x4] sm:$0xf]
      %v3294 = vld [vmem:[%s3291 + $0x8] sm:$0xf]
      %v3295 = vld [vmem:[%s3291 + $0xc] sm:$0xf]
      %v3296 = vld [vmem:[%s3291 + $0x10] sm:$0xf]
      %v3297 = vld [vmem:[%s3291 + $0x14] sm:$0xf]
      %v3298 = vld [vmem:[%s3291 + $0x18] sm:$0xf]
      %v3299 = vld [vmem:[%s3291 + $0x1c] sm:$0xf]
      %v3300 = vld [vmem:[%s3291 + $0x20] sm:$0xf]
      %v3301 = vld [vmem:[%s3291 + $0x24] sm:$0xf]
      %v3302 = vld [vmem:[%s3291 + $0x28] sm:$0xf]
      %v3303 = vld [vmem:[%s3291 + $0x2c] sm:$0xf]
      %v3304 = vld [vmem:[%s3291 + $0x30] sm:$0xf]
      %v3305 = vld [vmem:[%s3291 + $0x34] sm:$0xf]
      %v3306 = vld [vmem:[%s3291 + $0x38] sm:$0xf]
      %v3307 = vld [vmem:[%s3291 + $0x3c] sm:$0xf]
      %v3324 = vunpack.c.l.b16 %v3292
      %v3325 = vunpack.c.l.b16 %v3293
      %v3326 = vunpack.c.l.b16 %v3294
      %v3327 = vunpack.c.l.b16 %v3295
      %v3328 = vunpack.c.l.b16 %v3296
      %v3329 = vunpack.c.l.b16 %v3297
      %v3330 = vunpack.c.l.b16 %v3298
      %v3331 = vunpack.c.l.b16 %v3299
      %v3332 = vunpack.c.l.b16 %v3300
      %v3333 = vunpack.c.l.b16 %v3301
      %v3334 = vunpack.c.l.b16 %v3302
      %v3335 = vunpack.c.l.b16 %v3303
      %v3336 = vunpack.c.l.b16 %v3304
      %v3337 = vunpack.c.l.b16 %v3305
      %v3338 = vunpack.c.l.b16 %v3306
      %v3339 = vunpack.c.l.b16 %v3307
      %v3340 = vpack.c.b16 %v3325, %v3324
      %v3341 = vpack.c.b16 %v3327, %v3326
      %v3342 = vpack.c.b16 %v3329, %v3328
      %v3343 = vpack.c.b16 %v3331, %v3330
      %v3344 = vpack.c.b16 %v3333, %v3332
      %v3345 = vpack.c.b16 %v3335, %v3334
      %v3346 = vpack.c.b16 %v3337, %v3336
      %v3347 = vpack.c.b16 %v3339, %v3338
      %3356 = vmatprep.subr.bf16.mxu0 0
      %3357 = vmatpush1.bf16.msra.mxu0 %v3340
      %3358 = vmatprep.subr.bf16.mxu0 0
      %3359 = vmatpush1.bf16.msra.mxu0 %v3341
      %3360 = vmatprep.subr.bf16.mxu0 0
      %3361 = vmatpush1.bf16.msra.mxu0 %v3342
      %3362 = vmatprep.subr.bf16.mxu0 0
      %3363 = vmatpush1.bf16.msra.mxu0 %v3343
      %3364 = vmatprep.subr.bf16.mxu0 0
      %3365 = vmatpush1.bf16.msra.mxu0 %v3344
      %3366 = vmatprep.subr.bf16.mxu0 0
      %3367 = vmatpush1.bf16.msra.mxu0 %v3345
      %3368 = vmatprep.subr.bf16.mxu0 0
      %3369 = vmatpush1.bf16.msra.mxu0 %v3346
      %3370 = vmatprep.subr.bf16.mxu0 0
      %3371 = vmatpush1.bf16.msra.mxu0 %v3347
      %3372 = vmatprep.subr.bf16.mxu0 0
      %3373 = vmatpush1.bf16.msra.mxu0 0
      %3374 = vmatprep.subr.bf16.mxu0 0
      %3375 = vmatpush1.bf16.msra.mxu0 0
      %3376 = vmatprep.subr.bf16.mxu0 0
      %3377 = vmatpush1.bf16.msra.mxu0 0
      %3378 = vmatprep.subr.bf16.mxu0 0
      %3379 = vmatpush1.bf16.msra.mxu0 0
      %3380 = vmatprep.subr.bf16.mxu0 0
      %3381 = vmatpush1.bf16.msra.mxu0 0
      %3382 = vmatprep.subr.bf16.mxu0 0
      %3383 = vmatpush1.bf16.msra.mxu0 0
      %3384 = vmatprep.subr.bf16.mxu0 0
      %3385 = vmatpush1.bf16.msra.mxu0 0
      %3386 = vmatprep.subr.bf16.mxu0 0
      %3387 = vmatpush1.bf16.msra.mxu0 0
      %3388 = vmatprep.mubr.bf16.mxu0 0
      %3389 = vmatmul.mubr.bf16.gmra.mrb[0].mxu0 %v2436
      %v3390 = vpop.f32.mrb[0].mxu0
      %v3391 = vadd.f32 0.0, %v3390
      %v3392 = vpop.f32.mrb[0].mxu0
      %v3393 = vpop.f32.mrb[0].mxu0
      %v3394 = vadd.f32 0.0, %v3393
      %v3395 = vpop.f32.mrb[0].mxu0
      %3396 = vmatprep.mubr.bf16.mxu0 0
      %3397 = vmatmul.mubr.bf16.gmra.mrb[0].mxu0 %v2438
      %v3398 = vpop.f32.mrb[0].mxu0
      %v3399 = vadd.f32 0.0, %v3398
      %v3400 = vpop.f32.mrb[0].mxu0
      %v3401 = vpop.f32.mrb[0].mxu0
      %v3402 = vadd.f32 0.0, %v3401
      %v3403 = vpop.f32.mrb[0].mxu0
      %3404 = vmatprep.mubr.bf16.mxu0 0
      %3405 = vmatmul.mubr.bf16.gmra.mrb[0].mxu0 %v2441
      %v3406 = vpop.f32.mrb[0].mxu0
      %v3407 = vadd.f32 0.0, %v3406
      %v3408 = vpop.f32.mrb[0].mxu0
      %v3409 = vpop.f32.mrb[0].mxu0
      %v3410 = vadd.f32 0.0, %v3409
      %v3411 = vpop.f32.mrb[0].mxu0
      %3412 = vmatprep.mubr.bf16.mxu0 0
      %3413 = vmatmul.mubr.bf16.gmra.mrb[0].mxu0 %v2443
      %v3414 = vpop.f32.mrb[0].mxu0
      %v3415 = vadd.f32 0.0, %v3414
      %v3416 = vpop.f32.mrb[0].mxu0
      %v3417 = vpop.f32.mrb[0].mxu0
      %v3418 = vadd.f32 0.0, %v3417
      %v3419 = vpop.f32.mrb[0].mxu0
      %3420 = vmatprep.mubr.bf16.mxu0 0
      %3421 = vmatmul.mubr.bf16.gmra.mrb[0].mxu0 %v2446
      %v3422 = vpop.f32.mrb[0].mxu0
      %v3423 = vadd.f32 0.0, %v3422
      %v3424 = vpop.f32.mrb[0].mxu0
      %v3425 = vpop.f32.mrb[0].mxu0
      %v3426 = vadd.f32 0.0, %v3425
      %v3427 = vpop.f32.mrb[0].mxu0
      %3428 = vmatprep.mubr.bf16.mxu0 0
      %3429 = vmatmul.mubr.bf16.gmra.mrb[0].mxu0 %v2448
      %v3430 = vpop.f32.mrb[0].mxu0
      %v3431 = vadd.f32 0.0, %v3430
      %v3432 = vpop.f32.mrb[0].mxu0
      %v3433 = vpop.f32.mrb[0].mxu0
      %v3434 = vadd.f32 0.0, %v3433
      %v3435 = vpop.f32.mrb[0].mxu0
      %3436 = vmatprep.mubr.bf16.mxu0 0
      %3437 = vmatmul.mubr.bf16.gmra.mrb[0].mxu0 %v2451
      %v3438 = vpop.f32.mrb[0].mxu0
      %v3439 = vadd.f32 0.0, %v3438
      %v3440 = vpop.f32.mrb[0].mxu0
      %v3441 = vpop.f32.mrb[0].mxu0
      %v3442 = vadd.f32 0.0, %v3441
      %v3443 = vpop.f32.mrb[0].mxu0
      %3444 = vmatprep.mubr.bf16.mxu0 0
      %3445 = vmatmul.mubr.bf16.gmra.mrb[0].mxu0 %v2453
      %v3446 = vpop.f32.mrb[0].mxu0
      %v3447 = vadd.f32 0.0, %v3446
      %v3448 = vpop.f32.mrb[0].mxu0
      %v3449 = vpop.f32.mrb[0].mxu0
      %v3450 = vadd.f32 0.0, %v3449
      %v3451 = vpop.f32.mrb[0].mxu0
      %3452 = vmatprep.mubr.bf16.mxu0 0
      %3453 = vmatmul.mubr.bf16.gmra.mrb[0].mxu0 %v2456
      %v3454 = vpop.f32.mrb[0].mxu0
      %v3455 = vadd.f32 0.0, %v3454
      %v3456 = vpop.f32.mrb[0].mxu0
      %v3457 = vpop.f32.mrb[0].mxu0
      %v3458 = vadd.f32 0.0, %v3457
      %v3459 = vpop.f32.mrb[0].mxu0
      %3460 = vmatprep.mubr.bf16.mxu0 0
      %3461 = vmatmul.mubr.bf16.gmra.mrb[0].mxu0 %v2458
      %v3462 = vpop.f32.mrb[0].mxu0
      %v3463 = vadd.f32 0.0, %v3462
      %v3464 = vpop.f32.mrb[0].mxu0
      %v3465 = vpop.f32.mrb[0].mxu0
      %v3466 = vadd.f32 0.0, %v3465
      %v3467 = vpop.f32.mrb[0].mxu0
      %3468 = vmatprep.mubr.bf16.mxu0 0
      %3469 = vmatmul.mubr.bf16.gmra.mrb[0].mxu0 %v2461
      %v3470 = vpop.f32.mrb[0].mxu0
      %v3471 = vadd.f32 0.0, %v3470
      %v3472 = vpop.f32.mrb[0].mxu0
      %v3473 = vpop.f32.mrb[0].mxu0
      %v3474 = vadd.f32 0.0, %v3473
      %v3475 = vpop.f32.mrb[0].mxu0
      %3476 = vmatprep.mubr.bf16.mxu0 0
      %3477 = vmatmul.mubr.bf16.gmra.mrb[0].mxu0 %v2463
      %v3478 = vpop.f32.mrb[0].mxu0
      %v3479 = vadd.f32 0.0, %v3478
      %v3480 = vpop.f32.mrb[0].mxu0
      %v3481 = vpop.f32.mrb[0].mxu0
      %v3482 = vadd.f32 0.0, %v3481
      %v3483 = vpop.f32.mrb[0].mxu0
      %3484 = vmatprep.mubr.bf16.mxu0 0
      %3485 = vmatmul.mubr.bf16.gmra.mrb[0].mxu0 %v2466
      %v3486 = vpop.f32.mrb[0].mxu0
      %v3487 = vadd.f32 0.0, %v3486
      %v3488 = vpop.f32.mrb[0].mxu0
      %v3489 = vpop.f32.mrb[0].mxu0
      %v3490 = vadd.f32 0.0, %v3489
      %v3491 = vpop.f32.mrb[0].mxu0
      %3492 = vmatprep.mubr.bf16.mxu0 0
      %3493 = vmatmul.mubr.bf16.gmra.mrb[0].mxu0 %v2468
      %v3494 = vpop.f32.mrb[0].mxu0
      %v3495 = vadd.f32 0.0, %v3494
      %v3496 = vpop.f32.mrb[0].mxu0
      %v3497 = vpop.f32.mrb[0].mxu0
      %v3498 = vadd.f32 0.0, %v3497
      %v3499 = vpop.f32.mrb[0].mxu0
      %3500 = vmatprep.mubr.bf16.mxu0 0
      %3501 = vmatmul.mubr.bf16.gmra.mrb[0].mxu0 %v3286
      %v3502 = vpop.f32.mrb[0].mxu0
      %v3503 = vadd.f32 0.0, %v3502
      %v3504 = vpop.f32.mrb[0].mxu0
      %v3505 = vpop.f32.mrb[0].mxu0
      %v3506 = vadd.f32 0.0, %v3505
      %v3507 = vpop.f32.mrb[0].mxu0
      %3508 = vmatprep.mubr.bf16.mxu0 0
      %3509 = vmatmul.mubr.bf16.gmra.mrb[0].mxu0 %v3288
      %v3510 = vpop.f32.mrb[0].mxu0
      %v3511 = vadd.f32 0.0, %v3510
      %v3512 = vpop.f32.mrb[0].mxu0
      %v3513 = vpop.f32.mrb[0].mxu0
      %v3514 = vadd.f32 0.0, %v3513
      %v3515 = vpop.f32.mrb[0].mxu0
      %3516 = vdwg.mxu0
      %v3517 = vadd.f32 %v3249, %v3391
      %v3518 = vadd.f32 %v3250, %v3394
      %v3519 = vadd.f32 %v3251, %v3399
      %v3520 = vadd.f32 %v3252, %v3402
      %v3521 = vadd.f32 %v3253, %v3407
      %v3522 = vadd.f32 %v3254, %v3410
      %v3523 = vadd.f32 %v3255, %v3415
      %v3524 = vadd.f32 %v3256, %v3418
      %v3525 = vadd.f32 %v3257, %v3423
      %v3526 = vadd.f32 %v3258, %v3426
      %v3527 = vadd.f32 %v3259, %v3431
      %v3528 = vadd.f32 %v3260, %v3434
      %v3529 = vadd.f32 %v3261, %v3439
      %v3530 = vadd.f32 %v3262, %v3442
      %v3531 = vadd.f32 %v3263, %v3447
      %v3532 = vadd.f32 %v3264, %v3450
      %v3533 = vadd.f32 %v3265, %v3455
      %v3534 = vadd.f32 %v3266, %v3458
      %v3535 = vadd.f32 %v3267, %v3463
      %v3536 = vadd.f32 %v3268, %v3466
      %v3537 = vadd.f32 %v3269, %v3471
      %v3538 = vadd.f32 %v3270, %v3474
      %v3539 = vadd.f32 %v3271, %v3479
      %v3540 = vadd.f32 %v3272, %v3482
      %v3541 = vadd.f32 %v3273, %v3487
      %v3542 = vadd.f32 %v3274, %v3490
      %v3543 = vadd.f32 %v3275, %v3495
      %v3544 = vadd.f32 %v3276, %v3498
      %v3545 = vadd.f32 %v3277, %v3503
      %v3546 = vadd.f32 %v3278, %v3506
      %v3547 = vadd.f32 %v3279, %v3511
      %v3548 = vadd.f32 %v3280, %v3514
      %s3549 = scalar_lea.vmem %s2, 384
      %v3550 = vld [vmem:[%s3549] sm:$0xf]
      %v3551 = vld [vmem:[%s3549 + $0x4] sm:$0xf]
      %v3552 = vld [vmem:[%s3549 + $0x8] sm:$0xf]
      %v3553 = vld [vmem:[%s3549 + $0xc] sm:$0xf]
      %v3554 = vld [vmem:[%s3549 + $0x10] sm:$0xf]
      %v3555 = vld [vmem:[%s3549 + $0x14] sm:$0xf]
      %v3556 = vld [vmem:[%s3549 + $0x18] sm:$0xf]
      %v3557 = vld [vmem:[%s3549 + $0x1c] sm:$0xf]
      %v3558 = vld [vmem:[%s3549 + $0x20] sm:$0xf]
      %v3559 = vld [vmem:[%s3549 + $0x24] sm:$0xf]
      %v3560 = vld [vmem:[%s3549 + $0x28] sm:$0xf]
      %v3561 = vld [vmem:[%s3549 + $0x2c] sm:$0xf]
      %v3562 = vld [vmem:[%s3549 + $0x30] sm:$0xf]
      %v3563 = vld [vmem:[%s3549 + $0x34] sm:$0xf]
      %v3564 = vld [vmem:[%s3549 + $0x38] sm:$0xf]
      %v3565 = vld [vmem:[%s3549 + $0x3c] sm:$0xf]
      %v3582 = vunpack.c.l.b16 %v3550
      %v3583 = vunpack.c.l.b16 %v3551
      %v3584 = vunpack.c.l.b16 %v3552
      %v3585 = vunpack.c.l.b16 %v3553
      %v3586 = vunpack.c.l.b16 %v3554
      %v3587 = vunpack.c.l.b16 %v3555
      %v3588 = vunpack.c.l.b16 %v3556
      %v3589 = vunpack.c.l.b16 %v3557
      %v3590 = vunpack.c.l.b16 %v3558
      %v3591 = vunpack.c.l.b16 %v3559
      %v3592 = vunpack.c.l.b16 %v3560
      %v3593 = vunpack.c.l.b16 %v3561
      %v3594 = vunpack.c.l.b16 %v3562
      %v3595 = vunpack.c.l.b16 %v3563
      %v3596 = vunpack.c.l.b16 %v3564
      %v3597 = vunpack.c.l.b16 %v3565
      %v3598 = vpack.c.b16 %v3583, %v3582
      %v3599 = vpack.c.b16 %v3585, %v3584
      %v3600 = vpack.c.b16 %v3587, %v3586
      %v3601 = vpack.c.b16 %v3589, %v3588
      %v3602 = vpack.c.b16 %v3591, %v3590
      %v3603 = vpack.c.b16 %v3593, %v3592
      %v3604 = vpack.c.b16 %v3595, %v3594
      %v3605 = vpack.c.b16 %v3597, %v3596
      %3614 = vmatprep.subr.bf16.mxu0 0
      %3615 = vmatpush1.bf16.msra.mxu0 %v3598
      %3616 = vmatprep.subr.bf16.mxu0 0
      %3617 = vmatpush1.bf16.msra.mxu0 %v3599
      %3618 = vmatprep.subr.bf16.mxu0 0
      %3619 = vmatpush1.bf16.msra.mxu0 %v3600
      %3620 = vmatprep.subr.bf16.mxu0 0
      %3621 = vmatpush1.bf16.msra.mxu0 %v3601
      %3622 = vmatprep.subr.bf16.mxu0 0
      %3623 = vmatpush1.bf16.msra.mxu0 %v3602
      %3624 = vmatprep.subr.bf16.mxu0 0
      %3625 = vmatpush1.bf16.msra.mxu0 %v3603
      %3626 = vmatprep.subr.bf16.mxu0 0
      %3627 = vmatpush1.bf16.msra.mxu0 %v3604
      %3628 = vmatprep.subr.bf16.mxu0 0
      %3629 = vmatpush1.bf16.msra.mxu0 %v3605
      %3630 = vmatprep.subr.bf16.mxu0 0
      %3631 = vmatpush1.bf16.msra.mxu0 0
      %3632 = vmatprep.subr.bf16.mxu0 0
      %3633 = vmatpush1.bf16.msra.mxu0 0
      %3634 = vmatprep.subr.bf16.mxu0 0
      %3635 = vmatpush1.bf16.msra.mxu0 0
      %3636 = vmatprep.subr.bf16.mxu0 0
      %3637 = vmatpush1.bf16.msra.mxu0 0
      %3638 = vmatprep.subr.bf16.mxu0 0
      %3639 = vmatpush1.bf16.msra.mxu0 0
      %3640 = vmatprep.subr.bf16.mxu0 0
      %3641 = vmatpush1.bf16.msra.mxu0 0
      %3642 = vmatprep.subr.bf16.mxu0 0
      %3643 = vmatpush1.bf16.msra.mxu0 0
      %3644 = vmatprep.subr.bf16.mxu0 0
      %3645 = vmatpush1.bf16.msra.mxu0 0
      %3646 = vmatprep.mubr.bf16.mxu0 0
      %3647 = vmatmul.mubr.bf16.gmra.mrb[0].mxu0 %v1752
      %v3648 = vpop.f32.mrb[0].mxu0
      %v3649 = vadd.f32 0.0, %v3648
      %v3650 = vpop.f32.mrb[0].mxu0
      %v3651 = vpop.f32.mrb[0].mxu0
      %v3652 = vadd.f32 0.0, %v3651
      %v3653 = vpop.f32.mrb[0].mxu0
      %3654 = vmatprep.mubr.bf16.mxu0 0
      %3655 = vmatmul.mubr.bf16.gmra.mrb[0].mxu0 %v1753
      %v3656 = vpop.f32.mrb[0].mxu0
      %v3657 = vadd.f32 0.0, %v3656
      %v3658 = vpop.f32.mrb[0].mxu0
      %v3659 = vpop.f32.mrb[0].mxu0
      %v3660 = vadd.f32 0.0, %v3659
      %v3661 = vpop.f32.mrb[0].mxu0
      %3662 = vmatprep.mubr.bf16.mxu0 0
      %3663 = vmatmul.mubr.bf16.gmra.mrb[0].mxu0 %v1755
      %v3664 = vpop.f32.mrb[0].mxu0
      %v3665 = vadd.f32 0.0, %v3664
      %v3666 = vpop.f32.mrb[0].mxu0
      %v3667 = vpop.f32.mrb[0].mxu0
      %v3668 = vadd.f32 0.0, %v3667
      %v3669 = vpop.f32.mrb[0].mxu0
      %3670 = vmatprep.mubr.bf16.mxu0 0
      %3671 = vmatmul.mubr.bf16.gmra.mrb[0].mxu0 %v1756
      %v3672 = vpop.f32.mrb[0].mxu0
      %v3673 = vadd.f32 0.0, %v3672
      %v3674 = vpop.f32.mrb[0].mxu0
      %v3675 = vpop.f32.mrb[0].mxu0
      %v3676 = vadd.f32 0.0, %v3675
      %v3677 = vpop.f32.mrb[0].mxu0
      %3678 = vmatprep.mubr.bf16.mxu0 0
      %3679 = vmatmul.mubr.bf16.gmra.mrb[0].mxu0 %v1758
      %v3680 = vpop.f32.mrb[0].mxu0
      %v3681 = vadd.f32 0.0, %v3680
      %v3682 = vpop.f32.mrb[0].mxu0
      %v3683 = vpop.f32.mrb[0].mxu0
      %v3684 = vadd.f32 0.0, %v3683
      %v3685 = vpop.f32.mrb[0].mxu0
      %3686 = vmatprep.mubr.bf16.mxu0 0
      %3687 = vmatmul.mubr.bf16.gmra.mrb[0].mxu0 %v1759
      %v3688 = vpop.f32.mrb[0].mxu0
      %v3689 = vadd.f32 0.0, %v3688
      %v3690 = vpop.f32.mrb[0].mxu0
      %v3691 = vpop.f32.mrb[0].mxu0
      %v3692 = vadd.f32 0.0, %v3691
      %v3693 = vpop.f32.mrb[0].mxu0
      %3694 = vmatprep.mubr.bf16.mxu0 0
      %3695 = vmatmul.mubr.bf16.gmra.mrb[0].mxu0 %v1761
      %v3696 = vpop.f32.mrb[0].mxu0
      %v3697 = vadd.f32 0.0, %v3696
      %v3698 = vpop.f32.mrb[0].mxu0
      %v3699 = vpop.f32.mrb[0].mxu0
      %v3700 = vadd.f32 0.0, %v3699
      %v3701 = vpop.f32.mrb[0].mxu0
      %3702 = vmatprep.mubr.bf16.mxu0 0
      %3703 = vmatmul.mubr.bf16.gmra.mrb[0].mxu0 %v1762
      %v3704 = vpop.f32.mrb[0].mxu0
      %v3705 = vadd.f32 0.0, %v3704
      %v3706 = vpop.f32.mrb[0].mxu0
      %v3707 = vpop.f32.mrb[0].mxu0
      %v3708 = vadd.f32 0.0, %v3707
      %v3709 = vpop.f32.mrb[0].mxu0
      %3710 = vmatprep.mubr.bf16.mxu0 0
      %3711 = vmatmul.mubr.bf16.gmra.mrb[0].mxu0 %v1764
      %v3712 = vpop.f32.mrb[0].mxu0
      %v3713 = vadd.f32 0.0, %v3712
      %v3714 = vpop.f32.mrb[0].mxu0
      %v3715 = vpop.f32.mrb[0].mxu0
      %v3716 = vadd.f32 0.0, %v3715
      %v3717 = vpop.f32.mrb[0].mxu0
      %3718 = vmatprep.mubr.bf16.mxu0 0
      %3719 = vmatmul.mubr.bf16.gmra.mrb[0].mxu0 %v1765
      %v3720 = vpop.f32.mrb[0].mxu0
      %v3721 = vadd.f32 0.0, %v3720
      %v3722 = vpop.f32.mrb[0].mxu0
      %v3723 = vpop.f32.mrb[0].mxu0
      %v3724 = vadd.f32 0.0, %v3723
      %v3725 = vpop.f32.mrb[0].mxu0
      %3726 = vmatprep.mubr.bf16.mxu0 0
      %3727 = vmatmul.mubr.bf16.gmra.mrb[0].mxu0 %v1767
      %v3728 = vpop.f32.mrb[0].mxu0
      %v3729 = vadd.f32 0.0, %v3728
      %v3730 = vpop.f32.mrb[0].mxu0
      %v3731 = vpop.f32.mrb[0].mxu0
      %v3732 = vadd.f32 0.0, %v3731
      %v3733 = vpop.f32.mrb[0].mxu0
      %3734 = vmatprep.mubr.bf16.mxu0 0
      %3735 = vmatmul.mubr.bf16.gmra.mrb[0].mxu0 %v1768
      %v3736 = vpop.f32.mrb[0].mxu0
      %v3737 = vadd.f32 0.0, %v3736
      %v3738 = vpop.f32.mrb[0].mxu0
      %v3739 = vpop.f32.mrb[0].mxu0
      %v3740 = vadd.f32 0.0, %v3739
      %v3741 = vpop.f32.mrb[0].mxu0
      %3742 = vmatprep.mubr.bf16.mxu0 0
      %3743 = vmatmul.mubr.bf16.gmra.mrb[0].mxu0 %v1770
      %v3744 = vpop.f32.mrb[0].mxu0
      %v3745 = vadd.f32 0.0, %v3744
      %v3746 = vpop.f32.mrb[0].mxu0
      %v3747 = vpop.f32.mrb[0].mxu0
      %v3748 = vadd.f32 0.0, %v3747
      %v3749 = vpop.f32.mrb[0].mxu0
      %3750 = vmatprep.mubr.bf16.mxu0 0
      %3751 = vmatmul.mubr.bf16.gmra.mrb[0].mxu0 %v1771
      %v3752 = vpop.f32.mrb[0].mxu0
      %v3753 = vadd.f32 0.0, %v3752
      %v3754 = vpop.f32.mrb[0].mxu0
      %v3755 = vpop.f32.mrb[0].mxu0
      %v3756 = vadd.f32 0.0, %v3755
      %v3757 = vpop.f32.mrb[0].mxu0
      %3758 = vmatprep.mubr.bf16.mxu0 0
      %3759 = vmatmul.mubr.bf16.gmra.mrb[0].mxu0 %v1773
      %v3760 = vpop.f32.mrb[0].mxu0
      %v3761 = vadd.f32 0.0, %v3760
      %v3762 = vpop.f32.mrb[0].mxu0
      %v3763 = vpop.f32.mrb[0].mxu0
      %v3764 = vadd.f32 0.0, %v3763
      %v3765 = vpop.f32.mrb[0].mxu0
      %3766 = vmatprep.mubr.bf16.mxu0 0
      %3767 = vmatmul.mubr.bf16.gmra.mrb[0].mxu0 %v1774
      %v3768 = vpop.f32.mrb[0].mxu0
      %v3769 = vadd.f32 0.0, %v3768
      %v3770 = vpop.f32.mrb[0].mxu0
      %v3771 = vpop.f32.mrb[0].mxu0
      %v3772 = vadd.f32 0.0, %v3771
      %v3773 = vpop.f32.mrb[0].mxu0
      %3774 = vdwg.mxu0
      %v3775 = vadd.f32 %v3517, %v3649
      %v3776 = vadd.f32 %v3518, %v3652
      %v3777 = vadd.f32 %v3519, %v3657
      %v3778 = vadd.f32 %v3520, %v3660
      %v3779 = vadd.f32 %v3521, %v3665
      %v3780 = vadd.f32 %v3522, %v3668
      %v3781 = vadd.f32 %v3523, %v3673
      %v3782 = vadd.f32 %v3524, %v3676
      %v3783 = vadd.f32 %v3525, %v3681
      %v3784 = vadd.f32 %v3526, %v3684
      %v3785 = vadd.f32 %v3527, %v3689
      %v3786 = vadd.f32 %v3528, %v3692
      %v3787 = vadd.f32 %v3529, %v3697
      %v3788 = vadd.f32 %v3530, %v3700
      %v3789 = vadd.f32 %v3531, %v3705
      %v3790 = vadd.f32 %v3532, %v3708
      %v3791 = vadd.f32 %v3533, %v3713
      %v3792 = vadd.f32 %v3534, %v3716
      %v3793 = vadd.f32 %v3535, %v3721
      %v3794 = vadd.f32 %v3536, %v3724
      %v3795 = vadd.f32 %v3537, %v3729
      %v3796 = vadd.f32 %v3538, %v3732
      %v3797 = vadd.f32 %v3539, %v3737
      %v3798 = vadd.f32 %v3540, %v3740
      %v3799 = vadd.f32 %v3541, %v3745
      %v3800 = vadd.f32 %v3542, %v3748
      %v3801 = vadd.f32 %v3543, %v3753
      %v3802 = vadd.f32 %v3544, %v3756
      %v3803 = vadd.f32 %v3545, %v3761
      %v3804 = vadd.f32 %v3546, %v3764
      %v3805 = vadd.f32 %v3547, %v3769
      %v3806 = vadd.f32 %v3548, %v3772
      %v3808 = vshrl.u32 %v1773, 16
      %v3810 = vshll.u32 %v1773, 16
      %v3812 = vrot.slane %v3810, 1
      %v3813 = vor.u32 %v3808, %v3812
      %v3815 = vshll.u32 %v1774, 16
      %v3817 = vrot.slane %v3815, 1
      %v3818 = vsel %vm1792, %v3813, %v3817
      %v3819 = vshrl.u32 %v1774, 16
      %v3821 = vor.u32 %v3819, %v3817
      %v3823 = vshll.u32 %v1775, 16
      %v3825 = vrot.slane %v3823, 1
      %v3826 = vsel %vm1792, %v3821, %v3825
      %s3829 = scalar_lea.vmem %s2, 448
      %v3830 = vld [vmem:[%s3829] sm:$0xf]
      %v3831 = vld [vmem:[%s3829 + $0x4] sm:$0xf]
      %v3832 = vld [vmem:[%s3829 + $0x8] sm:$0xf]
      %v3833 = vld [vmem:[%s3829 + $0xc] sm:$0xf]
      %v3834 = vld [vmem:[%s3829 + $0x10] sm:$0xf]
      %v3835 = vld [vmem:[%s3829 + $0x14] sm:$0xf]
      %v3836 = vld [vmem:[%s3829 + $0x18] sm:$0xf]
      %v3837 = vld [vmem:[%s3829 + $0x1c] sm:$0xf]
      %v3838 = vld [vmem:[%s3829 + $0x20] sm:$0xf]
      %v3839 = vld [vmem:[%s3829 + $0x24] sm:$0xf]
      %v3840 = vld [vmem:[%s3829 + $0x28] sm:$0xf]
      %v3841 = vld [vmem:[%s3829 + $0x2c] sm:$0xf]
      %v3842 = vld [vmem:[%s3829 + $0x30] sm:$0xf]
      %v3843 = vld [vmem:[%s3829 + $0x34] sm:$0xf]
      %v3844 = vld [vmem:[%s3829 + $0x38] sm:$0xf]
      %v3845 = vld [vmem:[%s3829 + $0x3c] sm:$0xf]
      %v3862 = vunpack.c.l.b16 %v3830
      %v3863 = vunpack.c.l.b16 %v3831
      %v3864 = vunpack.c.l.b16 %v3832
      %v3865 = vunpack.c.l.b16 %v3833
      %v3866 = vunpack.c.l.b16 %v3834
      %v3867 = vunpack.c.l.b16 %v3835
      %v3868 = vunpack.c.l.b16 %v3836
      %v3869 = vunpack.c.l.b16 %v3837
      %v3870 = vunpack.c.l.b16 %v3838
      %v3871 = vunpack.c.l.b16 %v3839
      %v3872 = vunpack.c.l.b16 %v3840
      %v3873 = vunpack.c.l.b16 %v3841
      %v3874 = vunpack.c.l.b16 %v3842
      %v3875 = vunpack.c.l.b16 %v3843
      %v3876 = vunpack.c.l.b16 %v3844
      %v3877 = vunpack.c.l.b16 %v3845
      %v3878 = vpack.c.b16 %v3863, %v3862
      %v3879 = vpack.c.b16 %v3865, %v3864
      %v3880 = vpack.c.b16 %v3867, %v3866
      %v3881 = vpack.c.b16 %v3869, %v3868
      %v3882 = vpack.c.b16 %v3871, %v3870
      %v3883 = vpack.c.b16 %v3873, %v3872
      %v3884 = vpack.c.b16 %v3875, %v3874
      %v3885 = vpack.c.b16 %v3877, %v3876
      %3894 = vmatprep.subr.bf16.mxu0 0
      %3895 = vmatpush1.bf16.msra.mxu0 %v3878
      %3896 = vmatprep.subr.bf16.mxu0 0
      %3897 = vmatpush1.bf16.msra.mxu0 %v3879
      %3898 = vmatprep.subr.bf16.mxu0 0
      %3899 = vmatpush1.bf16.msra.mxu0 %v3880
      %3900 = vmatprep.subr.bf16.mxu0 0
      %3901 = vmatpush1.bf16.msra.mxu0 %v3881
      %3902 = vmatprep.subr.bf16.mxu0 0
      %3903 = vmatpush1.bf16.msra.mxu0 %v3882
      %3904 = vmatprep.subr.bf16.mxu0 0
      %3905 = vmatpush1.bf16.msra.mxu0 %v3883
      %3906 = vmatprep.subr.bf16.mxu0 0
      %3907 = vmatpush1.bf16.msra.mxu0 %v3884
      %3908 = vmatprep.subr.bf16.mxu0 0
      %3909 = vmatpush1.bf16.msra.mxu0 %v3885
      %3910 = vmatprep.subr.bf16.mxu0 0
      %3911 = vmatpush1.bf16.msra.mxu0 0
      %3912 = vmatprep.subr.bf16.mxu0 0
      %3913 = vmatpush1.bf16.msra.mxu0 0
      %3914 = vmatprep.subr.bf16.mxu0 0
      %3915 = vmatpush1.bf16.msra.mxu0 0
      %3916 = vmatprep.subr.bf16.mxu0 0
      %3917 = vmatpush1.bf16.msra.mxu0 0
      %3918 = vmatprep.subr.bf16.mxu0 0
      %3919 = vmatpush1.bf16.msra.mxu0 0
      %3920 = vmatprep.subr.bf16.mxu0 0
      %3921 = vmatpush1.bf16.msra.mxu0 0
      %3922 = vmatprep.subr.bf16.mxu0 0
      %3923 = vmatpush1.bf16.msra.mxu0 0
      %3924 = vmatprep.subr.bf16.mxu0 0
      %3925 = vmatpush1.bf16.msra.mxu0 0
      %3926 = vmatprep.mubr.bf16.mxu0 0
      %3927 = vmatmul.mubr.bf16.gmra.mrb[0].mxu0 %v1844
      %v3928 = vpop.f32.mrb[0].mxu0
      %v3929 = vadd.f32 0.0, %v3928
      %v3930 = vpop.f32.mrb[0].mxu0
      %v3931 = vpop.f32.mrb[0].mxu0
      %v3932 = vadd.f32 0.0, %v3931
      %v3933 = vpop.f32.mrb[0].mxu0
      %3934 = vmatprep.mubr.bf16.mxu0 0
      %3935 = vmatmul.mubr.bf16.gmra.mrb[0].mxu0 %v1852
      %v3936 = vpop.f32.mrb[0].mxu0
      %v3937 = vadd.f32 0.0, %v3936
      %v3938 = vpop.f32.mrb[0].mxu0
      %v3939 = vpop.f32.mrb[0].mxu0
      %v3940 = vadd.f32 0.0, %v3939
      %v3941 = vpop.f32.mrb[0].mxu0
      %3942 = vmatprep.mubr.bf16.mxu0 0
      %3943 = vmatmul.mubr.bf16.gmra.mrb[0].mxu0 %v1864
      %v3944 = vpop.f32.mrb[0].mxu0
      %v3945 = vadd.f32 0.0, %v3944
      %v3946 = vpop.f32.mrb[0].mxu0
      %v3947 = vpop.f32.mrb[0].mxu0
      %v3948 = vadd.f32 0.0, %v3947
      %v3949 = vpop.f32.mrb[0].mxu0
      %3950 = vmatprep.mubr.bf16.mxu0 0
      %3951 = vmatmul.mubr.bf16.gmra.mrb[0].mxu0 %v1872
      %v3952 = vpop.f32.mrb[0].mxu0
      %v3953 = vadd.f32 0.0, %v3952
      %v3954 = vpop.f32.mrb[0].mxu0
      %v3955 = vpop.f32.mrb[0].mxu0
      %v3956 = vadd.f32 0.0, %v3955
      %v3957 = vpop.f32.mrb[0].mxu0
      %3958 = vmatprep.mubr.bf16.mxu0 0
      %3959 = vmatmul.mubr.bf16.gmra.mrb[0].mxu0 %v1884
      %v3960 = vpop.f32.mrb[0].mxu0
      %v3961 = vadd.f32 0.0, %v3960
      %v3962 = vpop.f32.mrb[0].mxu0
      %v3963 = vpop.f32.mrb[0].mxu0
      %v3964 = vadd.f32 0.0, %v3963
      %v3965 = vpop.f32.mrb[0].mxu0
      %3966 = vmatprep.mubr.bf16.mxu0 0
      %3967 = vmatmul.mubr.bf16.gmra.mrb[0].mxu0 %v1892
      %v3968 = vpop.f32.mrb[0].mxu0
      %v3969 = vadd.f32 0.0, %v3968
      %v3970 = vpop.f32.mrb[0].mxu0
      %v3971 = vpop.f32.mrb[0].mxu0
      %v3972 = vadd.f32 0.0, %v3971
      %v3973 = vpop.f32.mrb[0].mxu0
      %3974 = vmatprep.mubr.bf16.mxu0 0
      %3975 = vmatmul.mubr.bf16.gmra.mrb[0].mxu0 %v1904
      %v3976 = vpop.f32.mrb[0].mxu0
      %v3977 = vadd.f32 0.0, %v3976
      %v3978 = vpop.f32.mrb[0].mxu0
      %v3979 = vpop.f32.mrb[0].mxu0
      %v3980 = vadd.f32 0.0, %v3979
      %v3981 = vpop.f32.mrb[0].mxu0
      %3982 = vmatprep.mubr.bf16.mxu0 0
      %3983 = vmatmul.mubr.bf16.gmra.mrb[0].mxu0 %v1912
      %v3984 = vpop.f32.mrb[0].mxu0
      %v3985 = vadd.f32 0.0, %v3984
      %v3986 = vpop.f32.mrb[0].mxu0
      %v3987 = vpop.f32.mrb[0].mxu0
      %v3988 = vadd.f32 0.0, %v3987
      %v3989 = vpop.f32.mrb[0].mxu0
      %3990 = vmatprep.mubr.bf16.mxu0 0
      %3991 = vmatmul.mubr.bf16.gmra.mrb[0].mxu0 %v1924
      %v3992 = vpop.f32.mrb[0].mxu0
      %v3993 = vadd.f32 0.0, %v3992
      %v3994 = vpop.f32.mrb[0].mxu0
      %v3995 = vpop.f32.mrb[0].mxu0
      %v3996 = vadd.f32 0.0, %v3995
      %v3997 = vpop.f32.mrb[0].mxu0
      %3998 = vmatprep.mubr.bf16.mxu0 0
      %3999 = vmatmul.mubr.bf16.gmra.mrb[0].mxu0 %v1932
      %v4000 = vpop.f32.mrb[0].mxu0
      %v4001 = vadd.f32 0.0, %v4000
      %v4002 = vpop.f32.mrb[0].mxu0
      %v4003 = vpop.f32.mrb[0].mxu0
      %v4004 = vadd.f32 0.0, %v4003
      %v4005 = vpop.f32.mrb[0].mxu0
      %4006 = vmatprep.mubr.bf16.mxu0 0
      %4007 = vmatmul.mubr.bf16.gmra.mrb[0].mxu0 %v1944
      %v4008 = vpop.f32.mrb[0].mxu0
      %v4009 = vadd.f32 0.0, %v4008
      %v4010 = vpop.f32.mrb[0].mxu0
      %v4011 = vpop.f32.mrb[0].mxu0
      %v4012 = vadd.f32 0.0, %v4011
      %v4013 = vpop.f32.mrb[0].mxu0
      %4014 = vmatprep.mubr.bf16.mxu0 0
      %4015 = vmatmul.mubr.bf16.gmra.mrb[0].mxu0 %v1952
      %v4016 = vpop.f32.mrb[0].mxu0
      %v4017 = vadd.f32 0.0, %v4016
      %v4018 = vpop.f32.mrb[0].mxu0
      %v4019 = vpop.f32.mrb[0].mxu0
      %v4020 = vadd.f32 0.0, %v4019
      %v4021 = vpop.f32.mrb[0].mxu0
      %4022 = vmatprep.mubr.bf16.mxu0 0
      %4023 = vmatmul.mubr.bf16.gmra.mrb[0].mxu0 %v3012
      %v4024 = vpop.f32.mrb[0].mxu0
      %v4025 = vadd.f32 0.0, %v4024
      %v4026 = vpop.f32.mrb[0].mxu0
      %v4027 = vpop.f32.mrb[0].mxu0
      %v4028 = vadd.f32 0.0, %v4027
      %v4029 = vpop.f32.mrb[0].mxu0
      %4030 = vmatprep.mubr.bf16.mxu0 0
      %4031 = vmatmul.mubr.bf16.gmra.mrb[0].mxu0 %v3020
      %v4032 = vpop.f32.mrb[0].mxu0
      %v4033 = vadd.f32 0.0, %v4032
      %v4034 = vpop.f32.mrb[0].mxu0
      %v4035 = vpop.f32.mrb[0].mxu0
      %v4036 = vadd.f32 0.0, %v4035
      %v4037 = vpop.f32.mrb[0].mxu0
      %4038 = vmatprep.mubr.bf16.mxu0 0
      %4039 = vmatmul.mubr.bf16.gmra.mrb[0].mxu0 %v3818
      %v4040 = vpop.f32.mrb[0].mxu0
      %v4041 = vadd.f32 0.0, %v4040
      %v4042 = vpop.f32.mrb[0].mxu0
      %v4043 = vpop.f32.mrb[0].mxu0
      %v4044 = vadd.f32 0.0, %v4043
      %v4045 = vpop.f32.mrb[0].mxu0
      %4046 = vmatprep.mubr.bf16.mxu0 0
      %4047 = vmatmul.mubr.bf16.gmra.mrb[0].mxu0 %v3826
      %v4048 = vpop.f32.mrb[0].mxu0
      %v4049 = vadd.f32 0.0, %v4048
      %v4050 = vpop.f32.mrb[0].mxu0
      %v4051 = vpop.f32.mrb[0].mxu0
      %v4052 = vadd.f32 0.0, %v4051
      %v4053 = vpop.f32.mrb[0].mxu0
      %4054 = vdwg.mxu0
      %v4055 = vadd.f32 %v3775, %v3929
      %v4056 = vadd.f32 %v3776, %v3932
      %v4057 = vadd.f32 %v3777, %v3937
      %v4058 = vadd.f32 %v3778, %v3940
      %v4059 = vadd.f32 %v3779, %v3945
      %v4060 = vadd.f32 %v3780, %v3948
      %v4061 = vadd.f32 %v3781, %v3953
      %v4062 = vadd.f32 %v3782, %v3956
      %v4063 = vadd.f32 %v3783, %v3961
      %v4064 = vadd.f32 %v3784, %v3964
      %v4065 = vadd.f32 %v3785, %v3969
      %v4066 = vadd.f32 %v3786, %v3972
      %v4067 = vadd.f32 %v3787, %v3977
      %v4068 = vadd.f32 %v3788, %v3980
      %v4069 = vadd.f32 %v3789, %v3985
      %v4070 = vadd.f32 %v3790, %v3988
      %v4071 = vadd.f32 %v3791, %v3993
      %v4072 = vadd.f32 %v3792, %v3996
      %v4073 = vadd.f32 %v3793, %v4001
      %v4074 = vadd.f32 %v3794, %v4004
      %v4075 = vadd.f32 %v3795, %v4009
      %v4076 = vadd.f32 %v3796, %v4012
      %v4077 = vadd.f32 %v3797, %v4017
      %v4078 = vadd.f32 %v3798, %v4020
      %v4079 = vadd.f32 %v3799, %v4025
      %v4080 = vadd.f32 %v3800, %v4028
      %v4081 = vadd.f32 %v3801, %v4033
      %v4082 = vadd.f32 %v3802, %v4036
      %v4083 = vadd.f32 %v3803, %v4041
      %v4084 = vadd.f32 %v3804, %v4044
      %v4085 = vadd.f32 %v3805, %v4049
      %v4086 = vadd.f32 %v3806, %v4052
      %v4090 = vrot.slane %v1773, 1
      %v4091 = vrot.slane %v1774, 1
      %v4092 = vsel %vm2428, %v4090, %v4091
      %v4093 = vrot.slane %v1775, 1
      %v4094 = vsel %vm2428, %v4091, %v4093
      %s4097 = scalar_lea.vmem %s2, 512
      %v4098 = vld [vmem:[%s4097] sm:$0xf]
      %v4099 = vld [vmem:[%s4097 + $0x4] sm:$0xf]
      %v4100 = vld [vmem:[%s4097 + $0x8] sm:$0xf]
      %v4101 = vld [vmem:[%s4097 + $0xc] sm:$0xf]
      %v4102 = vld [vmem:[%s4097 + $0x10] sm:$0xf]
      %v4103 = vld [vmem:[%s4097 + $0x14] sm:$0xf]
      %v4104 = vld [vmem:[%s4097 + $0x18] sm:$0xf]
      %v4105 = vld [vmem:[%s4097 + $0x1c] sm:$0xf]
      %v4106 = vld [vmem:[%s4097 + $0x20] sm:$0xf]
      %v4107 = vld [vmem:[%s4097 + $0x24] sm:$0xf]
      %v4108 = vld [vmem:[%s4097 + $0x28] sm:$0xf]
      %v4109 = vld [vmem:[%s4097 + $0x2c] sm:$0xf]
      %v4110 = vld [vmem:[%s4097 + $0x30] sm:$0xf]
      %v4111 = vld [vmem:[%s4097 + $0x34] sm:$0xf]
      %v4112 = vld [vmem:[%s4097 + $0x38] sm:$0xf]
      %v4113 = vld [vmem:[%s4097 + $0x3c] sm:$0xf]
      %v4130 = vunpack.c.l.b16 %v4098
      %v4131 = vunpack.c.l.b16 %v4099
      %v4132 = vunpack.c.l.b16 %v4100
      %v4133 = vunpack.c.l.b16 %v4101
      %v4134 = vunpack.c.l.b16 %v4102
      %v4135 = vunpack.c.l.b16 %v4103
      %v4136 = vunpack.c.l.b16 %v4104
      %v4137 = vunpack.c.l.b16 %v4105
      %v4138 = vunpack.c.l.b16 %v4106
      %v4139 = vunpack.c.l.b16 %v4107
      %v4140 = vunpack.c.l.b16 %v4108
      %v4141 = vunpack.c.l.b16 %v4109
      %v4142 = vunpack.c.l.b16 %v4110
      %v4143 = vunpack.c.l.b16 %v4111
      %v4144 = vunpack.c.l.b16 %v4112
      %v4145 = vunpack.c.l.b16 %v4113
      %v4146 = vpack.c.b16 %v4131, %v4130
      %v4147 = vpack.c.b16 %v4133, %v4132
      %v4148 = vpack.c.b16 %v4135, %v4134
      %v4149 = vpack.c.b16 %v4137, %v4136
      %v4150 = vpack.c.b16 %v4139, %v4138
      %v4151 = vpack.c.b16 %v4141, %v4140
      %v4152 = vpack.c.b16 %v4143, %v4142
      %v4153 = vpack.c.b16 %v4145, %v4144
      %4162 = vmatprep.subr.bf16.mxu0 0
      %4163 = vmatpush1.bf16.msra.mxu0 %v4146
      %4164 = vmatprep.subr.bf16.mxu0 0
      %4165 = vmatpush1.bf16.msra.mxu0 %v4147
      %4166 = vmatprep.subr.bf16.mxu0 0
      %4167 = vmatpush1.bf16.msra.mxu0 %v4148
      %4168 = vmatprep.subr.bf16.mxu0 0
      %4169 = vmatpush1.bf16.msra.mxu0 %v4149
      %4170 = vmatprep.subr.bf16.mxu0 0
      %4171 = vmatpush1.bf16.msra.mxu0 %v4150
      %4172 = vmatprep.subr.bf16.mxu0 0
      %4173 = vmatpush1.bf16.msra.mxu0 %v4151
      %4174 = vmatprep.subr.bf16.mxu0 0
      %4175 = vmatpush1.bf16.msra.mxu0 %v4152
      %4176 = vmatprep.subr.bf16.mxu0 0
      %4177 = vmatpush1.bf16.msra.mxu0 %v4153
      %4178 = vmatprep.subr.bf16.mxu0 0
      %4179 = vmatpush1.bf16.msra.mxu0 0
      %4180 = vmatprep.subr.bf16.mxu0 0
      %4181 = vmatpush1.bf16.msra.mxu0 0
      %4182 = vmatprep.subr.bf16.mxu0 0
      %4183 = vmatpush1.bf16.msra.mxu0 0
      %4184 = vmatprep.subr.bf16.mxu0 0
      %4185 = vmatpush1.bf16.msra.mxu0 0
      %4186 = vmatprep.subr.bf16.mxu0 0
      %4187 = vmatpush1.bf16.msra.mxu0 0
      %4188 = vmatprep.subr.bf16.mxu0 0
      %4189 = vmatpush1.bf16.msra.mxu0 0
      %4190 = vmatprep.subr.bf16.mxu0 0
      %4191 = vmatpush1.bf16.msra.mxu0 0
      %4192 = vmatprep.subr.bf16.mxu0 0
      %4193 = vmatpush1.bf16.msra.mxu0 0
      %4194 = vmatprep.mubr.bf16.mxu0 0
      %4195 = vmatmul.mubr.bf16.gmra.mrb[0].mxu0 %v2441
      %v4196 = vpop.f32.mrb[0].mxu0
      %v4197 = vadd.f32 0.0, %v4196
      %v4198 = vpop.f32.mrb[0].mxu0
      %v4199 = vpop.f32.mrb[0].mxu0
      %v4200 = vadd.f32 0.0, %v4199
      %v4201 = vpop.f32.mrb[0].mxu0
      %4202 = vmatprep.mubr.bf16.mxu0 0
      %4203 = vmatmul.mubr.bf16.gmra.mrb[0].mxu0 %v2443
      %v4204 = vpop.f32.mrb[0].mxu0
      %v4205 = vadd.f32 0.0, %v4204
      %v4206 = vpop.f32.mrb[0].mxu0
      %v4207 = vpop.f32.mrb[0].mxu0
      %v4208 = vadd.f32 0.0, %v4207
      %v4209 = vpop.f32.mrb[0].mxu0
      %4210 = vmatprep.mubr.bf16.mxu0 0
      %4211 = vmatmul.mubr.bf16.gmra.mrb[0].mxu0 %v2446
      %v4212 = vpop.f32.mrb[0].mxu0
      %v4213 = vadd.f32 0.0, %v4212
      %v4214 = vpop.f32.mrb[0].mxu0
      %v4215 = vpop.f32.mrb[0].mxu0
      %v4216 = vadd.f32 0.0, %v4215
      %v4217 = vpop.f32.mrb[0].mxu0
      %4218 = vmatprep.mubr.bf16.mxu0 0
      %4219 = vmatmul.mubr.bf16.gmra.mrb[0].mxu0 %v2448
      %v4220 = vpop.f32.mrb[0].mxu0
      %v4221 = vadd.f32 0.0, %v4220
      %v4222 = vpop.f32.mrb[0].mxu0
      %v4223 = vpop.f32.mrb[0].mxu0
      %v4224 = vadd.f32 0.0, %v4223
      %v4225 = vpop.f32.mrb[0].mxu0
      %4226 = vmatprep.mubr.bf16.mxu0 0
      %4227 = vmatmul.mubr.bf16.gmra.mrb[0].mxu0 %v2451
      %v4228 = vpop.f32.mrb[0].mxu0
      %v4229 = vadd.f32 0.0, %v4228
      %v4230 = vpop.f32.mrb[0].mxu0
      %v4231 = vpop.f32.mrb[0].mxu0
      %v4232 = vadd.f32 0.0, %v4231
      %v4233 = vpop.f32.mrb[0].mxu0
      %4234 = vmatprep.mubr.bf16.mxu0 0
      %4235 = vmatmul.mubr.bf16.gmra.mrb[0].mxu0 %v2453
      %v4236 = vpop.f32.mrb[0].mxu0
      %v4237 = vadd.f32 0.0, %v4236
      %v4238 = vpop.f32.mrb[0].mxu0
      %v4239 = vpop.f32.mrb[0].mxu0
      %v4240 = vadd.f32 0.0, %v4239
      %v4241 = vpop.f32.mrb[0].mxu0
      %4242 = vmatprep.mubr.bf16.mxu0 0
      %4243 = vmatmul.mubr.bf16.gmra.mrb[0].mxu0 %v2456
      %v4244 = vpop.f32.mrb[0].mxu0
      %v4245 = vadd.f32 0.0, %v4244
      %v4246 = vpop.f32.mrb[0].mxu0
      %v4247 = vpop.f32.mrb[0].mxu0
      %v4248 = vadd.f32 0.0, %v4247
      %v4249 = vpop.f32.mrb[0].mxu0
      %4250 = vmatprep.mubr.bf16.mxu0 0
      %4251 = vmatmul.mubr.bf16.gmra.mrb[0].mxu0 %v2458
      %v4252 = vpop.f32.mrb[0].mxu0
      %v4253 = vadd.f32 0.0, %v4252
      %v4254 = vpop.f32.mrb[0].mxu0
      %v4255 = vpop.f32.mrb[0].mxu0
      %v4256 = vadd.f32 0.0, %v4255
      %v4257 = vpop.f32.mrb[0].mxu0
      %4258 = vmatprep.mubr.bf16.mxu0 0
      %4259 = vmatmul.mubr.bf16.gmra.mrb[0].mxu0 %v2461
      %v4260 = vpop.f32.mrb[0].mxu0
      %v4261 = vadd.f32 0.0, %v4260
      %v4262 = vpop.f32.mrb[0].mxu0
      %v4263 = vpop.f32.mrb[0].mxu0
      %v4264 = vadd.f32 0.0, %v4263
      %v4265 = vpop.f32.mrb[0].mxu0
      %4266 = vmatprep.mubr.bf16.mxu0 0
      %4267 = vmatmul.mubr.bf16.gmra.mrb[0].mxu0 %v2463
      %v4268 = vpop.f32.mrb[0].mxu0
      %v4269 = vadd.f32 0.0, %v4268
      %v4270 = vpop.f32.mrb[0].mxu0
      %v4271 = vpop.f32.mrb[0].mxu0
      %v4272 = vadd.f32 0.0, %v4271
      %v4273 = vpop.f32.mrb[0].mxu0
      %4274 = vmatprep.mubr.bf16.mxu0 0
      %4275 = vmatmul.mubr.bf16.gmra.mrb[0].mxu0 %v2466
      %v4276 = vpop.f32.mrb[0].mxu0
      %v4277 = vadd.f32 0.0, %v4276
      %v4278 = vpop.f32.mrb[0].mxu0
      %v4279 = vpop.f32.mrb[0].mxu0
      %v4280 = vadd.f32 0.0, %v4279
      %v4281 = vpop.f32.mrb[0].mxu0
      %4282 = vmatprep.mubr.bf16.mxu0 0
      %4283 = vmatmul.mubr.bf16.gmra.mrb[0].mxu0 %v2468
      %v4284 = vpop.f32.mrb[0].mxu0
      %v4285 = vadd.f32 0.0, %v4284
      %v4286 = vpop.f32.mrb[0].mxu0
      %v4287 = vpop.f32.mrb[0].mxu0
      %v4288 = vadd.f32 0.0, %v4287
      %v4289 = vpop.f32.mrb[0].mxu0
      %4290 = vmatprep.mubr.bf16.mxu0 0
      %4291 = vmatmul.mubr.bf16.gmra.mrb[0].mxu0 %v3286
      %v4292 = vpop.f32.mrb[0].mxu0
      %v4293 = vadd.f32 0.0, %v4292
      %v4294 = vpop.f32.mrb[0].mxu0
      %v4295 = vpop.f32.mrb[0].mxu0
      %v4296 = vadd.f32 0.0, %v4295
      %v4297 = vpop.f32.mrb[0].mxu0
      %4298 = vmatprep.mubr.bf16.mxu0 0
      %4299 = vmatmul.mubr.bf16.gmra.mrb[0].mxu0 %v3288
      %v4300 = vpop.f32.mrb[0].mxu0
      %v4301 = vadd.f32 0.0, %v4300
      %v4302 = vpop.f32.mrb[0].mxu0
      %v4303 = vpop.f32.mrb[0].mxu0
      %v4304 = vadd.f32 0.0, %v4303
      %v4305 = vpop.f32.mrb[0].mxu0
      %4306 = vmatprep.mubr.bf16.mxu0 0
      %4307 = vmatmul.mubr.bf16.gmra.mrb[0].mxu0 %v4092
      %v4308 = vpop.f32.mrb[0].mxu0
      %v4309 = vadd.f32 0.0, %v4308
      %v4310 = vpop.f32.mrb[0].mxu0
      %v4311 = vpop.f32.mrb[0].mxu0
      %v4312 = vadd.f32 0.0, %v4311
      %v4313 = vpop.f32.mrb[0].mxu0
      %4314 = vmatprep.mubr.bf16.mxu0 0
      %4315 = vmatmul.mubr.bf16.gmra.mrb[0].mxu0 %v4094
      %v4316 = vpop.f32.mrb[0].mxu0
      %v4317 = vadd.f32 0.0, %v4316
      %v4318 = vpop.f32.mrb[0].mxu0
      %v4319 = vpop.f32.mrb[0].mxu0
      %v4320 = vadd.f32 0.0, %v4319
      %v4321 = vpop.f32.mrb[0].mxu0
      %4322 = vdwg.mxu0
      %v4323 = vadd.f32 %v4055, %v4197
      %v4324 = vadd.f32 %v4056, %v4200
      %v4325 = vadd.f32 %v4057, %v4205
      %v4326 = vadd.f32 %v4058, %v4208
      %v4327 = vadd.f32 %v4059, %v4213
      %v4328 = vadd.f32 %v4060, %v4216
      %v4329 = vadd.f32 %v4061, %v4221
      %v4330 = vadd.f32 %v4062, %v4224
      %v4331 = vadd.f32 %v4063, %v4229
      %v4332 = vadd.f32 %v4064, %v4232
      %v4333 = vadd.f32 %v4065, %v4237
      %v4334 = vadd.f32 %v4066, %v4240
      %v4335 = vadd.f32 %v4067, %v4245
      %v4336 = vadd.f32 %v4068, %v4248
      %v4337 = vadd.f32 %v4069, %v4253
      %v4338 = vadd.f32 %v4070, %v4256
      %v4339 = vadd.f32 %v4071, %v4261
      %v4340 = vadd.f32 %v4072, %v4264
      %v4341 = vadd.f32 %v4073, %v4269
      %v4342 = vadd.f32 %v4074, %v4272
      %v4343 = vadd.f32 %v4075, %v4277
      %v4344 = vadd.f32 %v4076, %v4280
      %v4345 = vadd.f32 %v4077, %v4285
      %v4346 = vadd.f32 %v4078, %v4288
      %v4347 = vadd.f32 %v4079, %v4293
      %v4348 = vadd.f32 %v4080, %v4296
      %v4349 = vadd.f32 %v4081, %v4301
      %v4350 = vadd.f32 %v4082, %v4304
      %v4351 = vadd.f32 %v4083, %v4309
      %v4352 = vadd.f32 %v4084, %v4312
      %v4353 = vadd.f32 %v4085, %v4317
      %v4354 = vadd.f32 %v4086, %v4320
      %v4355 = vld [vmem:[%s3] sm:$0x1]
      %v4357 = vlaneseq
      %v4358 = vshrl.u32 %v4357, 7
      %v4359 = vsub.s32 0, %v4358
      %v4360 = vrot.slane %v4355, %v4359
      %v4362 = vadd.f32 %v4323, %v4360
      %v4363 = vadd.f32 %v4324, %v4360
      %v4364 = vadd.f32 %v4325, %v4360
      %v4365 = vadd.f32 %v4326, %v4360
      %v4366 = vadd.f32 %v4327, %v4360
      %v4367 = vadd.f32 %v4328, %v4360
      %v4368 = vadd.f32 %v4329, %v4360
      %v4369 = vadd.f32 %v4330, %v4360
      %v4370 = vadd.f32 %v4331, %v4360
      %v4371 = vadd.f32 %v4332, %v4360
      %v4372 = vadd.f32 %v4333, %v4360
      %v4373 = vadd.f32 %v4334, %v4360
      %v4374 = vadd.f32 %v4335, %v4360
      %v4375 = vadd.f32 %v4336, %v4360
      %v4376 = vadd.f32 %v4337, %v4360
      %v4377 = vadd.f32 %v4338, %v4360
      %v4378 = vadd.f32 %v4339, %v4360
      %v4379 = vadd.f32 %v4340, %v4360
      %v4380 = vadd.f32 %v4341, %v4360
      %v4381 = vadd.f32 %v4342, %v4360
      %v4382 = vadd.f32 %v4343, %v4360
      %v4383 = vadd.f32 %v4344, %v4360
      %v4384 = vadd.f32 %v4345, %v4360
      %v4385 = vadd.f32 %v4346, %v4360
      %v4386 = vadd.f32 %v4347, %v4360
      %v4387 = vadd.f32 %v4348, %v4360
      %v4388 = vadd.f32 %v4349, %v4360
      %v4389 = vadd.f32 %v4350, %v4360
      %v4390 = vadd.f32 %v4351, %v4360
      %v4391 = vadd.f32 %v4352, %v4360
      %v4392 = vadd.f32 %v4353, %v4360
      %v4393 = vadd.f32 %v4354, %v4360
      %4394 = vst [vmem:[%s275] sm:$0xff] %v4362
      %4395 = vst [vmem:[%s275 + $0x8] sm:$0xff] %v4363
      %4396 = vst [vmem:[%s275 + $0x10] sm:$0xff] %v4364
      %4397 = vst [vmem:[%s275 + $0x18] sm:$0xff] %v4365
      %4398 = vst [vmem:[%s275 + $0x20] sm:$0xff] %v4366
      %4399 = vst [vmem:[%s275 + $0x28] sm:$0xff] %v4367
      %4400 = vst [vmem:[%s275 + $0x30] sm:$0xff] %v4368
      %4401 = vst [vmem:[%s275 + $0x38] sm:$0xff] %v4369
      %4402 = vst [vmem:[%s275 + $0x40] sm:$0xff] %v4370
      %4403 = vst [vmem:[%s275 + $0x48] sm:$0xff] %v4371
      %4404 = vst [vmem:[%s275 + $0x50] sm:$0xff] %v4372
      %4405 = vst [vmem:[%s275 + $0x58] sm:$0xff] %v4373
      %4406 = vst [vmem:[%s275 + $0x60] sm:$0xff] %v4374
      %4407 = vst [vmem:[%s275 + $0x68] sm:$0xff] %v4375
      %4408 = vst [vmem:[%s275 + $0x70] sm:$0xff] %v4376
      %4409 = vst [vmem:[%s275 + $0x78] sm:$0xff] %v4377
      %4410 = vst [vmem:[%s275 + $0x80] sm:$0xff] %v4378
      %4411 = vst [vmem:[%s275 + $0x88] sm:$0xff] %v4379
      %4412 = vst [vmem:[%s275 + $0x90] sm:$0xff] %v4380
      %4413 = vst [vmem:[%s275 + $0x98] sm:$0xff] %v4381
      %4414 = vst [vmem:[%s275 + $0xa0] sm:$0xff] %v4382
      %4415 = vst [vmem:[%s275 + $0xa8] sm:$0xff] %v4383
      %4416 = vst [vmem:[%s275 + $0xb0] sm:$0xff] %v4384
      %4417 = vst [vmem:[%s275 + $0xb8] sm:$0xff] %v4385
      %4418 = vst [vmem:[%s275 + $0xc0] sm:$0xff] %v4386
      %4419 = vst [vmem:[%s275 + $0xc8] sm:$0xff] %v4387
      %4420 = vst [vmem:[%s275 + $0xd0] sm:$0xff] %v4388
      %4421 = vst [vmem:[%s275 + $0xd8] sm:$0xff] %v4389
      %4422 = vst [vmem:[%s275 + $0xe0] sm:$0xff] %v4390
      %4423 = vst [vmem:[%s275 + $0xe8] sm:$0xff] %v4391
      %4424 = vst [vmem:[%s275 + $0xf0] sm:$0xff] %v4392
      %4425 = vst [vmem:[%s275 + $0xf8] sm:$0xff] %v4393
      %v4426 = vadd.f32 %v4362, %v4363
      %v4427 = vadd.f32 %v4426, %v4364
      %v4428 = vadd.f32 %v4427, %v4365
      %v4429 = vadd.f32 %v4428, %v4366
      %v4430 = vadd.f32 %v4429, %v4367
      %v4431 = vadd.f32 %v4430, %v4368
      %v4432 = vadd.f32 %v4431, %v4369
      %v4433 = vadd.f32 %v4432, %v4370
      %v4434 = vadd.f32 %v4433, %v4371
      %v4435 = vadd.f32 %v4434, %v4372
      %v4436 = vadd.f32 %v4435, %v4373
      %v4437 = vadd.f32 %v4436, %v4374
      %v4438 = vadd.f32 %v4437, %v4375
      %v4439 = vadd.f32 %v4438, %v4376
      %v4440 = vadd.f32 %v4439, %v4377
      %v4441 = vadd.f32 %v4440, %v4378
      %v4442 = vadd.f32 %v4441, %v4379
      %v4443 = vadd.f32 %v4442, %v4380
      %v4444 = vadd.f32 %v4443, %v4381
      %v4445 = vadd.f32 %v4444, %v4382
      %v4446 = vadd.f32 %v4445, %v4383
      %v4447 = vadd.f32 %v4446, %v4384
      %v4448 = vadd.f32 %v4447, %v4385
      %v4449 = vadd.f32 %v4448, %v4386
      %v4450 = vadd.f32 %v4449, %v4387
      %v4451 = vadd.f32 %v4450, %v4388
      %v4452 = vadd.f32 %v4451, %v4389
      %v4453 = vadd.f32 %v4452, %v4390
      %v4454 = vadd.f32 %v4453, %v4391
      %v4455 = vadd.f32 %v4454, %v4392
      %v4456 = vadd.f32 %v4455, %v4393
      %v4457 = vrot.slane %v4456, 4
      %v4458 = vadd.f32 %v4456, %v4457
      %v4459 = vrot.slane %v4458, 2
      %v4460 = vadd.f32 %v4458, %v4459
      %v4461 = vrot.slane %v4460, 1
      %v4462 = vadd.f32 %v4460, %v4461
      %v4463 = vmul.f32 %v4362, %v4362
      %v4464 = vmul.f32 %v4363, %v4363
      %v4465 = vmul.f32 %v4364, %v4364
      %v4466 = vmul.f32 %v4365, %v4365
      %v4467 = vmul.f32 %v4366, %v4366
      %v4468 = vmul.f32 %v4367, %v4367
      %v4469 = vmul.f32 %v4368, %v4368
      %v4470 = vmul.f32 %v4369, %v4369
      %v4471 = vmul.f32 %v4370, %v4370
      %v4472 = vmul.f32 %v4371, %v4371
      %v4473 = vmul.f32 %v4372, %v4372
      %v4474 = vmul.f32 %v4373, %v4373
      %v4475 = vmul.f32 %v4374, %v4374
      %v4476 = vmul.f32 %v4375, %v4375
      %v4477 = vmul.f32 %v4376, %v4376
      %v4478 = vmul.f32 %v4377, %v4377
      %v4479 = vmul.f32 %v4378, %v4378
      %v4480 = vmul.f32 %v4379, %v4379
      %v4481 = vmul.f32 %v4380, %v4380
      %v4482 = vmul.f32 %v4381, %v4381
      %v4483 = vmul.f32 %v4382, %v4382
      %v4484 = vmul.f32 %v4383, %v4383
      %v4485 = vmul.f32 %v4384, %v4384
      %v4486 = vmul.f32 %v4385, %v4385
      %v4487 = vmul.f32 %v4386, %v4386
      %v4488 = vmul.f32 %v4387, %v4387
      %v4489 = vmul.f32 %v4388, %v4388
      %v4490 = vmul.f32 %v4389, %v4389
      %v4491 = vmul.f32 %v4390, %v4390
      %v4492 = vmul.f32 %v4391, %v4391
      %v4493 = vmul.f32 %v4392, %v4392
      %v4494 = vmul.f32 %v4393, %v4393
      %v4495 = vadd.f32 %v4463, %v4464
      %v4496 = vadd.f32 %v4495, %v4465
      %v4497 = vadd.f32 %v4496, %v4466
      %v4498 = vadd.f32 %v4497, %v4467
      %v4499 = vadd.f32 %v4498, %v4468
      %v4500 = vadd.f32 %v4499, %v4469
      %v4501 = vadd.f32 %v4500, %v4470
      %v4502 = vadd.f32 %v4501, %v4471
      %v4503 = vadd.f32 %v4502, %v4472
      %v4504 = vadd.f32 %v4503, %v4473
      %v4505 = vadd.f32 %v4504, %v4474
      %v4506 = vadd.f32 %v4505, %v4475
      %v4507 = vadd.f32 %v4506, %v4476
      %v4508 = vadd.f32 %v4507, %v4477
      %v4509 = vadd.f32 %v4508, %v4478
      %v4510 = vadd.f32 %v4509, %v4479
      %v4511 = vadd.f32 %v4510, %v4480
      %v4512 = vadd.f32 %v4511, %v4481
      %v4513 = vadd.f32 %v4512, %v4482
      %v4514 = vadd.f32 %v4513, %v4483
      %v4515 = vadd.f32 %v4514, %v4484
      %v4516 = vadd.f32 %v4515, %v4485
      %v4517 = vadd.f32 %v4516, %v4486
      %v4518 = vadd.f32 %v4517, %v4487
      %v4519 = vadd.f32 %v4518, %v4488
      %v4520 = vadd.f32 %v4519, %v4489
      %v4521 = vadd.f32 %v4520, %v4490
      %v4522 = vadd.f32 %v4521, %v4491
      %v4523 = vadd.f32 %v4522, %v4492
      %v4524 = vadd.f32 %v4523, %v4493
      %v4525 = vadd.f32 %v4524, %v4494
      %v4526 = vrot.slane %v4525, 4
      %v4527 = vadd.f32 %v4525, %v4526
      %v4528 = vrot.slane %v4527, 2
      %v4529 = vadd.f32 %v4527, %v4528
      %v4530 = vrot.slane %v4529, 1
      %v4531 = vadd.f32 %v4529, %v4530
      %vm4532 = vcmask 1040384
      %v4533 = vsel %vm4532, %v4462, %v4531
      %4534 = vst [vmem:[%s284] sm:$0x3] %v4533
      %s4535 = smul.u32 8, %s22
      %p4536 = scmp.lt.s32.totalorder %s21, 1
      %s4537 = scalar_select %p4536, %s21, 1
      %p4538 = scmp.lt.s32.totalorder %s4535, 31
      %s4539 = scalar_select %p4538, %s4535, 31
      %s4540 = smul.addr %s4539, 4
      %s4541 = smul.addr %s4537, 128
      %s4542 = sadd.s32 %s4540, %s4541
      %s4543 = smul.addr %s4542, 8
      %s4544 = scalar_lea.vmem %s4, %s4543
      %p4545 = scmp.lt.s32.totalorder %s21, 1
      %s4546 = scalar_select %p4545, %s21, 1
      %p4547 = scmp.lt.s32.totalorder %s22, 3
      %s4548 = scalar_select %p4547, %s22, 3
      %s4549 = smul.addr %s4546, 4
      %s4550 = sadd.s32 %s4548, %s4549
      %s4551 = smul.addr %s4550, 2
      %s4552 = scalar_lea.vmem %s5, %s4551
      // Predicated region
      $region37: #{unet_up_forward.8} parent=35 // pred_check
        %p4553 = pneg %p140
      $region38: #{unet_up_forward.8} parent=35 // pred_check_branch
        %4555 = sbr.rel (%p4553) target = $region40
      $region39: #{unet_up_forward.8} parent=35 // pred_region
        %s4556 = smul.u32 8, %s22
      $region40: #{unet_up_forward.8} parent=35 // pred_fallthru
        _
      // Predicated region
      $region41: #{unet_up_forward.8} parent=35 // pred_check
        %p4557 = pneg %p168
      $region42: #{unet_up_forward.8} parent=35 // pred_check_branch
        %4559 = sbr.rel (%p4557) target = $region44
      $region43: #{unet_up_forward.8} parent=35 // pred_region
        _
      $region44: #{unet_up_forward.8} parent=35 // pred_fallthru
        _
    $region36: #{unet_up_forward.8} parent=5 // pred_fallthru
      _
    %p4560 = scmp.le.s32.totalorder 2, %s12
    // Predicated region
    $region45: #{unet_up_forward.8} parent=5 // pred_check
      %p4561 = pneg %p4560
    $region46: #{unet_up_forward.8} parent=5 // pred_check_branch
      %4563 = sbr.rel (%p4561) target = $region48
    $region47: #{unet_up_forward.8} parent=5 // pred_region
      %s4564 = ssub.s32 %s12, 2
      // Predicated region
      $region49: #{unet_up_forward.8} parent=47 // pred_check
        %p4565 = pneg %p146
      $region50: #{unet_up_forward.8} parent=47 // pred_check_branch
        %4567 = sbr.rel (%p4565) target = $region52
      $region51: #{unet_up_forward.8} parent=47 // pred_region
        %s4568 = smul.u32 8, %s24
        %p4569 = scmp.lt.s32.totalorder %s23, 1
        %s4570 = scalar_select %p4569, %s23, 1
        %p4571 = scmp.lt.s32.totalorder %s4568, 31
        %s4572 = scalar_select %p4571, %s4568, 31
        %s4573 = smul.addr %s4572, 4
        %s4574 = smul.addr %s4570, 128
        %s4575 = sadd.s32 %s4573, %s4574
        %s4576 = smul.addr %s4575, 8
        %s4577 = scalar_lea.vmem %s4, %s4576
      $region52: #{unet_up_forward.8} parent=47 // pred_fallthru
        _
      // Predicated region
      $region53: #{unet_up_forward.8} parent=47 // pred_check
        %p4578 = pneg %p174
      $region54: #{unet_up_forward.8} parent=47 // pred_check_branch
        %4580 = sbr.rel (%p4578) target = $region56
      $region55: #{unet_up_forward.8} parent=47 // pred_region
        %p4581 = scmp.lt.s32.totalorder %s23, 1
        %s4582 = scalar_select %p4581, %s23, 1
        %p4583 = scmp.lt.s32.totalorder %s24, 3
        %s4584 = scalar_select %p4583, %s24, 3
        %s4585 = smul.addr %s4582, 4
        %s4586 = sadd.s32 %s4584, %s4585
        %s4587 = smul.addr %s4586, 2
        %s4588 = scalar_lea.vmem %s5, %s4587
      $region56: #{unet_up_forward.8} parent=47 // pred_fallthru
        _
    $region48: #{unet_up_forward.8} parent=5 // pred_fallthru
      _
  $region6: #{unet_up_forward.8} parent=0 // loop_footer
    %s16 = sadd.s32 1, %s12
  $region7: #{unet_up_forward.8} parent=0 // loop_footer_branch
    %11 = sbr.rel target = $region3
  $region8: #{unet_up_forward.8} parent=0 // loop_exit
    _

</llo_original>
